<compile_context>
chip_gen: v5e
topology: v5e:2x2
jax: 0.10.0
libtpu: 0.0.40
codegen_flags: <defaults>
</compile_context>

<pallas_src>
import functools

import jax
import jax.numpy as jnp
import numpy as np
from jax.experimental import pallas as pl
from jax.experimental.pallas import tpu as pltpu

LN_EPS = 1e-5  # PyTorch nn.LayerNorm default

# indices into the packed attention-weight slabs
_TIME, _SEND, _RECV, _CROSS = 0, 1, 2, 3
# indices into the packed LayerNorm slabs
_N1, _N2, _N3, _N4, _D1, _D2 = 0, 1, 2, 3, 4, 5


# ----------------------------------------------------------------------------
# In-kernel helpers (operate on values already loaded from refs)
# ----------------------------------------------------------------------------
def _layernorm(z, gamma, beta):
    """LayerNorm with biased variance, eps=1e-5 (PyTorch semantics)."""
    mean = jnp.mean(z, axis=-1, keepdims=True)
    zc = z - mean
    var = jnp.mean(zc * zc, axis=-1, keepdims=True)
    return zc * jax.lax.rsqrt(var + LN_EPS) * gamma + beta


def _gelu_tanh(x):
    # TODO(synk): PyTorch nn.GELU defaults to exact erf; tanh approximation is
    # used here to keep the transcendental on the EUP (deviation ~1e-3).
    c = 0.7978845608028654  # sqrt(2/pi)
    return 0.5 * x * (1.0 + jnp.tanh(c * (x + 0.044715 * x * x * x)))


def _mlp(x, w1, b1, w2, b2):
    """Linear -> GELU -> Linear, fully fused (hidden never leaves vregs)."""
    h = jnp.dot(x.astype(jnp.bfloat16), w1, preferred_element_type=jnp.float32) + b1
    h = _gelu_tanh(h)
    return jnp.dot(h.astype(jnp.bfloat16), w2, preferred_element_type=jnp.float32) + b2


def _masked_mha(xq, xkv, bias_mask, wq, bq, wk, bk, wv, bv, wo, bo, *, num_heads):
    """Dense multi-head attention; group structure enforced by an additive mask.

    xq: (Nq, D), xkv: (Nk, D), bias_mask: (Nq, Nk) with 0.0 on allowed pairs and
    -1e30 on pairs from different groups.  One (Nq, Nk) matmul pair per head
    replaces the per-group / per-segment unrolled attention.  Returns (Nq, D) f32.
    """
    Nq, D = xq.shape
    E = D // num_heads
    scale = 1.0 / float(E) ** 0.5
    q = jnp.dot(xq.astype(jnp.bfloat16), wq, preferred_element_type=jnp.float32) + bq
    k = jnp.dot(xkv.astype(jnp.bfloat16), wk, preferred_element_type=jnp.float32) + bk
    v = jnp.dot(xkv.astype(jnp.bfloat16), wv, preferred_element_type=jnp.float32) + bv
    qb = q.astype(jnp.bfloat16)
    kb = k.astype(jnp.bfloat16)
    vb = v.astype(jnp.bfloat16)
    acc = jnp.zeros((Nq, D), jnp.float32)
    # Static unroll over heads only (H=4); every group/segment rides the dense
    # masked matmul, so there is no per-segment instruction blow-up.
    for h in range(num_heads):
        sl = slice(h * E, (h + 1) * E)
        s = jax.lax.dot_general(qb[:, sl], kb[:, sl], (((1,), (1,)), ((), ())),
                                preferred_element_type=jnp.float32) * scale
        s = s + bias_mask
        s = s - jnp.max(s, axis=-1, keepdims=True)
        p = jnp.exp(s)
        p = p * pl.reciprocal(jnp.sum(p, axis=-1, keepdims=True), approx=True)
        o = jnp.dot(p.astype(jnp.bfloat16), vb[:, sl],
                    preferred_element_type=jnp.float32)                   # (Nq, E)
        # fused per-head slice of the output projection (== concat-heads @ wo)
        acc = acc + jnp.dot(o.astype(jnp.bfloat16), wo[sl, :],
                            preferred_element_type=jnp.float32)
    return acc + bo


# ----------------------------------------------------------------------------
# Fused kernel: whole DecoderLayer forward for one batch element
# ----------------------------------------------------------------------------
def _decoder_layer_kernel(x_ref, mem_ref, router_ref,
                          mt_ref, ms_ref, mr_ref, mc_ref,
                          wq_ref, bq_ref, wk_ref, bk_ref,
                          wv_ref, bv_ref, wo_ref, bo_ref,
                          mw1_ref, mb1_ref, mw2_ref, mb2_ref,
                          lg_ref, lb_ref, pw_ref, pb_ref,
                          dec_ref, pred_ref, *, num_heads):
    x = x_ref[0]                # (R, D)   R = ts_d*seg rows in (t, g) order
    mem = mem_ref[0]            # (Rm, D)  Rm = ts_d*in_seg
    router = router_ref[...]    # (seg*factor, D)

    def attn(layer, q_in, kv_in, mask):
        return _masked_mha(q_in, kv_in, mask,
                           wq_ref[layer], bq_ref[layer],
                           wk_ref[layer], bk_ref[layer],
                           wv_ref[layer], bv_ref[layer],
                           wo_ref[layer], bo_ref[layer],
                           num_heads=num_heads)

    def add_ln(idx, a, b):
        return _layernorm(a + b, lg_ref[idx], lb_ref[idx])

    def mlp(idx, h):
        return _mlp(h, mw1_ref[idx], mb1_ref[idx], mw2_ref[idx], mb2_ref[idx])

    # --- TwoStageAttentionLayer, stage 1: time attention within each data dim
    h = add_ln(_N1, x, attn(_TIME, x, x, mt_ref[...]))
    h = add_ln(_N2, h, mlp(0, h))

    # --- stage 2: router-mediated cross-dimension attention (sender/receiver)
    buf = attn(_SEND, router, h, ms_ref[...])   # dim_sender(router, dim_send, dim_send)
    recv = attn(_RECV, h, buf, mr_ref[...])     # dim_receiver(dim_send, buffer, buffer)
    h = add_ln(_N3, h, recv)
    h = add_ln(_N4, h, mlp(1, h))

    # --- DecoderLayer: cross attention vs. encoder memory + norms + predict
    xd = attn(_CROSS, h, mem, mc_ref[...])
    y = add_ln(_D1, h, xd)          # y = x = norm_1(x + cross)
    dec = add_ln(_D2, y, y)         # dec_out = norm_2(y + x), with x == y
    dec_ref[0] = dec
    pred = jnp.dot(dec.astype(jnp.bfloat16), pw_ref[...],
                   preferred_element_type=jnp.float32) + pb_ref[...]
    pred_ref[0] = pred


# ----------------------------------------------------------------------------
# Host-side helpers
# ----------------------------------------------------------------------------
def _group_bias_masks(ts_d, seg, factor, in_seg):
    """Additive masks (0 = attend, -1e30 = blocked) encoding the group structure."""
    r_x = np.arange(ts_d * seg)
    r_r = np.arange(seg * factor)
    r_m = np.arange(ts_d * in_seg)
    t_x, g_x = r_x // seg, r_x % seg     # series-dim id / segment id of x rows
    g_r = r_r // factor                  # segment id of router/buffer rows
    t_m = r_m // in_seg                  # series-dim id of memory rows

    def mk(a, c):
        return jnp.asarray(np.where(a[:, None] == c[None, :], 0.0, -1e30)
                           .astype(np.float32))

    return mk(t_x, t_x), mk(g_r, g_x), mk(g_x, g_r), mk(t_x, t_m)


def decoder_layer_forward(x, memory, params, *, num_heads):
    b, ts_d, seg, D = x.shape
    in_seg = memory.shape[2]
    factor = params["router"].shape[1]
    seg_len = params["pred_w"].shape[1]
    R, Rm, Fr = ts_d * seg, ts_d * in_seg, seg * factor

    # Free host-side reshapes; the kernel only sees flat (rows, D) slabs.
    x2 = x.reshape(b, R, D)
    mem2 = memory.reshape(b, Rm, D)
    router2 = params["router"].reshape(Fr, D)
    mt, ms, mr, mc = _group_bias_masks(ts_d, seg, factor, in_seg)

    args = (x2, mem2, router2, mt, ms, mr, mc,
            params["attn_wq"], params["attn_bq"], params["attn_wk"], params["attn_bk"],
            params["attn_wv"], params["attn_bv"], params["attn_wo"], params["attn_bo"],
            params["mlp_w1"], params["mlp_b1"], params["mlp_w2"], params["mlp_b2"],
            params["ln_g"], params["ln_b"], params["pred_w"], params["pred_b"])

    def batch_spec(shape):
        nd = len(shape)
        return pl.BlockSpec((1,) + shape, lambda i, _nd=nd: (i,) + (0,) * _nd)

    def full_spec(a):
        nd = a.ndim
        return pl.BlockSpec(a.shape, lambda i, _nd=nd: (0,) * _nd)

    dec2, pred2 = pl.pallas_call(
        functools.partial(_decoder_layer_kernel, num_heads=num_heads),
        out_shape=(jax.ShapeDtypeStruct((b, R, D), jnp.float32),
                   jax.ShapeDtypeStruct((b, R, seg_len), jnp.float32)),
        grid=(b,),
        in_specs=[batch_spec((R, D)), batch_spec((Rm, D))]
                 + [full_spec(a) for a in args[2:]],
        out_specs=(batch_spec((R, D)), batch_spec((R, seg_len))),
        compiler_params=pltpu.CompilerParams(dimension_semantics=("parallel",)),
    )(*args)

    dec_out = dec2.reshape(b, ts_d, seg, D)
    layer_predict = pred2.reshape(b, ts_d * seg, seg_len)
    return dec_out, layer_predict


# ----------------------------------------------------------------------------
# Deterministic synthetic parameters (weights bf16, biases/norm params f32),
# packed into stacked slabs: attention layer order [time, sender, receiver,
# cross], MLP order [mlp1, mlp2], LayerNorm order [n1, n2, n3, n4, dec_norm_1,
# dec_norm_2].
# ----------------------------------------------------------------------------
def init_params(key, *, model_dim, ff_dim, seg_len, out_seg_num, factor):
    D, F = model_dim, ff_dim
    ks = jax.random.split(key, 43)

    def w(k, shape, scale=0.05):
        return (jax.random.normal(k, shape, jnp.float32) * scale).astype(jnp.bfloat16)

    def bias(k, n, scale=0.02):
        return jax.random.normal(k, (1, n), jnp.float32) * scale

    attn_wq = jnp.stack([w(ks[0 + i], (D, D)) for i in range(4)])
    attn_bq = jnp.stack([bias(ks[4 + i], D) for i in range(4)])
    attn_wk = jnp.stack([w(ks[8 + i], (D, D)) for i in range(4)])
    attn_bk = jnp.stack([bias(ks[12 + i], D) for i in range(4)])
    attn_wv = jnp.stack([w(ks[16 + i], (D, D)) for i in range(4)])
    attn_bv = jnp.stack([bias(ks[20 + i], D) for i in range(4)])
    attn_wo = jnp.stack([w(ks[24 + i], (D, D)) for i in range(4)])
    attn_bo = jnp.stack([bias(ks[28 + i], D) for i in range(4)])
    mlp_w1 = jnp.stack([w(ks[32 + i], (D, F)) for i in range(2)])
    mlp_b1 = jnp.stack([bias(ks[34 + i], F) for i in range(2)])
    mlp_w2 = jnp.stack([w(ks[36 + i], (F, D)) for i in range(2)])
    mlp_b2 = jnp.stack([bias(ks[38 + i], D) for i in range(2)])
    router = jax.random.normal(ks[40], (out_seg_num, factor, D), jnp.float32)
    pred_w = w(ks[41], (D, seg_len))
    pred_b = bias(ks[42], seg_len)
    ln_g = jnp.ones((6, 1, D), jnp.float32)
    ln_b = jnp.zeros((6, 1, D), jnp.float32)
    return dict(attn_wq=attn_wq, attn_bq=attn_bq, attn_wk=attn_wk, attn_bk=attn_bk,
                attn_wv=attn_wv, attn_bv=attn_bv, attn_wo=attn_wo, attn_bo=attn_bo,
                mlp_w1=mlp_w1, mlp_b1=mlp_b1, mlp_w2=mlp_w2, mlp_b2=mlp_b2,
                ln_g=ln_g, ln_b=ln_b, router=router, pred_w=pred_w, pred_b=pred_b)


# ----------------------------------------------------------------------------
# Pure-JAX reference (same math in f32, exact softmax divide) for a sanity check
# ----------------------------------------------------------------------------
def reference_forward(x, memory, params, *, num_heads):
    b, ts_d, seg, D = x.shape
    in_seg = memory.shape[2]
    factor = params["router"].shape[1]
    R, Rm, Fr = ts_d * seg, ts_d * in_seg, seg * factor
    mt, ms, mr, mc = _group_bias_masks(ts_d, seg, factor, in_seg)
    router = params["router"].reshape(Fr, D).astype(jnp.float32)
    f32 = lambda a: a.astype(jnp.float32)
    E = D // num_heads

    def mha(layer, q_in, kv_in, mask):
        q = q_in @ f32(params["attn_wq"][layer]) + params["attn_bq"][layer]
        k = kv_in @ f32(params["attn_wk"][layer]) + params["attn_bk"][layer]
        v = kv_in @ f32(params["attn_wv"][layer]) + params["attn_bv"][layer]
        outs = []
        for h in range(num_heads):
            sl = slice(h * E, (h + 1) * E)
            s = q[:, sl] @ k[:, sl].T / np.sqrt(E) + mask
            outs.append(jax.nn.softmax(s, axis=-1) @ v[:, sl])
        o = jnp.concatenate(outs, axis=-1)
        return o @ f32(params["attn_wo"][layer]) + params["attn_bo"][layer]

    def ln(idx, z):
        mean = jnp.mean(z, -1, keepdims=True)
        var = jnp.mean((z - mean) ** 2, -1, keepdims=True)
        return (z - mean) * jax.lax.rsqrt(var + LN_EPS) * params["ln_g"][idx] + params["ln_b"][idx]

    def mlp(idx, h):
        a = h @ f32(params["mlp_w1"][idx]) + params["mlp_b1"][idx]
        return _gelu_tanh(a) @ f32(params["mlp_w2"][idx]) + params["mlp_b2"][idx]

    decs, preds = [], []
    for bi in range(b):
        xb = x[bi].reshape(R, D)
        mb = memory[bi].reshape(Rm, D)
        h = ln(_N1, xb + mha(_TIME, xb, xb, mt))
        h = ln(_N2, h + mlp(0, h))
        buf = mha(_SEND, router, h, ms)
        h = ln(_N3, h + mha(_RECV, h, buf, mr))
        h = ln(_N4, h + mlp(1, h))
        y = ln(_D1, h + mha(_CROSS, h, mb, mc))
        dec = ln(_D2, y + y)
        decs.append(dec)
        preds.append(dec @ f32(params["pred_w"]) + params["pred_b"])
    dec_out = jnp.stack(decs).reshape(b, ts_d, seg, D)
    layer_predict = jnp.stack(preds).reshape(b, ts_d * seg, -1)
    return dec_out, layer_predict


# ----------------------------------------------------------------------------
if __name__ == "__main__":
    batch, data_dim = 2, 3
    out_seg_num, in_seg_num = 8, 16
    model_dim, heads_num = 32, 4
    seg_len, factor = 16, 4
    ff_dim = 4 * model_dim  # feedforward_dim=None -> 4 * model_dim

    key = jax.random.PRNGKey(0)
    k_x, k_mem, k_par = jax.random.split(key, 3)
    x = jax.random.normal(k_x, (batch, data_dim, out_seg_num, model_dim), jnp.float32)
    memory = jax.random.normal(k_mem, (batch, data_dim, in_seg_num, model_dim), jnp.float32)

    params = init_params(k_par, model_dim=model_dim, ff_dim=ff_dim, seg_len=seg_len,
                         out_seg_num=out_seg_num, factor=factor)

    fwd = jax.jit(functools.partial(decoder_layer_forward, num_heads=heads_num))
    dec_out, layer_predict = fwd(x, memory, params)
    jax.block_until_ready((dec_out, layer_predict))

    assert dec_out.shape == (batch, data_dim, out_seg_num, model_dim)
    assert layer_predict.shape == (batch, data_dim * out_seg_num, seg_len)
    assert bool(jnp.all(jnp.isfinite(dec_out)))
    assert bool(jnp.all(jnp.isfinite(layer_predict)))

    # Numeric sanity check vs. pure-JAX reference (differences come only from
    # bf16 MXU feeds and the approx softmax reciprocal).
    dec_expect, pred_expect = reference_forward(x, memory, params, num_heads=heads_num)
    derr = float(jnp.max(jnp.abs(dec_out - dec_expect)))
    perr = float(jnp.max(jnp.abs(layer_predict - pred_expect)))
    assert derr < 0.3 and perr < 0.3, (derr, perr)

    print("KERNEL_OK")
</pallas_src>

<mosaic_0001>
module attributes {stable_mosaic.version = 11 : i64} {
  func.func @_decoder_layer_kernel(%arg0: i32, %arg1: memref<1x24x32xf32, #tpu.memory_space<vmem>>, %arg2: memref<1x48x32xf32, #tpu.memory_space<vmem>>, %arg3: memref<32x32xf32, #tpu.memory_space<vmem>>, %arg4: memref<24x24xf32, #tpu.memory_space<vmem>>, %arg5: memref<32x24xf32, #tpu.memory_space<vmem>>, %arg6: memref<24x32xf32, #tpu.memory_space<vmem>>, %arg7: memref<24x48xf32, #tpu.memory_space<vmem>>, %arg8: memref<4x32x32xbf16, #tpu.memory_space<vmem>>, %arg9: memref<4x1x32xf32, #tpu.memory_space<vmem>>, %arg10: memref<4x32x32xbf16, #tpu.memory_space<vmem>>, %arg11: memref<4x1x32xf32, #tpu.memory_space<vmem>>, %arg12: memref<4x32x32xbf16, #tpu.memory_space<vmem>>, %arg13: memref<4x1x32xf32, #tpu.memory_space<vmem>>, %arg14: memref<4x32x32xbf16, #tpu.memory_space<vmem>>, %arg15: memref<4x1x32xf32, #tpu.memory_space<vmem>>, %arg16: memref<2x32x128xbf16, #tpu.memory_space<vmem>>, %arg17: memref<2x1x128xf32, #tpu.memory_space<vmem>>, %arg18: memref<2x128x32xbf16, #tpu.memory_space<vmem>>, %arg19: memref<2x1x32xf32, #tpu.memory_space<vmem>>, %arg20: memref<6x1x32xf32, #tpu.memory_space<vmem>>, %arg21: memref<6x1x32xf32, #tpu.memory_space<vmem>>, %arg22: memref<32x16xbf16, #tpu.memory_space<vmem>>, %arg23: memref<1x16xf32, #tpu.memory_space<vmem>>, %arg24: memref<1x24x32xf32, #tpu.memory_space<vmem>>, %arg25: memref<1x24x16xf32, #tpu.memory_space<vmem>>) attributes {dimension_semantics = [#tpu.dimension_semantics<parallel>], iteration_bounds = array<i64: 2>, scalar_prefetch = 0 : i64, scratch_operands = 0 : i64, tpu.core_type = #tpu.core_type<tc>, window_params = [{transform_indices = @transform_0, window_bounds = array<i64: 1, 24, 32>}, {transform_indices = @transform_1, window_bounds = array<i64: 1, 48, 32>}, {pipeline_mode = #tpu.pipeline_mode<synchronous>, transform_indices = @transform_2, window_bounds = array<i64: 32, 32>}, {pipeline_mode = #tpu.pipeline_mode<synchronous>, transform_indices = @transform_3, window_bounds = array<i64: 24, 24>}, {pipeline_mode = #tpu.pipeline_mode<synchronous>, transform_indices = @transform_4, window_bounds = array<i64: 32, 24>}, {pipeline_mode = #tpu.pipeline_mode<synchronous>, transform_indices = @transform_5, window_bounds = array<i64: 24, 32>}, {pipeline_mode = #tpu.pipeline_mode<synchronous>, transform_indices = @transform_6, window_bounds = array<i64: 24, 48>}, {pipeline_mode = #tpu.pipeline_mode<synchronous>, transform_indices = @transform_7, window_bounds = array<i64: 4, 32, 32>}, {pipeline_mode = #tpu.pipeline_mode<synchronous>, transform_indices = @transform_8, window_bounds = array<i64: 4, 1, 32>}, {pipeline_mode = #tpu.pipeline_mode<synchronous>, transform_indices = @transform_9, window_bounds = array<i64: 4, 32, 32>}, {pipeline_mode = #tpu.pipeline_mode<synchronous>, transform_indices = @transform_10, window_bounds = array<i64: 4, 1, 32>}, {pipeline_mode = #tpu.pipeline_mode<synchronous>, transform_indices = @transform_11, window_bounds = array<i64: 4, 32, 32>}, {pipeline_mode = #tpu.pipeline_mode<synchronous>, transform_indices = @transform_12, window_bounds = array<i64: 4, 1, 32>}, {pipeline_mode = #tpu.pipeline_mode<synchronous>, transform_indices = @transform_13, window_bounds = array<i64: 4, 32, 32>}, {pipeline_mode = #tpu.pipeline_mode<synchronous>, transform_indices = @transform_14, window_bounds = array<i64: 4, 1, 32>}, {pipeline_mode = #tpu.pipeline_mode<synchronous>, transform_indices = @transform_15, window_bounds = array<i64: 2, 32, 128>}, {pipeline_mode = #tpu.pipeline_mode<synchronous>, transform_indices = @transform_16, window_bounds = array<i64: 2, 1, 128>}, {pipeline_mode = #tpu.pipeline_mode<synchronous>, transform_indices = @transform_17, window_bounds = array<i64: 2, 128, 32>}, {pipeline_mode = #tpu.pipeline_mode<synchronous>, transform_indices = @transform_18, window_bounds = array<i64: 2, 1, 32>}, {pipeline_mode = #tpu.pipeline_mode<synchronous>, transform_indices = @transform_19, window_bounds = array<i64: 6, 1, 32>}, {pipeline_mode = #tpu.pipeline_mode<synchronous>, transform_indices = @transform_20, window_bounds = array<i64: 6, 1, 32>}, {pipeline_mode = #tpu.pipeline_mode<synchronous>, transform_indices = @transform_21, window_bounds = array<i64: 32, 16>}, {pipeline_mode = #tpu.pipeline_mode<synchronous>, transform_indices = @transform_22, window_bounds = array<i64: 1, 16>}, {transform_indices = @transform_23, window_bounds = array<i64: 1, 24, 32>}, {transform_indices = @transform_24, window_bounds = array<i64: 1, 24, 16>}]} {
    %c0 = arith.constant 0 : index
    %c0_0 = arith.constant 0 : index
    %c0_1 = arith.constant 0 : index
    %0 = vector.load %arg1[%c0, %c0_0, %c0_1] : memref<1x24x32xf32, #tpu.memory_space<vmem>>, vector<1x24x32xf32>
    %1 = vector.shape_cast %0 : vector<1x24x32xf32> to vector<24x32xf32>
    %c0_2 = arith.constant 0 : index
    %c0_3 = arith.constant 0 : index
    %c0_4 = arith.constant 0 : index
    %2 = vector.load %arg2[%c0_2, %c0_3, %c0_4] : memref<1x48x32xf32, #tpu.memory_space<vmem>>, vector<1x48x32xf32>
    %3 = vector.shape_cast %2 : vector<1x48x32xf32> to vector<48x32xf32>
    %c0_5 = arith.constant 0 : index
    %c0_6 = arith.constant 0 : index
    %4 = vector.load %arg3[%c0_5, %c0_6] : memref<32x32xf32, #tpu.memory_space<vmem>>, vector<32x32xf32>
    %c0_7 = arith.constant 0 : index
    %c0_8 = arith.constant 0 : index
    %5 = vector.load %arg4[%c0_7, %c0_8] : memref<24x24xf32, #tpu.memory_space<vmem>>, vector<24x24xf32>
    %c0_9 = arith.constant 0 : index
    %c0_10 = arith.constant 0 : index
    %c0_11 = arith.constant 0 : index
    %6 = vector.load %arg8[%c0_9, %c0_10, %c0_11] : memref<4x32x32xbf16, #tpu.memory_space<vmem>>, vector<1x32x32xbf16>
    %7 = vector.shape_cast %6 : vector<1x32x32xbf16> to vector<32x32xbf16>
    %c0_12 = arith.constant 0 : index
    %c0_13 = arith.constant 0 : index
    %c0_14 = arith.constant 0 : index
    %8 = vector.load %arg9[%c0_12, %c0_13, %c0_14] : memref<4x1x32xf32, #tpu.memory_space<vmem>>, vector<1x1x32xf32>
    %9 = vector.shape_cast %8 : vector<1x1x32xf32> to vector<1x32xf32>
    %c0_15 = arith.constant 0 : index
    %c0_16 = arith.constant 0 : index
    %c0_17 = arith.constant 0 : index
    %10 = vector.load %arg10[%c0_15, %c0_16, %c0_17] : memref<4x32x32xbf16, #tpu.memory_space<vmem>>, vector<1x32x32xbf16>
    %11 = vector.shape_cast %10 : vector<1x32x32xbf16> to vector<32x32xbf16>
    %c0_18 = arith.constant 0 : index
    %c0_19 = arith.constant 0 : index
    %c0_20 = arith.constant 0 : index
    %12 = vector.load %arg11[%c0_18, %c0_19, %c0_20] : memref<4x1x32xf32, #tpu.memory_space<vmem>>, vector<1x1x32xf32>
    %13 = vector.shape_cast %12 : vector<1x1x32xf32> to vector<1x32xf32>
    %c0_21 = arith.constant 0 : index
    %c0_22 = arith.constant 0 : index
    %c0_23 = arith.constant 0 : index
    %14 = vector.load %arg12[%c0_21, %c0_22, %c0_23] : memref<4x32x32xbf16, #tpu.memory_space<vmem>>, vector<1x32x32xbf16>
    %15 = vector.shape_cast %14 : vector<1x32x32xbf16> to vector<32x32xbf16>
    %c0_24 = arith.constant 0 : index
    %c0_25 = arith.constant 0 : index
    %c0_26 = arith.constant 0 : index
    %16 = vector.load %arg13[%c0_24, %c0_25, %c0_26] : memref<4x1x32xf32, #tpu.memory_space<vmem>>, vector<1x1x32xf32>
    %17 = vector.shape_cast %16 : vector<1x1x32xf32> to vector<1x32xf32>
    %c0_27 = arith.constant 0 : index
    %c0_28 = arith.constant 0 : index
    %c0_29 = arith.constant 0 : index
    %18 = vector.load %arg14[%c0_27, %c0_28, %c0_29] : memref<4x32x32xbf16, #tpu.memory_space<vmem>>, vector<1x32x32xbf16>
    %19 = vector.shape_cast %18 : vector<1x32x32xbf16> to vector<32x32xbf16>
    %c0_30 = arith.constant 0 : index
    %c0_31 = arith.constant 0 : index
    %c0_32 = arith.constant 0 : index
    %20 = vector.load %arg15[%c0_30, %c0_31, %c0_32] : memref<4x1x32xf32, #tpu.memory_space<vmem>>, vector<1x1x32xf32>
    %21 = vector.shape_cast %20 : vector<1x1x32xf32> to vector<1x32xf32>
    %22 = arith.truncf %1 : vector<24x32xf32> to vector<24x32xbf16>
    %cst = arith.constant dense<0.000000e+00> : vector<24x32xf32>
    %23 = tpu.matmul %22, %7, %cst {dimension_numbers = #tpu.dot_dimension_numbers<[1], [0], [0], [1], [0, 0, 1, 1], [], []>} : vector<24x32xbf16>, vector<32x32xbf16>, vector<24x32xf32> -> vector<24x32xf32>
    %24 = vector.broadcast %9 : vector<1x32xf32> to vector<24x32xf32>
    %25 = arith.addf %23, %24 : vector<24x32xf32>
    %26 = arith.truncf %1 : vector<24x32xf32> to vector<24x32xbf16>
    %cst_33 = arith.constant dense<0.000000e+00> : vector<24x32xf32>
    %27 = tpu.matmul %26, %11, %cst_33 {dimension_numbers = #tpu.dot_dimension_numbers<[1], [0], [0], [1], [0, 0, 1, 1], [], []>} : vector<24x32xbf16>, vector<32x32xbf16>, vector<24x32xf32> -> vector<24x32xf32>
    %28 = vector.broadcast %13 : vector<1x32xf32> to vector<24x32xf32>
    %29 = arith.addf %27, %28 : vector<24x32xf32>
    %30 = arith.truncf %1 : vector<24x32xf32> to vector<24x32xbf16>
    %cst_34 = arith.constant dense<0.000000e+00> : vector<24x32xf32>
    %31 = tpu.matmul %30, %15, %cst_34 {dimension_numbers = #tpu.dot_dimension_numbers<[1], [0], [0], [1], [0, 0, 1, 1], [], []>} : vector<24x32xbf16>, vector<32x32xbf16>, vector<24x32xf32> -> vector<24x32xf32>
    %32 = vector.broadcast %17 : vector<1x32xf32> to vector<24x32xf32>
    %33 = arith.addf %31, %32 : vector<24x32xf32>
    %34 = arith.truncf %25 : vector<24x32xf32> to vector<24x32xbf16>
    %35 = arith.truncf %29 : vector<24x32xf32> to vector<24x32xbf16>
    %36 = arith.truncf %33 : vector<24x32xf32> to vector<24x32xbf16>
    %cst_35 = arith.constant 0.000000e+00 : f32
    %37 = vector.broadcast %cst_35 : f32 to vector<24x32xf32>
    %38 = vector.extract_strided_slice %34 {offsets = [0, 0], sizes = [24, 8], strides = [1, 1]} : vector<24x32xbf16> to vector<24x8xbf16>
    %39 = vector.extract_strided_slice %35 {offsets = [0, 0], sizes = [24, 8], strides = [1, 1]} : vector<24x32xbf16> to vector<24x8xbf16>
    %cst_36 = arith.constant dense<0.000000e+00> : vector<24x24xf32>
    %40 = tpu.matmul %38, %39, %cst_36 {dimension_numbers = #tpu.dot_dimension_numbers<[1], [1], [0], [0], [0, 0, 1, 0], [], []>} : vector<24x8xbf16>, vector<24x8xbf16>, vector<24x24xf32> -> vector<24x24xf32>
    %cst_37 = arith.constant 0.353553385 : f32
    %41 = vector.broadcast %cst_37 : f32 to vector<24x24xf32>
    %42 = arith.mulf %40, %41 : vector<24x24xf32>
    %43 = arith.addf %42, %5 : vector<24x24xf32>
    %cst_38 = arith.constant dense<0xFF800000> : vector<24xf32>
    %44 = vector.multi_reduction <maximumf>, %43, %cst_38 [1] : vector<24x24xf32> to vector<24xf32>
    %45 = vector.shape_cast %44 : vector<24xf32> to vector<24x1xf32>
    %46 = vector.broadcast %45 : vector<24x1xf32> to vector<24x24xf32>
    %47 = arith.subf %43, %46 : vector<24x24xf32>
    %48 = math.exp %47 : vector<24x24xf32>
    %cst_39 = arith.constant dense<0.000000e+00> : vector<24xf32>
    %49 = vector.multi_reduction <add>, %48, %cst_39 [1] : vector<24x24xf32> to vector<24xf32>
    %50 = vector.shape_cast %49 : vector<24xf32> to vector<24x1xf32>
    %51 = tpu.reciprocal %50 {approx = true} : vector<24x1xf32> -> vector<24x1xf32>
    %52 = vector.broadcast %51 : vector<24x1xf32> to vector<24x24xf32>
    %53 = arith.mulf %48, %52 : vector<24x24xf32>
    %54 = arith.truncf %53 : vector<24x24xf32> to vector<24x24xbf16>
    %55 = vector.extract_strided_slice %36 {offsets = [0, 0], sizes = [24, 8], strides = [1, 1]} : vector<24x32xbf16> to vector<24x8xbf16>
    %cst_40 = arith.constant dense<0.000000e+00> : vector<24x8xf32>
    %56 = tpu.matmul %54, %55, %cst_40 {dimension_numbers = #tpu.dot_dimension_numbers<[1], [0], [0], [1], [0, 0, 1, 1], [], []>} : vector<24x24xbf16>, vector<24x8xbf16>, vector<24x8xf32> -> vector<24x8xf32>
    %57 = arith.truncf %56 : vector<24x8xf32> to vector<24x8xbf16>
    %58 = vector.extract_strided_slice %19 {offsets = [0, 0], sizes = [8, 32], strides = [1, 1]} : vector<32x32xbf16> to vector<8x32xbf16>
    %cst_41 = arith.constant dense<0.000000e+00> : vector<24x32xf32>
    %59 = tpu.matmul %57, %58, %cst_41 {dimension_numbers = #tpu.dot_dimension_numbers<[1], [0], [0], [1], [0, 0, 1, 1], [], []>} : vector<24x8xbf16>, vector<8x32xbf16>, vector<24x32xf32> -> vector<24x32xf32>
    %60 = arith.addf %37, %59 : vector<24x32xf32>
    %61 = vector.extract_strided_slice %34 {offsets = [0, 8], sizes = [24, 8], strides = [1, 1]} : vector<24x32xbf16> to vector<24x8xbf16>
    %62 = vector.extract_strided_slice %35 {offsets = [0, 8], sizes = [24, 8], strides = [1, 1]} : vector<24x32xbf16> to vector<24x8xbf16>
    %cst_42 = arith.constant dense<0.000000e+00> : vector<24x24xf32>
    %63 = tpu.matmul %61, %62, %cst_42 {dimension_numbers = #tpu.dot_dimension_numbers<[1], [1], [0], [0], [0, 0, 1, 0], [], []>} : vector<24x8xbf16>, vector<24x8xbf16>, vector<24x24xf32> -> vector<24x24xf32>
    %cst_43 = arith.constant 0.353553385 : f32
    %64 = vector.broadcast %cst_43 : f32 to vector<24x24xf32>
    %65 = arith.mulf %63, %64 : vector<24x24xf32>
    %66 = arith.addf %65, %5 : vector<24x24xf32>
    %cst_44 = arith.constant dense<0xFF800000> : vector<24xf32>
    %67 = vector.multi_reduction <maximumf>, %66, %cst_44 [1] : vector<24x24xf32> to vector<24xf32>
    %68 = vector.shape_cast %67 : vector<24xf32> to vector<24x1xf32>
    %69 = vector.broadcast %68 : vector<24x1xf32> to vector<24x24xf32>
    %70 = arith.subf %66, %69 : vector<24x24xf32>
    %71 = math.exp %70 : vector<24x24xf32>
    %cst_45 = arith.constant dense<0.000000e+00> : vector<24xf32>
    %72 = vector.multi_reduction <add>, %71, %cst_45 [1] : vector<24x24xf32> to vector<24xf32>
    %73 = vector.shape_cast %72 : vector<24xf32> to vector<24x1xf32>
    %74 = tpu.reciprocal %73 {approx = true} : vector<24x1xf32> -> vector<24x1xf32>
    %75 = vector.broadcast %74 : vector<24x1xf32> to vector<24x24xf32>
    %76 = arith.mulf %71, %75 : vector<24x24xf32>
    %77 = arith.truncf %76 : vector<24x24xf32> to vector<24x24xbf16>
    %78 = vector.extract_strided_slice %36 {offsets = [0, 8], sizes = [24, 8], strides = [1, 1]} : vector<24x32xbf16> to vector<24x8xbf16>
    %cst_46 = arith.constant dense<0.000000e+00> : vector<24x8xf32>
    %79 = tpu.matmul %77, %78, %cst_46 {dimension_numbers = #tpu.dot_dimension_numbers<[1], [0], [0], [1], [0, 0, 1, 1], [], []>} : vector<24x24xbf16>, vector<24x8xbf16>, vector<24x8xf32> -> vector<24x8xf32>
    %80 = arith.truncf %79 : vector<24x8xf32> to vector<24x8xbf16>
    %81 = vector.extract_strided_slice %19 {offsets = [8, 0], sizes = [8, 32], strides = [1, 1]} : vector<32x32xbf16> to vector<8x32xbf16>
    %cst_47 = arith.constant dense<0.000000e+00> : vector<24x32xf32>
    %82 = tpu.matmul %80, %81, %cst_47 {dimension_numbers = #tpu.dot_dimension_numbers<[1], [0], [0], [1], [0, 0, 1, 1], [], []>} : vector<24x8xbf16>, vector<8x32xbf16>, vector<24x32xf32> -> vector<24x32xf32>
    %83 = arith.addf %60, %82 : vector<24x32xf32>
    %84 = vector.extract_strided_slice %34 {offsets = [0, 16], sizes = [24, 8], strides = [1, 1]} : vector<24x32xbf16> to vector<24x8xbf16>
    %85 = vector.extract_strided_slice %35 {offsets = [0, 16], sizes = [24, 8], strides = [1, 1]} : vector<24x32xbf16> to vector<24x8xbf16>
    %cst_48 = arith.constant dense<0.000000e+00> : vector<24x24xf32>
    %86 = tpu.matmul %84, %85, %cst_48 {dimension_numbers = #tpu.dot_dimension_numbers<[1], [1], [0], [0], [0, 0, 1, 0], [], []>} : vector<24x8xbf16>, vector<24x8xbf16>, vector<24x24xf32> -> vector<24x24xf32>
    %cst_49 = arith.constant 0.353553385 : f32
    %87 = vector.broadcast %cst_49 : f32 to vector<24x24xf32>
    %88 = arith.mulf %86, %87 : vector<24x24xf32>
    %89 = arith.addf %88, %5 : vector<24x24xf32>
    %cst_50 = arith.constant dense<0xFF800000> : vector<24xf32>
    %90 = vector.multi_reduction <maximumf>, %89, %cst_50 [1] : vector<24x24xf32> to vector<24xf32>
    %91 = vector.shape_cast %90 : vector<24xf32> to vector<24x1xf32>
    %92 = vector.broadcast %91 : vector<24x1xf32> to vector<24x24xf32>
    %93 = arith.subf %89, %92 : vector<24x24xf32>
    %94 = math.exp %93 : vector<24x24xf32>
    %cst_51 = arith.constant dense<0.000000e+00> : vector<24xf32>
    %95 = vector.multi_reduction <add>, %94, %cst_51 [1] : vector<24x24xf32> to vector<24xf32>
    %96 = vector.shape_cast %95 : vector<24xf32> to vector<24x1xf32>
    %97 = tpu.reciprocal %96 {approx = true} : vector<24x1xf32> -> vector<24x1xf32>
    %98 = vector.broadcast %97 : vector<24x1xf32> to vector<24x24xf32>
    %99 = arith.mulf %94, %98 : vector<24x24xf32>
    %100 = arith.truncf %99 : vector<24x24xf32> to vector<24x24xbf16>
    %101 = vector.extract_strided_slice %36 {offsets = [0, 16], sizes = [24, 8], strides = [1, 1]} : vector<24x32xbf16> to vector<24x8xbf16>
    %cst_52 = arith.constant dense<0.000000e+00> : vector<24x8xf32>
    %102 = tpu.matmul %100, %101, %cst_52 {dimension_numbers = #tpu.dot_dimension_numbers<[1], [0], [0], [1], [0, 0, 1, 1], [], []>} : vector<24x24xbf16>, vector<24x8xbf16>, vector<24x8xf32> -> vector<24x8xf32>
    %103 = arith.truncf %102 : vector<24x8xf32> to vector<24x8xbf16>
    %104 = vector.extract_strided_slice %19 {offsets = [16, 0], sizes = [8, 32], strides = [1, 1]} : vector<32x32xbf16> to vector<8x32xbf16>
    %cst_53 = arith.constant dense<0.000000e+00> : vector<24x32xf32>
    %105 = tpu.matmul %103, %104, %cst_53 {dimension_numbers = #tpu.dot_dimension_numbers<[1], [0], [0], [1], [0, 0, 1, 1], [], []>} : vector<24x8xbf16>, vector<8x32xbf16>, vector<24x32xf32> -> vector<24x32xf32>
    %106 = arith.addf %83, %105 : vector<24x32xf32>
    %107 = vector.extract_strided_slice %34 {offsets = [0, 24], sizes = [24, 8], strides = [1, 1]} : vector<24x32xbf16> to vector<24x8xbf16>
    %108 = vector.extract_strided_slice %35 {offsets = [0, 24], sizes = [24, 8], strides = [1, 1]} : vector<24x32xbf16> to vector<24x8xbf16>
    %cst_54 = arith.constant dense<0.000000e+00> : vector<24x24xf32>
    %109 = tpu.matmul %107, %108, %cst_54 {dimension_numbers = #tpu.dot_dimension_numbers<[1], [1], [0], [0], [0, 0, 1, 0], [], []>} : vector<24x8xbf16>, vector<24x8xbf16>, vector<24x24xf32> -> vector<24x24xf32>
    %cst_55 = arith.constant 0.353553385 : f32
    %110 = vector.broadcast %cst_55 : f32 to vector<24x24xf32>
    %111 = arith.mulf %109, %110 : vector<24x24xf32>
    %112 = arith.addf %111, %5 : vector<24x24xf32>
    %cst_56 = arith.constant dense<0xFF800000> : vector<24xf32>
    %113 = vector.multi_reduction <maximumf>, %112, %cst_56 [1] : vector<24x24xf32> to vector<24xf32>
    %114 = vector.shape_cast %113 : vector<24xf32> to vector<24x1xf32>
    %115 = vector.broadcast %114 : vector<24x1xf32> to vector<24x24xf32>
    %116 = arith.subf %112, %115 : vector<24x24xf32>
    %117 = math.exp %116 : vector<24x24xf32>
    %cst_57 = arith.constant dense<0.000000e+00> : vector<24xf32>
    %118 = vector.multi_reduction <add>, %117, %cst_57 [1] : vector<24x24xf32> to vector<24xf32>
    %119 = vector.shape_cast %118 : vector<24xf32> to vector<24x1xf32>
    %120 = tpu.reciprocal %119 {approx = true} : vector<24x1xf32> -> vector<24x1xf32>
    %121 = vector.broadcast %120 : vector<24x1xf32> to vector<24x24xf32>
    %122 = arith.mulf %117, %121 : vector<24x24xf32>
    %123 = arith.truncf %122 : vector<24x24xf32> to vector<24x24xbf16>
    %124 = vector.extract_strided_slice %36 {offsets = [0, 24], sizes = [24, 8], strides = [1, 1]} : vector<24x32xbf16> to vector<24x8xbf16>
    %cst_58 = arith.constant dense<0.000000e+00> : vector<24x8xf32>
    %125 = tpu.matmul %123, %124, %cst_58 {dimension_numbers = #tpu.dot_dimension_numbers<[1], [0], [0], [1], [0, 0, 1, 1], [], []>} : vector<24x24xbf16>, vector<24x8xbf16>, vector<24x8xf32> -> vector<24x8xf32>
    %126 = arith.truncf %125 : vector<24x8xf32> to vector<24x8xbf16>
    %127 = vector.extract_strided_slice %19 {offsets = [24, 0], sizes = [8, 32], strides = [1, 1]} : vector<32x32xbf16> to vector<8x32xbf16>
    %cst_59 = arith.constant dense<0.000000e+00> : vector<24x32xf32>
    %128 = tpu.matmul %126, %127, %cst_59 {dimension_numbers = #tpu.dot_dimension_numbers<[1], [0], [0], [1], [0, 0, 1, 1], [], []>} : vector<24x8xbf16>, vector<8x32xbf16>, vector<24x32xf32> -> vector<24x32xf32>
    %129 = arith.addf %106, %128 : vector<24x32xf32>
    %130 = vector.broadcast %21 : vector<1x32xf32> to vector<24x32xf32>
    %131 = arith.addf %129, %130 : vector<24x32xf32>
    %132 = arith.addf %1, %131 : vector<24x32xf32>
    %c0_60 = arith.constant 0 : index
    %c0_61 = arith.constant 0 : index
    %c0_62 = arith.constant 0 : index
    %133 = vector.load %arg20[%c0_60, %c0_61, %c0_62] : memref<6x1x32xf32, #tpu.memory_space<vmem>>, vector<1x1x32xf32>
    %134 = vector.shape_cast %133 : vector<1x1x32xf32> to vector<1x32xf32>
    %c0_63 = arith.constant 0 : index
    %c0_64 = arith.constant 0 : index
    %c0_65 = arith.constant 0 : index
    %135 = vector.load %arg21[%c0_63, %c0_64, %c0_65] : memref<6x1x32xf32, #tpu.memory_space<vmem>>, vector<1x1x32xf32>
    %136 = vector.shape_cast %135 : vector<1x1x32xf32> to vector<1x32xf32>
    %cst_66 = arith.constant dense<0.000000e+00> : vector<24xf32>
    %137 = vector.multi_reduction <add>, %132, %cst_66 [1] : vector<24x32xf32> to vector<24xf32>
    %138 = vector.shape_cast %137 : vector<24xf32> to vector<24x1xf32>
    %cst_67 = arith.constant 3.200000e+01 : f32
    %139 = vector.broadcast %cst_67 : f32 to vector<24x1xf32>
    %140 = arith.divf %138, %139 : vector<24x1xf32>
    %141 = vector.broadcast %140 : vector<24x1xf32> to vector<24x32xf32>
    %142 = arith.subf %132, %141 : vector<24x32xf32>
    %143 = arith.mulf %142, %142 : vector<24x32xf32>
    %cst_68 = arith.constant dense<0.000000e+00> : vector<24xf32>
    %144 = vector.multi_reduction <add>, %143, %cst_68 [1] : vector<24x32xf32> to vector<24xf32>
    %145 = vector.shape_cast %144 : vector<24xf32> to vector<24x1xf32>
    %cst_69 = arith.constant 3.200000e+01 : f32
    %146 = vector.broadcast %cst_69 : f32 to vector<24x1xf32>
    %147 = arith.divf %145, %146 : vector<24x1xf32>
    %cst_70 = arith.constant 9.99999974E-6 : f32
    %148 = vector.broadcast %cst_70 : f32 to vector<24x1xf32>
    %149 = arith.addf %147, %148 : vector<24x1xf32>
    %150 = math.rsqrt %149 : vector<24x1xf32>
    %151 = vector.broadcast %150 : vector<24x1xf32> to vector<24x32xf32>
    %152 = arith.mulf %142, %151 : vector<24x32xf32>
    %153 = vector.broadcast %134 : vector<1x32xf32> to vector<24x32xf32>
    %154 = arith.mulf %152, %153 : vector<24x32xf32>
    %155 = vector.broadcast %136 : vector<1x32xf32> to vector<24x32xf32>
    %156 = arith.addf %154, %155 : vector<24x32xf32>
    %c0_71 = arith.constant 0 : index
    %c0_72 = arith.constant 0 : index
    %c0_73 = arith.constant 0 : index
    %157 = vector.load %arg16[%c0_71, %c0_72, %c0_73] : memref<2x32x128xbf16, #tpu.memory_space<vmem>>, vector<1x32x128xbf16>
    %158 = vector.shape_cast %157 : vector<1x32x128xbf16> to vector<32x128xbf16>
    %c0_74 = arith.constant 0 : index
    %c0_75 = arith.constant 0 : index
    %c0_76 = arith.constant 0 : index
    %159 = vector.load %arg17[%c0_74, %c0_75, %c0_76] : memref<2x1x128xf32, #tpu.memory_space<vmem>>, vector<1x1x128xf32>
    %160 = vector.shape_cast %159 : vector<1x1x128xf32> to vector<1x128xf32>
    %c0_77 = arith.constant 0 : index
    %c0_78 = arith.constant 0 : index
    %c0_79 = arith.constant 0 : index
    %161 = vector.load %arg18[%c0_77, %c0_78, %c0_79] : memref<2x128x32xbf16, #tpu.memory_space<vmem>>, vector<1x128x32xbf16>
    %162 = vector.shape_cast %161 : vector<1x128x32xbf16> to vector<128x32xbf16>
    %c0_80 = arith.constant 0 : index
    %c0_81 = arith.constant 0 : index
    %c0_82 = arith.constant 0 : index
    %163 = vector.load %arg19[%c0_80, %c0_81, %c0_82] : memref<2x1x32xf32, #tpu.memory_space<vmem>>, vector<1x1x32xf32>
    %164 = vector.shape_cast %163 : vector<1x1x32xf32> to vector<1x32xf32>
    %165 = arith.truncf %156 : vector<24x32xf32> to vector<24x32xbf16>
    %cst_83 = arith.constant dense<0.000000e+00> : vector<24x128xf32>
    %166 = tpu.matmul %165, %158, %cst_83 {dimension_numbers = #tpu.dot_dimension_numbers<[1], [0], [0], [1], [0, 0, 1, 1], [], []>} : vector<24x32xbf16>, vector<32x128xbf16>, vector<24x128xf32> -> vector<24x128xf32>
    %167 = vector.broadcast %160 : vector<1x128xf32> to vector<24x128xf32>
    %168 = arith.addf %166, %167 : vector<24x128xf32>
    %cst_84 = arith.constant 5.000000e-01 : f32
    %169 = vector.broadcast %cst_84 : f32 to vector<24x128xf32>
    %170 = arith.mulf %169, %168 : vector<24x128xf32>
    %cst_85 = arith.constant 4.471500e-02 : f32
    %171 = vector.broadcast %cst_85 : f32 to vector<24x128xf32>
    %172 = arith.mulf %171, %168 : vector<24x128xf32>
    %173 = arith.mulf %172, %168 : vector<24x128xf32>
    %174 = arith.mulf %173, %168 : vector<24x128xf32>
    %175 = arith.addf %168, %174 : vector<24x128xf32>
    %cst_86 = arith.constant 0.797884583 : f32
    %176 = vector.broadcast %cst_86 : f32 to vector<24x128xf32>
    %177 = arith.mulf %176, %175 : vector<24x128xf32>
    %178 = math.tanh %177 : vector<24x128xf32>
    %cst_87 = arith.constant 1.000000e+00 : f32
    %179 = vector.broadcast %cst_87 : f32 to vector<24x128xf32>
    %180 = arith.addf %179, %178 : vector<24x128xf32>
    %181 = arith.mulf %170, %180 : vector<24x128xf32>
    %182 = arith.truncf %181 : vector<24x128xf32> to vector<24x128xbf16>
    %cst_88 = arith.constant dense<0.000000e+00> : vector<24x32xf32>
    %183 = tpu.matmul %182, %162, %cst_88 {dimension_numbers = #tpu.dot_dimension_numbers<[1], [0], [0], [1], [0, 0, 1, 1], [], []>} : vector<24x128xbf16>, vector<128x32xbf16>, vector<24x32xf32> -> vector<24x32xf32>
    %184 = vector.broadcast %164 : vector<1x32xf32> to vector<24x32xf32>
    %185 = arith.addf %183, %184 : vector<24x32xf32>
    %186 = arith.addf %156, %185 : vector<24x32xf32>
    %c1 = arith.constant 1 : index
    %c0_89 = arith.constant 0 : index
    %c0_90 = arith.constant 0 : index
    %187 = vector.load %arg20[%c1, %c0_89, %c0_90] : memref<6x1x32xf32, #tpu.memory_space<vmem>>, vector<1x1x32xf32>
    %188 = vector.shape_cast %187 : vector<1x1x32xf32> to vector<1x32xf32>
    %c1_91 = arith.constant 1 : index
    %c0_92 = arith.constant 0 : index
    %c0_93 = arith.constant 0 : index
    %189 = vector.load %arg21[%c1_91, %c0_92, %c0_93] : memref<6x1x32xf32, #tpu.memory_space<vmem>>, vector<1x1x32xf32>
    %190 = vector.shape_cast %189 : vector<1x1x32xf32> to vector<1x32xf32>
    %cst_94 = arith.constant dense<0.000000e+00> : vector<24xf32>
    %191 = vector.multi_reduction <add>, %186, %cst_94 [1] : vector<24x32xf32> to vector<24xf32>
    %192 = vector.shape_cast %191 : vector<24xf32> to vector<24x1xf32>
    %cst_95 = arith.constant 3.200000e+01 : f32
    %193 = vector.broadcast %cst_95 : f32 to vector<24x1xf32>
    %194 = arith.divf %192, %193 : vector<24x1xf32>
    %195 = vector.broadcast %194 : vector<24x1xf32> to vector<24x32xf32>
    %196 = arith.subf %186, %195 : vector<24x32xf32>
    %197 = arith.mulf %196, %196 : vector<24x32xf32>
    %cst_96 = arith.constant dense<0.000000e+00> : vector<24xf32>
    %198 = vector.multi_reduction <add>, %197, %cst_96 [1] : vector<24x32xf32> to vector<24xf32>
    %199 = vector.shape_cast %198 : vector<24xf32> to vector<24x1xf32>
    %cst_97 = arith.constant 3.200000e+01 : f32
    %200 = vector.broadcast %cst_97 : f32 to vector<24x1xf32>
    %201 = arith.divf %199, %200 : vector<24x1xf32>
    %cst_98 = arith.constant 9.99999974E-6 : f32
    %202 = vector.broadcast %cst_98 : f32 to vector<24x1xf32>
    %203 = arith.addf %201, %202 : vector<24x1xf32>
    %204 = math.rsqrt %203 : vector<24x1xf32>
    %205 = vector.broadcast %204 : vector<24x1xf32> to vector<24x32xf32>
    %206 = arith.mulf %196, %205 : vector<24x32xf32>
    %207 = vector.broadcast %188 : vector<1x32xf32> to vector<24x32xf32>
    %208 = arith.mulf %206, %207 : vector<24x32xf32>
    %209 = vector.broadcast %190 : vector<1x32xf32> to vector<24x32xf32>
    %210 = arith.addf %208, %209 : vector<24x32xf32>
    %c0_99 = arith.constant 0 : index
    %c0_100 = arith.constant 0 : index
    %211 = vector.load %arg5[%c0_99, %c0_100] : memref<32x24xf32, #tpu.memory_space<vmem>>, vector<32x24xf32>
    %c1_101 = arith.constant 1 : index
    %c0_102 = arith.constant 0 : index
    %c0_103 = arith.constant 0 : index
    %212 = vector.load %arg8[%c1_101, %c0_102, %c0_103] : memref<4x32x32xbf16, #tpu.memory_space<vmem>>, vector<1x32x32xbf16>
    %213 = vector.shape_cast %212 : vector<1x32x32xbf16> to vector<32x32xbf16>
    %c1_104 = arith.constant 1 : index
    %c0_105 = arith.constant 0 : index
    %c0_106 = arith.constant 0 : index
    %214 = vector.load %arg9[%c1_104, %c0_105, %c0_106] : memref<4x1x32xf32, #tpu.memory_space<vmem>>, vector<1x1x32xf32>
    %215 = vector.shape_cast %214 : vector<1x1x32xf32> to vector<1x32xf32>
    %c1_107 = arith.constant 1 : index
    %c0_108 = arith.constant 0 : index
    %c0_109 = arith.constant 0 : index
    %216 = vector.load %arg10[%c1_107, %c0_108, %c0_109] : memref<4x32x32xbf16, #tpu.memory_space<vmem>>, vector<1x32x32xbf16>
    %217 = vector.shape_cast %216 : vector<1x32x32xbf16> to vector<32x32xbf16>
    %c1_110 = arith.constant 1 : index
    %c0_111 = arith.constant 0 : index
    %c0_112 = arith.constant 0 : index
    %218 = vector.load %arg11[%c1_110, %c0_111, %c0_112] : memref<4x1x32xf32, #tpu.memory_space<vmem>>, vector<1x1x32xf32>
    %219 = vector.shape_cast %218 : vector<1x1x32xf32> to vector<1x32xf32>
    %c1_113 = arith.constant 1 : index
    %c0_114 = arith.constant 0 : index
    %c0_115 = arith.constant 0 : index
    %220 = vector.load %arg12[%c1_113, %c0_114, %c0_115] : memref<4x32x32xbf16, #tpu.memory_space<vmem>>, vector<1x32x32xbf16>
    %221 = vector.shape_cast %220 : vector<1x32x32xbf16> to vector<32x32xbf16>
    %c1_116 = arith.constant 1 : index
    %c0_117 = arith.constant 0 : index
    %c0_118 = arith.constant 0 : index
    %222 = vector.load %arg13[%c1_116, %c0_117, %c0_118] : memref<4x1x32xf32, #tpu.memory_space<vmem>>, vector<1x1x32xf32>
    %223 = vector.shape_cast %222 : vector<1x1x32xf32> to vector<1x32xf32>
    %c1_119 = arith.constant 1 : index
    %c0_120 = arith.constant 0 : index
    %c0_121 = arith.constant 0 : index
    %224 = vector.load %arg14[%c1_119, %c0_120, %c0_121] : memref<4x32x32xbf16, #tpu.memory_space<vmem>>, vector<1x32x32xbf16>
    %225 = vector.shape_cast %224 : vector<1x32x32xbf16> to vector<32x32xbf16>
    %c1_122 = arith.constant 1 : index
    %c0_123 = arith.constant 0 : index
    %c0_124 = arith.constant 0 : index
    %226 = vector.load %arg15[%c1_122, %c0_123, %c0_124] : memref<4x1x32xf32, #tpu.memory_space<vmem>>, vector<1x1x32xf32>
    %227 = vector.shape_cast %226 : vector<1x1x32xf32> to vector<1x32xf32>
    %228 = arith.truncf %4 : vector<32x32xf32> to vector<32x32xbf16>
    %cst_125 = arith.constant dense<0.000000e+00> : vector<32x32xf32>
    %229 = tpu.matmul %228, %213, %cst_125 {dimension_numbers = #tpu.dot_dimension_numbers<[1], [0], [0], [1], [0, 0, 1, 1], [], []>} : vector<32x32xbf16>, vector<32x32xbf16>, vector<32x32xf32> -> vector<32x32xf32>
    %230 = vector.broadcast %215 : vector<1x32xf32> to vector<32x32xf32>
    %231 = arith.addf %229, %230 : vector<32x32xf32>
    %232 = arith.truncf %210 : vector<24x32xf32> to vector<24x32xbf16>
    %cst_126 = arith.constant dense<0.000000e+00> : vector<24x32xf32>
    %233 = tpu.matmul %232, %217, %cst_126 {dimension_numbers = #tpu.dot_dimension_numbers<[1], [0], [0], [1], [0, 0, 1, 1], [], []>} : vector<24x32xbf16>, vector<32x32xbf16>, vector<24x32xf32> -> vector<24x32xf32>
    %234 = vector.broadcast %219 : vector<1x32xf32> to vector<24x32xf32>
    %235 = arith.addf %233, %234 : vector<24x32xf32>
    %236 = arith.truncf %210 : vector<24x32xf32> to vector<24x32xbf16>
    %cst_127 = arith.constant dense<0.000000e+00> : vector<24x32xf32>
    %237 = tpu.matmul %236, %221, %cst_127 {dimension_numbers = #tpu.dot_dimension_numbers<[1], [0], [0], [1], [0, 0, 1, 1], [], []>} : vector<24x32xbf16>, vector<32x32xbf16>, vector<24x32xf32> -> vector<24x32xf32>
    %238 = vector.broadcast %223 : vector<1x32xf32> to vector<24x32xf32>
    %239 = arith.addf %237, %238 : vector<24x32xf32>
    %240 = arith.truncf %231 : vector<32x32xf32> to vector<32x32xbf16>
    %241 = arith.truncf %235 : vector<24x32xf32> to vector<24x32xbf16>
    %242 = arith.truncf %239 : vector<24x32xf32> to vector<24x32xbf16>
    %cst_128 = arith.constant 0.000000e+00 : f32
    %243 = vector.broadcast %cst_128 : f32 to vector<32x32xf32>
    %244 = vector.extract_strided_slice %240 {offsets = [0, 0], sizes = [32, 8], strides = [1, 1]} : vector<32x32xbf16> to vector<32x8xbf16>
    %245 = vector.extract_strided_slice %241 {offsets = [0, 0], sizes = [24, 8], strides = [1, 1]} : vector<24x32xbf16> to vector<24x8xbf16>
    %cst_129 = arith.constant dense<0.000000e+00> : vector<32x24xf32>
    %246 = tpu.matmul %244, %245, %cst_129 {dimension_numbers = #tpu.dot_dimension_numbers<[1], [1], [0], [0], [0, 0, 1, 0], [], []>} : vector<32x8xbf16>, vector<24x8xbf16>, vector<32x24xf32> -> vector<32x24xf32>
    %cst_130 = arith.constant 0.353553385 : f32
    %247 = vector.broadcast %cst_130 : f32 to vector<32x24xf32>
    %248 = arith.mulf %246, %247 : vector<32x24xf32>
    %249 = arith.addf %248, %211 : vector<32x24xf32>
    %cst_131 = arith.constant dense<0xFF800000> : vector<32xf32>
    %250 = vector.multi_reduction <maximumf>, %249, %cst_131 [1] : vector<32x24xf32> to vector<32xf32>
    %251 = vector.shape_cast %250 : vector<32xf32> to vector<32x1xf32>
    %252 = vector.broadcast %251 : vector<32x1xf32> to vector<32x24xf32>
    %253 = arith.subf %249, %252 : vector<32x24xf32>
    %254 = math.exp %253 : vector<32x24xf32>
    %cst_132 = arith.constant dense<0.000000e+00> : vector<32xf32>
    %255 = vector.multi_reduction <add>, %254, %cst_132 [1] : vector<32x24xf32> to vector<32xf32>
    %256 = vector.shape_cast %255 : vector<32xf32> to vector<32x1xf32>
    %257 = tpu.reciprocal %256 {approx = true} : vector<32x1xf32> -> vector<32x1xf32>
    %258 = vector.broadcast %257 : vector<32x1xf32> to vector<32x24xf32>
    %259 = arith.mulf %254, %258 : vector<32x24xf32>
    %260 = arith.truncf %259 : vector<32x24xf32> to vector<32x24xbf16>
    %261 = vector.extract_strided_slice %242 {offsets = [0, 0], sizes = [24, 8], strides = [1, 1]} : vector<24x32xbf16> to vector<24x8xbf16>
    %cst_133 = arith.constant dense<0.000000e+00> : vector<32x8xf32>
    %262 = tpu.matmul %260, %261, %cst_133 {dimension_numbers = #tpu.dot_dimension_numbers<[1], [0], [0], [1], [0, 0, 1, 1], [], []>} : vector<32x24xbf16>, vector<24x8xbf16>, vector<32x8xf32> -> vector<32x8xf32>
    %263 = arith.truncf %262 : vector<32x8xf32> to vector<32x8xbf16>
    %264 = vector.extract_strided_slice %225 {offsets = [0, 0], sizes = [8, 32], strides = [1, 1]} : vector<32x32xbf16> to vector<8x32xbf16>
    %cst_134 = arith.constant dense<0.000000e+00> : vector<32x32xf32>
    %265 = tpu.matmul %263, %264, %cst_134 {dimension_numbers = #tpu.dot_dimension_numbers<[1], [0], [0], [1], [0, 0, 1, 1], [], []>} : vector<32x8xbf16>, vector<8x32xbf16>, vector<32x32xf32> -> vector<32x32xf32>
    %266 = arith.addf %243, %265 : vector<32x32xf32>
    %267 = vector.extract_strided_slice %240 {offsets = [0, 8], sizes = [32, 8], strides = [1, 1]} : vector<32x32xbf16> to vector<32x8xbf16>
    %268 = vector.extract_strided_slice %241 {offsets = [0, 8], sizes = [24, 8], strides = [1, 1]} : vector<24x32xbf16> to vector<24x8xbf16>
    %cst_135 = arith.constant dense<0.000000e+00> : vector<32x24xf32>
    %269 = tpu.matmul %267, %268, %cst_135 {dimension_numbers = #tpu.dot_dimension_numbers<[1], [1], [0], [0], [0, 0, 1, 0], [], []>} : vector<32x8xbf16>, vector<24x8xbf16>, vector<32x24xf32> -> vector<32x24xf32>
    %cst_136 = arith.constant 0.353553385 : f32
    %270 = vector.broadcast %cst_136 : f32 to vector<32x24xf32>
    %271 = arith.mulf %269, %270 : vector<32x24xf32>
    %272 = arith.addf %271, %211 : vector<32x24xf32>
    %cst_137 = arith.constant dense<0xFF800000> : vector<32xf32>
    %273 = vector.multi_reduction <maximumf>, %272, %cst_137 [1] : vector<32x24xf32> to vector<32xf32>
    %274 = vector.shape_cast %273 : vector<32xf32> to vector<32x1xf32>
    %275 = vector.broadcast %274 : vector<32x1xf32> to vector<32x24xf32>
    %276 = arith.subf %272, %275 : vector<32x24xf32>
    %277 = math.exp %276 : vector<32x24xf32>
    %cst_138 = arith.constant dense<0.000000e+00> : vector<32xf32>
    %278 = vector.multi_reduction <add>, %277, %cst_138 [1] : vector<32x24xf32> to vector<32xf32>
    %279 = vector.shape_cast %278 : vector<32xf32> to vector<32x1xf32>
    %280 = tpu.reciprocal %279 {approx = true} : vector<32x1xf32> -> vector<32x1xf32>
    %281 = vector.broadcast %280 : vector<32x1xf32> to vector<32x24xf32>
    %282 = arith.mulf %277, %281 : vector<32x24xf32>
    %283 = arith.truncf %282 : vector<32x24xf32> to vector<32x24xbf16>
    %284 = vector.extract_strided_slice %242 {offsets = [0, 8], sizes = [24, 8], strides = [1, 1]} : vector<24x32xbf16> to vector<24x8xbf16>
    %cst_139 = arith.constant dense<0.000000e+00> : vector<32x8xf32>
    %285 = tpu.matmul %283, %284, %cst_139 {dimension_numbers = #tpu.dot_dimension_numbers<[1], [0], [0], [1], [0, 0, 1, 1], [], []>} : vector<32x24xbf16>, vector<24x8xbf16>, vector<32x8xf32> -> vector<32x8xf32>
    %286 = arith.truncf %285 : vector<32x8xf32> to vector<32x8xbf16>
    %287 = vector.extract_strided_slice %225 {offsets = [8, 0], sizes = [8, 32], strides = [1, 1]} : vector<32x32xbf16> to vector<8x32xbf16>
    %cst_140 = arith.constant dense<0.000000e+00> : vector<32x32xf32>
    %288 = tpu.matmul %286, %287, %cst_140 {dimension_numbers = #tpu.dot_dimension_numbers<[1], [0], [0], [1], [0, 0, 1, 1], [], []>} : vector<32x8xbf16>, vector<8x32xbf16>, vector<32x32xf32> -> vector<32x32xf32>
    %289 = arith.addf %266, %288 : vector<32x32xf32>
    %290 = vector.extract_strided_slice %240 {offsets = [0, 16], sizes = [32, 8], strides = [1, 1]} : vector<32x32xbf16> to vector<32x8xbf16>
    %291 = vector.extract_strided_slice %241 {offsets = [0, 16], sizes = [24, 8], strides = [1, 1]} : vector<24x32xbf16> to vector<24x8xbf16>
    %cst_141 = arith.constant dense<0.000000e+00> : vector<32x24xf32>
    %292 = tpu.matmul %290, %291, %cst_141 {dimension_numbers = #tpu.dot_dimension_numbers<[1], [1], [0], [0], [0, 0, 1, 0], [], []>} : vector<32x8xbf16>, vector<24x8xbf16>, vector<32x24xf32> -> vector<32x24xf32>
    %cst_142 = arith.constant 0.353553385 : f32
    %293 = vector.broadcast %cst_142 : f32 to vector<32x24xf32>
    %294 = arith.mulf %292, %293 : vector<32x24xf32>
    %295 = arith.addf %294, %211 : vector<32x24xf32>
    %cst_143 = arith.constant dense<0xFF800000> : vector<32xf32>
    %296 = vector.multi_reduction <maximumf>, %295, %cst_143 [1] : vector<32x24xf32> to vector<32xf32>
    %297 = vector.shape_cast %296 : vector<32xf32> to vector<32x1xf32>
    %298 = vector.broadcast %297 : vector<32x1xf32> to vector<32x24xf32>
    %299 = arith.subf %295, %298 : vector<32x24xf32>
    %300 = math.exp %299 : vector<32x24xf32>
    %cst_144 = arith.constant dense<0.000000e+00> : vector<32xf32>
    %301 = vector.multi_reduction <add>, %300, %cst_144 [1] : vector<32x24xf32> to vector<32xf32>
    %302 = vector.shape_cast %301 : vector<32xf32> to vector<32x1xf32>
    %303 = tpu.reciprocal %302 {approx = true} : vector<32x1xf32> -> vector<32x1xf32>
    %304 = vector.broadcast %303 : vector<32x1xf32> to vector<32x24xf32>
    %305 = arith.mulf %300, %304 : vector<32x24xf32>
    %306 = arith.truncf %305 : vector<32x24xf32> to vector<32x24xbf16>
    %307 = vector.extract_strided_slice %242 {offsets = [0, 16], sizes = [24, 8], strides = [1, 1]} : vector<24x32xbf16> to vector<24x8xbf16>
    %cst_145 = arith.constant dense<0.000000e+00> : vector<32x8xf32>
    %308 = tpu.matmul %306, %307, %cst_145 {dimension_numbers = #tpu.dot_dimension_numbers<[1], [0], [0], [1], [0, 0, 1, 1], [], []>} : vector<32x24xbf16>, vector<24x8xbf16>, vector<32x8xf32> -> vector<32x8xf32>
    %309 = arith.truncf %308 : vector<32x8xf32> to vector<32x8xbf16>
    %310 = vector.extract_strided_slice %225 {offsets = [16, 0], sizes = [8, 32], strides = [1, 1]} : vector<32x32xbf16> to vector<8x32xbf16>
    %cst_146 = arith.constant dense<0.000000e+00> : vector<32x32xf32>
    %311 = tpu.matmul %309, %310, %cst_146 {dimension_numbers = #tpu.dot_dimension_numbers<[1], [0], [0], [1], [0, 0, 1, 1], [], []>} : vector<32x8xbf16>, vector<8x32xbf16>, vector<32x32xf32> -> vector<32x32xf32>
    %312 = arith.addf %289, %311 : vector<32x32xf32>
    %313 = vector.extract_strided_slice %240 {offsets = [0, 24], sizes = [32, 8], strides = [1, 1]} : vector<32x32xbf16> to vector<32x8xbf16>
    %314 = vector.extract_strided_slice %241 {offsets = [0, 24], sizes = [24, 8], strides = [1, 1]} : vector<24x32xbf16> to vector<24x8xbf16>
    %cst_147 = arith.constant dense<0.000000e+00> : vector<32x24xf32>
    %315 = tpu.matmul %313, %314, %cst_147 {dimension_numbers = #tpu.dot_dimension_numbers<[1], [1], [0], [0], [0, 0, 1, 0], [], []>} : vector<32x8xbf16>, vector<24x8xbf16>, vector<32x24xf32> -> vector<32x24xf32>
    %cst_148 = arith.constant 0.353553385 : f32
    %316 = vector.broadcast %cst_148 : f32 to vector<32x24xf32>
    %317 = arith.mulf %315, %316 : vector<32x24xf32>
    %318 = arith.addf %317, %211 : vector<32x24xf32>
    %cst_149 = arith.constant dense<0xFF800000> : vector<32xf32>
    %319 = vector.multi_reduction <maximumf>, %318, %cst_149 [1] : vector<32x24xf32> to vector<32xf32>
    %320 = vector.shape_cast %319 : vector<32xf32> to vector<32x1xf32>
    %321 = vector.broadcast %320 : vector<32x1xf32> to vector<32x24xf32>
    %322 = arith.subf %318, %321 : vector<32x24xf32>
    %323 = math.exp %322 : vector<32x24xf32>
    %cst_150 = arith.constant dense<0.000000e+00> : vector<32xf32>
    %324 = vector.multi_reduction <add>, %323, %cst_150 [1] : vector<32x24xf32> to vector<32xf32>
    %325 = vector.shape_cast %324 : vector<32xf32> to vector<32x1xf32>
    %326 = tpu.reciprocal %325 {approx = true} : vector<32x1xf32> -> vector<32x1xf32>
    %327 = vector.broadcast %326 : vector<32x1xf32> to vector<32x24xf32>
    %328 = arith.mulf %323, %327 : vector<32x24xf32>
    %329 = arith.truncf %328 : vector<32x24xf32> to vector<32x24xbf16>
    %330 = vector.extract_strided_slice %242 {offsets = [0, 24], sizes = [24, 8], strides = [1, 1]} : vector<24x32xbf16> to vector<24x8xbf16>
    %cst_151 = arith.constant dense<0.000000e+00> : vector<32x8xf32>
    %331 = tpu.matmul %329, %330, %cst_151 {dimension_numbers = #tpu.dot_dimension_numbers<[1], [0], [0], [1], [0, 0, 1, 1], [], []>} : vector<32x24xbf16>, vector<24x8xbf16>, vector<32x8xf32> -> vector<32x8xf32>
    %332 = arith.truncf %331 : vector<32x8xf32> to vector<32x8xbf16>
    %333 = vector.extract_strided_slice %225 {offsets = [24, 0], sizes = [8, 32], strides = [1, 1]} : vector<32x32xbf16> to vector<8x32xbf16>
    %cst_152 = arith.constant dense<0.000000e+00> : vector<32x32xf32>
    %334 = tpu.matmul %332, %333, %cst_152 {dimension_numbers = #tpu.dot_dimension_numbers<[1], [0], [0], [1], [0, 0, 1, 1], [], []>} : vector<32x8xbf16>, vector<8x32xbf16>, vector<32x32xf32> -> vector<32x32xf32>
    %335 = arith.addf %312, %334 : vector<32x32xf32>
    %336 = vector.broadcast %227 : vector<1x32xf32> to vector<32x32xf32>
    %337 = arith.addf %335, %336 : vector<32x32xf32>
    %c0_153 = arith.constant 0 : index
    %c0_154 = arith.constant 0 : index
    %338 = vector.load %arg6[%c0_153, %c0_154] : memref<24x32xf32, #tpu.memory_space<vmem>>, vector<24x32xf32>
    %c2 = arith.constant 2 : index
    %c0_155 = arith.constant 0 : index
    %c0_156 = arith.constant 0 : index
    %339 = vector.load %arg8[%c2, %c0_155, %c0_156] : memref<4x32x32xbf16, #tpu.memory_space<vmem>>, vector<1x32x32xbf16>
    %340 = vector.shape_cast %339 : vector<1x32x32xbf16> to vector<32x32xbf16>
    %c2_157 = arith.constant 2 : index
    %c0_158 = arith.constant 0 : index
    %c0_159 = arith.constant 0 : index
    %341 = vector.load %arg9[%c2_157, %c0_158, %c0_159] : memref<4x1x32xf32, #tpu.memory_space<vmem>>, vector<1x1x32xf32>
    %342 = vector.shape_cast %341 : vector<1x1x32xf32> to vector<1x32xf32>
    %c2_160 = arith.constant 2 : index
    %c0_161 = arith.constant 0 : index
    %c0_162 = arith.constant 0 : index
    %343 = vector.load %arg10[%c2_160, %c0_161, %c0_162] : memref<4x32x32xbf16, #tpu.memory_space<vmem>>, vector<1x32x32xbf16>
    %344 = vector.shape_cast %343 : vector<1x32x32xbf16> to vector<32x32xbf16>
    %c2_163 = arith.constant 2 : index
    %c0_164 = arith.constant 0 : index
    %c0_165 = arith.constant 0 : index
    %345 = vector.load %arg11[%c2_163, %c0_164, %c0_165] : memref<4x1x32xf32, #tpu.memory_space<vmem>>, vector<1x1x32xf32>
    %346 = vector.shape_cast %345 : vector<1x1x32xf32> to vector<1x32xf32>
    %c2_166 = arith.constant 2 : index
    %c0_167 = arith.constant 0 : index
    %c0_168 = arith.constant 0 : index
    %347 = vector.load %arg12[%c2_166, %c0_167, %c0_168] : memref<4x32x32xbf16, #tpu.memory_space<vmem>>, vector<1x32x32xbf16>
    %348 = vector.shape_cast %347 : vector<1x32x32xbf16> to vector<32x32xbf16>
    %c2_169 = arith.constant 2 : index
    %c0_170 = arith.constant 0 : index
    %c0_171 = arith.constant 0 : index
    %349 = vector.load %arg13[%c2_169, %c0_170, %c0_171] : memref<4x1x32xf32, #tpu.memory_space<vmem>>, vector<1x1x32xf32>
    %350 = vector.shape_cast %349 : vector<1x1x32xf32> to vector<1x32xf32>
    %c2_172 = arith.constant 2 : index
    %c0_173 = arith.constant 0 : index
    %c0_174 = arith.constant 0 : index
    %351 = vector.load %arg14[%c2_172, %c0_173, %c0_174] : memref<4x32x32xbf16, #tpu.memory_space<vmem>>, vector<1x32x32xbf16>
    %352 = vector.shape_cast %351 : vector<1x32x32xbf16> to vector<32x32xbf16>
    %c2_175 = arith.constant 2 : index
    %c0_176 = arith.constant 0 : index
    %c0_177 = arith.constant 0 : index
    %353 = vector.load %arg15[%c2_175, %c0_176, %c0_177] : memref<4x1x32xf32, #tpu.memory_space<vmem>>, vector<1x1x32xf32>
    %354 = vector.shape_cast %353 : vector<1x1x32xf32> to vector<1x32xf32>
    %355 = arith.truncf %210 : vector<24x32xf32> to vector<24x32xbf16>
    %cst_178 = arith.constant dense<0.000000e+00> : vector<24x32xf32>
    %356 = tpu.matmul %355, %340, %cst_178 {dimension_numbers = #tpu.dot_dimension_numbers<[1], [0], [0], [1], [0, 0, 1, 1], [], []>} : vector<24x32xbf16>, vector<32x32xbf16>, vector<24x32xf32> -> vector<24x32xf32>
    %357 = vector.broadcast %342 : vector<1x32xf32> to vector<24x32xf32>
    %358 = arith.addf %356, %357 : vector<24x32xf32>
    %359 = arith.truncf %337 : vector<32x32xf32> to vector<32x32xbf16>
    %cst_179 = arith.constant dense<0.000000e+00> : vector<32x32xf32>
    %360 = tpu.matmul %359, %344, %cst_179 {dimension_numbers = #tpu.dot_dimension_numbers<[1], [0], [0], [1], [0, 0, 1, 1], [], []>} : vector<32x32xbf16>, vector<32x32xbf16>, vector<32x32xf32> -> vector<32x32xf32>
    %361 = vector.broadcast %346 : vector<1x32xf32> to vector<32x32xf32>
    %362 = arith.addf %360, %361 : vector<32x32xf32>
    %363 = arith.truncf %337 : vector<32x32xf32> to vector<32x32xbf16>
    %cst_180 = arith.constant dense<0.000000e+00> : vector<32x32xf32>
    %364 = tpu.matmul %363, %348, %cst_180 {dimension_numbers = #tpu.dot_dimension_numbers<[1], [0], [0], [1], [0, 0, 1, 1], [], []>} : vector<32x32xbf16>, vector<32x32xbf16>, vector<32x32xf32> -> vector<32x32xf32>
    %365 = vector.broadcast %350 : vector<1x32xf32> to vector<32x32xf32>
    %366 = arith.addf %364, %365 : vector<32x32xf32>
    %367 = arith.truncf %358 : vector<24x32xf32> to vector<24x32xbf16>
    %368 = arith.truncf %362 : vector<32x32xf32> to vector<32x32xbf16>
    %369 = arith.truncf %366 : vector<32x32xf32> to vector<32x32xbf16>
    %cst_181 = arith.constant 0.000000e+00 : f32
    %370 = vector.broadcast %cst_181 : f32 to vector<24x32xf32>
    %371 = vector.extract_strided_slice %367 {offsets = [0, 0], sizes = [24, 8], strides = [1, 1]} : vector<24x32xbf16> to vector<24x8xbf16>
    %372 = vector.extract_strided_slice %368 {offsets = [0, 0], sizes = [32, 8], strides = [1, 1]} : vector<32x32xbf16> to vector<32x8xbf16>
    %cst_182 = arith.constant dense<0.000000e+00> : vector<24x32xf32>
    %373 = tpu.matmul %371, %372, %cst_182 {dimension_numbers = #tpu.dot_dimension_numbers<[1], [1], [0], [0], [0, 0, 1, 0], [], []>} : vector<24x8xbf16>, vector<32x8xbf16>, vector<24x32xf32> -> vector<24x32xf32>
    %cst_183 = arith.constant 0.353553385 : f32
    %374 = vector.broadcast %cst_183 : f32 to vector<24x32xf32>
    %375 = arith.mulf %373, %374 : vector<24x32xf32>
    %376 = arith.addf %375, %338 : vector<24x32xf32>
    %cst_184 = arith.constant dense<0xFF800000> : vector<24xf32>
    %377 = vector.multi_reduction <maximumf>, %376, %cst_184 [1] : vector<24x32xf32> to vector<24xf32>
    %378 = vector.shape_cast %377 : vector<24xf32> to vector<24x1xf32>
    %379 = vector.broadcast %378 : vector<24x1xf32> to vector<24x32xf32>
    %380 = arith.subf %376, %379 : vector<24x32xf32>
    %381 = math.exp %380 : vector<24x32xf32>
    %cst_185 = arith.constant dense<0.000000e+00> : vector<24xf32>
    %382 = vector.multi_reduction <add>, %381, %cst_185 [1] : vector<24x32xf32> to vector<24xf32>
    %383 = vector.shape_cast %382 : vector<24xf32> to vector<24x1xf32>
    %384 = tpu.reciprocal %383 {approx = true} : vector<24x1xf32> -> vector<24x1xf32>
    %385 = vector.broadcast %384 : vector<24x1xf32> to vector<24x32xf32>
    %386 = arith.mulf %381, %385 : vector<24x32xf32>
    %387 = arith.truncf %386 : vector<24x32xf32> to vector<24x32xbf16>
    %388 = vector.extract_strided_slice %369 {offsets = [0, 0], sizes = [32, 8], strides = [1, 1]} : vector<32x32xbf16> to vector<32x8xbf16>
    %cst_186 = arith.constant dense<0.000000e+00> : vector<24x8xf32>
    %389 = tpu.matmul %387, %388, %cst_186 {dimension_numbers = #tpu.dot_dimension_numbers<[1], [0], [0], [1], [0, 0, 1, 1], [], []>} : vector<24x32xbf16>, vector<32x8xbf16>, vector<24x8xf32> -> vector<24x8xf32>
    %390 = arith.truncf %389 : vector<24x8xf32> to vector<24x8xbf16>
    %391 = vector.extract_strided_slice %352 {offsets = [0, 0], sizes = [8, 32], strides = [1, 1]} : vector<32x32xbf16> to vector<8x32xbf16>
    %cst_187 = arith.constant dense<0.000000e+00> : vector<24x32xf32>
    %392 = tpu.matmul %390, %391, %cst_187 {dimension_numbers = #tpu.dot_dimension_numbers<[1], [0], [0], [1], [0, 0, 1, 1], [], []>} : vector<24x8xbf16>, vector<8x32xbf16>, vector<24x32xf32> -> vector<24x32xf32>
    %393 = arith.addf %370, %392 : vector<24x32xf32>
    %394 = vector.extract_strided_slice %367 {offsets = [0, 8], sizes = [24, 8], strides = [1, 1]} : vector<24x32xbf16> to vector<24x8xbf16>
    %395 = vector.extract_strided_slice %368 {offsets = [0, 8], sizes = [32, 8], strides = [1, 1]} : vector<32x32xbf16> to vector<32x8xbf16>
    %cst_188 = arith.constant dense<0.000000e+00> : vector<24x32xf32>
    %396 = tpu.matmul %394, %395, %cst_188 {dimension_numbers = #tpu.dot_dimension_numbers<[1], [1], [0], [0], [0, 0, 1, 0], [], []>} : vector<24x8xbf16>, vector<32x8xbf16>, vector<24x32xf32> -> vector<24x32xf32>
    %cst_189 = arith.constant 0.353553385 : f32
    %397 = vector.broadcast %cst_189 : f32 to vector<24x32xf32>
    %398 = arith.mulf %396, %397 : vector<24x32xf32>
    %399 = arith.addf %398, %338 : vector<24x32xf32>
    %cst_190 = arith.constant dense<0xFF800000> : vector<24xf32>
    %400 = vector.multi_reduction <maximumf>, %399, %cst_190 [1] : vector<24x32xf32> to vector<24xf32>
    %401 = vector.shape_cast %400 : vector<24xf32> to vector<24x1xf32>
    %402 = vector.broadcast %401 : vector<24x1xf32> to vector<24x32xf32>
    %403 = arith.subf %399, %402 : vector<24x32xf32>
    %404 = math.exp %403 : vector<24x32xf32>
    %cst_191 = arith.constant dense<0.000000e+00> : vector<24xf32>
    %405 = vector.multi_reduction <add>, %404, %cst_191 [1] : vector<24x32xf32> to vector<24xf32>
    %406 = vector.shape_cast %405 : vector<24xf32> to vector<24x1xf32>
    %407 = tpu.reciprocal %406 {approx = true} : vector<24x1xf32> -> vector<24x1xf32>
    %408 = vector.broadcast %407 : vector<24x1xf32> to vector<24x32xf32>
    %409 = arith.mulf %404, %408 : vector<24x32xf32>
    %410 = arith.truncf %409 : vector<24x32xf32> to vector<24x32xbf16>
    %411 = vector.extract_strided_slice %369 {offsets = [0, 8], sizes = [32, 8], strides = [1, 1]} : vector<32x32xbf16> to vector<32x8xbf16>
    %cst_192 = arith.constant dense<0.000000e+00> : vector<24x8xf32>
    %412 = tpu.matmul %410, %411, %cst_192 {dimension_numbers = #tpu.dot_dimension_numbers<[1], [0], [0], [1], [0, 0, 1, 1], [], []>} : vector<24x32xbf16>, vector<32x8xbf16>, vector<24x8xf32> -> vector<24x8xf32>
    %413 = arith.truncf %412 : vector<24x8xf32> to vector<24x8xbf16>
    %414 = vector.extract_strided_slice %352 {offsets = [8, 0], sizes = [8, 32], strides = [1, 1]} : vector<32x32xbf16> to vector<8x32xbf16>
    %cst_193 = arith.constant dense<0.000000e+00> : vector<24x32xf32>
    %415 = tpu.matmul %413, %414, %cst_193 {dimension_numbers = #tpu.dot_dimension_numbers<[1], [0], [0], [1], [0, 0, 1, 1], [], []>} : vector<24x8xbf16>, vector<8x32xbf16>, vector<24x32xf32> -> vector<24x32xf32>
    %416 = arith.addf %393, %415 : vector<24x32xf32>
    %417 = vector.extract_strided_slice %367 {offsets = [0, 16], sizes = [24, 8], strides = [1, 1]} : vector<24x32xbf16> to vector<24x8xbf16>
    %418 = vector.extract_strided_slice %368 {offsets = [0, 16], sizes = [32, 8], strides = [1, 1]} : vector<32x32xbf16> to vector<32x8xbf16>
    %cst_194 = arith.constant dense<0.000000e+00> : vector<24x32xf32>
    %419 = tpu.matmul %417, %418, %cst_194 {dimension_numbers = #tpu.dot_dimension_numbers<[1], [1], [0], [0], [0, 0, 1, 0], [], []>} : vector<24x8xbf16>, vector<32x8xbf16>, vector<24x32xf32> -> vector<24x32xf32>
    %cst_195 = arith.constant 0.353553385 : f32
    %420 = vector.broadcast %cst_195 : f32 to vector<24x32xf32>
    %421 = arith.mulf %419, %420 : vector<24x32xf32>
    %422 = arith.addf %421, %338 : vector<24x32xf32>
    %cst_196 = arith.constant dense<0xFF800000> : vector<24xf32>
    %423 = vector.multi_reduction <maximumf>, %422, %cst_196 [1] : vector<24x32xf32> to vector<24xf32>
    %424 = vector.shape_cast %423 : vector<24xf32> to vector<24x1xf32>
    %425 = vector.broadcast %424 : vector<24x1xf32> to vector<24x32xf32>
    %426 = arith.subf %422, %425 : vector<24x32xf32>
    %427 = math.exp %426 : vector<24x32xf32>
    %cst_197 = arith.constant dense<0.000000e+00> : vector<24xf32>
    %428 = vector.multi_reduction <add>, %427, %cst_197 [1] : vector<24x32xf32> to vector<24xf32>
    %429 = vector.shape_cast %428 : vector<24xf32> to vector<24x1xf32>
    %430 = tpu.reciprocal %429 {approx = true} : vector<24x1xf32> -> vector<24x1xf32>
    %431 = vector.broadcast %430 : vector<24x1xf32> to vector<24x32xf32>
    %432 = arith.mulf %427, %431 : vector<24x32xf32>
    %433 = arith.truncf %432 : vector<24x32xf32> to vector<24x32xbf16>
    %434 = vector.extract_strided_slice %369 {offsets = [0, 16], sizes = [32, 8], strides = [1, 1]} : vector<32x32xbf16> to vector<32x8xbf16>
    %cst_198 = arith.constant dense<0.000000e+00> : vector<24x8xf32>
    %435 = tpu.matmul %433, %434, %cst_198 {dimension_numbers = #tpu.dot_dimension_numbers<[1], [0], [0], [1], [0, 0, 1, 1], [], []>} : vector<24x32xbf16>, vector<32x8xbf16>, vector<24x8xf32> -> vector<24x8xf32>
    %436 = arith.truncf %435 : vector<24x8xf32> to vector<24x8xbf16>
    %437 = vector.extract_strided_slice %352 {offsets = [16, 0], sizes = [8, 32], strides = [1, 1]} : vector<32x32xbf16> to vector<8x32xbf16>
    %cst_199 = arith.constant dense<0.000000e+00> : vector<24x32xf32>
    %438 = tpu.matmul %436, %437, %cst_199 {dimension_numbers = #tpu.dot_dimension_numbers<[1], [0], [0], [1], [0, 0, 1, 1], [], []>} : vector<24x8xbf16>, vector<8x32xbf16>, vector<24x32xf32> -> vector<24x32xf32>
    %439 = arith.addf %416, %438 : vector<24x32xf32>
    %440 = vector.extract_strided_slice %367 {offsets = [0, 24], sizes = [24, 8], strides = [1, 1]} : vector<24x32xbf16> to vector<24x8xbf16>
    %441 = vector.extract_strided_slice %368 {offsets = [0, 24], sizes = [32, 8], strides = [1, 1]} : vector<32x32xbf16> to vector<32x8xbf16>
    %cst_200 = arith.constant dense<0.000000e+00> : vector<24x32xf32>
    %442 = tpu.matmul %440, %441, %cst_200 {dimension_numbers = #tpu.dot_dimension_numbers<[1], [1], [0], [0], [0, 0, 1, 0], [], []>} : vector<24x8xbf16>, vector<32x8xbf16>, vector<24x32xf32> -> vector<24x32xf32>
    %cst_201 = arith.constant 0.353553385 : f32
    %443 = vector.broadcast %cst_201 : f32 to vector<24x32xf32>
    %444 = arith.mulf %442, %443 : vector<24x32xf32>
    %445 = arith.addf %444, %338 : vector<24x32xf32>
    %cst_202 = arith.constant dense<0xFF800000> : vector<24xf32>
    %446 = vector.multi_reduction <maximumf>, %445, %cst_202 [1] : vector<24x32xf32> to vector<24xf32>
    %447 = vector.shape_cast %446 : vector<24xf32> to vector<24x1xf32>
    %448 = vector.broadcast %447 : vector<24x1xf32> to vector<24x32xf32>
    %449 = arith.subf %445, %448 : vector<24x32xf32>
    %450 = math.exp %449 : vector<24x32xf32>
    %cst_203 = arith.constant dense<0.000000e+00> : vector<24xf32>
    %451 = vector.multi_reduction <add>, %450, %cst_203 [1] : vector<24x32xf32> to vector<24xf32>
    %452 = vector.shape_cast %451 : vector<24xf32> to vector<24x1xf32>
    %453 = tpu.reciprocal %452 {approx = true} : vector<24x1xf32> -> vector<24x1xf32>
    %454 = vector.broadcast %453 : vector<24x1xf32> to vector<24x32xf32>
    %455 = arith.mulf %450, %454 : vector<24x32xf32>
    %456 = arith.truncf %455 : vector<24x32xf32> to vector<24x32xbf16>
    %457 = vector.extract_strided_slice %369 {offsets = [0, 24], sizes = [32, 8], strides = [1, 1]} : vector<32x32xbf16> to vector<32x8xbf16>
    %cst_204 = arith.constant dense<0.000000e+00> : vector<24x8xf32>
    %458 = tpu.matmul %456, %457, %cst_204 {dimension_numbers = #tpu.dot_dimension_numbers<[1], [0], [0], [1], [0, 0, 1, 1], [], []>} : vector<24x32xbf16>, vector<32x8xbf16>, vector<24x8xf32> -> vector<24x8xf32>
    %459 = arith.truncf %458 : vector<24x8xf32> to vector<24x8xbf16>
    %460 = vector.extract_strided_slice %352 {offsets = [24, 0], sizes = [8, 32], strides = [1, 1]} : vector<32x32xbf16> to vector<8x32xbf16>
    %cst_205 = arith.constant dense<0.000000e+00> : vector<24x32xf32>
    %461 = tpu.matmul %459, %460, %cst_205 {dimension_numbers = #tpu.dot_dimension_numbers<[1], [0], [0], [1], [0, 0, 1, 1], [], []>} : vector<24x8xbf16>, vector<8x32xbf16>, vector<24x32xf32> -> vector<24x32xf32>
    %462 = arith.addf %439, %461 : vector<24x32xf32>
    %463 = vector.broadcast %354 : vector<1x32xf32> to vector<24x32xf32>
    %464 = arith.addf %462, %463 : vector<24x32xf32>
    %465 = arith.addf %210, %464 : vector<24x32xf32>
    %c2_206 = arith.constant 2 : index
    %c0_207 = arith.constant 0 : index
    %c0_208 = arith.constant 0 : index
    %466 = vector.load %arg20[%c2_206, %c0_207, %c0_208] : memref<6x1x32xf32, #tpu.memory_space<vmem>>, vector<1x1x32xf32>
    %467 = vector.shape_cast %466 : vector<1x1x32xf32> to vector<1x32xf32>
    %c2_209 = arith.constant 2 : index
    %c0_210 = arith.constant 0 : index
    %c0_211 = arith.constant 0 : index
    %468 = vector.load %arg21[%c2_209, %c0_210, %c0_211] : memref<6x1x32xf32, #tpu.memory_space<vmem>>, vector<1x1x32xf32>
    %469 = vector.shape_cast %468 : vector<1x1x32xf32> to vector<1x32xf32>
    %cst_212 = arith.constant dense<0.000000e+00> : vector<24xf32>
    %470 = vector.multi_reduction <add>, %465, %cst_212 [1] : vector<24x32xf32> to vector<24xf32>
    %471 = vector.shape_cast %470 : vector<24xf32> to vector<24x1xf32>
    %cst_213 = arith.constant 3.200000e+01 : f32
    %472 = vector.broadcast %cst_213 : f32 to vector<24x1xf32>
    %473 = arith.divf %471, %472 : vector<24x1xf32>
    %474 = vector.broadcast %473 : vector<24x1xf32> to vector<24x32xf32>
    %475 = arith.subf %465, %474 : vector<24x32xf32>
    %476 = arith.mulf %475, %475 : vector<24x32xf32>
    %cst_214 = arith.constant dense<0.000000e+00> : vector<24xf32>
    %477 = vector.multi_reduction <add>, %476, %cst_214 [1] : vector<24x32xf32> to vector<24xf32>
    %478 = vector.shape_cast %477 : vector<24xf32> to vector<24x1xf32>
    %cst_215 = arith.constant 3.200000e+01 : f32
    %479 = vector.broadcast %cst_215 : f32 to vector<24x1xf32>
    %480 = arith.divf %478, %479 : vector<24x1xf32>
    %cst_216 = arith.constant 9.99999974E-6 : f32
    %481 = vector.broadcast %cst_216 : f32 to vector<24x1xf32>
    %482 = arith.addf %480, %481 : vector<24x1xf32>
    %483 = math.rsqrt %482 : vector<24x1xf32>
    %484 = vector.broadcast %483 : vector<24x1xf32> to vector<24x32xf32>
    %485 = arith.mulf %475, %484 : vector<24x32xf32>
    %486 = vector.broadcast %467 : vector<1x32xf32> to vector<24x32xf32>
    %487 = arith.mulf %485, %486 : vector<24x32xf32>
    %488 = vector.broadcast %469 : vector<1x32xf32> to vector<24x32xf32>
    %489 = arith.addf %487, %488 : vector<24x32xf32>
    %c1_217 = arith.constant 1 : index
    %c0_218 = arith.constant 0 : index
    %c0_219 = arith.constant 0 : index
    %490 = vector.load %arg16[%c1_217, %c0_218, %c0_219] : memref<2x32x128xbf16, #tpu.memory_space<vmem>>, vector<1x32x128xbf16>
    %491 = vector.shape_cast %490 : vector<1x32x128xbf16> to vector<32x128xbf16>
    %c1_220 = arith.constant 1 : index
    %c0_221 = arith.constant 0 : index
    %c0_222 = arith.constant 0 : index
    %492 = vector.load %arg17[%c1_220, %c0_221, %c0_222] : memref<2x1x128xf32, #tpu.memory_space<vmem>>, vector<1x1x128xf32>
    %493 = vector.shape_cast %492 : vector<1x1x128xf32> to vector<1x128xf32>
    %c1_223 = arith.constant 1 : index
    %c0_224 = arith.constant 0 : index
    %c0_225 = arith.constant 0 : index
    %494 = vector.load %arg18[%c1_223, %c0_224, %c0_225] : memref<2x128x32xbf16, #tpu.memory_space<vmem>>, vector<1x128x32xbf16>
    %495 = vector.shape_cast %494 : vector<1x128x32xbf16> to vector<128x32xbf16>
    %c1_226 = arith.constant 1 : index
    %c0_227 = arith.constant 0 : index
    %c0_228 = arith.constant 0 : index
    %496 = vector.load %arg19[%c1_226, %c0_227, %c0_228] : memref<2x1x32xf32, #tpu.memory_space<vmem>>, vector<1x1x32xf32>
    %497 = vector.shape_cast %496 : vector<1x1x32xf32> to vector<1x32xf32>
    %498 = arith.truncf %489 : vector<24x32xf32> to vector<24x32xbf16>
    %cst_229 = arith.constant dense<0.000000e+00> : vector<24x128xf32>
    %499 = tpu.matmul %498, %491, %cst_229 {dimension_numbers = #tpu.dot_dimension_numbers<[1], [0], [0], [1], [0, 0, 1, 1], [], []>} : vector<24x32xbf16>, vector<32x128xbf16>, vector<24x128xf32> -> vector<24x128xf32>
    %500 = vector.broadcast %493 : vector<1x128xf32> to vector<24x128xf32>
    %501 = arith.addf %499, %500 : vector<24x128xf32>
    %cst_230 = arith.constant 5.000000e-01 : f32
    %502 = vector.broadcast %cst_230 : f32 to vector<24x128xf32>
    %503 = arith.mulf %502, %501 : vector<24x128xf32>
    %cst_231 = arith.constant 4.471500e-02 : f32
    %504 = vector.broadcast %cst_231 : f32 to vector<24x128xf32>
    %505 = arith.mulf %504, %501 : vector<24x128xf32>
    %506 = arith.mulf %505, %501 : vector<24x128xf32>
    %507 = arith.mulf %506, %501 : vector<24x128xf32>
    %508 = arith.addf %501, %507 : vector<24x128xf32>
    %cst_232 = arith.constant 0.797884583 : f32
    %509 = vector.broadcast %cst_232 : f32 to vector<24x128xf32>
    %510 = arith.mulf %509, %508 : vector<24x128xf32>
    %511 = math.tanh %510 : vector<24x128xf32>
    %cst_233 = arith.constant 1.000000e+00 : f32
    %512 = vector.broadcast %cst_233 : f32 to vector<24x128xf32>
    %513 = arith.addf %512, %511 : vector<24x128xf32>
    %514 = arith.mulf %503, %513 : vector<24x128xf32>
    %515 = arith.truncf %514 : vector<24x128xf32> to vector<24x128xbf16>
    %cst_234 = arith.constant dense<0.000000e+00> : vector<24x32xf32>
    %516 = tpu.matmul %515, %495, %cst_234 {dimension_numbers = #tpu.dot_dimension_numbers<[1], [0], [0], [1], [0, 0, 1, 1], [], []>} : vector<24x128xbf16>, vector<128x32xbf16>, vector<24x32xf32> -> vector<24x32xf32>
    %517 = vector.broadcast %497 : vector<1x32xf32> to vector<24x32xf32>
    %518 = arith.addf %516, %517 : vector<24x32xf32>
    %519 = arith.addf %489, %518 : vector<24x32xf32>
    %c3 = arith.constant 3 : index
    %c0_235 = arith.constant 0 : index
    %c0_236 = arith.constant 0 : index
    %520 = vector.load %arg20[%c3, %c0_235, %c0_236] : memref<6x1x32xf32, #tpu.memory_space<vmem>>, vector<1x1x32xf32>
    %521 = vector.shape_cast %520 : vector<1x1x32xf32> to vector<1x32xf32>
    %c3_237 = arith.constant 3 : index
    %c0_238 = arith.constant 0 : index
    %c0_239 = arith.constant 0 : index
    %522 = vector.load %arg21[%c3_237, %c0_238, %c0_239] : memref<6x1x32xf32, #tpu.memory_space<vmem>>, vector<1x1x32xf32>
    %523 = vector.shape_cast %522 : vector<1x1x32xf32> to vector<1x32xf32>
    %cst_240 = arith.constant dense<0.000000e+00> : vector<24xf32>
    %524 = vector.multi_reduction <add>, %519, %cst_240 [1] : vector<24x32xf32> to vector<24xf32>
    %525 = vector.shape_cast %524 : vector<24xf32> to vector<24x1xf32>
    %cst_241 = arith.constant 3.200000e+01 : f32
    %526 = vector.broadcast %cst_241 : f32 to vector<24x1xf32>
    %527 = arith.divf %525, %526 : vector<24x1xf32>
    %528 = vector.broadcast %527 : vector<24x1xf32> to vector<24x32xf32>
    %529 = arith.subf %519, %528 : vector<24x32xf32>
    %530 = arith.mulf %529, %529 : vector<24x32xf32>
    %cst_242 = arith.constant dense<0.000000e+00> : vector<24xf32>
    %531 = vector.multi_reduction <add>, %530, %cst_242 [1] : vector<24x32xf32> to vector<24xf32>
    %532 = vector.shape_cast %531 : vector<24xf32> to vector<24x1xf32>
    %cst_243 = arith.constant 3.200000e+01 : f32
    %533 = vector.broadcast %cst_243 : f32 to vector<24x1xf32>
    %534 = arith.divf %532, %533 : vector<24x1xf32>
    %cst_244 = arith.constant 9.99999974E-6 : f32
    %535 = vector.broadcast %cst_244 : f32 to vector<24x1xf32>
    %536 = arith.addf %534, %535 : vector<24x1xf32>
    %537 = math.rsqrt %536 : vector<24x1xf32>
    %538 = vector.broadcast %537 : vector<24x1xf32> to vector<24x32xf32>
    %539 = arith.mulf %529, %538 : vector<24x32xf32>
    %540 = vector.broadcast %521 : vector<1x32xf32> to vector<24x32xf32>
    %541 = arith.mulf %539, %540 : vector<24x32xf32>
    %542 = vector.broadcast %523 : vector<1x32xf32> to vector<24x32xf32>
    %543 = arith.addf %541, %542 : vector<24x32xf32>
    %c0_245 = arith.constant 0 : index
    %c0_246 = arith.constant 0 : index
    %544 = vector.load %arg7[%c0_245, %c0_246] : memref<24x48xf32, #tpu.memory_space<vmem>>, vector<24x48xf32>
    %c3_247 = arith.constant 3 : index
    %c0_248 = arith.constant 0 : index
    %c0_249 = arith.constant 0 : index
    %545 = vector.load %arg8[%c3_247, %c0_248, %c0_249] : memref<4x32x32xbf16, #tpu.memory_space<vmem>>, vector<1x32x32xbf16>
    %546 = vector.shape_cast %545 : vector<1x32x32xbf16> to vector<32x32xbf16>
    %c3_250 = arith.constant 3 : index
    %c0_251 = arith.constant 0 : index
    %c0_252 = arith.constant 0 : index
    %547 = vector.load %arg9[%c3_250, %c0_251, %c0_252] : memref<4x1x32xf32, #tpu.memory_space<vmem>>, vector<1x1x32xf32>
    %548 = vector.shape_cast %547 : vector<1x1x32xf32> to vector<1x32xf32>
    %c3_253 = arith.constant 3 : index
    %c0_254 = arith.constant 0 : index
    %c0_255 = arith.constant 0 : index
    %549 = vector.load %arg10[%c3_253, %c0_254, %c0_255] : memref<4x32x32xbf16, #tpu.memory_space<vmem>>, vector<1x32x32xbf16>
    %550 = vector.shape_cast %549 : vector<1x32x32xbf16> to vector<32x32xbf16>
    %c3_256 = arith.constant 3 : index
    %c0_257 = arith.constant 0 : index
    %c0_258 = arith.constant 0 : index
    %551 = vector.load %arg11[%c3_256, %c0_257, %c0_258] : memref<4x1x32xf32, #tpu.memory_space<vmem>>, vector<1x1x32xf32>
    %552 = vector.shape_cast %551 : vector<1x1x32xf32> to vector<1x32xf32>
    %c3_259 = arith.constant 3 : index
    %c0_260 = arith.constant 0 : index
    %c0_261 = arith.constant 0 : index
    %553 = vector.load %arg12[%c3_259, %c0_260, %c0_261] : memref<4x32x32xbf16, #tpu.memory_space<vmem>>, vector<1x32x32xbf16>
    %554 = vector.shape_cast %553 : vector<1x32x32xbf16> to vector<32x32xbf16>
    %c3_262 = arith.constant 3 : index
    %c0_263 = arith.constant 0 : index
    %c0_264 = arith.constant 0 : index
    %555 = vector.load %arg13[%c3_262, %c0_263, %c0_264] : memref<4x1x32xf32, #tpu.memory_space<vmem>>, vector<1x1x32xf32>
    %556 = vector.shape_cast %555 : vector<1x1x32xf32> to vector<1x32xf32>
    %c3_265 = arith.constant 3 : index
    %c0_266 = arith.constant 0 : index
    %c0_267 = arith.constant 0 : index
    %557 = vector.load %arg14[%c3_265, %c0_266, %c0_267] : memref<4x32x32xbf16, #tpu.memory_space<vmem>>, vector<1x32x32xbf16>
    %558 = vector.shape_cast %557 : vector<1x32x32xbf16> to vector<32x32xbf16>
    %c3_268 = arith.constant 3 : index
    %c0_269 = arith.constant 0 : index
    %c0_270 = arith.constant 0 : index
    %559 = vector.load %arg15[%c3_268, %c0_269, %c0_270] : memref<4x1x32xf32, #tpu.memory_space<vmem>>, vector<1x1x32xf32>
    %560 = vector.shape_cast %559 : vector<1x1x32xf32> to vector<1x32xf32>
    %561 = arith.truncf %543 : vector<24x32xf32> to vector<24x32xbf16>
    %cst_271 = arith.constant dense<0.000000e+00> : vector<24x32xf32>
    %562 = tpu.matmul %561, %546, %cst_271 {dimension_numbers = #tpu.dot_dimension_numbers<[1], [0], [0], [1], [0, 0, 1, 1], [], []>} : vector<24x32xbf16>, vector<32x32xbf16>, vector<24x32xf32> -> vector<24x32xf32>
    %563 = vector.broadcast %548 : vector<1x32xf32> to vector<24x32xf32>
    %564 = arith.addf %562, %563 : vector<24x32xf32>
    %565 = arith.truncf %3 : vector<48x32xf32> to vector<48x32xbf16>
    %cst_272 = arith.constant dense<0.000000e+00> : vector<48x32xf32>
    %566 = tpu.matmul %565, %550, %cst_272 {dimension_numbers = #tpu.dot_dimension_numbers<[1], [0], [0], [1], [0, 0, 1, 1], [], []>} : vector<48x32xbf16>, vector<32x32xbf16>, vector<48x32xf32> -> vector<48x32xf32>
    %567 = vector.broadcast %552 : vector<1x32xf32> to vector<48x32xf32>
    %568 = arith.addf %566, %567 : vector<48x32xf32>
    %569 = arith.truncf %3 : vector<48x32xf32> to vector<48x32xbf16>
    %cst_273 = arith.constant dense<0.000000e+00> : vector<48x32xf32>
    %570 = tpu.matmul %569, %554, %cst_273 {dimension_numbers = #tpu.dot_dimension_numbers<[1], [0], [0], [1], [0, 0, 1, 1], [], []>} : vector<48x32xbf16>, vector<32x32xbf16>, vector<48x32xf32> -> vector<48x32xf32>
    %571 = vector.broadcast %556 : vector<1x32xf32> to vector<48x32xf32>
    %572 = arith.addf %570, %571 : vector<48x32xf32>
    %573 = arith.truncf %564 : vector<24x32xf32> to vector<24x32xbf16>
    %574 = arith.truncf %568 : vector<48x32xf32> to vector<48x32xbf16>
    %575 = arith.truncf %572 : vector<48x32xf32> to vector<48x32xbf16>
    %cst_274 = arith.constant 0.000000e+00 : f32
    %576 = vector.broadcast %cst_274 : f32 to vector<24x32xf32>
    %577 = vector.extract_strided_slice %573 {offsets = [0, 0], sizes = [24, 8], strides = [1, 1]} : vector<24x32xbf16> to vector<24x8xbf16>
    %578 = vector.extract_strided_slice %574 {offsets = [0, 0], sizes = [48, 8], strides = [1, 1]} : vector<48x32xbf16> to vector<48x8xbf16>
    %cst_275 = arith.constant dense<0.000000e+00> : vector<24x48xf32>
    %579 = tpu.matmul %577, %578, %cst_275 {dimension_numbers = #tpu.dot_dimension_numbers<[1], [1], [0], [0], [0, 0, 1, 0], [], []>} : vector<24x8xbf16>, vector<48x8xbf16>, vector<24x48xf32> -> vector<24x48xf32>
    %cst_276 = arith.constant 0.353553385 : f32
    %580 = vector.broadcast %cst_276 : f32 to vector<24x48xf32>
    %581 = arith.mulf %579, %580 : vector<24x48xf32>
    %582 = arith.addf %581, %544 : vector<24x48xf32>
    %cst_277 = arith.constant dense<0xFF800000> : vector<24xf32>
    %583 = vector.multi_reduction <maximumf>, %582, %cst_277 [1] : vector<24x48xf32> to vector<24xf32>
    %584 = vector.shape_cast %583 : vector<24xf32> to vector<24x1xf32>
    %585 = vector.broadcast %584 : vector<24x1xf32> to vector<24x48xf32>
    %586 = arith.subf %582, %585 : vector<24x48xf32>
    %587 = math.exp %586 : vector<24x48xf32>
    %cst_278 = arith.constant dense<0.000000e+00> : vector<24xf32>
    %588 = vector.multi_reduction <add>, %587, %cst_278 [1] : vector<24x48xf32> to vector<24xf32>
    %589 = vector.shape_cast %588 : vector<24xf32> to vector<24x1xf32>
    %590 = tpu.reciprocal %589 {approx = true} : vector<24x1xf32> -> vector<24x1xf32>
    %591 = vector.broadcast %590 : vector<24x1xf32> to vector<24x48xf32>
    %592 = arith.mulf %587, %591 : vector<24x48xf32>
    %593 = arith.truncf %592 : vector<24x48xf32> to vector<24x48xbf16>
    %594 = vector.extract_strided_slice %575 {offsets = [0, 0], sizes = [48, 8], strides = [1, 1]} : vector<48x32xbf16> to vector<48x8xbf16>
    %cst_279 = arith.constant dense<0.000000e+00> : vector<24x8xf32>
    %595 = tpu.matmul %593, %594, %cst_279 {dimension_numbers = #tpu.dot_dimension_numbers<[1], [0], [0], [1], [0, 0, 1, 1], [], []>} : vector<24x48xbf16>, vector<48x8xbf16>, vector<24x8xf32> -> vector<24x8xf32>
    %596 = arith.truncf %595 : vector<24x8xf32> to vector<24x8xbf16>
    %597 = vector.extract_strided_slice %558 {offsets = [0, 0], sizes = [8, 32], strides = [1, 1]} : vector<32x32xbf16> to vector<8x32xbf16>
    %cst_280 = arith.constant dense<0.000000e+00> : vector<24x32xf32>
    %598 = tpu.matmul %596, %597, %cst_280 {dimension_numbers = #tpu.dot_dimension_numbers<[1], [0], [0], [1], [0, 0, 1, 1], [], []>} : vector<24x8xbf16>, vector<8x32xbf16>, vector<24x32xf32> -> vector<24x32xf32>
    %599 = arith.addf %576, %598 : vector<24x32xf32>
    %600 = vector.extract_strided_slice %573 {offsets = [0, 8], sizes = [24, 8], strides = [1, 1]} : vector<24x32xbf16> to vector<24x8xbf16>
    %601 = vector.extract_strided_slice %574 {offsets = [0, 8], sizes = [48, 8], strides = [1, 1]} : vector<48x32xbf16> to vector<48x8xbf16>
    %cst_281 = arith.constant dense<0.000000e+00> : vector<24x48xf32>
    %602 = tpu.matmul %600, %601, %cst_281 {dimension_numbers = #tpu.dot_dimension_numbers<[1], [1], [0], [0], [0, 0, 1, 0], [], []>} : vector<24x8xbf16>, vector<48x8xbf16>, vector<24x48xf32> -> vector<24x48xf32>
    %cst_282 = arith.constant 0.353553385 : f32
    %603 = vector.broadcast %cst_282 : f32 to vector<24x48xf32>
    %604 = arith.mulf %602, %603 : vector<24x48xf32>
    %605 = arith.addf %604, %544 : vector<24x48xf32>
    %cst_283 = arith.constant dense<0xFF800000> : vector<24xf32>
    %606 = vector.multi_reduction <maximumf>, %605, %cst_283 [1] : vector<24x48xf32> to vector<24xf32>
    %607 = vector.shape_cast %606 : vector<24xf32> to vector<24x1xf32>
    %608 = vector.broadcast %607 : vector<24x1xf32> to vector<24x48xf32>
    %609 = arith.subf %605, %608 : vector<24x48xf32>
    %610 = math.exp %609 : vector<24x48xf32>
    %cst_284 = arith.constant dense<0.000000e+00> : vector<24xf32>
    %611 = vector.multi_reduction <add>, %610, %cst_284 [1] : vector<24x48xf32> to vector<24xf32>
    %612 = vector.shape_cast %611 : vector<24xf32> to vector<24x1xf32>
    %613 = tpu.reciprocal %612 {approx = true} : vector<24x1xf32> -> vector<24x1xf32>
    %614 = vector.broadcast %613 : vector<24x1xf32> to vector<24x48xf32>
    %615 = arith.mulf %610, %614 : vector<24x48xf32>
    %616 = arith.truncf %615 : vector<24x48xf32> to vector<24x48xbf16>
    %617 = vector.extract_strided_slice %575 {offsets = [0, 8], sizes = [48, 8], strides = [1, 1]} : vector<48x32xbf16> to vector<48x8xbf16>
    %cst_285 = arith.constant dense<0.000000e+00> : vector<24x8xf32>
    %618 = tpu.matmul %616, %617, %cst_285 {dimension_numbers = #tpu.dot_dimension_numbers<[1], [0], [0], [1], [0, 0, 1, 1], [], []>} : vector<24x48xbf16>, vector<48x8xbf16>, vector<24x8xf32> -> vector<24x8xf32>
    %619 = arith.truncf %618 : vector<24x8xf32> to vector<24x8xbf16>
    %620 = vector.extract_strided_slice %558 {offsets = [8, 0], sizes = [8, 32], strides = [1, 1]} : vector<32x32xbf16> to vector<8x32xbf16>
    %cst_286 = arith.constant dense<0.000000e+00> : vector<24x32xf32>
    %621 = tpu.matmul %619, %620, %cst_286 {dimension_numbers = #tpu.dot_dimension_numbers<[1], [0], [0], [1], [0, 0, 1, 1], [], []>} : vector<24x8xbf16>, vector<8x32xbf16>, vector<24x32xf32> -> vector<24x32xf32>
    %622 = arith.addf %599, %621 : vector<24x32xf32>
    %623 = vector.extract_strided_slice %573 {offsets = [0, 16], sizes = [24, 8], strides = [1, 1]} : vector<24x32xbf16> to vector<24x8xbf16>
    %624 = vector.extract_strided_slice %574 {offsets = [0, 16], sizes = [48, 8], strides = [1, 1]} : vector<48x32xbf16> to vector<48x8xbf16>
    %cst_287 = arith.constant dense<0.000000e+00> : vector<24x48xf32>
    %625 = tpu.matmul %623, %624, %cst_287 {dimension_numbers = #tpu.dot_dimension_numbers<[1], [1], [0], [0], [0, 0, 1, 0], [], []>} : vector<24x8xbf16>, vector<48x8xbf16>, vector<24x48xf32> -> vector<24x48xf32>
    %cst_288 = arith.constant 0.353553385 : f32
    %626 = vector.broadcast %cst_288 : f32 to vector<24x48xf32>
    %627 = arith.mulf %625, %626 : vector<24x48xf32>
    %628 = arith.addf %627, %544 : vector<24x48xf32>
    %cst_289 = arith.constant dense<0xFF800000> : vector<24xf32>
    %629 = vector.multi_reduction <maximumf>, %628, %cst_289 [1] : vector<24x48xf32> to vector<24xf32>
    %630 = vector.shape_cast %629 : vector<24xf32> to vector<24x1xf32>
    %631 = vector.broadcast %630 : vector<24x1xf32> to vector<24x48xf32>
    %632 = arith.subf %628, %631 : vector<24x48xf32>
    %633 = math.exp %632 : vector<24x48xf32>
    %cst_290 = arith.constant dense<0.000000e+00> : vector<24xf32>
    %634 = vector.multi_reduction <add>, %633, %cst_290 [1] : vector<24x48xf32> to vector<24xf32>
    %635 = vector.shape_cast %634 : vector<24xf32> to vector<24x1xf32>
    %636 = tpu.reciprocal %635 {approx = true} : vector<24x1xf32> -> vector<24x1xf32>
    %637 = vector.broadcast %636 : vector<24x1xf32> to vector<24x48xf32>
    %638 = arith.mulf %633, %637 : vector<24x48xf32>
    %639 = arith.truncf %638 : vector<24x48xf32> to vector<24x48xbf16>
    %640 = vector.extract_strided_slice %575 {offsets = [0, 16], sizes = [48, 8], strides = [1, 1]} : vector<48x32xbf16> to vector<48x8xbf16>
    %cst_291 = arith.constant dense<0.000000e+00> : vector<24x8xf32>
    %641 = tpu.matmul %639, %640, %cst_291 {dimension_numbers = #tpu.dot_dimension_numbers<[1], [0], [0], [1], [0, 0, 1, 1], [], []>} : vector<24x48xbf16>, vector<48x8xbf16>, vector<24x8xf32> -> vector<24x8xf32>
    %642 = arith.truncf %641 : vector<24x8xf32> to vector<24x8xbf16>
    %643 = vector.extract_strided_slice %558 {offsets = [16, 0], sizes = [8, 32], strides = [1, 1]} : vector<32x32xbf16> to vector<8x32xbf16>
    %cst_292 = arith.constant dense<0.000000e+00> : vector<24x32xf32>
    %644 = tpu.matmul %642, %643, %cst_292 {dimension_numbers = #tpu.dot_dimension_numbers<[1], [0], [0], [1], [0, 0, 1, 1], [], []>} : vector<24x8xbf16>, vector<8x32xbf16>, vector<24x32xf32> -> vector<24x32xf32>
    %645 = arith.addf %622, %644 : vector<24x32xf32>
    %646 = vector.extract_strided_slice %573 {offsets = [0, 24], sizes = [24, 8], strides = [1, 1]} : vector<24x32xbf16> to vector<24x8xbf16>
    %647 = vector.extract_strided_slice %574 {offsets = [0, 24], sizes = [48, 8], strides = [1, 1]} : vector<48x32xbf16> to vector<48x8xbf16>
    %cst_293 = arith.constant dense<0.000000e+00> : vector<24x48xf32>
    %648 = tpu.matmul %646, %647, %cst_293 {dimension_numbers = #tpu.dot_dimension_numbers<[1], [1], [0], [0], [0, 0, 1, 0], [], []>} : vector<24x8xbf16>, vector<48x8xbf16>, vector<24x48xf32> -> vector<24x48xf32>
    %cst_294 = arith.constant 0.353553385 : f32
    %649 = vector.broadcast %cst_294 : f32 to vector<24x48xf32>
    %650 = arith.mulf %648, %649 : vector<24x48xf32>
    %651 = arith.addf %650, %544 : vector<24x48xf32>
    %cst_295 = arith.constant dense<0xFF800000> : vector<24xf32>
    %652 = vector.multi_reduction <maximumf>, %651, %cst_295 [1] : vector<24x48xf32> to vector<24xf32>
    %653 = vector.shape_cast %652 : vector<24xf32> to vector<24x1xf32>
    %654 = vector.broadcast %653 : vector<24x1xf32> to vector<24x48xf32>
    %655 = arith.subf %651, %654 : vector<24x48xf32>
    %656 = math.exp %655 : vector<24x48xf32>
    %cst_296 = arith.constant dense<0.000000e+00> : vector<24xf32>
    %657 = vector.multi_reduction <add>, %656, %cst_296 [1] : vector<24x48xf32> to vector<24xf32>
    %658 = vector.shape_cast %657 : vector<24xf32> to vector<24x1xf32>
    %659 = tpu.reciprocal %658 {approx = true} : vector<24x1xf32> -> vector<24x1xf32>
    %660 = vector.broadcast %659 : vector<24x1xf32> to vector<24x48xf32>
    %661 = arith.mulf %656, %660 : vector<24x48xf32>
    %662 = arith.truncf %661 : vector<24x48xf32> to vector<24x48xbf16>
    %663 = vector.extract_strided_slice %575 {offsets = [0, 24], sizes = [48, 8], strides = [1, 1]} : vector<48x32xbf16> to vector<48x8xbf16>
    %cst_297 = arith.constant dense<0.000000e+00> : vector<24x8xf32>
    %664 = tpu.matmul %662, %663, %cst_297 {dimension_numbers = #tpu.dot_dimension_numbers<[1], [0], [0], [1], [0, 0, 1, 1], [], []>} : vector<24x48xbf16>, vector<48x8xbf16>, vector<24x8xf32> -> vector<24x8xf32>
    %665 = arith.truncf %664 : vector<24x8xf32> to vector<24x8xbf16>
    %666 = vector.extract_strided_slice %558 {offsets = [24, 0], sizes = [8, 32], strides = [1, 1]} : vector<32x32xbf16> to vector<8x32xbf16>
    %cst_298 = arith.constant dense<0.000000e+00> : vector<24x32xf32>
    %667 = tpu.matmul %665, %666, %cst_298 {dimension_numbers = #tpu.dot_dimension_numbers<[1], [0], [0], [1], [0, 0, 1, 1], [], []>} : vector<24x8xbf16>, vector<8x32xbf16>, vector<24x32xf32> -> vector<24x32xf32>
    %668 = arith.addf %645, %667 : vector<24x32xf32>
    %669 = vector.broadcast %560 : vector<1x32xf32> to vector<24x32xf32>
    %670 = arith.addf %668, %669 : vector<24x32xf32>
    %671 = arith.addf %543, %670 : vector<24x32xf32>
    %c4 = arith.constant 4 : index
    %c0_299 = arith.constant 0 : index
    %c0_300 = arith.constant 0 : index
    %672 = vector.load %arg20[%c4, %c0_299, %c0_300] : memref<6x1x32xf32, #tpu.memory_space<vmem>>, vector<1x1x32xf32>
    %673 = vector.shape_cast %672 : vector<1x1x32xf32> to vector<1x32xf32>
    %c4_301 = arith.constant 4 : index
    %c0_302 = arith.constant 0 : index
    %c0_303 = arith.constant 0 : index
    %674 = vector.load %arg21[%c4_301, %c0_302, %c0_303] : memref<6x1x32xf32, #tpu.memory_space<vmem>>, vector<1x1x32xf32>
    %675 = vector.shape_cast %674 : vector<1x1x32xf32> to vector<1x32xf32>
    %cst_304 = arith.constant dense<0.000000e+00> : vector<24xf32>
    %676 = vector.multi_reduction <add>, %671, %cst_304 [1] : vector<24x32xf32> to vector<24xf32>
    %677 = vector.shape_cast %676 : vector<24xf32> to vector<24x1xf32>
    %cst_305 = arith.constant 3.200000e+01 : f32
    %678 = vector.broadcast %cst_305 : f32 to vector<24x1xf32>
    %679 = arith.divf %677, %678 : vector<24x1xf32>
    %680 = vector.broadcast %679 : vector<24x1xf32> to vector<24x32xf32>
    %681 = arith.subf %671, %680 : vector<24x32xf32>
    %682 = arith.mulf %681, %681 : vector<24x32xf32>
    %cst_306 = arith.constant dense<0.000000e+00> : vector<24xf32>
    %683 = vector.multi_reduction <add>, %682, %cst_306 [1] : vector<24x32xf32> to vector<24xf32>
    %684 = vector.shape_cast %683 : vector<24xf32> to vector<24x1xf32>
    %cst_307 = arith.constant 3.200000e+01 : f32
    %685 = vector.broadcast %cst_307 : f32 to vector<24x1xf32>
    %686 = arith.divf %684, %685 : vector<24x1xf32>
    %cst_308 = arith.constant 9.99999974E-6 : f32
    %687 = vector.broadcast %cst_308 : f32 to vector<24x1xf32>
    %688 = arith.addf %686, %687 : vector<24x1xf32>
    %689 = math.rsqrt %688 : vector<24x1xf32>
    %690 = vector.broadcast %689 : vector<24x1xf32> to vector<24x32xf32>
    %691 = arith.mulf %681, %690 : vector<24x32xf32>
    %692 = vector.broadcast %673 : vector<1x32xf32> to vector<24x32xf32>
    %693 = arith.mulf %691, %692 : vector<24x32xf32>
    %694 = vector.broadcast %675 : vector<1x32xf32> to vector<24x32xf32>
    %695 = arith.addf %693, %694 : vector<24x32xf32>
    %696 = arith.addf %695, %695 : vector<24x32xf32>
    %c5 = arith.constant 5 : index
    %c0_309 = arith.constant 0 : index
    %c0_310 = arith.constant 0 : index
    %697 = vector.load %arg20[%c5, %c0_309, %c0_310] : memref<6x1x32xf32, #tpu.memory_space<vmem>>, vector<1x1x32xf32>
    %698 = vector.shape_cast %697 : vector<1x1x32xf32> to vector<1x32xf32>
    %c5_311 = arith.constant 5 : index
    %c0_312 = arith.constant 0 : index
    %c0_313 = arith.constant 0 : index
    %699 = vector.load %arg21[%c5_311, %c0_312, %c0_313] : memref<6x1x32xf32, #tpu.memory_space<vmem>>, vector<1x1x32xf32>
    %700 = vector.shape_cast %699 : vector<1x1x32xf32> to vector<1x32xf32>
    %cst_314 = arith.constant dense<0.000000e+00> : vector<24xf32>
    %701 = vector.multi_reduction <add>, %696, %cst_314 [1] : vector<24x32xf32> to vector<24xf32>
    %702 = vector.shape_cast %701 : vector<24xf32> to vector<24x1xf32>
    %cst_315 = arith.constant 3.200000e+01 : f32
    %703 = vector.broadcast %cst_315 : f32 to vector<24x1xf32>
    %704 = arith.divf %702, %703 : vector<24x1xf32>
    %705 = vector.broadcast %704 : vector<24x1xf32> to vector<24x32xf32>
    %706 = arith.subf %696, %705 : vector<24x32xf32>
    %707 = arith.mulf %706, %706 : vector<24x32xf32>
    %cst_316 = arith.constant dense<0.000000e+00> : vector<24xf32>
    %708 = vector.multi_reduction <add>, %707, %cst_316 [1] : vector<24x32xf32> to vector<24xf32>
    %709 = vector.shape_cast %708 : vector<24xf32> to vector<24x1xf32>
    %cst_317 = arith.constant 3.200000e+01 : f32
    %710 = vector.broadcast %cst_317 : f32 to vector<24x1xf32>
    %711 = arith.divf %709, %710 : vector<24x1xf32>
    %cst_318 = arith.constant 9.99999974E-6 : f32
    %712 = vector.broadcast %cst_318 : f32 to vector<24x1xf32>
    %713 = arith.addf %711, %712 : vector<24x1xf32>
    %714 = math.rsqrt %713 : vector<24x1xf32>
    %715 = vector.broadcast %714 : vector<24x1xf32> to vector<24x32xf32>
    %716 = arith.mulf %706, %715 : vector<24x32xf32>
    %717 = vector.broadcast %698 : vector<1x32xf32> to vector<24x32xf32>
    %718 = arith.mulf %716, %717 : vector<24x32xf32>
    %719 = vector.broadcast %700 : vector<1x32xf32> to vector<24x32xf32>
    %720 = arith.addf %718, %719 : vector<24x32xf32>
    %c0_319 = arith.constant 0 : index
    %c0_320 = arith.constant 0 : index
    %c0_321 = arith.constant 0 : index
    %721 = vector.load %arg24[%c0_319, %c0_320, %c0_321] : memref<1x24x32xf32, #tpu.memory_space<vmem>>, vector<1x24x32xf32>
    %722 = vector.shape_cast %721 : vector<1x24x32xf32> to vector<24x32xf32>
    %723 = vector.shape_cast %720 : vector<24x32xf32> to vector<1x24x32xf32>
    tpu.vector_store %arg24[%c0_319, %c0_320, %c0_321], %723 {strides = array<i32>} : memref<1x24x32xf32, #tpu.memory_space<vmem>>, vector<1x24x32xf32>,
    %724 = arith.truncf %720 : vector<24x32xf32> to vector<24x32xbf16>
    %c0_322 = arith.constant 0 : index
    %c0_323 = arith.constant 0 : index
    %725 = vector.load %arg22[%c0_322, %c0_323] : memref<32x16xbf16, #tpu.memory_space<vmem>>, vector<32x16xbf16>
    %cst_324 = arith.constant dense<0.000000e+00> : vector<24x16xf32>
    %726 = tpu.matmul %724, %725, %cst_324 {dimension_numbers = #tpu.dot_dimension_numbers<[1], [0], [0], [1], [0, 0, 1, 1], [], []>} : vector<24x32xbf16>, vector<32x16xbf16>, vector<24x16xf32> -> vector<24x16xf32>
    %c0_325 = arith.constant 0 : index
    %c0_326 = arith.constant 0 : index
    %727 = vector.load %arg23[%c0_325, %c0_326] : memref<1x16xf32, #tpu.memory_space<vmem>>, vector<1x16xf32>
    %728 = vector.broadcast %727 : vector<1x16xf32> to vector<24x16xf32>
    %729 = arith.addf %726, %728 : vector<24x16xf32>
    %c0_327 = arith.constant 0 : index
    %c0_328 = arith.constant 0 : index
    %c0_329 = arith.constant 0 : index
    %730 = vector.load %arg25[%c0_327, %c0_328, %c0_329] : memref<1x24x16xf32, #tpu.memory_space<vmem>>, vector<1x24x16xf32>
    %731 = vector.shape_cast %730 : vector<1x24x16xf32> to vector<24x16xf32>
    %732 = vector.shape_cast %729 : vector<24x16xf32> to vector<1x24x16xf32>
    tpu.vector_store %arg25[%c0_327, %c0_328, %c0_329], %732 {strides = array<i32>} : memref<1x24x16xf32, #tpu.memory_space<vmem>>, vector<1x24x16xf32>,
    return
  }
  func.func @transform_0(%arg0: i32) -> (i32, i32, i32) {
    %c0_i32 = arith.constant 0 : i32
    %c0_i32_0 = arith.constant 0 : i32
    %c0_i32_1 = arith.constant 0 : i32
    return %arg0, %c0_i32, %c0_i32_0 : i32, i32, i32
  }
  func.func @transform_1(%arg0: i32) -> (i32, i32, i32) {
    %c0_i32 = arith.constant 0 : i32
    %c0_i32_0 = arith.constant 0 : i32
    %c0_i32_1 = arith.constant 0 : i32
    return %arg0, %c0_i32, %c0_i32_0 : i32, i32, i32
  }
  func.func @transform_2(%arg0: i32) -> (i32, i32) {
    %c0_i32 = arith.constant 0 : i32
    %c0_i32_0 = arith.constant 0 : i32
    %c0_i32_1 = arith.constant 0 : i32
    return %c0_i32, %c0_i32_0 : i32, i32
  }
  func.func @transform_3(%arg0: i32) -> (i32, i32) {
    %c0_i32 = arith.constant 0 : i32
    %c0_i32_0 = arith.constant 0 : i32
    %c0_i32_1 = arith.constant 0 : i32
    return %c0_i32, %c0_i32_0 : i32, i32
  }
  func.func @transform_4(%arg0: i32) -> (i32, i32) {
    %c0_i32 = arith.constant 0 : i32
    %c0_i32_0 = arith.constant 0 : i32
    %c0_i32_1 = arith.constant 0 : i32
    return %c0_i32, %c0_i32_0 : i32, i32
  }
  func.func @transform_5(%arg0: i32) -> (i32, i32) {
    %c0_i32 = arith.constant 0 : i32
    %c0_i32_0 = arith.constant 0 : i32
    %c0_i32_1 = arith.constant 0 : i32
    return %c0_i32, %c0_i32_0 : i32, i32
  }
  func.func @transform_6(%arg0: i32) -> (i32, i32) {
    %c0_i32 = arith.constant 0 : i32
    %c0_i32_0 = arith.constant 0 : i32
    %c0_i32_1 = arith.constant 0 : i32
    return %c0_i32, %c0_i32_0 : i32, i32
  }
  func.func @transform_7(%arg0: i32) -> (i32, i32, i32) {
    %c0_i32 = arith.constant 0 : i32
    %c0_i32_0 = arith.constant 0 : i32
    %c0_i32_1 = arith.constant 0 : i32
    %c0_i32_2 = arith.constant 0 : i32
    return %c0_i32, %c0_i32_0, %c0_i32_1 : i32, i32, i32
  }
  func.func @transform_8(%arg0: i32) -> (i32, i32, i32) {
    %c0_i32 = arith.constant 0 : i32
    %c0_i32_0 = arith.constant 0 : i32
    %c0_i32_1 = arith.constant 0 : i32
    %c0_i32_2 = arith.constant 0 : i32
    return %c0_i32, %c0_i32_0, %c0_i32_1 : i32, i32, i32
  }
  func.func @transform_9(%arg0: i32) -> (i32, i32, i32) {
    %c0_i32 = arith.constant 0 : i32
    %c0_i32_0 = arith.constant 0 : i32
    %c0_i32_1 = arith.constant 0 : i32
    %c0_i32_2 = arith.constant 0 : i32
    return %c0_i32, %c0_i32_0, %c0_i32_1 : i32, i32, i32
  }
  func.func @transform_10(%arg0: i32) -> (i32, i32, i32) {
    %c0_i32 = arith.constant 0 : i32
    %c0_i32_0 = arith.constant 0 : i32
    %c0_i32_1 = arith.constant 0 : i32
    %c0_i32_2 = arith.constant 0 : i32
    return %c0_i32, %c0_i32_0, %c0_i32_1 : i32, i32, i32
  }
  func.func @transform_11(%arg0: i32) -> (i32, i32, i32) {
    %c0_i32 = arith.constant 0 : i32
    %c0_i32_0 = arith.constant 0 : i32
    %c0_i32_1 = arith.constant 0 : i32
    %c0_i32_2 = arith.constant 0 : i32
    return %c0_i32, %c0_i32_0, %c0_i32_1 : i32, i32, i32
  }
  func.func @transform_12(%arg0: i32) -> (i32, i32, i32) {
    %c0_i32 = arith.constant 0 : i32
    %c0_i32_0 = arith.constant 0 : i32
    %c0_i32_1 = arith.constant 0 : i32
    %c0_i32_2 = arith.constant 0 : i32
    return %c0_i32, %c0_i32_0, %c0_i32_1 : i32, i32, i32
  }
  func.func @transform_13(%arg0: i32) -> (i32, i32, i32) {
    %c0_i32 = arith.constant 0 : i32
    %c0_i32_0 = arith.constant 0 : i32
    %c0_i32_1 = arith.constant 0 : i32
    %c0_i32_2 = arith.constant 0 : i32
    return %c0_i32, %c0_i32_0, %c0_i32_1 : i32, i32, i32
  }
  func.func @transform_14(%arg0: i32) -> (i32, i32, i32) {
    %c0_i32 = arith.constant 0 : i32
    %c0_i32_0 = arith.constant 0 : i32
    %c0_i32_1 = arith.constant 0 : i32
    %c0_i32_2 = arith.constant 0 : i32
    return %c0_i32, %c0_i32_0, %c0_i32_1 : i32, i32, i32
  }
  func.func @transform_15(%arg0: i32) -> (i32, i32, i32) {
    %c0_i32 = arith.constant 0 : i32
    %c0_i32_0 = arith.constant 0 : i32
    %c0_i32_1 = arith.constant 0 : i32
    %c0_i32_2 = arith.constant 0 : i32
    return %c0_i32, %c0_i32_0, %c0_i32_1 : i32, i32, i32
  }
  func.func @transform_16(%arg0: i32) -> (i32, i32, i32) {
    %c0_i32 = arith.constant 0 : i32
    %c0_i32_0 = arith.constant 0 : i32
    %c0_i32_1 = arith.constant 0 : i32
    %c0_i32_2 = arith.constant 0 : i32
    return %c0_i32, %c0_i32_0, %c0_i32_1 : i32, i32, i32
  }
  func.func @transform_17(%arg0: i32) -> (i32, i32, i32) {
    %c0_i32 = arith.constant 0 : i32
    %c0_i32_0 = arith.constant 0 : i32
    %c0_i32_1 = arith.constant 0 : i32
    %c0_i32_2 = arith.constant 0 : i32
    return %c0_i32, %c0_i32_0, %c0_i32_1 : i32, i32, i32
  }
  func.func @transform_18(%arg0: i32) -> (i32, i32, i32) {
    %c0_i32 = arith.constant 0 : i32
    %c0_i32_0 = arith.constant 0 : i32
    %c0_i32_1 = arith.constant 0 : i32
    %c0_i32_2 = arith.constant 0 : i32
    return %c0_i32, %c0_i32_0, %c0_i32_1 : i32, i32, i32
  }
  func.func @transform_19(%arg0: i32) -> (i32, i32, i32) {
    %c0_i32 = arith.constant 0 : i32
    %c0_i32_0 = arith.constant 0 : i32
    %c0_i32_1 = arith.constant 0 : i32
    %c0_i32_2 = arith.constant 0 : i32
    return %c0_i32, %c0_i32_0, %c0_i32_1 : i32, i32, i32
  }
  func.func @transform_20(%arg0: i32) -> (i32, i32, i32) {
    %c0_i32 = arith.constant 0 : i32
    %c0_i32_0 = arith.constant 0 : i32
    %c0_i32_1 = arith.constant 0 : i32
    %c0_i32_2 = arith.constant 0 : i32
    return %c0_i32, %c0_i32_0, %c0_i32_1 : i32, i32, i32
  }
  func.func @transform_21(%arg0: i32) -> (i32, i32) {
    %c0_i32 = arith.constant 0 : i32
    %c0_i32_0 = arith.constant 0 : i32
    %c0_i32_1 = arith.constant 0 : i32
    return %c0_i32, %c0_i32_0 : i32, i32
  }
  func.func @transform_22(%arg0: i32) -> (i32, i32) {
    %c0_i32 = arith.constant 0 : i32
    %c0_i32_0 = arith.constant 0 : i32
    %c0_i32_1 = arith.constant 0 : i32
    return %c0_i32, %c0_i32_0 : i32, i32
  }
  func.func @transform_23(%arg0: i32) -> (i32, i32, i32) {
    %c0_i32 = arith.constant 0 : i32
    %c0_i32_0 = arith.constant 0 : i32
    %c0_i32_1 = arith.constant 0 : i32
    return %arg0, %c0_i32, %c0_i32_0 : i32, i32, i32
  }
  func.func @transform_24(%arg0: i32) -> (i32, i32, i32) {
    %c0_i32 = arith.constant 0 : i32
    %c0_i32_0 = arith.constant 0 : i32
    %c0_i32_1 = arith.constant 0 : i32
    return %arg0, %c0_i32, %c0_i32_0 : i32, i32, i32
  }
}

</mosaic_0001>

<llo_original>
// kernel: decoder_layer_forward.1
$region0: #{decoder_layer_forward.1}
  #allocation0 [shape = 'u32[]', space=smem, size = 0x4, offset = 0x4, fixed_abs, tag = 'smem constant byte address 0x4 - core index']
  #allocation1 [shape = 'u32[72,128]{1,0:T(1,128)}', space=vmem, size = 0x9000, scoped, tag = 'internal scratch']
  %s0 = inlined_call_operand.hbm [shape: f32[2,24,32], index: 0, kind: input, shape index: {}]
  %s1 = inlined_call_operand.vmem [shape: f32[2,48,32], index: 1, kind: input, shape index: {}]
  %s2 = inlined_call_operand.hbm [shape: f32[32,32], index: 2, kind: input, shape index: {}]
  %s3 = inlined_call_operand.hbm [shape: f32[24,24], index: 3, kind: input, shape index: {}]
  %s4 = inlined_call_operand.hbm [shape: f32[32,24], index: 4, kind: input, shape index: {}]
  %s5 = inlined_call_operand.hbm [shape: f32[24,32], index: 5, kind: input, shape index: {}]
  %s6 = inlined_call_operand.hbm [shape: f32[24,48], index: 6, kind: input, shape index: {}]
  %s7 = inlined_call_operand.vmem [shape: bf16[4,32,32], index: 7, kind: input, shape index: {}]
  %s8 = inlined_call_operand.hbm [shape: f32[4,1,32], index: 8, kind: input, shape index: {}]
  %s9 = inlined_call_operand.hbm [shape: bf16[4,32,32], index: 9, kind: input, shape index: {}]
  %s10 = inlined_call_operand.hbm [shape: f32[4,1,32], index: 10, kind: input, shape index: {}]
  %s11 = inlined_call_operand.hbm [shape: bf16[4,32,32], index: 11, kind: input, shape index: {}]
  %s12 = inlined_call_operand.hbm [shape: f32[4,1,32], index: 12, kind: input, shape index: {}]
  %s13 = inlined_call_operand.hbm [shape: bf16[4,32,32], index: 13, kind: input, shape index: {}]
  %s14 = inlined_call_operand.hbm [shape: f32[4,1,32], index: 14, kind: input, shape index: {}]
  %s15 = inlined_call_operand.hbm [shape: bf16[2,32,128], index: 15, kind: input, shape index: {}]
  %s16 = inlined_call_operand.vmem [shape: f32[2,1,128], index: 16, kind: input, shape index: {}]
  %s17 = inlined_call_operand.vmem [shape: bf16[2,128,32], index: 17, kind: input, shape index: {}]
  %s18 = inlined_call_operand.hbm [shape: f32[2,1,32], index: 18, kind: input, shape index: {}]
  %s19 = inlined_call_operand.hbm [shape: f32[6,1,32], index: 19, kind: input, shape index: {}]
  %s20 = inlined_call_operand.hbm [shape: f32[6,1,32], index: 20, kind: input, shape index: {}]
  %s21 = inlined_call_operand.vmem [shape: bf16[32,16], index: 21, kind: input, shape index: {}]
  %s22 = inlined_call_operand.hbm [shape: f32[1,16], index: 22, kind: input, shape index: {}]
  %s23 = inlined_call_operand.hbm [shape: f32[2,24,32], index: 23, kind: output, shape index: {0}]
  %s24 = inlined_call_operand.vmem [shape: f32[2,24,16], index: 24, kind: output, shape index: {1}]
  %25 = xla_tuple %s23, %s24
  %s26 = sld [smem:[#allocation0]]
  $region205: #{decoder_layer_forward.1} parent=0
    _
  %s28 = ssub.s32 1, %s26
  %s29 = scalar_select 0, %s28, %s26
  $region1: #{decoder_layer_forward.1} parent=0
    #allocation2 [shape = 'u8[24576]{0}', space=vmem, size = 0x6000, scoped, tag = 'input window, operand 0']
    #allocation3 [shape = 's32[2]{0}', space=sflag, size = 0x8, scoped, tag = 'scoped memory for decoder_layer_forward.1']
    #allocation4 [shape = 's32[2]{0}', space=sflag, size = 0x8, scoped, tag = 'scoped memory for decoder_layer_forward.1']
    #allocation5 [shape = 'u8[16384]{0}', space=vmem, size = 0x4000, scoped, tag = 'input window, operand 2, single buffered']
    #allocation6 [shape = 's32[1]{0}', space=sflag, size = 0x4, scoped, tag = 'scoped memory for decoder_layer_forward.1']
    #allocation7 [shape = 'u8[12288]{0}', space=vmem, size = 0x3000, scoped, tag = 'input window, operand 3, single buffered']
    #allocation8 [shape = 'u8[16384]{0}', space=vmem, size = 0x4000, scoped, tag = 'input window, operand 4, single buffered']
    #allocation9 [shape = 's32[1]{0}', space=sflag, size = 0x4, scoped, tag = 'scoped memory for decoder_layer_forward.1']
    #allocation10 [shape = 'u8[12288]{0}', space=vmem, size = 0x3000, scoped, tag = 'input window, operand 5, single buffered']
    #allocation11 [shape = 'u8[12288]{0}', space=vmem, size = 0x3000, scoped, tag = 'input window, operand 6, single buffered']
    #allocation12 [shape = 's32[1]{0}', space=sflag, size = 0x4, scoped, tag = 'scoped memory for decoder_layer_forward.1']
    #allocation13 [shape = 'u8[2048]{0}', space=vmem, size = 0x800, scoped, tag = 'input window, operand 8, single buffered']
    #allocation14 [shape = 'u8[32768]{0}', space=vmem, size = 0x8000, scoped, tag = 'input window, operand 9, single buffered']
    #allocation15 [shape = 's32[1]{0}', space=sflag, size = 0x4, scoped, tag = 'scoped memory for decoder_layer_forward.1']
    #allocation16 [shape = 'u8[2048]{0}', space=vmem, size = 0x800, scoped, tag = 'input window, operand 10, single buffered']
    #allocation17 [shape = 'u8[32768]{0}', space=vmem, size = 0x8000, scoped, tag = 'input window, operand 11, single buffered']
    #allocation18 [shape = 's32[1]{0}', space=sflag, size = 0x4, scoped, tag = 'scoped memory for decoder_layer_forward.1']
    #allocation19 [shape = 'u8[2048]{0}', space=vmem, size = 0x800, scoped, tag = 'input window, operand 12, single buffered']
    #allocation20 [shape = 'u8[32768]{0}', space=vmem, size = 0x8000, scoped, tag = 'input window, operand 13, single buffered']
    #allocation21 [shape = 's32[1]{0}', space=sflag, size = 0x4, scoped, tag = 'scoped memory for decoder_layer_forward.1']
    #allocation22 [shape = 'u8[2048]{0}', space=vmem, size = 0x800, scoped, tag = 'input window, operand 14, single buffered']
    #allocation23 [shape = 'u8[16384]{0}', space=vmem, size = 0x4000, scoped, tag = 'input window, operand 15, single buffered']
    #allocation24 [shape = 's32[1]{0}', space=sflag, size = 0x4, scoped, tag = 'scoped memory for decoder_layer_forward.1']
    #allocation25 [shape = 'u8[1024]{0}', space=vmem, size = 0x400, scoped, tag = 'input window, operand 18, single buffered']
    #allocation26 [shape = 'u8[3072]{0}', space=vmem, size = 0xc00, scoped, tag = 'input window, operand 19, single buffered']
    #allocation27 [shape = 's32[1]{0}', space=sflag, size = 0x4, scoped, tag = 'scoped memory for decoder_layer_forward.1']
    #allocation28 [shape = 'u8[3072]{0}', space=vmem, size = 0xc00, scoped, tag = 'input window, operand 20, single buffered']
    #allocation29 [shape = 'u8[512]{0}', space=vmem, size = 0x400, scoped, tag = 'input window, operand 22, single buffered']
    #allocation30 [shape = 's32[1]{0}', space=sflag, size = 0x4, scoped, tag = 'scoped memory for decoder_layer_forward.1']
    #allocation31 [shape = 'u8[24576]{0}', space=vmem, size = 0x6000, scoped, tag = 'output window, operand 0']
    %30 = vsyncpa [#allocation3], 0
    %s31 = scalar_lea.sflag [#allocation3], 1
    %32 = vsyncpa %s31, 0
    %33 = vsyncpa [#allocation6], 0
    %34 = vsyncpa [#allocation9], 0
    %35 = vsyncpa [#allocation12], 0
    %36 = vsyncpa [#allocation15], 0
    %37 = vsyncpa [#allocation18], 0
    %38 = vsyncpa [#allocation21], 0
    %39 = vsyncpa [#allocation24], 0
    %40 = vsyncpa [#allocation27], 0
    %41 = vsyncpa [#allocation30], 0
    %42 = vsyncpa [#allocation4], 0
    %s43 = scalar_lea.sflag [#allocation4], 1
    %44 = vsyncpa %s43, 0
    loop: start=0, step=1, limit=4
    $region2: #{decoder_layer_forward.1} parent=1 // loop_pre_header
      _
    $region3: #{decoder_layer_forward.1} parent=1 // loop_header
      %s46 = sphi 0, %s50
      %p47 = scmp.ge.s32.totalorder %s46, 4
      %s56 = sphi 0, %s58
      %s59 = sphi 0, %s56
      %s60 = sphi 0, %s59
      %s76 = sphi 0, %s60
      %s82 = sphi 0, %s84
      %s85 = sphi 0, %s82
      %s86 = sphi 0, %s85
      %s102 = sphi 0, %s86
      %s106 = sphi 0, %s106
      %s108 = sphi 0, %s106
      %s109 = sphi 0, %s108
      %s123 = sphi 0, %s109
      %s127 = sphi 0, %s127
      %s129 = sphi 0, %s127
      %s130 = sphi 0, %s129
      %s144 = sphi 0, %s130
      %s148 = sphi 0, %s148
      %s150 = sphi 0, %s148
      %s151 = sphi 0, %s150
      %s165 = sphi 0, %s151
      %s169 = sphi 0, %s169
      %s171 = sphi 0, %s169
      %s172 = sphi 0, %s171
      %s186 = sphi 0, %s172
      %s190 = sphi 0, %s190
      %s192 = sphi 0, %s190
      %s193 = sphi 0, %s192
      %s207 = sphi 0, %s193
      %s211 = sphi 0, %s211
      %s213 = sphi 0, %s211
      %s214 = sphi 0, %s213
      %s228 = sphi 0, %s214
      %s232 = sphi 0, %s232
      %s234 = sphi 0, %s232
      %s235 = sphi 0, %s234
      %s249 = sphi 0, %s235
      %s253 = sphi 0, %s253
      %s255 = sphi 0, %s253
      %s256 = sphi 0, %s255
      %s270 = sphi 0, %s256
      %s274 = sphi 0, %s274
      %s276 = sphi 0, %s274
      %s277 = sphi 0, %s276
      %s291 = sphi 0, %s277
      %s295 = sphi 0, %s295
      %s297 = sphi 0, %s295
      %s298 = sphi 0, %s297
      %s312 = sphi 0, %s298
      %s316 = sphi 0, %s316
      %s318 = sphi 0, %s316
      %s319 = sphi 0, %s318
      %s333 = sphi 0, %s319
      %s337 = sphi 0, %s337
      %s339 = sphi 0, %s337
      %s340 = sphi 0, %s339
      %s354 = sphi 0, %s340
      %s358 = sphi 0, %s358
      %s360 = sphi 0, %s358
      %s361 = sphi 0, %s360
      %s375 = sphi 0, %s361
      %s379 = sphi 0, %s379
      %s381 = sphi 0, %s379
      %s382 = sphi 0, %s381
      %s396 = sphi 0, %s382
      %s400 = sphi 0, %s400
      %s402 = sphi 0, %s400
      %s403 = sphi 0, %s402
      %s417 = sphi 0, %s403
      %s421 = sphi 0, %s421
      %s423 = sphi 0, %s421
      %s424 = sphi 0, %s423
      %s438 = sphi 0, %s424
      %s442 = sphi 0, %s442
      %s444 = sphi 0, %s442
      %s445 = sphi 0, %s444
      %s459 = sphi 0, %s445
      %s463 = sphi 0, %s463
      %s465 = sphi 0, %s463
      %s466 = sphi 0, %s465
      %s480 = sphi 0, %s466
      %s484 = sphi 0, %s484
      %s486 = sphi 0, %s484
      %s487 = sphi 0, %s486
      %s501 = sphi 0, %s487
      %s505 = sphi 0, %s505
      %s507 = sphi 0, %s505
      %s508 = sphi 0, %s507
      %s522 = sphi 0, %s508
      %s526 = sphi 0, %s526
      %s528 = sphi 0, %s526
      %s529 = sphi 0, %s528
      %s543 = sphi 0, %s529
      %s549 = sphi 0, %s551
      %s552 = sphi 0, %s549
      %s553 = sphi 0, %s552
      %s569 = sphi 0, %s553
      %s575 = sphi 0, %s577
      %s578 = sphi 0, %s575
      %s579 = sphi 0, %s578
      %s595 = sphi 0, %s579
    $region4: #{decoder_layer_forward.1} parent=1 // loop_header_branch
      %49 = sbr.rel (%p47) target = $region8
    $region5: #{decoder_layer_forward.1} parent=1 // loop_body
      %s51 = ssub.s32 %s46, 1
      %s52 = ssub.s32 %s46, 2
      %s53 = sadd.s32 %s46, 1
      %s54 = ssub.s32 %s46, %s53
      %p55 = scmp.eq.s32.totalorder %s54, 0
      %s57 = sadd.s32 %s56, 1
      %s58 = scalar_select %p55, %s56, %s57
      %p61 = pneg %p55
      %p62 = scmp.eq.s32.totalorder %s46, 1
      %p63 = por %p61, %p62
      %p64 = scmp.ne.s32.totalorder %s56, %s59
      %p65 = scmp.eq.s32.totalorder %s46, 0
      %p66 = por %p64, %p65
      %p67 = scmp.ne.s32.totalorder %s56, %s59
      %p68 = scmp.eq.s32.totalorder %s51, 1
      %p69 = por %p67, %p68
      %p70 = scmp.ne.s32.totalorder %s59, %s60
      %p71 = scmp.eq.s32.totalorder %s51, 0
      %p72 = por %p70, %p71
      %p73 = scmp.ne.s32.totalorder %s59, %s60
      %p74 = scmp.eq.s32.totalorder %s52, 1
      %p75 = por %p73, %p74
      %p77 = scmp.ne.s32.totalorder %s60, %s76
      %p78 = scmp.eq.s32.totalorder %s52, 0
      %p79 = por %p77, %p78
      %s80 = ssub.s32 %s46, %s53
      %p81 = scmp.eq.s32.totalorder %s80, 0
      %s83 = sadd.s32 %s82, 1
      %s84 = scalar_select %p81, %s82, %s83
      %p87 = pneg %p81
      %p88 = scmp.eq.s32.totalorder %s46, 1
      %p89 = por %p87, %p88
      %p90 = scmp.ne.s32.totalorder %s82, %s85
      %p91 = scmp.eq.s32.totalorder %s46, 0
      %p92 = por %p90, %p91
      %p93 = scmp.ne.s32.totalorder %s82, %s85
      %p94 = scmp.eq.s32.totalorder %s51, 1
      %p95 = por %p93, %p94
      %p96 = scmp.ne.s32.totalorder %s85, %s86
      %p97 = scmp.eq.s32.totalorder %s51, 0
      %p98 = por %p96, %p97
      %p99 = scmp.ne.s32.totalorder %s85, %s86
      %p100 = scmp.eq.s32.totalorder %s52, 1
      %p101 = por %p99, %p100
      %p103 = scmp.ne.s32.totalorder %s86, %s102
      %p104 = scmp.eq.s32.totalorder %s52, 0
      %p105 = por %p103, %p104
      %s107 = sadd.s32 %s106, 1
      %p110 = scmp.eq.s32.totalorder %s46, 1
      %p111 = scmp.ne.s32.totalorder %s106, %s108
      %p112 = scmp.eq.s32.totalorder %s46, 0
      %p113 = por %p111, %p112
      %p114 = scmp.ne.s32.totalorder %s106, %s108
      %p115 = scmp.eq.s32.totalorder %s51, 1
      %p116 = por %p114, %p115
      %p117 = scmp.ne.s32.totalorder %s108, %s109
      %p118 = scmp.eq.s32.totalorder %s51, 0
      %p119 = por %p117, %p118
      %p120 = scmp.ne.s32.totalorder %s108, %s109
      %p121 = scmp.eq.s32.totalorder %s52, 1
      %p122 = por %p120, %p121
      %p124 = scmp.ne.s32.totalorder %s109, %s123
      %p125 = scmp.eq.s32.totalorder %s52, 0
      %p126 = por %p124, %p125
      %s128 = sadd.s32 %s127, 1
      %p131 = scmp.eq.s32.totalorder %s46, 1
      %p132 = scmp.ne.s32.totalorder %s127, %s129
      %p133 = scmp.eq.s32.totalorder %s46, 0
      %p134 = por %p132, %p133
      %p135 = scmp.ne.s32.totalorder %s127, %s129
      %p136 = scmp.eq.s32.totalorder %s51, 1
      %p137 = por %p135, %p136
      %p138 = scmp.ne.s32.totalorder %s129, %s130
      %p139 = scmp.eq.s32.totalorder %s51, 0
      %p140 = por %p138, %p139
      %p141 = scmp.ne.s32.totalorder %s129, %s130
      %p142 = scmp.eq.s32.totalorder %s52, 1
      %p143 = por %p141, %p142
      %p145 = scmp.ne.s32.totalorder %s130, %s144
      %p146 = scmp.eq.s32.totalorder %s52, 0
      %p147 = por %p145, %p146
      %s149 = sadd.s32 %s148, 1
      %p152 = scmp.eq.s32.totalorder %s46, 1
      %p153 = scmp.ne.s32.totalorder %s148, %s150
      %p154 = scmp.eq.s32.totalorder %s46, 0
      %p155 = por %p153, %p154
      %p156 = scmp.ne.s32.totalorder %s148, %s150
      %p157 = scmp.eq.s32.totalorder %s51, 1
      %p158 = por %p156, %p157
      %p159 = scmp.ne.s32.totalorder %s150, %s151
      %p160 = scmp.eq.s32.totalorder %s51, 0
      %p161 = por %p159, %p160
      %p162 = scmp.ne.s32.totalorder %s150, %s151
      %p163 = scmp.eq.s32.totalorder %s52, 1
      %p164 = por %p162, %p163
      %p166 = scmp.ne.s32.totalorder %s151, %s165
      %p167 = scmp.eq.s32.totalorder %s52, 0
      %p168 = por %p166, %p167
      %s170 = sadd.s32 %s169, 1
      %p173 = scmp.eq.s32.totalorder %s46, 1
      %p174 = scmp.ne.s32.totalorder %s169, %s171
      %p175 = scmp.eq.s32.totalorder %s46, 0
      %p176 = por %p174, %p175
      %p177 = scmp.ne.s32.totalorder %s169, %s171
      %p178 = scmp.eq.s32.totalorder %s51, 1
      %p179 = por %p177, %p178
      %p180 = scmp.ne.s32.totalorder %s171, %s172
      %p181 = scmp.eq.s32.totalorder %s51, 0
      %p182 = por %p180, %p181
      %p183 = scmp.ne.s32.totalorder %s171, %s172
      %p184 = scmp.eq.s32.totalorder %s52, 1
      %p185 = por %p183, %p184
      %p187 = scmp.ne.s32.totalorder %s172, %s186
      %p188 = scmp.eq.s32.totalorder %s52, 0
      %p189 = por %p187, %p188
      %s191 = sadd.s32 %s190, 1
      %p194 = scmp.eq.s32.totalorder %s46, 1
      %p195 = scmp.ne.s32.totalorder %s190, %s192
      %p196 = scmp.eq.s32.totalorder %s46, 0
      %p197 = por %p195, %p196
      %p198 = scmp.ne.s32.totalorder %s190, %s192
      %p199 = scmp.eq.s32.totalorder %s51, 1
      %p200 = por %p198, %p199
      %p201 = scmp.ne.s32.totalorder %s192, %s193
      %p202 = scmp.eq.s32.totalorder %s51, 0
      %p203 = por %p201, %p202
      %p204 = scmp.ne.s32.totalorder %s192, %s193
      %p205 = scmp.eq.s32.totalorder %s52, 1
      %p206 = por %p204, %p205
      %p208 = scmp.ne.s32.totalorder %s193, %s207
      %p209 = scmp.eq.s32.totalorder %s52, 0
      %p210 = por %p208, %p209
      %s212 = sadd.s32 %s211, 1
      %p215 = scmp.eq.s32.totalorder %s46, 1
      %p216 = scmp.ne.s32.totalorder %s211, %s213
      %p217 = scmp.eq.s32.totalorder %s46, 0
      %p218 = por %p216, %p217
      %p219 = scmp.ne.s32.totalorder %s211, %s213
      %p220 = scmp.eq.s32.totalorder %s51, 1
      %p221 = por %p219, %p220
      %p222 = scmp.ne.s32.totalorder %s213, %s214
      %p223 = scmp.eq.s32.totalorder %s51, 0
      %p224 = por %p222, %p223
      %p225 = scmp.ne.s32.totalorder %s213, %s214
      %p226 = scmp.eq.s32.totalorder %s52, 1
      %p227 = por %p225, %p226
      %p229 = scmp.ne.s32.totalorder %s214, %s228
      %p230 = scmp.eq.s32.totalorder %s52, 0
      %p231 = por %p229, %p230
      %s233 = sadd.s32 %s232, 1
      %p236 = scmp.eq.s32.totalorder %s46, 1
      %p237 = scmp.ne.s32.totalorder %s232, %s234
      %p238 = scmp.eq.s32.totalorder %s46, 0
      %p239 = por %p237, %p238
      %p240 = scmp.ne.s32.totalorder %s232, %s234
      %p241 = scmp.eq.s32.totalorder %s51, 1
      %p242 = por %p240, %p241
      %p243 = scmp.ne.s32.totalorder %s234, %s235
      %p244 = scmp.eq.s32.totalorder %s51, 0
      %p245 = por %p243, %p244
      %p246 = scmp.ne.s32.totalorder %s234, %s235
      %p247 = scmp.eq.s32.totalorder %s52, 1
      %p248 = por %p246, %p247
      %p250 = scmp.ne.s32.totalorder %s235, %s249
      %p251 = scmp.eq.s32.totalorder %s52, 0
      %p252 = por %p250, %p251
      %s254 = sadd.s32 %s253, 1
      %p257 = scmp.eq.s32.totalorder %s46, 1
      %p258 = scmp.ne.s32.totalorder %s253, %s255
      %p259 = scmp.eq.s32.totalorder %s46, 0
      %p260 = por %p258, %p259
      %p261 = scmp.ne.s32.totalorder %s253, %s255
      %p262 = scmp.eq.s32.totalorder %s51, 1
      %p263 = por %p261, %p262
      %p264 = scmp.ne.s32.totalorder %s255, %s256
      %p265 = scmp.eq.s32.totalorder %s51, 0
      %p266 = por %p264, %p265
      %p267 = scmp.ne.s32.totalorder %s255, %s256
      %p268 = scmp.eq.s32.totalorder %s52, 1
      %p269 = por %p267, %p268
      %p271 = scmp.ne.s32.totalorder %s256, %s270
      %p272 = scmp.eq.s32.totalorder %s52, 0
      %p273 = por %p271, %p272
      %s275 = sadd.s32 %s274, 1
      %p278 = scmp.eq.s32.totalorder %s46, 1
      %p279 = scmp.ne.s32.totalorder %s274, %s276
      %p280 = scmp.eq.s32.totalorder %s46, 0
      %p281 = por %p279, %p280
      %p282 = scmp.ne.s32.totalorder %s274, %s276
      %p283 = scmp.eq.s32.totalorder %s51, 1
      %p284 = por %p282, %p283
      %p285 = scmp.ne.s32.totalorder %s276, %s277
      %p286 = scmp.eq.s32.totalorder %s51, 0
      %p287 = por %p285, %p286
      %p288 = scmp.ne.s32.totalorder %s276, %s277
      %p289 = scmp.eq.s32.totalorder %s52, 1
      %p290 = por %p288, %p289
      %p292 = scmp.ne.s32.totalorder %s277, %s291
      %p293 = scmp.eq.s32.totalorder %s52, 0
      %p294 = por %p292, %p293
      %s296 = sadd.s32 %s295, 1
      %p299 = scmp.eq.s32.totalorder %s46, 1
      %p300 = scmp.ne.s32.totalorder %s295, %s297
      %p301 = scmp.eq.s32.totalorder %s46, 0
      %p302 = por %p300, %p301
      %p303 = scmp.ne.s32.totalorder %s295, %s297
      %p304 = scmp.eq.s32.totalorder %s51, 1
      %p305 = por %p303, %p304
      %p306 = scmp.ne.s32.totalorder %s297, %s298
      %p307 = scmp.eq.s32.totalorder %s51, 0
      %p308 = por %p306, %p307
      %p309 = scmp.ne.s32.totalorder %s297, %s298
      %p310 = scmp.eq.s32.totalorder %s52, 1
      %p311 = por %p309, %p310
      %p313 = scmp.ne.s32.totalorder %s298, %s312
      %p314 = scmp.eq.s32.totalorder %s52, 0
      %p315 = por %p313, %p314
      %s317 = sadd.s32 %s316, 1
      %p320 = scmp.eq.s32.totalorder %s46, 1
      %p321 = scmp.ne.s32.totalorder %s316, %s318
      %p322 = scmp.eq.s32.totalorder %s46, 0
      %p323 = por %p321, %p322
      %p324 = scmp.ne.s32.totalorder %s316, %s318
      %p325 = scmp.eq.s32.totalorder %s51, 1
      %p326 = por %p324, %p325
      %p327 = scmp.ne.s32.totalorder %s318, %s319
      %p328 = scmp.eq.s32.totalorder %s51, 0
      %p329 = por %p327, %p328
      %p330 = scmp.ne.s32.totalorder %s318, %s319
      %p331 = scmp.eq.s32.totalorder %s52, 1
      %p332 = por %p330, %p331
      %p334 = scmp.ne.s32.totalorder %s319, %s333
      %p335 = scmp.eq.s32.totalorder %s52, 0
      %p336 = por %p334, %p335
      %s338 = sadd.s32 %s337, 1
      %p341 = scmp.eq.s32.totalorder %s46, 1
      %p342 = scmp.ne.s32.totalorder %s337, %s339
      %p343 = scmp.eq.s32.totalorder %s46, 0
      %p344 = por %p342, %p343
      %p345 = scmp.ne.s32.totalorder %s337, %s339
      %p346 = scmp.eq.s32.totalorder %s51, 1
      %p347 = por %p345, %p346
      %p348 = scmp.ne.s32.totalorder %s339, %s340
      %p349 = scmp.eq.s32.totalorder %s51, 0
      %p350 = por %p348, %p349
      %p351 = scmp.ne.s32.totalorder %s339, %s340
      %p352 = scmp.eq.s32.totalorder %s52, 1
      %p353 = por %p351, %p352
      %p355 = scmp.ne.s32.totalorder %s340, %s354
      %p356 = scmp.eq.s32.totalorder %s52, 0
      %p357 = por %p355, %p356
      %s359 = sadd.s32 %s358, 1
      %p362 = scmp.eq.s32.totalorder %s46, 1
      %p363 = scmp.ne.s32.totalorder %s358, %s360
      %p364 = scmp.eq.s32.totalorder %s46, 0
      %p365 = por %p363, %p364
      %p366 = scmp.ne.s32.totalorder %s358, %s360
      %p367 = scmp.eq.s32.totalorder %s51, 1
      %p368 = por %p366, %p367
      %p369 = scmp.ne.s32.totalorder %s360, %s361
      %p370 = scmp.eq.s32.totalorder %s51, 0
      %p371 = por %p369, %p370
      %p372 = scmp.ne.s32.totalorder %s360, %s361
      %p373 = scmp.eq.s32.totalorder %s52, 1
      %p374 = por %p372, %p373
      %p376 = scmp.ne.s32.totalorder %s361, %s375
      %p377 = scmp.eq.s32.totalorder %s52, 0
      %p378 = por %p376, %p377
      %s380 = sadd.s32 %s379, 1
      %p383 = scmp.eq.s32.totalorder %s46, 1
      %p384 = scmp.ne.s32.totalorder %s379, %s381
      %p385 = scmp.eq.s32.totalorder %s46, 0
      %p386 = por %p384, %p385
      %p387 = scmp.ne.s32.totalorder %s379, %s381
      %p388 = scmp.eq.s32.totalorder %s51, 1
      %p389 = por %p387, %p388
      %p390 = scmp.ne.s32.totalorder %s381, %s382
      %p391 = scmp.eq.s32.totalorder %s51, 0
      %p392 = por %p390, %p391
      %p393 = scmp.ne.s32.totalorder %s381, %s382
      %p394 = scmp.eq.s32.totalorder %s52, 1
      %p395 = por %p393, %p394
      %p397 = scmp.ne.s32.totalorder %s382, %s396
      %p398 = scmp.eq.s32.totalorder %s52, 0
      %p399 = por %p397, %p398
      %s401 = sadd.s32 %s400, 1
      %p404 = scmp.eq.s32.totalorder %s46, 1
      %p405 = scmp.ne.s32.totalorder %s400, %s402
      %p406 = scmp.eq.s32.totalorder %s46, 0
      %p407 = por %p405, %p406
      %p408 = scmp.ne.s32.totalorder %s400, %s402
      %p409 = scmp.eq.s32.totalorder %s51, 1
      %p410 = por %p408, %p409
      %p411 = scmp.ne.s32.totalorder %s402, %s403
      %p412 = scmp.eq.s32.totalorder %s51, 0
      %p413 = por %p411, %p412
      %p414 = scmp.ne.s32.totalorder %s402, %s403
      %p415 = scmp.eq.s32.totalorder %s52, 1
      %p416 = por %p414, %p415
      %p418 = scmp.ne.s32.totalorder %s403, %s417
      %p419 = scmp.eq.s32.totalorder %s52, 0
      %p420 = por %p418, %p419
      %s422 = sadd.s32 %s421, 1
      %p425 = scmp.eq.s32.totalorder %s46, 1
      %p426 = scmp.ne.s32.totalorder %s421, %s423
      %p427 = scmp.eq.s32.totalorder %s46, 0
      %p428 = por %p426, %p427
      %p429 = scmp.ne.s32.totalorder %s421, %s423
      %p430 = scmp.eq.s32.totalorder %s51, 1
      %p431 = por %p429, %p430
      %p432 = scmp.ne.s32.totalorder %s423, %s424
      %p433 = scmp.eq.s32.totalorder %s51, 0
      %p434 = por %p432, %p433
      %p435 = scmp.ne.s32.totalorder %s423, %s424
      %p436 = scmp.eq.s32.totalorder %s52, 1
      %p437 = por %p435, %p436
      %p439 = scmp.ne.s32.totalorder %s424, %s438
      %p440 = scmp.eq.s32.totalorder %s52, 0
      %p441 = por %p439, %p440
      %s443 = sadd.s32 %s442, 1
      %p446 = scmp.eq.s32.totalorder %s46, 1
      %p447 = scmp.ne.s32.totalorder %s442, %s444
      %p448 = scmp.eq.s32.totalorder %s46, 0
      %p449 = por %p447, %p448
      %p450 = scmp.ne.s32.totalorder %s442, %s444
      %p451 = scmp.eq.s32.totalorder %s51, 1
      %p452 = por %p450, %p451
      %p453 = scmp.ne.s32.totalorder %s444, %s445
      %p454 = scmp.eq.s32.totalorder %s51, 0
      %p455 = por %p453, %p454
      %p456 = scmp.ne.s32.totalorder %s444, %s445
      %p457 = scmp.eq.s32.totalorder %s52, 1
      %p458 = por %p456, %p457
      %p460 = scmp.ne.s32.totalorder %s445, %s459
      %p461 = scmp.eq.s32.totalorder %s52, 0
      %p462 = por %p460, %p461
      %s464 = sadd.s32 %s463, 1
      %p467 = scmp.eq.s32.totalorder %s46, 1
      %p468 = scmp.ne.s32.totalorder %s463, %s465
      %p469 = scmp.eq.s32.totalorder %s46, 0
      %p470 = por %p468, %p469
      %p471 = scmp.ne.s32.totalorder %s463, %s465
      %p472 = scmp.eq.s32.totalorder %s51, 1
      %p473 = por %p471, %p472
      %p474 = scmp.ne.s32.totalorder %s465, %s466
      %p475 = scmp.eq.s32.totalorder %s51, 0
      %p476 = por %p474, %p475
      %p477 = scmp.ne.s32.totalorder %s465, %s466
      %p478 = scmp.eq.s32.totalorder %s52, 1
      %p479 = por %p477, %p478
      %p481 = scmp.ne.s32.totalorder %s466, %s480
      %p482 = scmp.eq.s32.totalorder %s52, 0
      %p483 = por %p481, %p482
      %s485 = sadd.s32 %s484, 1
      %p488 = scmp.eq.s32.totalorder %s46, 1
      %p489 = scmp.ne.s32.totalorder %s484, %s486
      %p490 = scmp.eq.s32.totalorder %s46, 0
      %p491 = por %p489, %p490
      %p492 = scmp.ne.s32.totalorder %s484, %s486
      %p493 = scmp.eq.s32.totalorder %s51, 1
      %p494 = por %p492, %p493
      %p495 = scmp.ne.s32.totalorder %s486, %s487
      %p496 = scmp.eq.s32.totalorder %s51, 0
      %p497 = por %p495, %p496
      %p498 = scmp.ne.s32.totalorder %s486, %s487
      %p499 = scmp.eq.s32.totalorder %s52, 1
      %p500 = por %p498, %p499
      %p502 = scmp.ne.s32.totalorder %s487, %s501
      %p503 = scmp.eq.s32.totalorder %s52, 0
      %p504 = por %p502, %p503
      %s506 = sadd.s32 %s505, 1
      %p509 = scmp.eq.s32.totalorder %s46, 1
      %p510 = scmp.ne.s32.totalorder %s505, %s507
      %p511 = scmp.eq.s32.totalorder %s46, 0
      %p512 = por %p510, %p511
      %p513 = scmp.ne.s32.totalorder %s505, %s507
      %p514 = scmp.eq.s32.totalorder %s51, 1
      %p515 = por %p513, %p514
      %p516 = scmp.ne.s32.totalorder %s507, %s508
      %p517 = scmp.eq.s32.totalorder %s51, 0
      %p518 = por %p516, %p517
      %p519 = scmp.ne.s32.totalorder %s507, %s508
      %p520 = scmp.eq.s32.totalorder %s52, 1
      %p521 = por %p519, %p520
      %p523 = scmp.ne.s32.totalorder %s508, %s522
      %p524 = scmp.eq.s32.totalorder %s52, 0
      %p525 = por %p523, %p524
      %s527 = sadd.s32 %s526, 1
      %p530 = scmp.eq.s32.totalorder %s46, 1
      %p531 = scmp.ne.s32.totalorder %s526, %s528
      %p532 = scmp.eq.s32.totalorder %s46, 0
      %p533 = por %p531, %p532
      %p534 = scmp.ne.s32.totalorder %s526, %s528
      %p535 = scmp.eq.s32.totalorder %s51, 1
      %p536 = por %p534, %p535
      %p537 = scmp.ne.s32.totalorder %s528, %s529
      %p538 = scmp.eq.s32.totalorder %s51, 0
      %p539 = por %p537, %p538
      %p540 = scmp.ne.s32.totalorder %s528, %s529
      %p541 = scmp.eq.s32.totalorder %s52, 1
      %p542 = por %p540, %p541
      %p544 = scmp.ne.s32.totalorder %s529, %s543
      %p545 = scmp.eq.s32.totalorder %s52, 0
      %p546 = por %p544, %p545
      %s547 = ssub.s32 %s46, %s53
      %p548 = scmp.eq.s32.totalorder %s547, 0
      %s550 = sadd.s32 %s549, 1
      %s551 = scalar_select %p548, %s549, %s550
      %p554 = pneg %p548
      %p555 = scmp.eq.s32.totalorder %s46, 1
      %p556 = por %p554, %p555
      %p557 = scmp.ne.s32.totalorder %s549, %s552
      %p558 = scmp.eq.s32.totalorder %s46, 0
      %p559 = por %p557, %p558
      %p560 = scmp.ne.s32.totalorder %s549, %s552
      %p561 = scmp.eq.s32.totalorder %s51, 1
      %p562 = por %p560, %p561
      %p563 = scmp.ne.s32.totalorder %s552, %s553
      %p564 = scmp.eq.s32.totalorder %s51, 0
      %p565 = por %p563, %p564
      %p566 = scmp.ne.s32.totalorder %s552, %s553
      %p567 = scmp.eq.s32.totalorder %s52, 1
      %p568 = por %p566, %p567
      %p570 = scmp.ne.s32.totalorder %s553, %s569
      %p571 = scmp.eq.s32.totalorder %s52, 0
      %p572 = por %p570, %p571
      %s573 = ssub.s32 %s46, %s53
      %p574 = scmp.eq.s32.totalorder %s573, 0
      %s576 = sadd.s32 %s575, 1
      %s577 = scalar_select %p574, %s575, %s576
      %p580 = pneg %p574
      %p581 = scmp.eq.s32.totalorder %s46, 1
      %p582 = por %p580, %p581
      %p583 = scmp.ne.s32.totalorder %s575, %s578
      %p584 = scmp.eq.s32.totalorder %s46, 0
      %p585 = por %p583, %p584
      %p586 = scmp.ne.s32.totalorder %s575, %s578
      %p587 = scmp.eq.s32.totalorder %s51, 1
      %p588 = por %p586, %p587
      %p589 = scmp.ne.s32.totalorder %s578, %s579
      %p590 = scmp.eq.s32.totalorder %s51, 0
      %p591 = por %p589, %p590
      %p592 = scmp.ne.s32.totalorder %s578, %s579
      %p593 = scmp.eq.s32.totalorder %s52, 1
      %p594 = por %p592, %p593
      %p596 = scmp.ne.s32.totalorder %s579, %s595
      %p597 = scmp.eq.s32.totalorder %s52, 0
      %p598 = por %p596, %p597
      %p599 = scmp.le.s32.totalorder 1, %s46
      %p600 = scmp.lt.s32.totalorder %s46, 3
      %p601 = pnand %p599, %p600
      %p602 = pneg %p601
      // Predicated region
      $region9: #{decoder_layer_forward.1} parent=5 // pred_check
        _
      $region10: #{decoder_layer_forward.1} parent=5 // pred_check_branch
        %604 = sbr.rel (%p601) target = $region12
      $region11: #{decoder_layer_forward.1} parent=5 // pred_region
        %s605 = ssub.s32 %s46, 1
        // Predicated region
        $region13: #{decoder_layer_forward.1} parent=11 // pred_check
          %p606 = pneg %p119
        $region14: #{decoder_layer_forward.1} parent=11 // pred_check_branch
          %608 = sbr.rel (%p606) target = $region16
        $region15: #{decoder_layer_forward.1} parent=11 // pred_region
          %610 = vsyncadd [#allocation6], 0
          %s611 = sshll.u32 %s2, 4
          %s612 = int_to_ptr.hbm [resolvable:$true] %s611
          %s613 = sshll.u32 [#allocation5], 4
          %s614 = int_to_ptr.vmem [resolvable:$true] %s613
          %619 = dma.hbm_to_vmem [thread:$0]  %s612, 512, %s614, [#allocation6], 128, 128, 8
        $region16: #{decoder_layer_forward.1} parent=11 // pred_fallthru
          _
        // Predicated region
        $region17: #{decoder_layer_forward.1} parent=11 // pred_check
          %p620 = pneg %p140
        $region18: #{decoder_layer_forward.1} parent=11 // pred_check_branch
          %622 = sbr.rel (%p620) target = $region20
        $region19: #{decoder_layer_forward.1} parent=11 // pred_region
          %624 = vsyncadd [#allocation6], 0
          %s625 = sshll.u32 %s3, 4
          %s626 = int_to_ptr.hbm [resolvable:$true] %s625
          %s627 = sshll.u32 [#allocation7], 4
          %s628 = int_to_ptr.vmem [resolvable:$true] %s627
          %633 = dma.hbm_to_vmem [thread:$0]  %s626, 384, %s628, [#allocation6], 128, 128, 8
        $region20: #{decoder_layer_forward.1} parent=11 // pred_fallthru
          _
        // Predicated region
        $region21: #{decoder_layer_forward.1} parent=11 // pred_check
          %p634 = pneg %p161
        $region22: #{decoder_layer_forward.1} parent=11 // pred_check_branch
          %636 = sbr.rel (%p634) target = $region24
        $region23: #{decoder_layer_forward.1} parent=11 // pred_region
          %638 = vsyncadd [#allocation9], 0
          %s639 = sshll.u32 %s4, 4
          %s640 = int_to_ptr.hbm [resolvable:$true] %s639
          %s641 = sshll.u32 [#allocation8], 4
          %s642 = int_to_ptr.vmem [resolvable:$true] %s641
          %647 = dma.hbm_to_vmem [thread:$0]  %s640, 512, %s642, [#allocation9], 128, 128, 8
        $region24: #{decoder_layer_forward.1} parent=11 // pred_fallthru
          _
        // Predicated region
        $region25: #{decoder_layer_forward.1} parent=11 // pred_check
          %p648 = pneg %p182
        $region26: #{decoder_layer_forward.1} parent=11 // pred_check_branch
          %650 = sbr.rel (%p648) target = $region28
        $region27: #{decoder_layer_forward.1} parent=11 // pred_region
          %652 = vsyncadd [#allocation9], 0
          %s653 = sshll.u32 %s5, 4
          %s654 = int_to_ptr.hbm [resolvable:$true] %s653
          %s655 = sshll.u32 [#allocation10], 4
          %s656 = int_to_ptr.vmem [resolvable:$true] %s655
          %661 = dma.hbm_to_vmem [thread:$0]  %s654, 384, %s656, [#allocation9], 128, 128, 8
        $region28: #{decoder_layer_forward.1} parent=11 // pred_fallthru
          _
        // Predicated region
        $region29: #{decoder_layer_forward.1} parent=11 // pred_check
          %p662 = pneg %p203
        $region30: #{decoder_layer_forward.1} parent=11 // pred_check_branch
          %664 = sbr.rel (%p662) target = $region32
        $region31: #{decoder_layer_forward.1} parent=11 // pred_region
          %666 = vsyncadd [#allocation12], 0
          %s667 = sshll.u32 %s6, 4
          %s668 = int_to_ptr.hbm [resolvable:$true] %s667
          %s669 = sshll.u32 [#allocation11], 4
          %s670 = int_to_ptr.vmem [resolvable:$true] %s669
          %675 = dma.hbm_to_vmem [thread:$0]  %s668, 384, %s670, [#allocation12], 128, 128, 8
        $region32: #{decoder_layer_forward.1} parent=11 // pred_fallthru
          _
        // Predicated region
        $region33: #{decoder_layer_forward.1} parent=11 // pred_check
          %p676 = pneg %p224
        $region34: #{decoder_layer_forward.1} parent=11 // pred_check_branch
          %678 = sbr.rel (%p676) target = $region36
        $region35: #{decoder_layer_forward.1} parent=11 // pred_region
          _
        $region36: #{decoder_layer_forward.1} parent=11 // pred_fallthru
          _
        // Predicated region
        $region37: #{decoder_layer_forward.1} parent=11 // pred_check
          %p679 = pneg %p245
        $region38: #{decoder_layer_forward.1} parent=11 // pred_check_branch
          %681 = sbr.rel (%p679) target = $region40
        $region39: #{decoder_layer_forward.1} parent=11 // pred_region
          %683 = vsyncadd [#allocation12], 0
          %s684 = sshll.u32 %s8, 4
          %s685 = int_to_ptr.hbm [resolvable:$true] %s684
          %s686 = sshll.u32 [#allocation13], 4
          %s687 = int_to_ptr.vmem [resolvable:$true] %s686
          %692 = dma.hbm_to_vmem [thread:$0]  %s685, 64, %s687, [#allocation12], 16, 16, 1
        $region40: #{decoder_layer_forward.1} parent=11 // pred_fallthru
          _
        // Predicated region
        $region41: #{decoder_layer_forward.1} parent=11 // pred_check
          %p693 = pneg %p266
        $region42: #{decoder_layer_forward.1} parent=11 // pred_check_branch
          %695 = sbr.rel (%p693) target = $region44
        $region43: #{decoder_layer_forward.1} parent=11 // pred_region
          %697 = vsyncadd [#allocation15], 0
          %s698 = sshll.u32 %s9, 4
          %s699 = int_to_ptr.hbm [resolvable:$true] %s698
          %s700 = sshll.u32 [#allocation14], 4
          %s701 = int_to_ptr.vmem [resolvable:$true] %s700
          %706 = dma.hbm_to_vmem [thread:$0]  %s699, 1024, %s701, [#allocation15], 64, 64, 4
        $region44: #{decoder_layer_forward.1} parent=11 // pred_fallthru
          _
        // Predicated region
        $region45: #{decoder_layer_forward.1} parent=11 // pred_check
          %p707 = pneg %p287
        $region46: #{decoder_layer_forward.1} parent=11 // pred_check_branch
          %709 = sbr.rel (%p707) target = $region48
        $region47: #{decoder_layer_forward.1} parent=11 // pred_region
          %711 = vsyncadd [#allocation15], 0
          %s712 = sshll.u32 %s10, 4
          %s713 = int_to_ptr.hbm [resolvable:$true] %s712
          %s714 = sshll.u32 [#allocation16], 4
          %s715 = int_to_ptr.vmem [resolvable:$true] %s714
          %720 = dma.hbm_to_vmem [thread:$0]  %s713, 64, %s715, [#allocation15], 16, 16, 1
        $region48: #{decoder_layer_forward.1} parent=11 // pred_fallthru
          _
        // Predicated region
        $region49: #{decoder_layer_forward.1} parent=11 // pred_check
          %p721 = pneg %p308
        $region50: #{decoder_layer_forward.1} parent=11 // pred_check_branch
          %723 = sbr.rel (%p721) target = $region52
        $region51: #{decoder_layer_forward.1} parent=11 // pred_region
          %725 = vsyncadd [#allocation18], 0
          %s726 = sshll.u32 %s11, 4
          %s727 = int_to_ptr.hbm [resolvable:$true] %s726
          %s728 = sshll.u32 [#allocation17], 4
          %s729 = int_to_ptr.vmem [resolvable:$true] %s728
          %734 = dma.hbm_to_vmem [thread:$0]  %s727, 1024, %s729, [#allocation18], 64, 64, 4
        $region52: #{decoder_layer_forward.1} parent=11 // pred_fallthru
          _
        // Predicated region
        $region53: #{decoder_layer_forward.1} parent=11 // pred_check
          %p735 = pneg %p329
        $region54: #{decoder_layer_forward.1} parent=11 // pred_check_branch
          %737 = sbr.rel (%p735) target = $region56
        $region55: #{decoder_layer_forward.1} parent=11 // pred_region
          %739 = vsyncadd [#allocation18], 0
          %s740 = sshll.u32 %s12, 4
          %s741 = int_to_ptr.hbm [resolvable:$true] %s740
          %s742 = sshll.u32 [#allocation19], 4
          %s743 = int_to_ptr.vmem [resolvable:$true] %s742
          %748 = dma.hbm_to_vmem [thread:$0]  %s741, 64, %s743, [#allocation18], 16, 16, 1
        $region56: #{decoder_layer_forward.1} parent=11 // pred_fallthru
          _
        // Predicated region
        $region57: #{decoder_layer_forward.1} parent=11 // pred_check
          %p749 = pneg %p350
        $region58: #{decoder_layer_forward.1} parent=11 // pred_check_branch
          %751 = sbr.rel (%p749) target = $region60
        $region59: #{decoder_layer_forward.1} parent=11 // pred_region
          %753 = vsyncadd [#allocation21], 0
          %s754 = sshll.u32 %s13, 4
          %s755 = int_to_ptr.hbm [resolvable:$true] %s754
          %s756 = sshll.u32 [#allocation20], 4
          %s757 = int_to_ptr.vmem [resolvable:$true] %s756
          %762 = dma.hbm_to_vmem [thread:$0]  %s755, 1024, %s757, [#allocation21], 64, 64, 4
        $region60: #{decoder_layer_forward.1} parent=11 // pred_fallthru
          _
        // Predicated region
        $region61: #{decoder_layer_forward.1} parent=11 // pred_check
          %p763 = pneg %p371
        $region62: #{decoder_layer_forward.1} parent=11 // pred_check_branch
          %765 = sbr.rel (%p763) target = $region64
        $region63: #{decoder_layer_forward.1} parent=11 // pred_region
          %767 = vsyncadd [#allocation21], 0
          %s768 = sshll.u32 %s14, 4
          %s769 = int_to_ptr.hbm [resolvable:$true] %s768
          %s770 = sshll.u32 [#allocation22], 4
          %s771 = int_to_ptr.vmem [resolvable:$true] %s770
          %776 = dma.hbm_to_vmem [thread:$0]  %s769, 64, %s771, [#allocation21], 16, 16, 1
        $region64: #{decoder_layer_forward.1} parent=11 // pred_fallthru
          _
        // Predicated region
        $region65: #{decoder_layer_forward.1} parent=11 // pred_check
          %p777 = pneg %p392
        $region66: #{decoder_layer_forward.1} parent=11 // pred_check_branch
          %779 = sbr.rel (%p777) target = $region68
        $region67: #{decoder_layer_forward.1} parent=11 // pred_region
          %781 = vsyncadd [#allocation24], 0
          %s782 = sshll.u32 %s15, 4
          %s783 = int_to_ptr.hbm [resolvable:$true] %s782
          %s784 = sshll.u32 [#allocation23], 4
          %s785 = int_to_ptr.vmem [resolvable:$true] %s784
          %790 = dma.hbm_to_vmem [thread:$0]  %s783, 512, %s785, [#allocation24], 64, 64, 4
        $region68: #{decoder_layer_forward.1} parent=11 // pred_fallthru
          _
        // Predicated region
        $region69: #{decoder_layer_forward.1} parent=11 // pred_check
          %p791 = pneg %p413
        $region70: #{decoder_layer_forward.1} parent=11 // pred_check_branch
          %793 = sbr.rel (%p791) target = $region72
        $region71: #{decoder_layer_forward.1} parent=11 // pred_region
          _
        $region72: #{decoder_layer_forward.1} parent=11 // pred_fallthru
          _
        // Predicated region
        $region73: #{decoder_layer_forward.1} parent=11 // pred_check
          %p794 = pneg %p434
        $region74: #{decoder_layer_forward.1} parent=11 // pred_check_branch
          %796 = sbr.rel (%p794) target = $region76
        $region75: #{decoder_layer_forward.1} parent=11 // pred_region
          _
        $region76: #{decoder_layer_forward.1} parent=11 // pred_fallthru
          _
        // Predicated region
        $region77: #{decoder_layer_forward.1} parent=11 // pred_check
          %p797 = pneg %p455
        $region78: #{decoder_layer_forward.1} parent=11 // pred_check_branch
          %799 = sbr.rel (%p797) target = $region80
        $region79: #{decoder_layer_forward.1} parent=11 // pred_region
          %801 = vsyncadd [#allocation24], 0
          %s802 = sshll.u32 %s18, 4
          %s803 = int_to_ptr.hbm [resolvable:$true] %s802
          %s804 = sshll.u32 [#allocation25], 4
          %s805 = int_to_ptr.vmem [resolvable:$true] %s804
          %810 = dma.hbm_to_vmem [thread:$0]  %s803, 32, %s805, [#allocation24], 16, 16, 1
        $region80: #{decoder_layer_forward.1} parent=11 // pred_fallthru
          _
        // Predicated region
        $region81: #{decoder_layer_forward.1} parent=11 // pred_check
          %p811 = pneg %p476
        $region82: #{decoder_layer_forward.1} parent=11 // pred_check_branch
          %813 = sbr.rel (%p811) target = $region84
        $region83: #{decoder_layer_forward.1} parent=11 // pred_region
          %815 = vsyncadd [#allocation27], 0
          %s816 = sshll.u32 %s19, 4
          %s817 = int_to_ptr.hbm [resolvable:$true] %s816
          %s818 = sshll.u32 [#allocation26], 4
          %s819 = int_to_ptr.vmem [resolvable:$true] %s818
          %824 = dma.hbm_to_vmem [thread:$0]  %s817, 96, %s819, [#allocation27], 16, 16, 1
        $region84: #{decoder_layer_forward.1} parent=11 // pred_fallthru
          _
        // Predicated region
        $region85: #{decoder_layer_forward.1} parent=11 // pred_check
          %p825 = pneg %p497
        $region86: #{decoder_layer_forward.1} parent=11 // pred_check_branch
          %827 = sbr.rel (%p825) target = $region88
        $region87: #{decoder_layer_forward.1} parent=11 // pred_region
          %829 = vsyncadd [#allocation27], 0
          %s830 = sshll.u32 %s20, 4
          %s831 = int_to_ptr.hbm [resolvable:$true] %s830
          %s832 = sshll.u32 [#allocation28], 4
          %s833 = int_to_ptr.vmem [resolvable:$true] %s832
          %838 = dma.hbm_to_vmem [thread:$0]  %s831, 96, %s833, [#allocation27], 16, 16, 1
        $region88: #{decoder_layer_forward.1} parent=11 // pred_fallthru
          _
        // Predicated region
        $region89: #{decoder_layer_forward.1} parent=11 // pred_check
          %p839 = pneg %p518
        $region90: #{decoder_layer_forward.1} parent=11 // pred_check_branch
          %841 = sbr.rel (%p839) target = $region92
        $region91: #{decoder_layer_forward.1} parent=11 // pred_region
          _
        $region92: #{decoder_layer_forward.1} parent=11 // pred_fallthru
          _
        // Predicated region
        $region93: #{decoder_layer_forward.1} parent=11 // pred_check
          %p842 = pneg %p539
        $region94: #{decoder_layer_forward.1} parent=11 // pred_check_branch
          %844 = sbr.rel (%p842) target = $region96
        $region95: #{decoder_layer_forward.1} parent=11 // pred_region
          %846 = vsyncadd [#allocation30], 0
          %s848 = sshll.u32 %s22, 4
          %s849 = int_to_ptr.hbm [resolvable:$true] %s848
          %s850 = sshll.u32 [#allocation29], 4
          %s851 = int_to_ptr.vmem [resolvable:$true] %s850
          %853 = dma.hbm_to_vmem [thread:$0]  %s849, 16, %s851, [#allocation30]
        $region96: #{decoder_layer_forward.1} parent=11 // pred_fallthru
          _
      $region12: #{decoder_layer_forward.1} parent=5 // pred_fallthru
        _
      %p854 = scmp.lt.s32.totalorder %s46, 2
      // Predicated region
      $region97: #{decoder_layer_forward.1} parent=5 // pred_check
        %p855 = pneg %p854
      $region98: #{decoder_layer_forward.1} parent=5 // pred_check_branch
        %857 = sbr.rel (%p855) target = $region100
      $region99: #{decoder_layer_forward.1} parent=5 // pred_region
        // Predicated region
        $region101: #{decoder_layer_forward.1} parent=99 // pred_check
          %p858 = pneg %p66
        $region102: #{decoder_layer_forward.1} parent=99 // pred_check_branch
          %860 = sbr.rel (%p858) target = $region104
        $region103: #{decoder_layer_forward.1} parent=99 // pred_region
          %s861 = sand.u32 %s56, 1
          %s862 = scalar_lea.sflag [#allocation3], %s861
          %s863 = sand.u32 %s56, 1
          %s864 = smul.addr %s863, 24
          %s865 = scalar_lea.vmem [#allocation2], %s864
          %867 = vsyncadd %s862, 0
          %s868 = smul.addr %s46, 3
          %s869 = smul.addr %s868, 8
          %s870 = scalar_lea.hbm %s0, %s869
          %s871 = sshll.u32 %s870, 4
          %s872 = int_to_ptr.hbm [resolvable:$true] %s871
          %s873 = sshll.u32 %s865, 4
          %s874 = int_to_ptr.vmem [resolvable:$true] %s873
          %879 = dma.hbm_to_vmem [thread:$0]  %s872, 384, %s874, %s862, 128, 128, 8
        $region104: #{decoder_layer_forward.1} parent=99 // pred_fallthru
          _
        // Predicated region
        $region105: #{decoder_layer_forward.1} parent=99 // pred_check
          %p880 = pneg %p92
        $region106: #{decoder_layer_forward.1} parent=99 // pred_check_branch
          %882 = sbr.rel (%p880) target = $region108
        $region107: #{decoder_layer_forward.1} parent=99 // pred_region
          %p883 = scmp.lt.s32.totalorder %s46, 1
          %s884 = scalar_select %p883, %s46, 1
          %s885 = smul.addr %s884, 6
          %s886 = smul.addr %s885, 8
          %s887 = scalar_lea.vmem %s1, %s886
        $region108: #{decoder_layer_forward.1} parent=99 // pred_fallthru
          _
      $region100: #{decoder_layer_forward.1} parent=5 // pred_fallthru
        _
      %p888 = scmp.le.s32.totalorder 1, %s46
      %p889 = scmp.lt.s32.totalorder %s46, 3
      %p890 = pnand %p888, %p889
      %p891 = pneg %p890
      // Predicated region
      $region109: #{decoder_layer_forward.1} parent=5 // pred_check
        _
      $region110: #{decoder_layer_forward.1} parent=5 // pred_check_branch
        %893 = sbr.rel (%p890) target = $region112
      $region111: #{decoder_layer_forward.1} parent=5 // pred_region
        %s894 = ssub.s32 %s46, 1
        %s895 = sand.u32 %s59, 1
        %s896 = scalar_lea.sflag [#allocation3], %s895
        %s897 = sand.u32 %s59, 1
        %s898 = smul.addr %s897, 24
        %s899 = scalar_lea.vmem [#allocation2], %s898
        // Predicated region
        $region113: #{decoder_layer_forward.1} parent=111 // pred_check
          %p900 = pneg %p72
        $region114: #{decoder_layer_forward.1} parent=111 // pred_check_branch
          %902 = sbr.rel (%p900) target = $region116
        $region115: #{decoder_layer_forward.1} parent=111 // pred_region
          %904 = dma.done %s896, 384
        $region116: #{decoder_layer_forward.1} parent=111 // pred_fallthru
          _
        // Predicated region
        $region117: #{decoder_layer_forward.1} parent=111 // pred_check
          %p905 = pneg %p119
        $region118: #{decoder_layer_forward.1} parent=111 // pred_check_branch
          %907 = sbr.rel (%p905) target = $region120
        $region119: #{decoder_layer_forward.1} parent=111 // pred_region
          %909 = dma.done [#allocation6], 512
        $region120: #{decoder_layer_forward.1} parent=111 // pred_fallthru
          _
        // Predicated region
        $region121: #{decoder_layer_forward.1} parent=111 // pred_check
          %p910 = pneg %p140
        $region122: #{decoder_layer_forward.1} parent=111 // pred_check_branch
          %912 = sbr.rel (%p910) target = $region124
        $region123: #{decoder_layer_forward.1} parent=111 // pred_region
          %914 = dma.done [#allocation6], 384
        $region124: #{decoder_layer_forward.1} parent=111 // pred_fallthru
          _
        // Predicated region
        $region125: #{decoder_layer_forward.1} parent=111 // pred_check
          %p915 = pneg %p161
        $region126: #{decoder_layer_forward.1} parent=111 // pred_check_branch
          %917 = sbr.rel (%p915) target = $region128
        $region127: #{decoder_layer_forward.1} parent=111 // pred_region
          %919 = dma.done [#allocation9], 512
        $region128: #{decoder_layer_forward.1} parent=111 // pred_fallthru
          _
        // Predicated region
        $region129: #{decoder_layer_forward.1} parent=111 // pred_check
          %p920 = pneg %p182
        $region130: #{decoder_layer_forward.1} parent=111 // pred_check_branch
          %922 = sbr.rel (%p920) target = $region132
        $region131: #{decoder_layer_forward.1} parent=111 // pred_region
          %924 = dma.done [#allocation9], 384
        $region132: #{decoder_layer_forward.1} parent=111 // pred_fallthru
          _
        // Predicated region
        $region133: #{decoder_layer_forward.1} parent=111 // pred_check
          %p925 = pneg %p203
        $region134: #{decoder_layer_forward.1} parent=111 // pred_check_branch
          %927 = sbr.rel (%p925) target = $region136
        $region135: #{decoder_layer_forward.1} parent=111 // pred_region
          %929 = dma.done [#allocation12], 384
        $region136: #{decoder_layer_forward.1} parent=111 // pred_fallthru
          _
        // Predicated region
        $region137: #{decoder_layer_forward.1} parent=111 // pred_check
          %p930 = pneg %p245
        $region138: #{decoder_layer_forward.1} parent=111 // pred_check_branch
          %932 = sbr.rel (%p930) target = $region140
        $region139: #{decoder_layer_forward.1} parent=111 // pred_region
          %934 = dma.done [#allocation12], 64
        $region140: #{decoder_layer_forward.1} parent=111 // pred_fallthru
          _
        // Predicated region
        $region141: #{decoder_layer_forward.1} parent=111 // pred_check
          %p935 = pneg %p266
        $region142: #{decoder_layer_forward.1} parent=111 // pred_check_branch
          %937 = sbr.rel (%p935) target = $region144
        $region143: #{decoder_layer_forward.1} parent=111 // pred_region
          %939 = dma.done [#allocation15], 1024
        $region144: #{decoder_layer_forward.1} parent=111 // pred_fallthru
          _
        // Predicated region
        $region145: #{decoder_layer_forward.1} parent=111 // pred_check
          %p940 = pneg %p287
        $region146: #{decoder_layer_forward.1} parent=111 // pred_check_branch
          %942 = sbr.rel (%p940) target = $region148
        $region147: #{decoder_layer_forward.1} parent=111 // pred_region
          %944 = dma.done [#allocation15], 64
        $region148: #{decoder_layer_forward.1} parent=111 // pred_fallthru
          _
        // Predicated region
        $region149: #{decoder_layer_forward.1} parent=111 // pred_check
          %p945 = pneg %p308
        $region150: #{decoder_layer_forward.1} parent=111 // pred_check_branch
          %947 = sbr.rel (%p945) target = $region152
        $region151: #{decoder_layer_forward.1} parent=111 // pred_region
          %949 = dma.done [#allocation18], 1024
        $region152: #{decoder_layer_forward.1} parent=111 // pred_fallthru
          _
        // Predicated region
        $region153: #{decoder_layer_forward.1} parent=111 // pred_check
          %p950 = pneg %p329
        $region154: #{decoder_layer_forward.1} parent=111 // pred_check_branch
          %952 = sbr.rel (%p950) target = $region156
        $region155: #{decoder_layer_forward.1} parent=111 // pred_region
          %954 = dma.done [#allocation18], 64
        $region156: #{decoder_layer_forward.1} parent=111 // pred_fallthru
          _
        // Predicated region
        $region157: #{decoder_layer_forward.1} parent=111 // pred_check
          %p955 = pneg %p350
        $region158: #{decoder_layer_forward.1} parent=111 // pred_check_branch
          %957 = sbr.rel (%p955) target = $region160
        $region159: #{decoder_layer_forward.1} parent=111 // pred_region
          %959 = dma.done [#allocation21], 1024
        $region160: #{decoder_layer_forward.1} parent=111 // pred_fallthru
          _
        // Predicated region
        $region161: #{decoder_layer_forward.1} parent=111 // pred_check
          %p960 = pneg %p371
        $region162: #{decoder_layer_forward.1} parent=111 // pred_check_branch
          %962 = sbr.rel (%p960) target = $region164
        $region163: #{decoder_layer_forward.1} parent=111 // pred_region
          %964 = dma.done [#allocation21], 64
        $region164: #{decoder_layer_forward.1} parent=111 // pred_fallthru
          _
        // Predicated region
        $region165: #{decoder_layer_forward.1} parent=111 // pred_check
          %p965 = pneg %p392
        $region166: #{decoder_layer_forward.1} parent=111 // pred_check_branch
          %967 = sbr.rel (%p965) target = $region168
        $region167: #{decoder_layer_forward.1} parent=111 // pred_region
          %969 = dma.done [#allocation24], 512
        $region168: #{decoder_layer_forward.1} parent=111 // pred_fallthru
          _
        // Predicated region
        $region169: #{decoder_layer_forward.1} parent=111 // pred_check
          %p970 = pneg %p455
        $region170: #{decoder_layer_forward.1} parent=111 // pred_check_branch
          %972 = sbr.rel (%p970) target = $region172
        $region171: #{decoder_layer_forward.1} parent=111 // pred_region
          %974 = dma.done [#allocation24], 32
        $region172: #{decoder_layer_forward.1} parent=111 // pred_fallthru
          _
        // Predicated region
        $region173: #{decoder_layer_forward.1} parent=111 // pred_check
          %p975 = pneg %p476
        $region174: #{decoder_layer_forward.1} parent=111 // pred_check_branch
          %977 = sbr.rel (%p975) target = $region176
        $region175: #{decoder_layer_forward.1} parent=111 // pred_region
          %979 = dma.done [#allocation27], 96
        $region176: #{decoder_layer_forward.1} parent=111 // pred_fallthru
          _
        // Predicated region
        $region177: #{decoder_layer_forward.1} parent=111 // pred_check
          %p980 = pneg %p497
        $region178: #{decoder_layer_forward.1} parent=111 // pred_check_branch
          %982 = sbr.rel (%p980) target = $region180
        $region179: #{decoder_layer_forward.1} parent=111 // pred_region
          %984 = dma.done [#allocation27], 96
        $region180: #{decoder_layer_forward.1} parent=111 // pred_fallthru
          _
        // Predicated region
        $region181: #{decoder_layer_forward.1} parent=111 // pred_check
          %p985 = pneg %p539
        $region182: #{decoder_layer_forward.1} parent=111 // pred_check_branch
          %987 = sbr.rel (%p985) target = $region184
        $region183: #{decoder_layer_forward.1} parent=111 // pred_region
          %989 = dma.done [#allocation30], 16
        $region184: #{decoder_layer_forward.1} parent=111 // pred_fallthru
          _
        %s990 = sand.u32 %s59, 1
        %s991 = scalar_lea.sflag [#allocation3], %s990
        %s992 = sand.u32 %s59, 1
        %s993 = smul.addr %s992, 24
        %s994 = scalar_lea.vmem [#allocation2], %s993
        %p995 = pneg %p72
        %p996 = pneg %p69
        %p997 = scmp.lt.s32.totalorder %s51, 1
        %s998 = scalar_select %p997, %s51, 1
        %s999 = smul.addr %s998, 6
        %s1000 = smul.addr %s999, 8
        %s1001 = scalar_lea.vmem %s1, %s1000
        %p1002 = pneg %p98
        %p1003 = pneg %p95
        %p1004 = pneg %p119
        %p1005 = pneg %p116
        %p1006 = pneg %p140
        %p1007 = pneg %p137
        %p1008 = pneg %p161
        %p1009 = pneg %p158
        %p1010 = pneg %p182
        %p1011 = pneg %p179
        %p1012 = pneg %p203
        %p1013 = pneg %p200
        %p1014 = pneg %p224
        %p1015 = pneg %p221
        %p1016 = pneg %p245
        %p1017 = pneg %p242
        %p1018 = pneg %p266
        %p1019 = pneg %p263
        %p1020 = pneg %p287
        %p1021 = pneg %p284
        %p1022 = pneg %p308
        %p1023 = pneg %p305
        %p1024 = pneg %p329
        %p1025 = pneg %p326
        %p1026 = pneg %p350
        %p1027 = pneg %p347
        %p1028 = pneg %p371
        %p1029 = pneg %p368
        %p1030 = pneg %p392
        %p1031 = pneg %p389
        %p1032 = pneg %p413
        %p1033 = pneg %p410
        %p1034 = pneg %p434
        %p1035 = pneg %p431
        %p1036 = pneg %p455
        %p1037 = pneg %p452
        %p1038 = pneg %p476
        %p1039 = pneg %p473
        %p1040 = pneg %p497
        %p1041 = pneg %p494
        %p1042 = pneg %p518
        %p1043 = pneg %p515
        %p1044 = pneg %p539
        %p1045 = pneg %p536
        %p1046 = pneg %p565
        %p1047 = pneg %p562
        %s1048 = sand.u32 %s552, 1
        %s1049 = scalar_lea.sflag [#allocation4], %s1048
        %s1050 = sand.u32 %s552, 1
        %s1051 = smul.addr %s1050, 24
        %s1052 = scalar_lea.vmem [#allocation31], %s1051
        %p1053 = pneg %p591
        %p1054 = pneg %p588
        %p1055 = scmp.lt.s32.totalorder %s51, 1
        %s1056 = scalar_select %p1055, %s51, 1
        %s1057 = smul.addr %s1056, 3
        %s1058 = smul.addr %s1057, 8
        %s1059 = scalar_lea.vmem %s24, %s1058
        %p1060 = scmp.lt.s32.totalorder %s51, 1
        %s1061 = scalar_select %p1060, %s51, 1
        %s1062 = smul.addr %s1061, 6
        %s1063 = smul.addr %s1062, 8
        %s1064 = scalar_lea.vmem %s1, %s1063
        %p1065 = scmp.lt.s32.totalorder %s51, 1
        %s1066 = scalar_select %p1065, %s51, 1
        %s1067 = smul.addr %s1066, 3
        %s1068 = smul.addr %s1067, 8
        %s1069 = scalar_lea.vmem %s24, %s1068
        %v1071 = vld [vmem:[%s899] sm:$0xff]
        %v1072 = vld [vmem:[%s899 + $0x8] sm:$0xff]
        %v1073 = vld [vmem:[%s899 + $0x10] sm:$0xff]
        %v1074 = vld [vmem:[%s1064] sm:$0xff]
        %v1075 = vld [vmem:[%s1064 + $0x8] sm:$0xff]
        %v1076 = vld [vmem:[%s1064 + $0x10] sm:$0xff]
        %v1077 = vld [vmem:[%s1064 + $0x18] sm:$0xff]
        %v1078 = vld [vmem:[%s1064 + $0x20] sm:$0xff]
        %v1079 = vld [vmem:[%s1064 + $0x28] sm:$0xff]
        %v1080 = vld [vmem:[#allocation5] sm:$0xff]
        %v1081 = vld [vmem:[#allocation5 + $0x8] sm:$0xff]
        %v1082 = vld [vmem:[#allocation5 + $0x10] sm:$0xff]
        %v1083 = vld [vmem:[#allocation5 + $0x18] sm:$0xff]
        %v1084 = vld [vmem:[#allocation7] sm:$0xff]
        %v1085 = vld [vmem:[#allocation7 + $0x8] sm:$0xff]
        %v1086 = vld [vmem:[#allocation7 + $0x10] sm:$0xff]
        %v1087 = vld [vmem:[%s7] sm:$0xf]
        %v1088 = vld [vmem:[%s7 + $0x4] sm:$0xf]
        %v1089 = vld [vmem:[%s7 + $0x8] sm:$0xf]
        %v1090 = vld [vmem:[%s7 + $0xc] sm:$0xf]
        %v1091 = vld [vmem:[#allocation13] sm:$0x1]
        %v1092 = vld [vmem:[#allocation14] sm:$0xf]
        %v1093 = vld [vmem:[#allocation14 + $0x4] sm:$0xf]
        %v1094 = vld [vmem:[#allocation14 + $0x8] sm:$0xf]
        %v1095 = vld [vmem:[#allocation14 + $0xc] sm:$0xf]
        %v1096 = vld [vmem:[#allocation16] sm:$0x1]
        %v1097 = vld [vmem:[#allocation17] sm:$0xf]
        %v1098 = vld [vmem:[#allocation17 + $0x4] sm:$0xf]
        %v1099 = vld [vmem:[#allocation17 + $0x8] sm:$0xf]
        %v1100 = vld [vmem:[#allocation17 + $0xc] sm:$0xf]
        %v1101 = vld [vmem:[#allocation19] sm:$0x1]
        %v1102 = vld [vmem:[#allocation20] sm:$0xf]
        %v1103 = vld [vmem:[#allocation20 + $0x4] sm:$0xf]
        %v1104 = vld [vmem:[#allocation20 + $0x8] sm:$0xf]
        %v1105 = vld [vmem:[#allocation20 + $0xc] sm:$0xf]
        %v1106 = vld [vmem:[#allocation22] sm:$0x1]
        %v1107 = vpack.c.bf16 %v1072, %v1071
        %v1108 = vpack.c.bf16 %v1073, %v1073
        %v1110 = vperm.slane %v1091, 0
        %v1116 = vunpack.c.l.b16 %v1087
        %v1117 = vunpack.c.l.b16 %v1088
        %v1118 = vunpack.c.l.b16 %v1089
        %v1119 = vunpack.c.l.b16 %v1090
        %v1120 = vpack.c.b16 %v1117, %v1116
        %v1121 = vpack.c.b16 %v1119, %v1118
        %vm1124 = vcmask 261120
        %v1126 = vsel %vm1124, %v1107, 0
        %v1129 = vsel %vm1124, %v1108, 0
        %1131 = vmatpush.bf16.msra.mxu0 0
        %1132 = vmatpush.bf16.msra.mxu0 0
        %1133 = vmatpush.bf16.msra.mxu0 0
        %1134 = vmatpush.bf16.msra.mxu0 0
        %1135 = vmatpush.bf16.msra.mxu0 0
        %1136 = vmatpush.bf16.msra.mxu0 0
        %1137 = vmatpush.bf16.msra.mxu0 %v1121
        %1138 = vmatpush.bf16.msra.mxu0 %v1120
        %1139 = vmatmul.bf16.gmra.mxu0 %v1126
        %v1140 = vpop.f32.mrf.mxu0
        %v1141 = vadd.f32 %v1110, %v1140
        %v1142 = vpop.f32.mrf.mxu0
        %v1143 = vadd.f32 %v1110, %v1142
        %1144 = vmatmul.bf16.gmra.mxu0 %v1129
        %v1145 = vpop.f32.mrf.mxu0
        %v1146 = vadd.f32 %v1110, %v1145
        %v1147 = vpop.f32.mrf.mxu0
        %1148 = vdwg.mxu0
        %v1150 = vperm.slane %v1096, 0
        %v1156 = vunpack.c.l.b16 %v1092
        %v1157 = vunpack.c.l.b16 %v1093
        %v1158 = vunpack.c.l.b16 %v1094
        %v1159 = vunpack.c.l.b16 %v1095
        %v1160 = vpack.c.b16 %v1157, %v1156
        %v1161 = vpack.c.b16 %v1159, %v1158
        %1164 = vmatpush.bf16.msra.mxu0 0
        %1165 = vmatpush.bf16.msra.mxu0 0
        %1166 = vmatpush.bf16.msra.mxu0 0
        %1167 = vmatpush.bf16.msra.mxu0 0
        %1168 = vmatpush.bf16.msra.mxu0 0
        %1169 = vmatpush.bf16.msra.mxu0 0
        %1170 = vmatpush.bf16.msra.mxu0 %v1161
        %1171 = vmatpush.bf16.msra.mxu0 %v1160
        %1172 = vmatmul.bf16.gmra.mxu0 %v1126
        %v1173 = vpop.f32.mrf.mxu0
        %v1174 = vadd.f32 %v1150, %v1173
        %v1175 = vpop.f32.mrf.mxu0
        %v1176 = vadd.f32 %v1150, %v1175
        %1177 = vmatmul.bf16.gmra.mxu0 %v1129
        %v1178 = vpop.f32.mrf.mxu0
        %v1179 = vadd.f32 %v1150, %v1178
        %v1180 = vpop.f32.mrf.mxu0
        %1181 = vdwg.mxu0
        %v1183 = vperm.slane %v1101, 0
        %v1189 = vunpack.c.l.b16 %v1097
        %v1190 = vunpack.c.l.b16 %v1098
        %v1191 = vunpack.c.l.b16 %v1099
        %v1192 = vunpack.c.l.b16 %v1100
        %v1193 = vpack.c.b16 %v1190, %v1189
        %v1194 = vpack.c.b16 %v1192, %v1191
        %1197 = vmatpush.bf16.msra.mxu0 0
        %1198 = vmatpush.bf16.msra.mxu0 0
        %1199 = vmatpush.bf16.msra.mxu0 0
        %1200 = vmatpush.bf16.msra.mxu0 0
        %1201 = vmatpush.bf16.msra.mxu0 0
        %1202 = vmatpush.bf16.msra.mxu0 0
        %1203 = vmatpush.bf16.msra.mxu0 %v1194
        %1204 = vmatpush.bf16.msra.mxu0 %v1193
        %1205 = vmatmul.bf16.gmra.mxu0 %v1126
        %v1206 = vpop.f32.mrf.mxu0
        %v1207 = vadd.f32 %v1183, %v1206
        %v1208 = vpop.f32.mrf.mxu0
        %v1209 = vadd.f32 %v1183, %v1208
        %1210 = vmatmul.bf16.gmra.mxu0 %v1129
        %v1211 = vpop.f32.mrf.mxu0
        %v1212 = vadd.f32 %v1183, %v1211
        %v1213 = vpop.f32.mrf.mxu0
        %1214 = vdwg.mxu0
        %v1215 = vpack.c.bf16 %v1141, %v1141
        %v1216 = vpack.c.bf16 %v1143, %v1143
        %v1217 = vpack.c.bf16 %v1146, %v1146
        %v1218 = vpack.c.bf16 %v1174, %v1174
        %v1219 = vpack.c.bf16 %v1176, %v1176
        %v1220 = vpack.c.bf16 %v1179, %v1179
        %v1221 = vpack.c.bf16 %v1207, %v1207
        %v1222 = vpack.c.bf16 %v1209, %v1209
        %v1223 = vpack.c.bf16 %v1212, %v1212
        %v1227 = vunpack.c.l.b16 %v1215
        %v1228 = vunpack.c.l.b16 %v1216
        %v1229 = vunpack.c.l.b16 %v1217
        %v1230 = vpack.c.b16 %v1228, %v1227
        %v1231 = vpack.c.b16 %v1229, %v1229
        %v1235 = vunpack.c.l.b16 %v1218
        %v1236 = vunpack.c.l.b16 %v1219
        %v1237 = vunpack.c.l.b16 %v1220
        %v1238 = vpack.c.b16 %v1236, %v1235
        %v1239 = vpack.c.b16 %v1237, %v1237
        %vm1240 = vcmask 64512
        %v1242 = vsel %vm1240, %v1230, 0
        %v1245 = vsel %vm1240, %v1231, 0
        %v1248 = vsel %vm1240, %v1238, 0
        %v1251 = vsel %vm1240, %v1239, 0
        %1253 = vmatpush.bf16.xpose.msra.mxu0 0
        %1254 = vmatpush.bf16.xpose.msra.mxu0 0
        %1255 = vmatpush.bf16.xpose.msra.mxu0 0
        %1256 = vmatpush.bf16.xpose.msra.mxu0 0
        %1257 = vmatpush.bf16.xpose.msra.mxu0 0
        %1258 = vmatpush.bf16.xpose.msra.mxu0 0
        %1259 = vmatpush.bf16.xpose.msra.mxu0 %v1251
        %1260 = vmatpush.bf16.xpose.msra.mxu0 %v1248
        %1261 = vmatmul.bf16.gmra.mxu0 %v1242
        %v1262 = vpop.f32.mrf.mxu0
        %v1263 = vadd.f32 0.0, %v1262
        %v1264 = vpop.f32.mrf.mxu0
        %v1265 = vadd.f32 0.0, %v1264
        %1266 = vmatmul.bf16.gmra.mxu0 %v1245
        %v1267 = vpop.f32.mrf.mxu0
        %v1268 = vadd.f32 0.0, %v1267
        %v1269 = vpop.f32.mrf.mxu0
        %1270 = vdwg.mxu0
        %v1271 = vmul.f32 %v1263, 0.35355338
        %v1272 = vmul.f32 %v1265, 0.35355338
        %v1273 = vmul.f32 %v1268, 0.35355338
        %v1274 = vadd.f32 %v1271, %v1084
        %v1275 = vadd.f32 %v1272, %v1085
        %v1276 = vadd.f32 %v1273, %v1086
        %vm1277 = vcmask 195584
        %v1278 = vsel %vm1277, %v1274, -inf
        %1279 = vmax.xlane.f32.xlu0 %v1278
        %v1280 = vpop.xlane.xlu0 %1279
        %v1281 = vsel %vm1277, %v1275, -inf
        %1282 = vmax.xlane.f32.xlu0 %v1281
        %v1283 = vpop.xlane.xlu0 %1282
        %v1284 = vsel %vm1277, %v1276, -inf
        %1285 = vmax.xlane.f32.xlu0 %v1284
        %v1286 = vpop.xlane.xlu0 %1285
        %v1287 = vsub.f32 %v1274, %v1280
        %v1288 = vsub.f32 %v1275, %v1283
        %v1289 = vsub.f32 %v1276, %v1286
        %v1290 = vmul.f32 %v1287, 1.442695
        %v1291 = vpow.pop %v1290
        %v1292 = vmul.f32 %v1288, 1.442695
        %v1293 = vpow.pop %v1292
        %v1294 = vmul.f32 %v1289, 1.442695
        %v1295 = vpow.pop %v1294
        %v1296 = vsel %vm1277, %v1291, 0.0
        %1297 = vadd.xlane.f32.xlu0 %v1296
        %v1298 = vpop.xlane.xlu0 %1297
        %v1299 = vsel %vm1277, %v1293, 0.0
        %1300 = vadd.xlane.f32.xlu0 %v1299
        %v1301 = vpop.xlane.xlu0 %1300
        %v1302 = vsel %vm1277, %v1295, 0.0
        %1303 = vadd.xlane.f32.xlu0 %v1302
        %v1304 = vpop.xlane.xlu0 %1303
        %v1305 = vrcp.pop %v1298
        %v1306 = vrcp.pop %v1301
        %v1307 = vrcp.pop %v1304
        %v1308 = vmul.f32 %v1291, %v1305
        %v1309 = vmul.f32 %v1293, %v1306
        %v1310 = vmul.f32 %v1295, %v1307
        %v1311 = vpack.c.bf16 %v1309, %v1308
        %v1312 = vpack.c.bf16 %v1310, %v1310
        %v1316 = vunpack.c.l.b16 %v1221
        %v1317 = vunpack.c.l.b16 %v1222
        %v1318 = vunpack.c.l.b16 %v1223
        %v1319 = vpack.c.b16 %v1317, %v1316
        %v1320 = vpack.c.b16 %v1318, %v1318
        %v1323 = vsel %vm1277, %v1311, 0
        %v1326 = vsel %vm1277, %v1312, 0
        %vm1328 = vcmask 1043456
        %v1330 = vsel %vm1328, %v1320, 0
        %1332 = vmatpush.bf16.msra.mxu0 0
        %1333 = vmatpush.bf16.msra.mxu0 0
        %1334 = vmatpush.bf16.msra.mxu0 0
        %1335 = vmatpush.bf16.msra.mxu0 0
        %1336 = vmatpush.bf16.msra.mxu0 0
        %1337 = vmatpush.bf16.msra.mxu0 0
        %1338 = vmatpush.bf16.msra.mxu0 %v1330
        %1339 = vmatpush.bf16.msra.mxu0 %v1319
        %1340 = vmatmul.bf16.gmra.mxu0 %v1323
        %v1341 = vpop.f32.mrf.mxu0
        %v1342 = vadd.f32 0.0, %v1341
        %v1343 = vpop.f32.mrf.mxu0
        %v1344 = vadd.f32 0.0, %v1343
        %1345 = vmatmul.bf16.gmra.mxu0 %v1326
        %v1346 = vpop.f32.mrf.mxu0
        %v1347 = vadd.f32 0.0, %v1346
        %v1348 = vpop.f32.mrf.mxu0
        %1349 = vdwg.mxu0
        %v1350 = vpack.c.bf16 %v1344, %v1342
        %v1351 = vpack.c.bf16 %v1347, %v1347
        %1352 = vrot.lane.b32.xlu0 %v1230, 120
        %v1353 = vpop.permute.xlu0 %1352
        %1354 = vrot.lane.b32.xlu0 %v1231, 120
        %v1355 = vpop.permute.xlu0 %1354
        %1356 = vrot.lane.b32.xlu0 %v1238, 120
        %v1357 = vpop.permute.xlu0 %1356
        %1358 = vrot.lane.b32.xlu0 %v1239, 120
        %v1359 = vpop.permute.xlu0 %1358
        %v1361 = vsel %vm1240, %v1353, 0
        %v1364 = vsel %vm1240, %v1355, 0
        %v1367 = vsel %vm1240, %v1357, 0
        %v1370 = vsel %vm1240, %v1359, 0
        %1372 = vmatpush.bf16.xpose.msra.mxu0 0
        %1373 = vmatpush.bf16.xpose.msra.mxu0 0
        %1374 = vmatpush.bf16.xpose.msra.mxu0 0
        %1375 = vmatpush.bf16.xpose.msra.mxu0 0
        %1376 = vmatpush.bf16.xpose.msra.mxu0 0
        %1377 = vmatpush.bf16.xpose.msra.mxu0 0
        %1378 = vmatpush.bf16.xpose.msra.mxu0 %v1370
        %1379 = vmatpush.bf16.xpose.msra.mxu0 %v1367
        %1380 = vmatmul.bf16.gmra.mxu0 %v1361
        %v1381 = vpop.f32.mrf.mxu0
        %v1382 = vadd.f32 0.0, %v1381
        %v1383 = vpop.f32.mrf.mxu0
        %v1384 = vadd.f32 0.0, %v1383
        %1385 = vmatmul.bf16.gmra.mxu0 %v1364
        %v1386 = vpop.f32.mrf.mxu0
        %v1387 = vadd.f32 0.0, %v1386
        %v1388 = vpop.f32.mrf.mxu0
        %1389 = vdwg.mxu0
        %v1390 = vmul.f32 %v1382, 0.35355338
        %v1391 = vmul.f32 %v1384, 0.35355338
        %v1392 = vmul.f32 %v1387, 0.35355338
        %v1393 = vadd.f32 %v1390, %v1084
        %v1394 = vadd.f32 %v1391, %v1085
        %v1395 = vadd.f32 %v1392, %v1086
        %v1396 = vsel %vm1277, %v1393, -inf
        %1397 = vmax.xlane.f32.xlu0 %v1396
        %v1398 = vpop.xlane.xlu0 %1397
        %v1399 = vsel %vm1277, %v1394, -inf
        %1400 = vmax.xlane.f32.xlu0 %v1399
        %v1401 = vpop.xlane.xlu0 %1400
        %v1402 = vsel %vm1277, %v1395, -inf
        %1403 = vmax.xlane.f32.xlu0 %v1402
        %v1404 = vpop.xlane.xlu0 %1403
        %v1405 = vsub.f32 %v1393, %v1398
        %v1406 = vsub.f32 %v1394, %v1401
        %v1407 = vsub.f32 %v1395, %v1404
        %v1408 = vmul.f32 %v1405, 1.442695
        %v1409 = vpow.pop %v1408
        %v1410 = vmul.f32 %v1406, 1.442695
        %v1411 = vpow.pop %v1410
        %v1412 = vmul.f32 %v1407, 1.442695
        %v1413 = vpow.pop %v1412
        %v1414 = vsel %vm1277, %v1409, 0.0
        %1415 = vadd.xlane.f32.xlu0 %v1414
        %v1416 = vpop.xlane.xlu0 %1415
        %v1417 = vsel %vm1277, %v1411, 0.0
        %1418 = vadd.xlane.f32.xlu0 %v1417
        %v1419 = vpop.xlane.xlu0 %1418
        %v1420 = vsel %vm1277, %v1413, 0.0
        %1421 = vadd.xlane.f32.xlu0 %v1420
        %v1422 = vpop.xlane.xlu0 %1421
        %v1423 = vrcp.pop %v1416
        %v1424 = vrcp.pop %v1419
        %v1425 = vrcp.pop %v1422
        %v1426 = vmul.f32 %v1409, %v1423
        %v1427 = vmul.f32 %v1411, %v1424
        %v1428 = vmul.f32 %v1413, %v1425
        %v1429 = vpack.c.bf16 %v1427, %v1426
        %v1430 = vpack.c.bf16 %v1428, %v1428
        %1431 = vrot.lane.b32.xlu0 %v1319, 120
        %v1432 = vpop.permute.xlu0 %1431
        %1433 = vrot.lane.b32.xlu0 %v1320, 120
        %v1434 = vpop.permute.xlu0 %1433
        %v1437 = vsel %vm1277, %v1429, 0
        %v1440 = vsel %vm1277, %v1430, 0
        %v1443 = vsel %vm1328, %v1434, 0
        %1445 = vmatpush.bf16.msra.mxu0 0
        %1446 = vmatpush.bf16.msra.mxu0 0
        %1447 = vmatpush.bf16.msra.mxu0 0
        %1448 = vmatpush.bf16.msra.mxu0 0
        %1449 = vmatpush.bf16.msra.mxu0 0
        %1450 = vmatpush.bf16.msra.mxu0 0
        %1451 = vmatpush.bf16.msra.mxu0 %v1443
        %1452 = vmatpush.bf16.msra.mxu0 %v1432
        %1453 = vmatmul.bf16.gmra.mxu0 %v1437
        %v1454 = vpop.f32.mrf.mxu0
        %v1455 = vadd.f32 0.0, %v1454
        %v1456 = vpop.f32.mrf.mxu0
        %v1457 = vadd.f32 0.0, %v1456
        %1458 = vmatmul.bf16.gmra.mxu0 %v1440
        %v1459 = vpop.f32.mrf.mxu0
        %v1460 = vadd.f32 0.0, %v1459
        %v1461 = vpop.f32.mrf.mxu0
        %1462 = vdwg.mxu0
        %v1463 = vpack.c.bf16 %v1457, %v1455
        %v1464 = vpack.c.bf16 %v1460, %v1460
        %v1466 = vsel %vm1240, %v1463, 0
        %v1469 = vsel %vm1240, %v1464, 0
        %v1472 = vsel %vm1328, %v1103, 0
        %1474 = vmatpush.bf16.msra.mxu0 0
        %1475 = vmatpush.bf16.msra.mxu0 0
        %1476 = vmatpush.bf16.msra.mxu0 0
        %1477 = vmatpush.bf16.msra.mxu0 0
        %1478 = vmatpush.bf16.msra.mxu0 0
        %1479 = vmatpush.bf16.msra.mxu0 0
        %1480 = vmatpush.bf16.msra.mxu0 0
        %1481 = vmatpush.bf16.msra.mxu0 %v1472
        %1482 = vmatmul.bf16.gmra.mxu0 %v1466
        %v1483 = vpop.f32.mrf.mxu0
        %v1484 = vadd.f32 0.0, %v1483
        %v1485 = vpop.f32.mrf.mxu0
        %v1486 = vadd.f32 0.0, %v1485
        %1487 = vmatmul.bf16.gmra.mxu0 %v1469
        %v1488 = vpop.f32.mrf.mxu0
        %v1489 = vadd.f32 0.0, %v1488
        %v1490 = vpop.f32.mrf.mxu0
        %1491 = vdwg.mxu0
        %v1493 = vsel %vm1240, %v1350, 0
        %v1496 = vsel %vm1240, %v1351, 0
        %v1499 = vsel %vm1328, %v1102, 0
        %1501 = vmatpush.bf16.msra.mxu0 0
        %1502 = vmatpush.bf16.msra.mxu0 0
        %1503 = vmatpush.bf16.msra.mxu0 0
        %1504 = vmatpush.bf16.msra.mxu0 0
        %1505 = vmatpush.bf16.msra.mxu0 0
        %1506 = vmatpush.bf16.msra.mxu0 0
        %1507 = vmatpush.bf16.msra.mxu0 0
        %1508 = vmatpush.bf16.msra.mxu0 %v1499
        %1509 = vmatmul.bf16.gmra.mxu0 %v1493
        %v1510 = vpop.f32.mrf.mxu0
        %v1511 = vadd.f32 %v1484, %v1510
        %v1512 = vpop.f32.mrf.mxu0
        %v1513 = vadd.f32 %v1486, %v1512
        %1514 = vmatmul.bf16.gmra.mxu0 %v1496
        %v1515 = vpop.f32.mrf.mxu0
        %v1516 = vadd.f32 %v1489, %v1515
        %v1517 = vpop.f32.mrf.mxu0
        %1518 = vdwg.mxu0
        %1519 = vrot.lane.b32.xlu0 %v1230, 112
        %v1520 = vpop.permute.xlu0 %1519
        %1521 = vrot.lane.b32.xlu0 %v1231, 112
        %v1522 = vpop.permute.xlu0 %1521
        %1523 = vrot.lane.b32.xlu0 %v1238, 112
        %v1524 = vpop.permute.xlu0 %1523
        %1525 = vrot.lane.b32.xlu0 %v1239, 112
        %v1526 = vpop.permute.xlu0 %1525
        %v1528 = vsel %vm1240, %v1520, 0
        %v1531 = vsel %vm1240, %v1522, 0
        %v1534 = vsel %vm1240, %v1524, 0
        %v1537 = vsel %vm1240, %v1526, 0
        %1539 = vmatpush.bf16.xpose.msra.mxu0 0
        %1540 = vmatpush.bf16.xpose.msra.mxu0 0
        %1541 = vmatpush.bf16.xpose.msra.mxu0 0
        %1542 = vmatpush.bf16.xpose.msra.mxu0 0
        %1543 = vmatpush.bf16.xpose.msra.mxu0 0
        %1544 = vmatpush.bf16.xpose.msra.mxu0 0
        %1545 = vmatpush.bf16.xpose.msra.mxu0 %v1537
        %1546 = vmatpush.bf16.xpose.msra.mxu0 %v1534
        %1547 = vmatmul.bf16.gmra.mxu0 %v1528
        %v1548 = vpop.f32.mrf.mxu0
        %v1549 = vadd.f32 0.0, %v1548
        %v1550 = vpop.f32.mrf.mxu0
        %v1551 = vadd.f32 0.0, %v1550
        %1552 = vmatmul.bf16.gmra.mxu0 %v1531
        %v1553 = vpop.f32.mrf.mxu0
        %v1554 = vadd.f32 0.0, %v1553
        %v1555 = vpop.f32.mrf.mxu0
        %1556 = vdwg.mxu0
        %v1557 = vmul.f32 %v1549, 0.35355338
        %v1558 = vmul.f32 %v1551, 0.35355338
        %v1559 = vmul.f32 %v1554, 0.35355338
        %v1560 = vadd.f32 %v1557, %v1084
        %v1561 = vadd.f32 %v1558, %v1085
        %v1562 = vadd.f32 %v1559, %v1086
        %v1563 = vsel %vm1277, %v1560, -inf
        %1564 = vmax.xlane.f32.xlu0 %v1563
        %v1565 = vpop.xlane.xlu0 %1564
        %v1566 = vsel %vm1277, %v1561, -inf
        %1567 = vmax.xlane.f32.xlu0 %v1566
        %v1568 = vpop.xlane.xlu0 %1567
        %v1569 = vsel %vm1277, %v1562, -inf
        %1570 = vmax.xlane.f32.xlu0 %v1569
        %v1571 = vpop.xlane.xlu0 %1570
        %v1572 = vsub.f32 %v1560, %v1565
        %v1573 = vsub.f32 %v1561, %v1568
        %v1574 = vsub.f32 %v1562, %v1571
        %v1575 = vmul.f32 %v1572, 1.442695
        %v1576 = vpow.pop %v1575
        %v1577 = vmul.f32 %v1573, 1.442695
        %v1578 = vpow.pop %v1577
        %v1579 = vmul.f32 %v1574, 1.442695
        %v1580 = vpow.pop %v1579
        %v1581 = vsel %vm1277, %v1576, 0.0
        %1582 = vadd.xlane.f32.xlu0 %v1581
        %v1583 = vpop.xlane.xlu0 %1582
        %v1584 = vsel %vm1277, %v1578, 0.0
        %1585 = vadd.xlane.f32.xlu0 %v1584
        %v1586 = vpop.xlane.xlu0 %1585
        %v1587 = vsel %vm1277, %v1580, 0.0
        %1588 = vadd.xlane.f32.xlu0 %v1587
        %v1589 = vpop.xlane.xlu0 %1588
        %v1590 = vrcp.pop %v1583
        %v1591 = vrcp.pop %v1586
        %v1592 = vrcp.pop %v1589
        %v1593 = vmul.f32 %v1576, %v1590
        %v1594 = vmul.f32 %v1578, %v1591
        %v1595 = vmul.f32 %v1580, %v1592
        %v1596 = vpack.c.bf16 %v1594, %v1593
        %v1597 = vpack.c.bf16 %v1595, %v1595
        %1598 = vrot.lane.b32.xlu0 %v1319, 112
        %v1599 = vpop.permute.xlu0 %1598
        %1600 = vrot.lane.b32.xlu0 %v1320, 112
        %v1601 = vpop.permute.xlu0 %1600
        %v1604 = vsel %vm1277, %v1596, 0
        %v1607 = vsel %vm1277, %v1597, 0
        %v1610 = vsel %vm1328, %v1601, 0
        %1612 = vmatpush.bf16.msra.mxu0 0
        %1613 = vmatpush.bf16.msra.mxu0 0
        %1614 = vmatpush.bf16.msra.mxu0 0
        %1615 = vmatpush.bf16.msra.mxu0 0
        %1616 = vmatpush.bf16.msra.mxu0 0
        %1617 = vmatpush.bf16.msra.mxu0 0
        %1618 = vmatpush.bf16.msra.mxu0 %v1610
        %1619 = vmatpush.bf16.msra.mxu0 %v1599
        %1620 = vmatmul.bf16.gmra.mxu0 %v1604
        %v1621 = vpop.f32.mrf.mxu0
        %v1622 = vadd.f32 0.0, %v1621
        %v1623 = vpop.f32.mrf.mxu0
        %v1624 = vadd.f32 0.0, %v1623
        %1625 = vmatmul.bf16.gmra.mxu0 %v1607
        %v1626 = vpop.f32.mrf.mxu0
        %v1627 = vadd.f32 0.0, %v1626
        %v1628 = vpop.f32.mrf.mxu0
        %1629 = vdwg.mxu0
        %v1630 = vpack.c.bf16 %v1624, %v1622
        %v1631 = vpack.c.bf16 %v1627, %v1627
        %v1633 = vsel %vm1240, %v1630, 0
        %v1636 = vsel %vm1240, %v1631, 0
        %v1639 = vsel %vm1328, %v1104, 0
        %1641 = vmatpush.bf16.msra.mxu0 0
        %1642 = vmatpush.bf16.msra.mxu0 0
        %1643 = vmatpush.bf16.msra.mxu0 0
        %1644 = vmatpush.bf16.msra.mxu0 0
        %1645 = vmatpush.bf16.msra.mxu0 0
        %1646 = vmatpush.bf16.msra.mxu0 0
        %1647 = vmatpush.bf16.msra.mxu0 0
        %1648 = vmatpush.bf16.msra.mxu0 %v1639
        %1649 = vmatmul.bf16.gmra.mxu0 %v1633
        %v1650 = vpop.f32.mrf.mxu0
        %v1651 = vadd.f32 0.0, %v1650
        %v1652 = vpop.f32.mrf.mxu0
        %v1653 = vadd.f32 0.0, %v1652
        %1654 = vmatmul.bf16.gmra.mxu0 %v1636
        %v1655 = vpop.f32.mrf.mxu0
        %v1656 = vadd.f32 0.0, %v1655
        %v1657 = vpop.f32.mrf.mxu0
        %1658 = vdwg.mxu0
        %v1659 = vadd.f32 %v1511, %v1651
        %v1660 = vadd.f32 %v1513, %v1653
        %v1661 = vadd.f32 %v1516, %v1656
        %1662 = vrot.lane.b32.xlu0 %v1230, 104
        %v1663 = vpop.permute.xlu0 %1662
        %1664 = vrot.lane.b32.xlu0 %v1231, 104
        %v1665 = vpop.permute.xlu0 %1664
        %1666 = vrot.lane.b32.xlu0 %v1238, 104
        %v1667 = vpop.permute.xlu0 %1666
        %1668 = vrot.lane.b32.xlu0 %v1239, 104
        %v1669 = vpop.permute.xlu0 %1668
        %v1671 = vsel %vm1240, %v1663, 0
        %v1674 = vsel %vm1240, %v1665, 0
        %v1677 = vsel %vm1240, %v1667, 0
        %v1680 = vsel %vm1240, %v1669, 0
        %1682 = vmatpush.bf16.xpose.msra.mxu0 0
        %1683 = vmatpush.bf16.xpose.msra.mxu0 0
        %1684 = vmatpush.bf16.xpose.msra.mxu0 0
        %1685 = vmatpush.bf16.xpose.msra.mxu0 0
        %1686 = vmatpush.bf16.xpose.msra.mxu0 0
        %1687 = vmatpush.bf16.xpose.msra.mxu0 0
        %1688 = vmatpush.bf16.xpose.msra.mxu0 %v1680
        %1689 = vmatpush.bf16.xpose.msra.mxu0 %v1677
        %1690 = vmatmul.bf16.gmra.mxu0 %v1671
        %v1691 = vpop.f32.mrf.mxu0
        %v1692 = vadd.f32 0.0, %v1691
        %v1693 = vpop.f32.mrf.mxu0
        %v1694 = vadd.f32 0.0, %v1693
        %1695 = vmatmul.bf16.gmra.mxu0 %v1674
        %v1696 = vpop.f32.mrf.mxu0
        %v1697 = vadd.f32 0.0, %v1696
        %v1698 = vpop.f32.mrf.mxu0
        %1699 = vdwg.mxu0
        %v1700 = vmul.f32 %v1692, 0.35355338
        %v1701 = vmul.f32 %v1694, 0.35355338
        %v1702 = vmul.f32 %v1697, 0.35355338
        %v1703 = vadd.f32 %v1700, %v1084
        %v1704 = vadd.f32 %v1701, %v1085
        %v1705 = vadd.f32 %v1702, %v1086
        %v1706 = vsel %vm1277, %v1703, -inf
        %1707 = vmax.xlane.f32.xlu0 %v1706
        %v1708 = vpop.xlane.xlu0 %1707
        %v1709 = vsel %vm1277, %v1704, -inf
        %1710 = vmax.xlane.f32.xlu0 %v1709
        %v1711 = vpop.xlane.xlu0 %1710
        %v1712 = vsel %vm1277, %v1705, -inf
        %1713 = vmax.xlane.f32.xlu0 %v1712
        %v1714 = vpop.xlane.xlu0 %1713
        %v1715 = vsub.f32 %v1703, %v1708
        %v1716 = vsub.f32 %v1704, %v1711
        %v1717 = vsub.f32 %v1705, %v1714
        %v1718 = vmul.f32 %v1715, 1.442695
        %v1719 = vpow.pop %v1718
        %v1720 = vmul.f32 %v1716, 1.442695
        %v1721 = vpow.pop %v1720
        %v1722 = vmul.f32 %v1717, 1.442695
        %v1723 = vpow.pop %v1722
        %v1724 = vsel %vm1277, %v1719, 0.0
        %1725 = vadd.xlane.f32.xlu0 %v1724
        %v1726 = vpop.xlane.xlu0 %1725
        %v1727 = vsel %vm1277, %v1721, 0.0
        %1728 = vadd.xlane.f32.xlu0 %v1727
        %v1729 = vpop.xlane.xlu0 %1728
        %v1730 = vsel %vm1277, %v1723, 0.0
        %1731 = vadd.xlane.f32.xlu0 %v1730
        %v1732 = vpop.xlane.xlu0 %1731
        %v1733 = vrcp.pop %v1726
        %v1734 = vrcp.pop %v1729
        %v1735 = vrcp.pop %v1732
        %v1736 = vmul.f32 %v1719, %v1733
        %v1737 = vmul.f32 %v1721, %v1734
        %v1738 = vmul.f32 %v1723, %v1735
        %v1739 = vpack.c.bf16 %v1737, %v1736
        %v1740 = vpack.c.bf16 %v1738, %v1738
        %1741 = vrot.lane.b32.xlu0 %v1319, 104
        %v1742 = vpop.permute.xlu0 %1741
        %1743 = vrot.lane.b32.xlu0 %v1320, 104
        %v1744 = vpop.permute.xlu0 %1743
        %v1747 = vsel %vm1277, %v1739, 0
        %v1750 = vsel %vm1277, %v1740, 0
        %v1753 = vsel %vm1328, %v1744, 0
        %1755 = vmatpush.bf16.msra.mxu0 0
        %1756 = vmatpush.bf16.msra.mxu0 0
        %1757 = vmatpush.bf16.msra.mxu0 0
        %1758 = vmatpush.bf16.msra.mxu0 0
        %1759 = vmatpush.bf16.msra.mxu0 0
        %1760 = vmatpush.bf16.msra.mxu0 0
        %1761 = vmatpush.bf16.msra.mxu0 %v1753
        %1762 = vmatpush.bf16.msra.mxu0 %v1742
        %1763 = vmatmul.bf16.gmra.mxu0 %v1747
        %v1764 = vpop.f32.mrf.mxu0
        %v1765 = vadd.f32 0.0, %v1764
        %v1766 = vpop.f32.mrf.mxu0
        %v1767 = vadd.f32 0.0, %v1766
        %1768 = vmatmul.bf16.gmra.mxu0 %v1750
        %v1769 = vpop.f32.mrf.mxu0
        %v1770 = vadd.f32 0.0, %v1769
        %v1771 = vpop.f32.mrf.mxu0
        %1772 = vdwg.mxu0
        %v1773 = vpack.c.bf16 %v1767, %v1765
        %v1774 = vpack.c.bf16 %v1770, %v1770
        %v1776 = vsel %vm1240, %v1773, 0
        %v1779 = vsel %vm1240, %v1774, 0
        %v1782 = vsel %vm1328, %v1105, 0
        %1784 = vmatpush.bf16.msra.mxu0 0
        %1785 = vmatpush.bf16.msra.mxu0 0
        %1786 = vmatpush.bf16.msra.mxu0 0
        %1787 = vmatpush.bf16.msra.mxu0 0
        %1788 = vmatpush.bf16.msra.mxu0 0
        %1789 = vmatpush.bf16.msra.mxu0 0
        %1790 = vmatpush.bf16.msra.mxu0 0
        %1791 = vmatpush.bf16.msra.mxu0 %v1782
        %1792 = vmatmul.bf16.gmra.mxu0 %v1776
        %v1793 = vpop.f32.mrf.mxu0
        %v1794 = vadd.f32 0.0, %v1793
        %v1795 = vpop.f32.mrf.mxu0
        %v1796 = vadd.f32 0.0, %v1795
        %1797 = vmatmul.bf16.gmra.mxu0 %v1779
        %v1798 = vpop.f32.mrf.mxu0
        %v1799 = vadd.f32 0.0, %v1798
        %v1800 = vpop.f32.mrf.mxu0
        %1801 = vdwg.mxu0
        %v1802 = vadd.f32 %v1659, %v1794
        %v1803 = vadd.f32 %v1660, %v1796
        %v1804 = vadd.f32 %v1661, %v1799
        %v1806 = vperm.slane %v1106, 0
        %v1808 = vadd.f32 %v1802, %v1806
        %v1809 = vadd.f32 %v1803, %v1806
        %v1810 = vadd.f32 %v1804, %v1806
        %v1811 = vadd.f32 %v1071, %v1808
        %v1812 = vadd.f32 %v1072, %v1809
        %v1813 = vadd.f32 %v1073, %v1810
        %v1814 = vld [vmem:[#allocation26] sm:$0x1]
        %v1815 = vld [vmem:[#allocation28] sm:$0x1]
        %v1816 = vsel %vm1124, %v1811, 0.0
        %1817 = vadd.xlane.f32.xlu0 %v1816
        %v1818 = vpop.xlane.xlu0 %1817
        %v1819 = vsel %vm1124, %v1812, 0.0
        %1820 = vadd.xlane.f32.xlu0 %v1819
        %v1821 = vpop.xlane.xlu0 %1820
        %v1822 = vsel %vm1124, %v1813, 0.0
        %1823 = vadd.xlane.f32.xlu0 %v1822
        %v1824 = vpop.xlane.xlu0 %1823
        %v1825 = vrcp.pop 32.0
        %v1826 = vmul.f32 32.0, %v1825
        %v1827 = vsub.f32 1.0, %v1826
        %v1828 = vmul.f32 %v1825, %v1827
        %v1829 = vadd.f32 %v1825, %v1828
        %vm1830 = vweird.f32 %v1825
        %v1831 = vsel %vm1830, %v1825, %v1829
        %v1832 = vmul.f32 %v1818, %v1831
        %v1833 = vmul.f32 %v1821, %v1831
        %v1834 = vmul.f32 %v1824, %v1831
        %v1835 = vsub.f32 %v1811, %v1832
        %v1836 = vsub.f32 %v1812, %v1833
        %v1837 = vsub.f32 %v1813, %v1834
        %v1838 = vmul.f32 %v1835, %v1835
        %v1839 = vmul.f32 %v1836, %v1836
        %v1840 = vmul.f32 %v1837, %v1837
        %v1841 = vsel %vm1124, %v1838, 0.0
        %1842 = vadd.xlane.f32.xlu0 %v1841
        %v1843 = vpop.xlane.xlu0 %1842
        %v1844 = vsel %vm1124, %v1839, 0.0
        %1845 = vadd.xlane.f32.xlu0 %v1844
        %v1846 = vpop.xlane.xlu0 %1845
        %v1847 = vsel %vm1124, %v1840, 0.0
        %1848 = vadd.xlane.f32.xlu0 %v1847
        %v1849 = vpop.xlane.xlu0 %1848
        %v1850 = vmul.f32 %v1843, %v1831
        %v1851 = vmul.f32 %v1846, %v1831
        %v1852 = vmul.f32 %v1849, %v1831
        %v1853 = vadd.f32 %v1850, 1e-05
        %v1854 = vadd.f32 %v1851, 1e-05
        %v1855 = vadd.f32 %v1852, 1e-05
        %v1856 = vrsqrt.pop %v1853
        %v1857 = vmul.f32 %v1856, %v1853
        %v1858 = vmul.f32 %v1857, %v1856
        %v1859 = vmul.f32 0.5, %v1858
        %v1860 = vsub.f32 1.5, %v1859
        %v1861 = vmul.f32 %v1856, %v1860
        %vm1862 = vweird.f32 %v1853
        %vm1863 = vweird.f32 %v1856
        %vm1864 = vmor %vm1862, %vm1863
        %v1865 = vsel %vm1864, %v1856, %v1861
        %v1866 = vrsqrt.pop %v1854
        %v1867 = vmul.f32 %v1866, %v1854
        %v1868 = vmul.f32 %v1867, %v1866
        %v1869 = vmul.f32 0.5, %v1868
        %v1870 = vsub.f32 1.5, %v1869
        %v1871 = vmul.f32 %v1866, %v1870
        %vm1872 = vweird.f32 %v1854
        %vm1873 = vweird.f32 %v1866
        %vm1874 = vmor %vm1872, %vm1873
        %v1875 = vsel %vm1874, %v1866, %v1871
        %v1876 = vrsqrt.pop %v1855
        %v1877 = vmul.f32 %v1876, %v1855
        %v1878 = vmul.f32 %v1877, %v1876
        %v1879 = vmul.f32 0.5, %v1878
        %v1880 = vsub.f32 1.5, %v1879
        %v1881 = vmul.f32 %v1876, %v1880
        %vm1882 = vweird.f32 %v1855
        %vm1883 = vweird.f32 %v1876
        %vm1884 = vmor %vm1882, %vm1883
        %v1885 = vsel %vm1884, %v1876, %v1881
        %v1886 = vmul.f32 %v1835, %v1865
        %v1887 = vmul.f32 %v1836, %v1875
        %v1888 = vmul.f32 %v1837, %v1885
        %v1890 = vperm.slane %v1814, 0
        %v1892 = vmul.f32 %v1886, %v1890
        %v1893 = vmul.f32 %v1887, %v1890
        %v1894 = vmul.f32 %v1888, %v1890
        %v1896 = vperm.slane %v1815, 0
        %v1898 = vadd.f32 %v1892, %v1896
        %v1899 = vadd.f32 %v1893, %v1896
        %v1900 = vadd.f32 %v1894, %v1896
        %v1901 = vld [vmem:[#allocation23] sm:$0xf]
        %v1902 = vld [vmem:[#allocation23 + $0x4] sm:$0xf]
        %v1903 = vld [vmem:[#allocation23 + $0x8] sm:$0xf]
        %v1904 = vld [vmem:[#allocation23 + $0xc] sm:$0xf]
        %v1905 = vld [vmem:[%s16] sm:$0x1]
        %v1906 = vld [vmem:[%s17] sm:$0xf]
        %v1907 = vld [vmem:[%s17 + $0x4] sm:$0xf]
        %v1908 = vld [vmem:[%s17 + $0x8] sm:$0xf]
        %v1909 = vld [vmem:[%s17 + $0xc] sm:$0xf]
        %v1910 = vld [vmem:[%s17 + $0x10] sm:$0xf]
        %v1911 = vld [vmem:[%s17 + $0x14] sm:$0xf]
        %v1912 = vld [vmem:[%s17 + $0x18] sm:$0xf]
        %v1913 = vld [vmem:[%s17 + $0x1c] sm:$0xf]
        %v1914 = vld [vmem:[%s17 + $0x20] sm:$0xf]
        %v1915 = vld [vmem:[%s17 + $0x24] sm:$0xf]
        %v1916 = vld [vmem:[%s17 + $0x28] sm:$0xf]
        %v1917 = vld [vmem:[%s17 + $0x2c] sm:$0xf]
        %v1918 = vld [vmem:[%s17 + $0x30] sm:$0xf]
        %v1919 = vld [vmem:[%s17 + $0x34] sm:$0xf]
        %v1920 = vld [vmem:[%s17 + $0x38] sm:$0xf]
        %v1921 = vld [vmem:[%s17 + $0x3c] sm:$0xf]
        %v1922 = vld [vmem:[#allocation25] sm:$0x1]
        %v1923 = vpack.c.bf16 %v1899, %v1898
        %v1924 = vpack.c.bf16 %v1900, %v1900
        %v1926 = vperm.slane %v1905, 0
        %v1932 = vunpack.c.l.b16 %v1901
        %v1933 = vunpack.c.l.b16 %v1902
        %v1934 = vunpack.c.l.b16 %v1903
        %v1935 = vunpack.c.l.b16 %v1904
        %v1936 = vpack.c.b16 %v1933, %v1932
        %v1937 = vpack.c.b16 %v1935, %v1934
        %v1941 = vsel %vm1124, %v1923, 0
        %v1944 = vsel %vm1124, %v1924, 0
        %1946 = vmatpush.bf16.msra.mxu0 0
        %1947 = vmatpush.bf16.msra.mxu0 0
        %1948 = vmatpush.bf16.msra.mxu0 0
        %1949 = vmatpush.bf16.msra.mxu0 0
        %1950 = vmatpush.bf16.msra.mxu0 0
        %1951 = vmatpush.bf16.msra.mxu0 0
        %1952 = vmatpush.bf16.msra.mxu0 %v1937
        %1953 = vmatpush.bf16.msra.mxu0 %v1936
        %1954 = vmatmul.bf16.gmra.mxu0 %v1941
        %v1955 = vpop.f32.mrf.mxu0
        %v1956 = vadd.f32 %v1926, %v1955
        %v1957 = vpop.f32.mrf.mxu0
        %v1958 = vadd.f32 %v1926, %v1957
        %1959 = vmatmul.bf16.gmra.mxu0 %v1944
        %v1960 = vpop.f32.mrf.mxu0
        %v1961 = vadd.f32 %v1926, %v1960
        %v1962 = vpop.f32.mrf.mxu0
        %1963 = vdwg.mxu0
        %v1964 = vmul.f32 %v1956, 0.5
        %v1965 = vmul.f32 %v1958, 0.5
        %v1966 = vmul.f32 %v1961, 0.5
        %v1967 = vmul.f32 %v1956, 0.044715
        %v1968 = vmul.f32 %v1958, 0.044715
        %v1969 = vmul.f32 %v1961, 0.044715
        %v1970 = vmul.f32 %v1967, %v1956
        %v1971 = vmul.f32 %v1968, %v1958
        %v1972 = vmul.f32 %v1969, %v1961
        %v1973 = vmul.f32 %v1970, %v1956
        %v1974 = vmul.f32 %v1971, %v1958
        %v1975 = vmul.f32 %v1972, %v1961
        %v1976 = vadd.f32 %v1956, %v1973
        %v1977 = vadd.f32 %v1958, %v1974
        %v1978 = vadd.f32 %v1961, %v1975
        %v1979 = vmul.f32 %v1976, 0.7978846
        %v1980 = vmul.f32 %v1977, 0.7978846
        %v1981 = vmul.f32 %v1978, 0.7978846
        %v1982 = vtanh.pop %v1979
        %v1983 = vtanh.pop %v1980
        %v1984 = vtanh.pop %v1981
        %v1985 = vadd.f32 %v1982, 1.0
        %v1986 = vadd.f32 %v1983, 1.0
        %v1987 = vadd.f32 %v1984, 1.0
        %v1988 = vmul.f32 %v1964, %v1985
        %v1989 = vmul.f32 %v1965, %v1986
        %v1990 = vmul.f32 %v1966, %v1987
        %v1991 = vpack.c.bf16 %v1989, %v1988
        %v1992 = vpack.c.bf16 %v1990, %v1990
        %v1994 = vperm.slane %v1922, 0
        %v2012 = vunpack.c.l.b16 %v1906
        %v2013 = vunpack.c.l.b16 %v1907
        %v2014 = vunpack.c.l.b16 %v1908
        %v2015 = vunpack.c.l.b16 %v1909
        %v2016 = vunpack.c.l.b16 %v1910
        %v2017 = vunpack.c.l.b16 %v1911
        %v2018 = vunpack.c.l.b16 %v1912
        %v2019 = vunpack.c.l.b16 %v1913
        %v2020 = vunpack.c.l.b16 %v1914
        %v2021 = vunpack.c.l.b16 %v1915
        %v2022 = vunpack.c.l.b16 %v1916
        %v2023 = vunpack.c.l.b16 %v1917
        %v2024 = vunpack.c.l.b16 %v1918
        %v2025 = vunpack.c.l.b16 %v1919
        %v2026 = vunpack.c.l.b16 %v1920
        %v2027 = vunpack.c.l.b16 %v1921
        %v2028 = vpack.c.b16 %v2013, %v2012
        %v2029 = vpack.c.b16 %v2015, %v2014
        %v2030 = vpack.c.b16 %v2017, %v2016
        %v2031 = vpack.c.b16 %v2019, %v2018
        %v2032 = vpack.c.b16 %v2021, %v2020
        %v2033 = vpack.c.b16 %v2023, %v2022
        %v2034 = vpack.c.b16 %v2025, %v2024
        %v2035 = vpack.c.b16 %v2027, %v2026
        %2044 = vmatpush.bf16.msra.mxu0 %v2035
        %2045 = vmatpush.bf16.msra.mxu0 %v2034
        %2046 = vmatpush.bf16.msra.mxu0 %v2033
        %2047 = vmatpush.bf16.msra.mxu0 %v2032
        %2048 = vmatpush.bf16.msra.mxu0 %v2031
        %2049 = vmatpush.bf16.msra.mxu0 %v2030
        %2050 = vmatpush.bf16.msra.mxu0 %v2029
        %2051 = vmatpush.bf16.msra.mxu0 %v2028
        %2052 = vmatmul.bf16.gmra.mxu0 %v1991
        %v2053 = vpop.f32.mrf.mxu0
        %v2054 = vadd.f32 %v1994, %v2053
        %v2055 = vpop.f32.mrf.mxu0
        %v2056 = vadd.f32 %v1994, %v2055
        %2057 = vmatmul.bf16.gmra.mxu0 %v1992
        %v2058 = vpop.f32.mrf.mxu0
        %v2059 = vadd.f32 %v1994, %v2058
        %v2060 = vpop.f32.mrf.mxu0
        %2061 = vdwg.mxu0
        %v2062 = vadd.f32 %v1898, %v2054
        %v2063 = vadd.f32 %v1899, %v2056
        %v2064 = vadd.f32 %v1900, %v2059
        %s2065 = scalar_lea.vmem [#allocation26], 1
        %v2066 = vld [vmem:[%s2065] sm:$0x1]
        %s2067 = scalar_lea.vmem [#allocation28], 1
        %v2068 = vld [vmem:[%s2067] sm:$0x1]
        %v2069 = vsel %vm1124, %v2062, 0.0
        %2070 = vadd.xlane.f32.xlu0 %v2069
        %v2071 = vpop.xlane.xlu0 %2070
        %v2072 = vsel %vm1124, %v2063, 0.0
        %2073 = vadd.xlane.f32.xlu0 %v2072
        %v2074 = vpop.xlane.xlu0 %2073
        %v2075 = vsel %vm1124, %v2064, 0.0
        %2076 = vadd.xlane.f32.xlu0 %v2075
        %v2077 = vpop.xlane.xlu0 %2076
        %v2078 = vmul.f32 %v2071, %v1831
        %v2079 = vmul.f32 %v2074, %v1831
        %v2080 = vmul.f32 %v2077, %v1831
        %v2081 = vsub.f32 %v2062, %v2078
        %v2082 = vsub.f32 %v2063, %v2079
        %v2083 = vsub.f32 %v2064, %v2080
        %v2084 = vmul.f32 %v2081, %v2081
        %v2085 = vmul.f32 %v2082, %v2082
        %v2086 = vmul.f32 %v2083, %v2083
        %v2087 = vsel %vm1124, %v2084, 0.0
        %2088 = vadd.xlane.f32.xlu0 %v2087
        %v2089 = vpop.xlane.xlu0 %2088
        %v2090 = vsel %vm1124, %v2085, 0.0
        %2091 = vadd.xlane.f32.xlu0 %v2090
        %v2092 = vpop.xlane.xlu0 %2091
        %v2093 = vsel %vm1124, %v2086, 0.0
        %2094 = vadd.xlane.f32.xlu0 %v2093
        %v2095 = vpop.xlane.xlu0 %2094
        %v2096 = vmul.f32 %v2089, %v1831
        %v2097 = vmul.f32 %v2092, %v1831
        %v2098 = vmul.f32 %v2095, %v1831
        %v2099 = vadd.f32 %v2096, 1e-05
        %v2100 = vadd.f32 %v2097, 1e-05
        %v2101 = vadd.f32 %v2098, 1e-05
        %v2102 = vrsqrt.pop %v2099
        %v2103 = vmul.f32 %v2102, %v2099
        %v2104 = vmul.f32 %v2103, %v2102
        %v2105 = vmul.f32 0.5, %v2104
        %v2106 = vsub.f32 1.5, %v2105
        %v2107 = vmul.f32 %v2102, %v2106
        %vm2108 = vweird.f32 %v2099
        %vm2109 = vweird.f32 %v2102
        %vm2110 = vmor %vm2108, %vm2109
        %v2111 = vsel %vm2110, %v2102, %v2107
        %v2112 = vrsqrt.pop %v2100
        %v2113 = vmul.f32 %v2112, %v2100
        %v2114 = vmul.f32 %v2113, %v2112
        %v2115 = vmul.f32 0.5, %v2114
        %v2116 = vsub.f32 1.5, %v2115
        %v2117 = vmul.f32 %v2112, %v2116
        %vm2118 = vweird.f32 %v2100
        %vm2119 = vweird.f32 %v2112
        %vm2120 = vmor %vm2118, %vm2119
        %v2121 = vsel %vm2120, %v2112, %v2117
        %v2122 = vrsqrt.pop %v2101
        %v2123 = vmul.f32 %v2122, %v2101
        %v2124 = vmul.f32 %v2123, %v2122
        %v2125 = vmul.f32 0.5, %v2124
        %v2126 = vsub.f32 1.5, %v2125
        %v2127 = vmul.f32 %v2122, %v2126
        %vm2128 = vweird.f32 %v2101
        %vm2129 = vweird.f32 %v2122
        %vm2130 = vmor %vm2128, %vm2129
        %v2131 = vsel %vm2130, %v2122, %v2127
        %v2132 = vmul.f32 %v2081, %v2111
        %v2133 = vmul.f32 %v2082, %v2121
        %v2134 = vmul.f32 %v2083, %v2131
        %v2136 = vperm.slane %v2066, 0
        %v2138 = vmul.f32 %v2132, %v2136
        %v2139 = vmul.f32 %v2133, %v2136
        %v2140 = vmul.f32 %v2134, %v2136
        %v2142 = vperm.slane %v2068, 0
        %v2144 = vadd.f32 %v2138, %v2142
        %v2145 = vadd.f32 %v2139, %v2142
        %v2146 = vadd.f32 %v2140, %v2142
        %v2147 = vld [vmem:[#allocation8] sm:$0xff]
        %v2148 = vld [vmem:[#allocation8 + $0x8] sm:$0xff]
        %v2149 = vld [vmem:[#allocation8 + $0x10] sm:$0xff]
        %v2150 = vld [vmem:[#allocation8 + $0x18] sm:$0xff]
        %s2151 = scalar_lea.vmem %s7, 16
        %v2152 = vld [vmem:[%s2151] sm:$0xf]
        %v2153 = vld [vmem:[%s2151 + $0x4] sm:$0xf]
        %v2154 = vld [vmem:[%s2151 + $0x8] sm:$0xf]
        %v2155 = vld [vmem:[%s2151 + $0xc] sm:$0xf]
        %s2156 = scalar_lea.vmem [#allocation13], 1
        %v2157 = vld [vmem:[%s2156] sm:$0x1]
        %s2158 = scalar_lea.vmem [#allocation14], 16
        %v2159 = vld [vmem:[%s2158] sm:$0xf]
        %v2160 = vld [vmem:[%s2158 + $0x4] sm:$0xf]
        %v2161 = vld [vmem:[%s2158 + $0x8] sm:$0xf]
        %v2162 = vld [vmem:[%s2158 + $0xc] sm:$0xf]
        %s2163 = scalar_lea.vmem [#allocation16], 1
        %v2164 = vld [vmem:[%s2163] sm:$0x1]
        %s2165 = scalar_lea.vmem [#allocation17], 16
        %v2166 = vld [vmem:[%s2165] sm:$0xf]
        %v2167 = vld [vmem:[%s2165 + $0x4] sm:$0xf]
        %v2168 = vld [vmem:[%s2165 + $0x8] sm:$0xf]
        %v2169 = vld [vmem:[%s2165 + $0xc] sm:$0xf]
        %s2170 = scalar_lea.vmem [#allocation19], 1
        %v2171 = vld [vmem:[%s2170] sm:$0x1]
        %s2172 = scalar_lea.vmem [#allocation20], 16
        %v2173 = vld [vmem:[%s2172] sm:$0xf]
        %v2174 = vld [vmem:[%s2172 + $0x4] sm:$0xf]
        %v2175 = vld [vmem:[%s2172 + $0x8] sm:$0xf]
        %v2176 = vld [vmem:[%s2172 + $0xc] sm:$0xf]
        %s2177 = scalar_lea.vmem [#allocation22], 1
        %v2178 = vld [vmem:[%s2177] sm:$0x1]
        %v2179 = vpack.c.bf16 %v1081, %v1080
        %v2180 = vpack.c.bf16 %v1083, %v1082
        %v2182 = vperm.slane %v2157, 0
        %v2188 = vunpack.c.l.b16 %v2152
        %v2189 = vunpack.c.l.b16 %v2153
        %v2190 = vunpack.c.l.b16 %v2154
        %v2191 = vunpack.c.l.b16 %v2155
        %v2192 = vpack.c.b16 %v2189, %v2188
        %v2193 = vpack.c.b16 %v2191, %v2190
        %v2197 = vsel %vm1124, %v2179, 0
        %v2200 = vsel %vm1124, %v2180, 0
        %2202 = vmatpush.bf16.msra.mxu0 0
        %2203 = vmatpush.bf16.msra.mxu0 0
        %2204 = vmatpush.bf16.msra.mxu0 0
        %2205 = vmatpush.bf16.msra.mxu0 0
        %2206 = vmatpush.bf16.msra.mxu0 0
        %2207 = vmatpush.bf16.msra.mxu0 0
        %2208 = vmatpush.bf16.msra.mxu0 %v2193
        %2209 = vmatpush.bf16.msra.mxu0 %v2192
        %2210 = vmatmul.bf16.gmra.mxu0 %v2197
        %v2211 = vpop.f32.mrf.mxu0
        %v2212 = vadd.f32 %v2182, %v2211
        %v2213 = vpop.f32.mrf.mxu0
        %v2214 = vadd.f32 %v2182, %v2213
        %2215 = vmatmul.bf16.gmra.mxu0 %v2200
        %v2216 = vpop.f32.mrf.mxu0
        %v2217 = vadd.f32 %v2182, %v2216
        %v2218 = vpop.f32.mrf.mxu0
        %v2219 = vadd.f32 %v2182, %v2218
        %2220 = vdwg.mxu0
        %v2221 = vpack.c.bf16 %v2145, %v2144
        %v2222 = vpack.c.bf16 %v2146, %v2146
        %v2224 = vperm.slane %v2164, 0
        %v2230 = vunpack.c.l.b16 %v2159
        %v2231 = vunpack.c.l.b16 %v2160
        %v2232 = vunpack.c.l.b16 %v2161
        %v2233 = vunpack.c.l.b16 %v2162
        %v2234 = vpack.c.b16 %v2231, %v2230
        %v2235 = vpack.c.b16 %v2233, %v2232
        %v2239 = vsel %vm1124, %v2221, 0
        %v2242 = vsel %vm1124, %v2222, 0
        %2244 = vmatpush.bf16.msra.mxu0 0
        %2245 = vmatpush.bf16.msra.mxu0 0
        %2246 = vmatpush.bf16.msra.mxu0 0
        %2247 = vmatpush.bf16.msra.mxu0 0
        %2248 = vmatpush.bf16.msra.mxu0 0
        %2249 = vmatpush.bf16.msra.mxu0 0
        %2250 = vmatpush.bf16.msra.mxu0 %v2235
        %2251 = vmatpush.bf16.msra.mxu0 %v2234
        %2252 = vmatmul.bf16.gmra.mxu0 %v2239
        %v2253 = vpop.f32.mrf.mxu0
        %v2254 = vadd.f32 %v2224, %v2253
        %v2255 = vpop.f32.mrf.mxu0
        %v2256 = vadd.f32 %v2224, %v2255
        %2257 = vmatmul.bf16.gmra.mxu0 %v2242
        %v2258 = vpop.f32.mrf.mxu0
        %v2259 = vadd.f32 %v2224, %v2258
        %v2260 = vpop.f32.mrf.mxu0
        %2261 = vdwg.mxu0
        %v2263 = vperm.slane %v2171, 0
        %v2269 = vunpack.c.l.b16 %v2166
        %v2270 = vunpack.c.l.b16 %v2167
        %v2271 = vunpack.c.l.b16 %v2168
        %v2272 = vunpack.c.l.b16 %v2169
        %v2273 = vpack.c.b16 %v2270, %v2269
        %v2274 = vpack.c.b16 %v2272, %v2271
        %2277 = vmatpush.bf16.msra.mxu0 0
        %2278 = vmatpush.bf16.msra.mxu0 0
        %2279 = vmatpush.bf16.msra.mxu0 0
        %2280 = vmatpush.bf16.msra.mxu0 0
        %2281 = vmatpush.bf16.msra.mxu0 0
        %2282 = vmatpush.bf16.msra.mxu0 0
        %2283 = vmatpush.bf16.msra.mxu0 %v2274
        %2284 = vmatpush.bf16.msra.mxu0 %v2273
        %2285 = vmatmul.bf16.gmra.mxu0 %v2239
        %v2286 = vpop.f32.mrf.mxu0
        %v2287 = vadd.f32 %v2263, %v2286
        %v2288 = vpop.f32.mrf.mxu0
        %v2289 = vadd.f32 %v2263, %v2288
        %2290 = vmatmul.bf16.gmra.mxu0 %v2242
        %v2291 = vpop.f32.mrf.mxu0
        %v2292 = vadd.f32 %v2263, %v2291
        %v2293 = vpop.f32.mrf.mxu0
        %2294 = vdwg.mxu0
        %v2295 = vpack.c.bf16 %v2212, %v2212
        %v2296 = vpack.c.bf16 %v2214, %v2214
        %v2297 = vpack.c.bf16 %v2217, %v2217
        %v2298 = vpack.c.bf16 %v2219, %v2219
        %v2299 = vpack.c.bf16 %v2254, %v2254
        %v2300 = vpack.c.bf16 %v2256, %v2256
        %v2301 = vpack.c.bf16 %v2259, %v2259
        %v2302 = vpack.c.bf16 %v2287, %v2287
        %v2303 = vpack.c.bf16 %v2289, %v2289
        %v2304 = vpack.c.bf16 %v2292, %v2292
        %v2309 = vunpack.c.l.b16 %v2295
        %v2310 = vunpack.c.l.b16 %v2296
        %v2311 = vunpack.c.l.b16 %v2297
        %v2312 = vunpack.c.l.b16 %v2298
        %v2313 = vpack.c.b16 %v2310, %v2309
        %v2314 = vpack.c.b16 %v2312, %v2311
        %v2318 = vunpack.c.l.b16 %v2299
        %v2319 = vunpack.c.l.b16 %v2300
        %v2320 = vunpack.c.l.b16 %v2301
        %v2321 = vpack.c.b16 %v2319, %v2318
        %v2322 = vpack.c.b16 %v2320, %v2320
        %v2324 = vsel %vm1240, %v2313, 0
        %v2327 = vsel %vm1240, %v2314, 0
        %v2330 = vsel %vm1240, %v2321, 0
        %v2333 = vsel %vm1240, %v2322, 0
        %2335 = vmatpush.bf16.xpose.msra.mxu0 0
        %2336 = vmatpush.bf16.xpose.msra.mxu0 0
        %2337 = vmatpush.bf16.xpose.msra.mxu0 0
        %2338 = vmatpush.bf16.xpose.msra.mxu0 0
        %2339 = vmatpush.bf16.xpose.msra.mxu0 0
        %2340 = vmatpush.bf16.xpose.msra.mxu0 0
        %2341 = vmatpush.bf16.xpose.msra.mxu0 %v2333
        %2342 = vmatpush.bf16.xpose.msra.mxu0 %v2330
        %2343 = vmatmul.bf16.gmra.mxu0 %v2324
        %v2344 = vpop.f32.mrf.mxu0
        %v2345 = vadd.f32 0.0, %v2344
        %v2346 = vpop.f32.mrf.mxu0
        %v2347 = vadd.f32 0.0, %v2346
        %2348 = vmatmul.bf16.gmra.mxu0 %v2327
        %v2349 = vpop.f32.mrf.mxu0
        %v2350 = vadd.f32 0.0, %v2349
        %v2351 = vpop.f32.mrf.mxu0
        %v2352 = vadd.f32 0.0, %v2351
        %2353 = vdwg.mxu0
        %v2354 = vmul.f32 %v2345, 0.35355338
        %v2355 = vmul.f32 %v2347, 0.35355338
        %v2356 = vmul.f32 %v2350, 0.35355338
        %v2357 = vmul.f32 %v2352, 0.35355338
        %v2358 = vadd.f32 %v2354, %v2147
        %v2359 = vadd.f32 %v2355, %v2148
        %v2360 = vadd.f32 %v2356, %v2149
        %v2361 = vadd.f32 %v2357, %v2150
        %v2362 = vsel %vm1277, %v2358, -inf
        %2363 = vmax.xlane.f32.xlu0 %v2362
        %v2364 = vpop.xlane.xlu0 %2363
        %v2365 = vsel %vm1277, %v2359, -inf
        %2366 = vmax.xlane.f32.xlu0 %v2365
        %v2367 = vpop.xlane.xlu0 %2366
        %v2368 = vsel %vm1277, %v2360, -inf
        %2369 = vmax.xlane.f32.xlu0 %v2368
        %v2370 = vpop.xlane.xlu0 %2369
        %v2371 = vsel %vm1277, %v2361, -inf
        %2372 = vmax.xlane.f32.xlu0 %v2371
        %v2373 = vpop.xlane.xlu0 %2372
        %v2374 = vsub.f32 %v2358, %v2364
        %v2375 = vsub.f32 %v2359, %v2367
        %v2376 = vsub.f32 %v2360, %v2370
        %v2377 = vsub.f32 %v2361, %v2373
        %v2378 = vmul.f32 %v2374, 1.442695
        %v2379 = vpow.pop %v2378
        %v2380 = vmul.f32 %v2375, 1.442695
        %v2381 = vpow.pop %v2380
        %v2382 = vmul.f32 %v2376, 1.442695
        %v2383 = vpow.pop %v2382
        %v2384 = vmul.f32 %v2377, 1.442695
        %v2385 = vpow.pop %v2384
        %v2386 = vsel %vm1277, %v2379, 0.0
        %2387 = vadd.xlane.f32.xlu0 %v2386
        %v2388 = vpop.xlane.xlu0 %2387
        %v2389 = vsel %vm1277, %v2381, 0.0
        %2390 = vadd.xlane.f32.xlu0 %v2389
        %v2391 = vpop.xlane.xlu0 %2390
        %v2392 = vsel %vm1277, %v2383, 0.0
        %2393 = vadd.xlane.f32.xlu0 %v2392
        %v2394 = vpop.xlane.xlu0 %2393
        %v2395 = vsel %vm1277, %v2385, 0.0
        %2396 = vadd.xlane.f32.xlu0 %v2395
        %v2397 = vpop.xlane.xlu0 %2396
        %v2398 = vrcp.pop %v2388
        %v2399 = vrcp.pop %v2391
        %v2400 = vrcp.pop %v2394
        %v2401 = vrcp.pop %v2397
        %v2402 = vmul.f32 %v2379, %v2398
        %v2403 = vmul.f32 %v2381, %v2399
        %v2404 = vmul.f32 %v2383, %v2400
        %v2405 = vmul.f32 %v2385, %v2401
        %v2406 = vpack.c.bf16 %v2403, %v2402
        %v2407 = vpack.c.bf16 %v2405, %v2404
        %v2411 = vunpack.c.l.b16 %v2302
        %v2412 = vunpack.c.l.b16 %v2303
        %v2413 = vunpack.c.l.b16 %v2304
        %v2414 = vpack.c.b16 %v2412, %v2411
        %v2415 = vpack.c.b16 %v2413, %v2413
        %v2418 = vsel %vm1277, %v2406, 0
        %v2421 = vsel %vm1277, %v2407, 0
        %v2424 = vsel %vm1328, %v2415, 0
        %2426 = vmatpush.bf16.msra.mxu0 0
        %2427 = vmatpush.bf16.msra.mxu0 0
        %2428 = vmatpush.bf16.msra.mxu0 0
        %2429 = vmatpush.bf16.msra.mxu0 0
        %2430 = vmatpush.bf16.msra.mxu0 0
        %2431 = vmatpush.bf16.msra.mxu0 0
        %2432 = vmatpush.bf16.msra.mxu0 %v2424
        %2433 = vmatpush.bf16.msra.mxu0 %v2414
        %2434 = vmatmul.bf16.gmra.mxu0 %v2418
        %v2435 = vpop.f32.mrf.mxu0
        %v2436 = vadd.f32 0.0, %v2435
        %v2437 = vpop.f32.mrf.mxu0
        %v2438 = vadd.f32 0.0, %v2437
        %2439 = vmatmul.bf16.gmra.mxu0 %v2421
        %v2440 = vpop.f32.mrf.mxu0
        %v2441 = vadd.f32 0.0, %v2440
        %v2442 = vpop.f32.mrf.mxu0
        %v2443 = vadd.f32 0.0, %v2442
        %2444 = vdwg.mxu0
        %v2445 = vpack.c.bf16 %v2438, %v2436
        %v2446 = vpack.c.bf16 %v2443, %v2441
        %2447 = vrot.lane.b32.xlu0 %v2313, 120
        %v2448 = vpop.permute.xlu0 %2447
        %2449 = vrot.lane.b32.xlu0 %v2314, 120
        %v2450 = vpop.permute.xlu0 %2449
        %2451 = vrot.lane.b32.xlu0 %v2321, 120
        %v2452 = vpop.permute.xlu0 %2451
        %2453 = vrot.lane.b32.xlu0 %v2322, 120
        %v2454 = vpop.permute.xlu0 %2453
        %v2456 = vsel %vm1240, %v2448, 0
        %v2459 = vsel %vm1240, %v2450, 0
        %v2462 = vsel %vm1240, %v2452, 0
        %v2465 = vsel %vm1240, %v2454, 0
        %2467 = vmatpush.bf16.xpose.msra.mxu0 0
        %2468 = vmatpush.bf16.xpose.msra.mxu0 0
        %2469 = vmatpush.bf16.xpose.msra.mxu0 0
        %2470 = vmatpush.bf16.xpose.msra.mxu0 0
        %2471 = vmatpush.bf16.xpose.msra.mxu0 0
        %2472 = vmatpush.bf16.xpose.msra.mxu0 0
        %2473 = vmatpush.bf16.xpose.msra.mxu0 %v2465
        %2474 = vmatpush.bf16.xpose.msra.mxu0 %v2462
        %2475 = vmatmul.bf16.gmra.mxu0 %v2456
        %v2476 = vpop.f32.mrf.mxu0
        %v2477 = vadd.f32 0.0, %v2476
        %v2478 = vpop.f32.mrf.mxu0
        %v2479 = vadd.f32 0.0, %v2478
        %2480 = vmatmul.bf16.gmra.mxu0 %v2459
        %v2481 = vpop.f32.mrf.mxu0
        %v2482 = vadd.f32 0.0, %v2481
        %v2483 = vpop.f32.mrf.mxu0
        %v2484 = vadd.f32 0.0, %v2483
        %2485 = vdwg.mxu0
        %v2486 = vmul.f32 %v2477, 0.35355338
        %v2487 = vmul.f32 %v2479, 0.35355338
        %v2488 = vmul.f32 %v2482, 0.35355338
        %v2489 = vmul.f32 %v2484, 0.35355338
        %v2490 = vadd.f32 %v2486, %v2147
        %v2491 = vadd.f32 %v2487, %v2148
        %v2492 = vadd.f32 %v2488, %v2149
        %v2493 = vadd.f32 %v2489, %v2150
        %v2494 = vsel %vm1277, %v2490, -inf
        %2495 = vmax.xlane.f32.xlu0 %v2494
        %v2496 = vpop.xlane.xlu0 %2495
        %v2497 = vsel %vm1277, %v2491, -inf
        %2498 = vmax.xlane.f32.xlu0 %v2497
        %v2499 = vpop.xlane.xlu0 %2498
        %v2500 = vsel %vm1277, %v2492, -inf
        %2501 = vmax.xlane.f32.xlu0 %v2500
        %v2502 = vpop.xlane.xlu0 %2501
        %v2503 = vsel %vm1277, %v2493, -inf
        %2504 = vmax.xlane.f32.xlu0 %v2503
        %v2505 = vpop.xlane.xlu0 %2504
        %v2506 = vsub.f32 %v2490, %v2496
        %v2507 = vsub.f32 %v2491, %v2499
        %v2508 = vsub.f32 %v2492, %v2502
        %v2509 = vsub.f32 %v2493, %v2505
        %v2510 = vmul.f32 %v2506, 1.442695
        %v2511 = vpow.pop %v2510
        %v2512 = vmul.f32 %v2507, 1.442695
        %v2513 = vpow.pop %v2512
        %v2514 = vmul.f32 %v2508, 1.442695
        %v2515 = vpow.pop %v2514
        %v2516 = vmul.f32 %v2509, 1.442695
        %v2517 = vpow.pop %v2516
        %v2518 = vsel %vm1277, %v2511, 0.0
        %2519 = vadd.xlane.f32.xlu0 %v2518
        %v2520 = vpop.xlane.xlu0 %2519
        %v2521 = vsel %vm1277, %v2513, 0.0
        %2522 = vadd.xlane.f32.xlu0 %v2521
        %v2523 = vpop.xlane.xlu0 %2522
        %v2524 = vsel %vm1277, %v2515, 0.0
        %2525 = vadd.xlane.f32.xlu0 %v2524
        %v2526 = vpop.xlane.xlu0 %2525
        %v2527 = vsel %vm1277, %v2517, 0.0
        %2528 = vadd.xlane.f32.xlu0 %v2527
        %v2529 = vpop.xlane.xlu0 %2528
        %v2530 = vrcp.pop %v2520
        %v2531 = vrcp.pop %v2523
        %v2532 = vrcp.pop %v2526
        %v2533 = vrcp.pop %v2529
        %v2534 = vmul.f32 %v2511, %v2530
        %v2535 = vmul.f32 %v2513, %v2531
        %v2536 = vmul.f32 %v2515, %v2532
        %v2537 = vmul.f32 %v2517, %v2533
        %v2538 = vpack.c.bf16 %v2535, %v2534
        %v2539 = vpack.c.bf16 %v2537, %v2536
        %2540 = vrot.lane.b32.xlu0 %v2414, 120
        %v2541 = vpop.permute.xlu0 %2540
        %2542 = vrot.lane.b32.xlu0 %v2415, 120
        %v2543 = vpop.permute.xlu0 %2542
        %v2546 = vsel %vm1277, %v2538, 0
        %v2549 = vsel %vm1277, %v2539, 0
        %v2552 = vsel %vm1328, %v2543, 0
        %2554 = vmatpush.bf16.msra.mxu0 0
        %2555 = vmatpush.bf16.msra.mxu0 0
        %2556 = vmatpush.bf16.msra.mxu0 0
        %2557 = vmatpush.bf16.msra.mxu0 0
        %2558 = vmatpush.bf16.msra.mxu0 0
        %2559 = vmatpush.bf16.msra.mxu0 0
        %2560 = vmatpush.bf16.msra.mxu0 %v2552
        %2561 = vmatpush.bf16.msra.mxu0 %v2541
        %2562 = vmatmul.bf16.gmra.mxu0 %v2546
        %v2563 = vpop.f32.mrf.mxu0
        %v2564 = vadd.f32 0.0, %v2563
        %v2565 = vpop.f32.mrf.mxu0
        %v2566 = vadd.f32 0.0, %v2565
        %2567 = vmatmul.bf16.gmra.mxu0 %v2549
        %v2568 = vpop.f32.mrf.mxu0
        %v2569 = vadd.f32 0.0, %v2568
        %v2570 = vpop.f32.mrf.mxu0
        %v2571 = vadd.f32 0.0, %v2570
        %2572 = vdwg.mxu0
        %v2573 = vpack.c.bf16 %v2566, %v2564
        %v2574 = vpack.c.bf16 %v2571, %v2569
        %v2576 = vsel %vm1240, %v2573, 0
        %v2579 = vsel %vm1240, %v2574, 0
        %v2582 = vsel %vm1328, %v2174, 0
        %2584 = vmatpush.bf16.msra.mxu0 0
        %2585 = vmatpush.bf16.msra.mxu0 0
        %2586 = vmatpush.bf16.msra.mxu0 0
        %2587 = vmatpush.bf16.msra.mxu0 0
        %2588 = vmatpush.bf16.msra.mxu0 0
        %2589 = vmatpush.bf16.msra.mxu0 0
        %2590 = vmatpush.bf16.msra.mxu0 0
        %2591 = vmatpush.bf16.msra.mxu0 %v2582
        %2592 = vmatmul.bf16.gmra.mxu0 %v2576
        %v2593 = vpop.f32.mrf.mxu0
        %v2594 = vadd.f32 0.0, %v2593
        %v2595 = vpop.f32.mrf.mxu0
        %v2596 = vadd.f32 0.0, %v2595
        %2597 = vmatmul.bf16.gmra.mxu0 %v2579
        %v2598 = vpop.f32.mrf.mxu0
        %v2599 = vadd.f32 0.0, %v2598
        %v2600 = vpop.f32.mrf.mxu0
        %v2601 = vadd.f32 0.0, %v2600
        %2602 = vdwg.mxu0
        %v2604 = vsel %vm1240, %v2445, 0
        %v2607 = vsel %vm1240, %v2446, 0
        %v2610 = vsel %vm1328, %v2173, 0
        %2612 = vmatpush.bf16.msra.mxu0 0
        %2613 = vmatpush.bf16.msra.mxu0 0
        %2614 = vmatpush.bf16.msra.mxu0 0
        %2615 = vmatpush.bf16.msra.mxu0 0
        %2616 = vmatpush.bf16.msra.mxu0 0
        %2617 = vmatpush.bf16.msra.mxu0 0
        %2618 = vmatpush.bf16.msra.mxu0 0
        %2619 = vmatpush.bf16.msra.mxu0 %v2610
        %2620 = vmatmul.bf16.gmra.mxu0 %v2604
        %v2621 = vpop.f32.mrf.mxu0
        %v2622 = vadd.f32 %v2594, %v2621
        %v2623 = vpop.f32.mrf.mxu0
        %v2624 = vadd.f32 %v2596, %v2623
        %2625 = vmatmul.bf16.gmra.mxu0 %v2607
        %v2626 = vpop.f32.mrf.mxu0
        %v2627 = vadd.f32 %v2599, %v2626
        %v2628 = vpop.f32.mrf.mxu0
        %v2629 = vadd.f32 %v2601, %v2628
        %2630 = vdwg.mxu0
        %2631 = vrot.lane.b32.xlu0 %v2313, 112
        %v2632 = vpop.permute.xlu0 %2631
        %2633 = vrot.lane.b32.xlu0 %v2314, 112
        %v2634 = vpop.permute.xlu0 %2633
        %2635 = vrot.lane.b32.xlu0 %v2321, 112
        %v2636 = vpop.permute.xlu0 %2635
        %2637 = vrot.lane.b32.xlu0 %v2322, 112
        %v2638 = vpop.permute.xlu0 %2637
        %v2640 = vsel %vm1240, %v2632, 0
        %v2643 = vsel %vm1240, %v2634, 0
        %v2646 = vsel %vm1240, %v2636, 0
        %v2649 = vsel %vm1240, %v2638, 0
        %2651 = vmatpush.bf16.xpose.msra.mxu0 0
        %2652 = vmatpush.bf16.xpose.msra.mxu0 0
        %2653 = vmatpush.bf16.xpose.msra.mxu0 0
        %2654 = vmatpush.bf16.xpose.msra.mxu0 0
        %2655 = vmatpush.bf16.xpose.msra.mxu0 0
        %2656 = vmatpush.bf16.xpose.msra.mxu0 0
        %2657 = vmatpush.bf16.xpose.msra.mxu0 %v2649
        %2658 = vmatpush.bf16.xpose.msra.mxu0 %v2646
        %2659 = vmatmul.bf16.gmra.mxu0 %v2640
        %v2660 = vpop.f32.mrf.mxu0
        %v2661 = vadd.f32 0.0, %v2660
        %v2662 = vpop.f32.mrf.mxu0
        %v2663 = vadd.f32 0.0, %v2662
        %2664 = vmatmul.bf16.gmra.mxu0 %v2643
        %v2665 = vpop.f32.mrf.mxu0
        %v2666 = vadd.f32 0.0, %v2665
        %v2667 = vpop.f32.mrf.mxu0
        %v2668 = vadd.f32 0.0, %v2667
        %2669 = vdwg.mxu0
        %v2670 = vmul.f32 %v2661, 0.35355338
        %v2671 = vmul.f32 %v2663, 0.35355338
        %v2672 = vmul.f32 %v2666, 0.35355338
        %v2673 = vmul.f32 %v2668, 0.35355338
        %v2674 = vadd.f32 %v2670, %v2147
        %v2675 = vadd.f32 %v2671, %v2148
        %v2676 = vadd.f32 %v2672, %v2149
        %v2677 = vadd.f32 %v2673, %v2150
        %v2678 = vsel %vm1277, %v2674, -inf
        %2679 = vmax.xlane.f32.xlu0 %v2678
        %v2680 = vpop.xlane.xlu0 %2679
        %v2681 = vsel %vm1277, %v2675, -inf
        %2682 = vmax.xlane.f32.xlu0 %v2681
        %v2683 = vpop.xlane.xlu0 %2682
        %v2684 = vsel %vm1277, %v2676, -inf
        %2685 = vmax.xlane.f32.xlu0 %v2684
        %v2686 = vpop.xlane.xlu0 %2685
        %v2687 = vsel %vm1277, %v2677, -inf
        %2688 = vmax.xlane.f32.xlu0 %v2687
        %v2689 = vpop.xlane.xlu0 %2688
        %v2690 = vsub.f32 %v2674, %v2680
        %v2691 = vsub.f32 %v2675, %v2683
        %v2692 = vsub.f32 %v2676, %v2686
        %v2693 = vsub.f32 %v2677, %v2689
        %v2694 = vmul.f32 %v2690, 1.442695
        %v2695 = vpow.pop %v2694
        %v2696 = vmul.f32 %v2691, 1.442695
        %v2697 = vpow.pop %v2696
        %v2698 = vmul.f32 %v2692, 1.442695
        %v2699 = vpow.pop %v2698
        %v2700 = vmul.f32 %v2693, 1.442695
        %v2701 = vpow.pop %v2700
        %v2702 = vsel %vm1277, %v2695, 0.0
        %2703 = vadd.xlane.f32.xlu0 %v2702
        %v2704 = vpop.xlane.xlu0 %2703
        %v2705 = vsel %vm1277, %v2697, 0.0
        %2706 = vadd.xlane.f32.xlu0 %v2705
        %v2707 = vpop.xlane.xlu0 %2706
        %v2708 = vsel %vm1277, %v2699, 0.0
        %2709 = vadd.xlane.f32.xlu0 %v2708
        %v2710 = vpop.xlane.xlu0 %2709
        %v2711 = vsel %vm1277, %v2701, 0.0
        %2712 = vadd.xlane.f32.xlu0 %v2711
        %v2713 = vpop.xlane.xlu0 %2712
        %v2714 = vrcp.pop %v2704
        %v2715 = vrcp.pop %v2707
        %v2716 = vrcp.pop %v2710
        %v2717 = vrcp.pop %v2713
        %v2718 = vmul.f32 %v2695, %v2714
        %v2719 = vmul.f32 %v2697, %v2715
        %v2720 = vmul.f32 %v2699, %v2716
        %v2721 = vmul.f32 %v2701, %v2717
        %v2722 = vpack.c.bf16 %v2719, %v2718
        %v2723 = vpack.c.bf16 %v2721, %v2720
        %2724 = vrot.lane.b32.xlu0 %v2414, 112
        %v2725 = vpop.permute.xlu0 %2724
        %2726 = vrot.lane.b32.xlu0 %v2415, 112
        %v2727 = vpop.permute.xlu0 %2726
        %v2730 = vsel %vm1277, %v2722, 0
        %v2733 = vsel %vm1277, %v2723, 0
        %v2736 = vsel %vm1328, %v2727, 0
        %2738 = vmatpush.bf16.msra.mxu0 0
        %2739 = vmatpush.bf16.msra.mxu0 0
        %2740 = vmatpush.bf16.msra.mxu0 0
        %2741 = vmatpush.bf16.msra.mxu0 0
        %2742 = vmatpush.bf16.msra.mxu0 0
        %2743 = vmatpush.bf16.msra.mxu0 0
        %2744 = vmatpush.bf16.msra.mxu0 %v2736
        %2745 = vmatpush.bf16.msra.mxu0 %v2725
        %2746 = vmatmul.bf16.gmra.mxu0 %v2730
        %v2747 = vpop.f32.mrf.mxu0
        %v2748 = vadd.f32 0.0, %v2747
        %v2749 = vpop.f32.mrf.mxu0
        %v2750 = vadd.f32 0.0, %v2749
        %2751 = vmatmul.bf16.gmra.mxu0 %v2733
        %v2752 = vpop.f32.mrf.mxu0
        %v2753 = vadd.f32 0.0, %v2752
        %v2754 = vpop.f32.mrf.mxu0
        %v2755 = vadd.f32 0.0, %v2754
        %2756 = vdwg.mxu0
        %v2757 = vpack.c.bf16 %v2750, %v2748
        %v2758 = vpack.c.bf16 %v2755, %v2753
        %v2760 = vsel %vm1240, %v2757, 0
        %v2763 = vsel %vm1240, %v2758, 0
        %v2766 = vsel %vm1328, %v2175, 0
        %2768 = vmatpush.bf16.msra.mxu0 0
        %2769 = vmatpush.bf16.msra.mxu0 0
        %2770 = vmatpush.bf16.msra.mxu0 0
        %2771 = vmatpush.bf16.msra.mxu0 0
        %2772 = vmatpush.bf16.msra.mxu0 0
        %2773 = vmatpush.bf16.msra.mxu0 0
        %2774 = vmatpush.bf16.msra.mxu0 0
        %2775 = vmatpush.bf16.msra.mxu0 %v2766
        %2776 = vmatmul.bf16.gmra.mxu0 %v2760
        %v2777 = vpop.f32.mrf.mxu0
        %v2778 = vadd.f32 0.0, %v2777
        %v2779 = vpop.f32.mrf.mxu0
        %v2780 = vadd.f32 0.0, %v2779
        %2781 = vmatmul.bf16.gmra.mxu0 %v2763
        %v2782 = vpop.f32.mrf.mxu0
        %v2783 = vadd.f32 0.0, %v2782
        %v2784 = vpop.f32.mrf.mxu0
        %v2785 = vadd.f32 0.0, %v2784
        %2786 = vdwg.mxu0
        %v2787 = vadd.f32 %v2622, %v2778
        %v2788 = vadd.f32 %v2624, %v2780
        %v2789 = vadd.f32 %v2627, %v2783
        %v2790 = vadd.f32 %v2629, %v2785
        %2791 = vrot.lane.b32.xlu0 %v2313, 104
        %v2792 = vpop.permute.xlu0 %2791
        %2793 = vrot.lane.b32.xlu0 %v2314, 104
        %v2794 = vpop.permute.xlu0 %2793
        %2795 = vrot.lane.b32.xlu0 %v2321, 104
        %v2796 = vpop.permute.xlu0 %2795
        %2797 = vrot.lane.b32.xlu0 %v2322, 104
        %v2798 = vpop.permute.xlu0 %2797
        %v2800 = vsel %vm1240, %v2792, 0
        %v2803 = vsel %vm1240, %v2794, 0
        %v2806 = vsel %vm1240, %v2796, 0
        %v2809 = vsel %vm1240, %v2798, 0
        %2811 = vmatpush.bf16.xpose.msra.mxu0 0
        %2812 = vmatpush.bf16.xpose.msra.mxu0 0
        %2813 = vmatpush.bf16.xpose.msra.mxu0 0
        %2814 = vmatpush.bf16.xpose.msra.mxu0 0
        %2815 = vmatpush.bf16.xpose.msra.mxu0 0
        %2816 = vmatpush.bf16.xpose.msra.mxu0 0
        %2817 = vmatpush.bf16.xpose.msra.mxu0 %v2809
        %2818 = vmatpush.bf16.xpose.msra.mxu0 %v2806
        %2819 = vmatmul.bf16.gmra.mxu0 %v2800
        %v2820 = vpop.f32.mrf.mxu0
        %v2821 = vadd.f32 0.0, %v2820
        %v2822 = vpop.f32.mrf.mxu0
        %v2823 = vadd.f32 0.0, %v2822
        %2824 = vmatmul.bf16.gmra.mxu0 %v2803
        %v2825 = vpop.f32.mrf.mxu0
        %v2826 = vadd.f32 0.0, %v2825
        %v2827 = vpop.f32.mrf.mxu0
        %v2828 = vadd.f32 0.0, %v2827
        %2829 = vdwg.mxu0
        %v2830 = vmul.f32 %v2821, 0.35355338
        %v2831 = vmul.f32 %v2823, 0.35355338
        %v2832 = vmul.f32 %v2826, 0.35355338
        %v2833 = vmul.f32 %v2828, 0.35355338
        %v2834 = vadd.f32 %v2830, %v2147
        %v2835 = vadd.f32 %v2831, %v2148
        %v2836 = vadd.f32 %v2832, %v2149
        %v2837 = vadd.f32 %v2833, %v2150
        %v2838 = vsel %vm1277, %v2834, -inf
        %2839 = vmax.xlane.f32.xlu0 %v2838
        %v2840 = vpop.xlane.xlu0 %2839
        %v2841 = vsel %vm1277, %v2835, -inf
        %2842 = vmax.xlane.f32.xlu0 %v2841
        %v2843 = vpop.xlane.xlu0 %2842
        %v2844 = vsel %vm1277, %v2836, -inf
        %2845 = vmax.xlane.f32.xlu0 %v2844
        %v2846 = vpop.xlane.xlu0 %2845
        %v2847 = vsel %vm1277, %v2837, -inf
        %2848 = vmax.xlane.f32.xlu0 %v2847
        %v2849 = vpop.xlane.xlu0 %2848
        %v2850 = vsub.f32 %v2834, %v2840
        %v2851 = vsub.f32 %v2835, %v2843
        %v2852 = vsub.f32 %v2836, %v2846
        %v2853 = vsub.f32 %v2837, %v2849
        %v2854 = vmul.f32 %v2850, 1.442695
        %v2855 = vpow.pop %v2854
        %v2856 = vmul.f32 %v2851, 1.442695
        %v2857 = vpow.pop %v2856
        %v2858 = vmul.f32 %v2852, 1.442695
        %v2859 = vpow.pop %v2858
        %v2860 = vmul.f32 %v2853, 1.442695
        %v2861 = vpow.pop %v2860
        %v2862 = vsel %vm1277, %v2855, 0.0
        %2863 = vadd.xlane.f32.xlu0 %v2862
        %v2864 = vpop.xlane.xlu0 %2863
        %v2865 = vsel %vm1277, %v2857, 0.0
        %2866 = vadd.xlane.f32.xlu0 %v2865
        %v2867 = vpop.xlane.xlu0 %2866
        %v2868 = vsel %vm1277, %v2859, 0.0
        %2869 = vadd.xlane.f32.xlu0 %v2868
        %v2870 = vpop.xlane.xlu0 %2869
        %v2871 = vsel %vm1277, %v2861, 0.0
        %2872 = vadd.xlane.f32.xlu0 %v2871
        %v2873 = vpop.xlane.xlu0 %2872
        %v2874 = vrcp.pop %v2864
        %v2875 = vrcp.pop %v2867
        %v2876 = vrcp.pop %v2870
        %v2877 = vrcp.pop %v2873
        %v2878 = vmul.f32 %v2855, %v2874
        %v2879 = vmul.f32 %v2857, %v2875
        %v2880 = vmul.f32 %v2859, %v2876
        %v2881 = vmul.f32 %v2861, %v2877
        %v2882 = vpack.c.bf16 %v2879, %v2878
        %v2883 = vpack.c.bf16 %v2881, %v2880
        %2884 = vrot.lane.b32.xlu0 %v2414, 104
        %v2885 = vpop.permute.xlu0 %2884
        %2886 = vrot.lane.b32.xlu0 %v2415, 104
        %v2887 = vpop.permute.xlu0 %2886
        %v2890 = vsel %vm1277, %v2882, 0
        %v2893 = vsel %vm1277, %v2883, 0
        %v2896 = vsel %vm1328, %v2887, 0
        %2898 = vmatpush.bf16.msra.mxu0 0
        %2899 = vmatpush.bf16.msra.mxu0 0
        %2900 = vmatpush.bf16.msra.mxu0 0
        %2901 = vmatpush.bf16.msra.mxu0 0
        %2902 = vmatpush.bf16.msra.mxu0 0
        %2903 = vmatpush.bf16.msra.mxu0 0
        %2904 = vmatpush.bf16.msra.mxu0 %v2896
        %2905 = vmatpush.bf16.msra.mxu0 %v2885
        %2906 = vmatmul.bf16.gmra.mxu0 %v2890
        %v2907 = vpop.f32.mrf.mxu0
        %v2908 = vadd.f32 0.0, %v2907
        %v2909 = vpop.f32.mrf.mxu0
        %v2910 = vadd.f32 0.0, %v2909
        %2911 = vmatmul.bf16.gmra.mxu0 %v2893
        %v2912 = vpop.f32.mrf.mxu0
        %v2913 = vadd.f32 0.0, %v2912
        %v2914 = vpop.f32.mrf.mxu0
        %v2915 = vadd.f32 0.0, %v2914
        %2916 = vdwg.mxu0
        %v2917 = vpack.c.bf16 %v2910, %v2908
        %v2918 = vpack.c.bf16 %v2915, %v2913
        %v2920 = vsel %vm1240, %v2917, 0
        %v2923 = vsel %vm1240, %v2918, 0
        %v2926 = vsel %vm1328, %v2176, 0
        %2928 = vmatpush.bf16.msra.mxu0 0
        %2929 = vmatpush.bf16.msra.mxu0 0
        %2930 = vmatpush.bf16.msra.mxu0 0
        %2931 = vmatpush.bf16.msra.mxu0 0
        %2932 = vmatpush.bf16.msra.mxu0 0
        %2933 = vmatpush.bf16.msra.mxu0 0
        %2934 = vmatpush.bf16.msra.mxu0 0
        %2935 = vmatpush.bf16.msra.mxu0 %v2926
        %2936 = vmatmul.bf16.gmra.mxu0 %v2920
        %v2937 = vpop.f32.mrf.mxu0
        %v2938 = vadd.f32 0.0, %v2937
        %v2939 = vpop.f32.mrf.mxu0
        %v2940 = vadd.f32 0.0, %v2939
        %2941 = vmatmul.bf16.gmra.mxu0 %v2923
        %v2942 = vpop.f32.mrf.mxu0
        %v2943 = vadd.f32 0.0, %v2942
        %v2944 = vpop.f32.mrf.mxu0
        %v2945 = vadd.f32 0.0, %v2944
        %2946 = vdwg.mxu0
        %v2947 = vadd.f32 %v2787, %v2938
        %v2948 = vadd.f32 %v2788, %v2940
        %v2949 = vadd.f32 %v2789, %v2943
        %v2950 = vadd.f32 %v2790, %v2945
        %v2952 = vperm.slane %v2178, 0
        %v2954 = vadd.f32 %v2947, %v2952
        %v2955 = vadd.f32 %v2948, %v2952
        %v2956 = vadd.f32 %v2949, %v2952
        %v2957 = vadd.f32 %v2950, %v2952
        %v2958 = vld [vmem:[#allocation10] sm:$0xff]
        %v2959 = vld [vmem:[#allocation10 + $0x8] sm:$0xff]
        %v2960 = vld [vmem:[#allocation10 + $0x10] sm:$0xff]
        %s2961 = scalar_lea.vmem %s7, 32
        %v2962 = vld [vmem:[%s2961] sm:$0xf]
        %v2963 = vld [vmem:[%s2961 + $0x4] sm:$0xf]
        %v2964 = vld [vmem:[%s2961 + $0x8] sm:$0xf]
        %v2965 = vld [vmem:[%s2961 + $0xc] sm:$0xf]
        %s2966 = scalar_lea.vmem [#allocation13], 2
        %v2967 = vld [vmem:[%s2966] sm:$0x1]
        %s2968 = scalar_lea.vmem [#allocation14], 32
        %v2969 = vld [vmem:[%s2968] sm:$0xf]
        %v2970 = vld [vmem:[%s2968 + $0x4] sm:$0xf]
        %v2971 = vld [vmem:[%s2968 + $0x8] sm:$0xf]
        %v2972 = vld [vmem:[%s2968 + $0xc] sm:$0xf]
        %s2973 = scalar_lea.vmem [#allocation16], 2
        %v2974 = vld [vmem:[%s2973] sm:$0x1]
        %s2975 = scalar_lea.vmem [#allocation17], 32
        %v2976 = vld [vmem:[%s2975] sm:$0xf]
        %v2977 = vld [vmem:[%s2975 + $0x4] sm:$0xf]
        %v2978 = vld [vmem:[%s2975 + $0x8] sm:$0xf]
        %v2979 = vld [vmem:[%s2975 + $0xc] sm:$0xf]
        %s2980 = scalar_lea.vmem [#allocation19], 2
        %v2981 = vld [vmem:[%s2980] sm:$0x1]
        %s2982 = scalar_lea.vmem [#allocation20], 32
        %v2983 = vld [vmem:[%s2982] sm:$0xf]
        %v2984 = vld [vmem:[%s2982 + $0x4] sm:$0xf]
        %v2985 = vld [vmem:[%s2982 + $0x8] sm:$0xf]
        %v2986 = vld [vmem:[%s2982 + $0xc] sm:$0xf]
        %s2987 = scalar_lea.vmem [#allocation22], 2
        %v2988 = vld [vmem:[%s2987] sm:$0x1]
        %v2990 = vperm.slane %v2967, 0
        %v2996 = vunpack.c.l.b16 %v2962
        %v2997 = vunpack.c.l.b16 %v2963
        %v2998 = vunpack.c.l.b16 %v2964
        %v2999 = vunpack.c.l.b16 %v2965
        %v3000 = vpack.c.b16 %v2997, %v2996
        %v3001 = vpack.c.b16 %v2999, %v2998
        %3004 = vmatpush.bf16.msra.mxu0 0
        %3005 = vmatpush.bf16.msra.mxu0 0
        %3006 = vmatpush.bf16.msra.mxu0 0
        %3007 = vmatpush.bf16.msra.mxu0 0
        %3008 = vmatpush.bf16.msra.mxu0 0
        %3009 = vmatpush.bf16.msra.mxu0 0
        %3010 = vmatpush.bf16.msra.mxu0 %v3001
        %3011 = vmatpush.bf16.msra.mxu0 %v3000
        %3012 = vmatmul.bf16.gmra.mxu0 %v2239
        %v3013 = vpop.f32.mrf.mxu0
        %v3014 = vadd.f32 %v2990, %v3013
        %v3015 = vpop.f32.mrf.mxu0
        %v3016 = vadd.f32 %v2990, %v3015
        %3017 = vmatmul.bf16.gmra.mxu0 %v2242
        %v3018 = vpop.f32.mrf.mxu0
        %v3019 = vadd.f32 %v2990, %v3018
        %v3020 = vpop.f32.mrf.mxu0
        %3021 = vdwg.mxu0
        %v3022 = vpack.c.bf16 %v2955, %v2954
        %v3023 = vpack.c.bf16 %v2957, %v2956
        %v3025 = vperm.slane %v2974, 0
        %v3031 = vunpack.c.l.b16 %v2969
        %v3032 = vunpack.c.l.b16 %v2970
        %v3033 = vunpack.c.l.b16 %v2971
        %v3034 = vunpack.c.l.b16 %v2972
        %v3035 = vpack.c.b16 %v3032, %v3031
        %v3036 = vpack.c.b16 %v3034, %v3033
        %v3040 = vsel %vm1124, %v3022, 0
        %v3043 = vsel %vm1124, %v3023, 0
        %3045 = vmatpush.bf16.msra.mxu0 0
        %3046 = vmatpush.bf16.msra.mxu0 0
        %3047 = vmatpush.bf16.msra.mxu0 0
        %3048 = vmatpush.bf16.msra.mxu0 0
        %3049 = vmatpush.bf16.msra.mxu0 0
        %3050 = vmatpush.bf16.msra.mxu0 0
        %3051 = vmatpush.bf16.msra.mxu0 %v3036
        %3052 = vmatpush.bf16.msra.mxu0 %v3035
        %3053 = vmatmul.bf16.gmra.mxu0 %v3040
        %v3054 = vpop.f32.mrf.mxu0
        %v3055 = vadd.f32 %v3025, %v3054
        %v3056 = vpop.f32.mrf.mxu0
        %v3057 = vadd.f32 %v3025, %v3056
        %3058 = vmatmul.bf16.gmra.mxu0 %v3043
        %v3059 = vpop.f32.mrf.mxu0
        %v3060 = vadd.f32 %v3025, %v3059
        %v3061 = vpop.f32.mrf.mxu0
        %v3062 = vadd.f32 %v3025, %v3061
        %3063 = vdwg.mxu0
        %v3065 = vperm.slane %v2981, 0
        %v3071 = vunpack.c.l.b16 %v2976
        %v3072 = vunpack.c.l.b16 %v2977
        %v3073 = vunpack.c.l.b16 %v2978
        %v3074 = vunpack.c.l.b16 %v2979
        %v3075 = vpack.c.b16 %v3072, %v3071
        %v3076 = vpack.c.b16 %v3074, %v3073
        %3079 = vmatpush.bf16.msra.mxu0 0
        %3080 = vmatpush.bf16.msra.mxu0 0
        %3081 = vmatpush.bf16.msra.mxu0 0
        %3082 = vmatpush.bf16.msra.mxu0 0
        %3083 = vmatpush.bf16.msra.mxu0 0
        %3084 = vmatpush.bf16.msra.mxu0 0
        %3085 = vmatpush.bf16.msra.mxu0 %v3076
        %3086 = vmatpush.bf16.msra.mxu0 %v3075
        %3087 = vmatmul.bf16.gmra.mxu0 %v3040
        %v3088 = vpop.f32.mrf.mxu0
        %v3089 = vadd.f32 %v3065, %v3088
        %v3090 = vpop.f32.mrf.mxu0
        %v3091 = vadd.f32 %v3065, %v3090
        %3092 = vmatmul.bf16.gmra.mxu0 %v3043
        %v3093 = vpop.f32.mrf.mxu0
        %v3094 = vadd.f32 %v3065, %v3093
        %v3095 = vpop.f32.mrf.mxu0
        %v3096 = vadd.f32 %v3065, %v3095
        %3097 = vdwg.mxu0
        %v3098 = vpack.c.bf16 %v3014, %v3014
        %v3099 = vpack.c.bf16 %v3016, %v3016
        %v3100 = vpack.c.bf16 %v3019, %v3019
        %v3101 = vpack.c.bf16 %v3055, %v3055
        %v3102 = vpack.c.bf16 %v3057, %v3057
        %v3103 = vpack.c.bf16 %v3060, %v3060
        %v3104 = vpack.c.bf16 %v3062, %v3062
        %v3105 = vpack.c.bf16 %v3089, %v3089
        %v3106 = vpack.c.bf16 %v3091, %v3091
        %v3107 = vpack.c.bf16 %v3094, %v3094
        %v3108 = vpack.c.bf16 %v3096, %v3096
        %v3112 = vunpack.c.l.b16 %v3098
        %v3113 = vunpack.c.l.b16 %v3099
        %v3114 = vunpack.c.l.b16 %v3100
        %v3115 = vpack.c.b16 %v3113, %v3112
        %v3116 = vpack.c.b16 %v3114, %v3114
        %v3121 = vunpack.c.l.b16 %v3101
        %v3122 = vunpack.c.l.b16 %v3102
        %v3123 = vunpack.c.l.b16 %v3103
        %v3124 = vunpack.c.l.b16 %v3104
        %v3125 = vpack.c.b16 %v3122, %v3121
        %v3126 = vpack.c.b16 %v3124, %v3123
        %v3128 = vsel %vm1240, %v3115, 0
        %v3131 = vsel %vm1240, %v3116, 0
        %v3134 = vsel %vm1240, %v3125, 0
        %v3137 = vsel %vm1240, %v3126, 0
        %3139 = vmatpush.bf16.xpose.msra.mxu0 0
        %3140 = vmatpush.bf16.xpose.msra.mxu0 0
        %3141 = vmatpush.bf16.xpose.msra.mxu0 0
        %3142 = vmatpush.bf16.xpose.msra.mxu0 0
        %3143 = vmatpush.bf16.xpose.msra.mxu0 0
        %3144 = vmatpush.bf16.xpose.msra.mxu0 0
        %3145 = vmatpush.bf16.xpose.msra.mxu0 %v3137
        %3146 = vmatpush.bf16.xpose.msra.mxu0 %v3134
        %3147 = vmatmul.bf16.gmra.mxu0 %v3128
        %v3148 = vpop.f32.mrf.mxu0
        %v3149 = vadd.f32 0.0, %v3148
        %v3150 = vpop.f32.mrf.mxu0
        %v3151 = vadd.f32 0.0, %v3150
        %3152 = vmatmul.bf16.gmra.mxu0 %v3131
        %v3153 = vpop.f32.mrf.mxu0
        %v3154 = vadd.f32 0.0, %v3153
        %v3155 = vpop.f32.mrf.mxu0
        %3156 = vdwg.mxu0
        %v3157 = vmul.f32 %v3149, 0.35355338
        %v3158 = vmul.f32 %v3151, 0.35355338
        %v3159 = vmul.f32 %v3154, 0.35355338
        %v3160 = vadd.f32 %v3157, %v2958
        %v3161 = vadd.f32 %v3158, %v2959
        %v3162 = vadd.f32 %v3159, %v2960
        %v3163 = vsel %vm1124, %v3160, -inf
        %3164 = vmax.xlane.f32.xlu0 %v3163
        %v3165 = vpop.xlane.xlu0 %3164
        %v3166 = vsel %vm1124, %v3161, -inf
        %3167 = vmax.xlane.f32.xlu0 %v3166
        %v3168 = vpop.xlane.xlu0 %3167
        %v3169 = vsel %vm1124, %v3162, -inf
        %3170 = vmax.xlane.f32.xlu0 %v3169
        %v3171 = vpop.xlane.xlu0 %3170
        %v3172 = vsub.f32 %v3160, %v3165
        %v3173 = vsub.f32 %v3161, %v3168
        %v3174 = vsub.f32 %v3162, %v3171
        %v3175 = vmul.f32 %v3172, 1.442695
        %v3176 = vpow.pop %v3175
        %v3177 = vmul.f32 %v3173, 1.442695
        %v3178 = vpow.pop %v3177
        %v3179 = vmul.f32 %v3174, 1.442695
        %v3180 = vpow.pop %v3179
        %v3181 = vsel %vm1124, %v3176, 0.0
        %3182 = vadd.xlane.f32.xlu0 %v3181
        %v3183 = vpop.xlane.xlu0 %3182
        %v3184 = vsel %vm1124, %v3178, 0.0
        %3185 = vadd.xlane.f32.xlu0 %v3184
        %v3186 = vpop.xlane.xlu0 %3185
        %v3187 = vsel %vm1124, %v3180, 0.0
        %3188 = vadd.xlane.f32.xlu0 %v3187
        %v3189 = vpop.xlane.xlu0 %3188
        %v3190 = vrcp.pop %v3183
        %v3191 = vrcp.pop %v3186
        %v3192 = vrcp.pop %v3189
        %v3193 = vmul.f32 %v3176, %v3190
        %v3194 = vmul.f32 %v3178, %v3191
        %v3195 = vmul.f32 %v3180, %v3192
        %v3196 = vpack.c.bf16 %v3194, %v3193
        %v3197 = vpack.c.bf16 %v3195, %v3195
        %v3202 = vunpack.c.l.b16 %v3105
        %v3203 = vunpack.c.l.b16 %v3106
        %v3204 = vunpack.c.l.b16 %v3107
        %v3205 = vunpack.c.l.b16 %v3108
        %v3206 = vpack.c.b16 %v3203, %v3202
        %v3207 = vpack.c.b16 %v3205, %v3204
        %v3211 = vsel %vm1124, %v3196, 0
        %v3214 = vsel %vm1124, %v3197, 0
        %3216 = vmatpush.bf16.msra.mxu0 0
        %3217 = vmatpush.bf16.msra.mxu0 0
        %3218 = vmatpush.bf16.msra.mxu0 0
        %3219 = vmatpush.bf16.msra.mxu0 0
        %3220 = vmatpush.bf16.msra.mxu0 0
        %3221 = vmatpush.bf16.msra.mxu0 0
        %3222 = vmatpush.bf16.msra.mxu0 %v3207
        %3223 = vmatpush.bf16.msra.mxu0 %v3206
        %3224 = vmatmul.bf16.gmra.mxu0 %v3211
        %v3225 = vpop.f32.mrf.mxu0
        %v3226 = vadd.f32 0.0, %v3225
        %v3227 = vpop.f32.mrf.mxu0
        %v3228 = vadd.f32 0.0, %v3227
        %3229 = vmatmul.bf16.gmra.mxu0 %v3214
        %v3230 = vpop.f32.mrf.mxu0
        %v3231 = vadd.f32 0.0, %v3230
        %v3232 = vpop.f32.mrf.mxu0
        %3233 = vdwg.mxu0
        %v3234 = vpack.c.bf16 %v3228, %v3226
        %v3235 = vpack.c.bf16 %v3231, %v3231
        %3236 = vrot.lane.b32.xlu0 %v3115, 120
        %v3237 = vpop.permute.xlu0 %3236
        %3238 = vrot.lane.b32.xlu0 %v3116, 120
        %v3239 = vpop.permute.xlu0 %3238
        %3240 = vrot.lane.b32.xlu0 %v3125, 120
        %v3241 = vpop.permute.xlu0 %3240
        %3242 = vrot.lane.b32.xlu0 %v3126, 120
        %v3243 = vpop.permute.xlu0 %3242
        %v3245 = vsel %vm1240, %v3237, 0
        %v3248 = vsel %vm1240, %v3239, 0
        %v3251 = vsel %vm1240, %v3241, 0
        %v3254 = vsel %vm1240, %v3243, 0
        %3256 = vmatpush.bf16.xpose.msra.mxu0 0
        %3257 = vmatpush.bf16.xpose.msra.mxu0 0
        %3258 = vmatpush.bf16.xpose.msra.mxu0 0
        %3259 = vmatpush.bf16.xpose.msra.mxu0 0
        %3260 = vmatpush.bf16.xpose.msra.mxu0 0
        %3261 = vmatpush.bf16.xpose.msra.mxu0 0
        %3262 = vmatpush.bf16.xpose.msra.mxu0 %v3254
        %3263 = vmatpush.bf16.xpose.msra.mxu0 %v3251
        %3264 = vmatmul.bf16.gmra.mxu0 %v3245
        %v3265 = vpop.f32.mrf.mxu0
        %v3266 = vadd.f32 0.0, %v3265
        %v3267 = vpop.f32.mrf.mxu0
        %v3268 = vadd.f32 0.0, %v3267
        %3269 = vmatmul.bf16.gmra.mxu0 %v3248
        %v3270 = vpop.f32.mrf.mxu0
        %v3271 = vadd.f32 0.0, %v3270
        %v3272 = vpop.f32.mrf.mxu0
        %3273 = vdwg.mxu0
        %v3274 = vmul.f32 %v3266, 0.35355338
        %v3275 = vmul.f32 %v3268, 0.35355338
        %v3276 = vmul.f32 %v3271, 0.35355338
        %v3277 = vadd.f32 %v3274, %v2958
        %v3278 = vadd.f32 %v3275, %v2959
        %v3279 = vadd.f32 %v3276, %v2960
        %v3280 = vsel %vm1124, %v3277, -inf
        %3281 = vmax.xlane.f32.xlu0 %v3280
        %v3282 = vpop.xlane.xlu0 %3281
        %v3283 = vsel %vm1124, %v3278, -inf
        %3284 = vmax.xlane.f32.xlu0 %v3283
        %v3285 = vpop.xlane.xlu0 %3284
        %v3286 = vsel %vm1124, %v3279, -inf
        %3287 = vmax.xlane.f32.xlu0 %v3286
        %v3288 = vpop.xlane.xlu0 %3287
        %v3289 = vsub.f32 %v3277, %v3282
        %v3290 = vsub.f32 %v3278, %v3285
        %v3291 = vsub.f32 %v3279, %v3288
        %v3292 = vmul.f32 %v3289, 1.442695
        %v3293 = vpow.pop %v3292
        %v3294 = vmul.f32 %v3290, 1.442695
        %v3295 = vpow.pop %v3294
        %v3296 = vmul.f32 %v3291, 1.442695
        %v3297 = vpow.pop %v3296
        %v3298 = vsel %vm1124, %v3293, 0.0
        %3299 = vadd.xlane.f32.xlu0 %v3298
        %v3300 = vpop.xlane.xlu0 %3299
        %v3301 = vsel %vm1124, %v3295, 0.0
        %3302 = vadd.xlane.f32.xlu0 %v3301
        %v3303 = vpop.xlane.xlu0 %3302
        %v3304 = vsel %vm1124, %v3297, 0.0
        %3305 = vadd.xlane.f32.xlu0 %v3304
        %v3306 = vpop.xlane.xlu0 %3305
        %v3307 = vrcp.pop %v3300
        %v3308 = vrcp.pop %v3303
        %v3309 = vrcp.pop %v3306
        %v3310 = vmul.f32 %v3293, %v3307
        %v3311 = vmul.f32 %v3295, %v3308
        %v3312 = vmul.f32 %v3297, %v3309
        %v3313 = vpack.c.bf16 %v3311, %v3310
        %v3314 = vpack.c.bf16 %v3312, %v3312
        %3315 = vrot.lane.b32.xlu0 %v3206, 120
        %v3316 = vpop.permute.xlu0 %3315
        %3317 = vrot.lane.b32.xlu0 %v3207, 120
        %v3318 = vpop.permute.xlu0 %3317
        %v3322 = vsel %vm1124, %v3313, 0
        %v3325 = vsel %vm1124, %v3314, 0
        %3327 = vmatpush.bf16.msra.mxu0 0
        %3328 = vmatpush.bf16.msra.mxu0 0
        %3329 = vmatpush.bf16.msra.mxu0 0
        %3330 = vmatpush.bf16.msra.mxu0 0
        %3331 = vmatpush.bf16.msra.mxu0 0
        %3332 = vmatpush.bf16.msra.mxu0 0
        %3333 = vmatpush.bf16.msra.mxu0 %v3318
        %3334 = vmatpush.bf16.msra.mxu0 %v3316
        %3335 = vmatmul.bf16.gmra.mxu0 %v3322
        %v3336 = vpop.f32.mrf.mxu0
        %v3337 = vadd.f32 0.0, %v3336
        %v3338 = vpop.f32.mrf.mxu0
        %v3339 = vadd.f32 0.0, %v3338
        %3340 = vmatmul.bf16.gmra.mxu0 %v3325
        %v3341 = vpop.f32.mrf.mxu0
        %v3342 = vadd.f32 0.0, %v3341
        %v3343 = vpop.f32.mrf.mxu0
        %3344 = vdwg.mxu0
        %v3345 = vpack.c.bf16 %v3339, %v3337
        %v3346 = vpack.c.bf16 %v3342, %v3342
        %v3348 = vsel %vm1240, %v3345, 0
        %v3351 = vsel %vm1240, %v3346, 0
        %v3354 = vsel %vm1328, %v2984, 0
        %3356 = vmatpush.bf16.msra.mxu0 0
        %3357 = vmatpush.bf16.msra.mxu0 0
        %3358 = vmatpush.bf16.msra.mxu0 0
        %3359 = vmatpush.bf16.msra.mxu0 0
        %3360 = vmatpush.bf16.msra.mxu0 0
        %3361 = vmatpush.bf16.msra.mxu0 0
        %3362 = vmatpush.bf16.msra.mxu0 0
        %3363 = vmatpush.bf16.msra.mxu0 %v3354
        %3364 = vmatmul.bf16.gmra.mxu0 %v3348
        %v3365 = vpop.f32.mrf.mxu0
        %v3366 = vadd.f32 0.0, %v3365
        %v3367 = vpop.f32.mrf.mxu0
        %v3368 = vadd.f32 0.0, %v3367
        %3369 = vmatmul.bf16.gmra.mxu0 %v3351
        %v3370 = vpop.f32.mrf.mxu0
        %v3371 = vadd.f32 0.0, %v3370
        %v3372 = vpop.f32.mrf.mxu0
        %3373 = vdwg.mxu0
        %v3375 = vsel %vm1240, %v3234, 0
        %v3378 = vsel %vm1240, %v3235, 0
        %v3381 = vsel %vm1328, %v2983, 0
        %3383 = vmatpush.bf16.msra.mxu0 0
        %3384 = vmatpush.bf16.msra.mxu0 0
        %3385 = vmatpush.bf16.msra.mxu0 0
        %3386 = vmatpush.bf16.msra.mxu0 0
        %3387 = vmatpush.bf16.msra.mxu0 0
        %3388 = vmatpush.bf16.msra.mxu0 0
        %3389 = vmatpush.bf16.msra.mxu0 0
        %3390 = vmatpush.bf16.msra.mxu0 %v3381
        %3391 = vmatmul.bf16.gmra.mxu0 %v3375
        %v3392 = vpop.f32.mrf.mxu0
        %v3393 = vadd.f32 %v3366, %v3392
        %v3394 = vpop.f32.mrf.mxu0
        %v3395 = vadd.f32 %v3368, %v3394
        %3396 = vmatmul.bf16.gmra.mxu0 %v3378
        %v3397 = vpop.f32.mrf.mxu0
        %v3398 = vadd.f32 %v3371, %v3397
        %v3399 = vpop.f32.mrf.mxu0
        %3400 = vdwg.mxu0
        %3401 = vrot.lane.b32.xlu0 %v3115, 112
        %v3402 = vpop.permute.xlu0 %3401
        %3403 = vrot.lane.b32.xlu0 %v3116, 112
        %v3404 = vpop.permute.xlu0 %3403
        %3405 = vrot.lane.b32.xlu0 %v3125, 112
        %v3406 = vpop.permute.xlu0 %3405
        %3407 = vrot.lane.b32.xlu0 %v3126, 112
        %v3408 = vpop.permute.xlu0 %3407
        %v3410 = vsel %vm1240, %v3402, 0
        %v3413 = vsel %vm1240, %v3404, 0
        %v3416 = vsel %vm1240, %v3406, 0
        %v3419 = vsel %vm1240, %v3408, 0
        %3421 = vmatpush.bf16.xpose.msra.mxu0 0
        %3422 = vmatpush.bf16.xpose.msra.mxu0 0
        %3423 = vmatpush.bf16.xpose.msra.mxu0 0
        %3424 = vmatpush.bf16.xpose.msra.mxu0 0
        %3425 = vmatpush.bf16.xpose.msra.mxu0 0
        %3426 = vmatpush.bf16.xpose.msra.mxu0 0
        %3427 = vmatpush.bf16.xpose.msra.mxu0 %v3419
        %3428 = vmatpush.bf16.xpose.msra.mxu0 %v3416
        %3429 = vmatmul.bf16.gmra.mxu0 %v3410
        %v3430 = vpop.f32.mrf.mxu0
        %v3431 = vadd.f32 0.0, %v3430
        %v3432 = vpop.f32.mrf.mxu0
        %v3433 = vadd.f32 0.0, %v3432
        %3434 = vmatmul.bf16.gmra.mxu0 %v3413
        %v3435 = vpop.f32.mrf.mxu0
        %v3436 = vadd.f32 0.0, %v3435
        %v3437 = vpop.f32.mrf.mxu0
        %3438 = vdwg.mxu0
        %v3439 = vmul.f32 %v3431, 0.35355338
        %v3440 = vmul.f32 %v3433, 0.35355338
        %v3441 = vmul.f32 %v3436, 0.35355338
        %v3442 = vadd.f32 %v3439, %v2958
        %v3443 = vadd.f32 %v3440, %v2959
        %v3444 = vadd.f32 %v3441, %v2960
        %v3445 = vsel %vm1124, %v3442, -inf
        %3446 = vmax.xlane.f32.xlu0 %v3445
        %v3447 = vpop.xlane.xlu0 %3446
        %v3448 = vsel %vm1124, %v3443, -inf
        %3449 = vmax.xlane.f32.xlu0 %v3448
        %v3450 = vpop.xlane.xlu0 %3449
        %v3451 = vsel %vm1124, %v3444, -inf
        %3452 = vmax.xlane.f32.xlu0 %v3451
        %v3453 = vpop.xlane.xlu0 %3452
        %v3454 = vsub.f32 %v3442, %v3447
        %v3455 = vsub.f32 %v3443, %v3450
        %v3456 = vsub.f32 %v3444, %v3453
        %v3457 = vmul.f32 %v3454, 1.442695
        %v3458 = vpow.pop %v3457
        %v3459 = vmul.f32 %v3455, 1.442695
        %v3460 = vpow.pop %v3459
        %v3461 = vmul.f32 %v3456, 1.442695
        %v3462 = vpow.pop %v3461
        %v3463 = vsel %vm1124, %v3458, 0.0
        %3464 = vadd.xlane.f32.xlu0 %v3463
        %v3465 = vpop.xlane.xlu0 %3464
        %v3466 = vsel %vm1124, %v3460, 0.0
        %3467 = vadd.xlane.f32.xlu0 %v3466
        %v3468 = vpop.xlane.xlu0 %3467
        %v3469 = vsel %vm1124, %v3462, 0.0
        %3470 = vadd.xlane.f32.xlu0 %v3469
        %v3471 = vpop.xlane.xlu0 %3470
        %v3472 = vrcp.pop %v3465
        %v3473 = vrcp.pop %v3468
        %v3474 = vrcp.pop %v3471
        %v3475 = vmul.f32 %v3458, %v3472
        %v3476 = vmul.f32 %v3460, %v3473
        %v3477 = vmul.f32 %v3462, %v3474
        %v3478 = vpack.c.bf16 %v3476, %v3475
        %v3479 = vpack.c.bf16 %v3477, %v3477
        %3480 = vrot.lane.b32.xlu0 %v3206, 112
        %v3481 = vpop.permute.xlu0 %3480
        %3482 = vrot.lane.b32.xlu0 %v3207, 112
        %v3483 = vpop.permute.xlu0 %3482
        %v3487 = vsel %vm1124, %v3478, 0
        %v3490 = vsel %vm1124, %v3479, 0
        %3492 = vmatpush.bf16.msra.mxu0 0
        %3493 = vmatpush.bf16.msra.mxu0 0
        %3494 = vmatpush.bf16.msra.mxu0 0
        %3495 = vmatpush.bf16.msra.mxu0 0
        %3496 = vmatpush.bf16.msra.mxu0 0
        %3497 = vmatpush.bf16.msra.mxu0 0
        %3498 = vmatpush.bf16.msra.mxu0 %v3483
        %3499 = vmatpush.bf16.msra.mxu0 %v3481
        %3500 = vmatmul.bf16.gmra.mxu0 %v3487
        %v3501 = vpop.f32.mrf.mxu0
        %v3502 = vadd.f32 0.0, %v3501
        %v3503 = vpop.f32.mrf.mxu0
        %v3504 = vadd.f32 0.0, %v3503
        %3505 = vmatmul.bf16.gmra.mxu0 %v3490
        %v3506 = vpop.f32.mrf.mxu0
        %v3507 = vadd.f32 0.0, %v3506
        %v3508 = vpop.f32.mrf.mxu0
        %3509 = vdwg.mxu0
        %v3510 = vpack.c.bf16 %v3504, %v3502
        %v3511 = vpack.c.bf16 %v3507, %v3507
        %v3513 = vsel %vm1240, %v3510, 0
        %v3516 = vsel %vm1240, %v3511, 0
        %v3519 = vsel %vm1328, %v2985, 0
        %3521 = vmatpush.bf16.msra.mxu0 0
        %3522 = vmatpush.bf16.msra.mxu0 0
        %3523 = vmatpush.bf16.msra.mxu0 0
        %3524 = vmatpush.bf16.msra.mxu0 0
        %3525 = vmatpush.bf16.msra.mxu0 0
        %3526 = vmatpush.bf16.msra.mxu0 0
        %3527 = vmatpush.bf16.msra.mxu0 0
        %3528 = vmatpush.bf16.msra.mxu0 %v3519
        %3529 = vmatmul.bf16.gmra.mxu0 %v3513
        %v3530 = vpop.f32.mrf.mxu0
        %v3531 = vadd.f32 0.0, %v3530
        %v3532 = vpop.f32.mrf.mxu0
        %v3533 = vadd.f32 0.0, %v3532
        %3534 = vmatmul.bf16.gmra.mxu0 %v3516
        %v3535 = vpop.f32.mrf.mxu0
        %v3536 = vadd.f32 0.0, %v3535
        %v3537 = vpop.f32.mrf.mxu0
        %3538 = vdwg.mxu0
        %v3539 = vadd.f32 %v3393, %v3531
        %v3540 = vadd.f32 %v3395, %v3533
        %v3541 = vadd.f32 %v3398, %v3536
        %3542 = vrot.lane.b32.xlu0 %v3115, 104
        %v3543 = vpop.permute.xlu0 %3542
        %3544 = vrot.lane.b32.xlu0 %v3116, 104
        %v3545 = vpop.permute.xlu0 %3544
        %3546 = vrot.lane.b32.xlu0 %v3125, 104
        %v3547 = vpop.permute.xlu0 %3546
        %3548 = vrot.lane.b32.xlu0 %v3126, 104
        %v3549 = vpop.permute.xlu0 %3548
        %v3551 = vsel %vm1240, %v3543, 0
        %v3554 = vsel %vm1240, %v3545, 0
        %v3557 = vsel %vm1240, %v3547, 0
        %v3560 = vsel %vm1240, %v3549, 0
        %3562 = vmatpush.bf16.xpose.msra.mxu0 0
        %3563 = vmatpush.bf16.xpose.msra.mxu0 0
        %3564 = vmatpush.bf16.xpose.msra.mxu0 0
        %3565 = vmatpush.bf16.xpose.msra.mxu0 0
        %3566 = vmatpush.bf16.xpose.msra.mxu0 0
        %3567 = vmatpush.bf16.xpose.msra.mxu0 0
        %3568 = vmatpush.bf16.xpose.msra.mxu0 %v3560
        %3569 = vmatpush.bf16.xpose.msra.mxu0 %v3557
        %3570 = vmatmul.bf16.gmra.mxu0 %v3551
        %v3571 = vpop.f32.mrf.mxu0
        %v3572 = vadd.f32 0.0, %v3571
        %v3573 = vpop.f32.mrf.mxu0
        %v3574 = vadd.f32 0.0, %v3573
        %3575 = vmatmul.bf16.gmra.mxu0 %v3554
        %v3576 = vpop.f32.mrf.mxu0
        %v3577 = vadd.f32 0.0, %v3576
        %v3578 = vpop.f32.mrf.mxu0
        %3579 = vdwg.mxu0
        %v3580 = vmul.f32 %v3572, 0.35355338
        %v3581 = vmul.f32 %v3574, 0.35355338
        %v3582 = vmul.f32 %v3577, 0.35355338
        %v3583 = vadd.f32 %v3580, %v2958
        %v3584 = vadd.f32 %v3581, %v2959
        %v3585 = vadd.f32 %v3582, %v2960
        %v3586 = vsel %vm1124, %v3583, -inf
        %3587 = vmax.xlane.f32.xlu0 %v3586
        %v3588 = vpop.xlane.xlu0 %3587
        %v3589 = vsel %vm1124, %v3584, -inf
        %3590 = vmax.xlane.f32.xlu0 %v3589
        %v3591 = vpop.xlane.xlu0 %3590
        %v3592 = vsel %vm1124, %v3585, -inf
        %3593 = vmax.xlane.f32.xlu0 %v3592
        %v3594 = vpop.xlane.xlu0 %3593
        %v3595 = vsub.f32 %v3583, %v3588
        %v3596 = vsub.f32 %v3584, %v3591
        %v3597 = vsub.f32 %v3585, %v3594
        %v3598 = vmul.f32 %v3595, 1.442695
        %v3599 = vpow.pop %v3598
        %v3600 = vmul.f32 %v3596, 1.442695
        %v3601 = vpow.pop %v3600
        %v3602 = vmul.f32 %v3597, 1.442695
        %v3603 = vpow.pop %v3602
        %v3604 = vsel %vm1124, %v3599, 0.0
        %3605 = vadd.xlane.f32.xlu0 %v3604
        %v3606 = vpop.xlane.xlu0 %3605
        %v3607 = vsel %vm1124, %v3601, 0.0
        %3608 = vadd.xlane.f32.xlu0 %v3607
        %v3609 = vpop.xlane.xlu0 %3608
        %v3610 = vsel %vm1124, %v3603, 0.0
        %3611 = vadd.xlane.f32.xlu0 %v3610
        %v3612 = vpop.xlane.xlu0 %3611
        %v3613 = vrcp.pop %v3606
        %v3614 = vrcp.pop %v3609
        %v3615 = vrcp.pop %v3612
        %v3616 = vmul.f32 %v3599, %v3613
        %v3617 = vmul.f32 %v3601, %v3614
        %v3618 = vmul.f32 %v3603, %v3615
        %v3619 = vpack.c.bf16 %v3617, %v3616
        %v3620 = vpack.c.bf16 %v3618, %v3618
        %3621 = vrot.lane.b32.xlu0 %v3206, 104
        %v3622 = vpop.permute.xlu0 %3621
        %3623 = vrot.lane.b32.xlu0 %v3207, 104
        %v3624 = vpop.permute.xlu0 %3623
        %v3628 = vsel %vm1124, %v3619, 0
        %v3631 = vsel %vm1124, %v3620, 0
        %3633 = vmatpush.bf16.msra.mxu0 0
        %3634 = vmatpush.bf16.msra.mxu0 0
        %3635 = vmatpush.bf16.msra.mxu0 0
        %3636 = vmatpush.bf16.msra.mxu0 0
        %3637 = vmatpush.bf16.msra.mxu0 0
        %3638 = vmatpush.bf16.msra.mxu0 0
        %3639 = vmatpush.bf16.msra.mxu0 %v3624
        %3640 = vmatpush.bf16.msra.mxu0 %v3622
        %3641 = vmatmul.bf16.gmra.mxu0 %v3628
        %v3642 = vpop.f32.mrf.mxu0
        %v3643 = vadd.f32 0.0, %v3642
        %v3644 = vpop.f32.mrf.mxu0
        %v3645 = vadd.f32 0.0, %v3644
        %3646 = vmatmul.bf16.gmra.mxu0 %v3631
        %v3647 = vpop.f32.mrf.mxu0
        %v3648 = vadd.f32 0.0, %v3647
        %v3649 = vpop.f32.mrf.mxu0
        %3650 = vdwg.mxu0
        %v3651 = vpack.c.bf16 %v3645, %v3643
        %v3652 = vpack.c.bf16 %v3648, %v3648
        %v3654 = vsel %vm1240, %v3651, 0
        %v3657 = vsel %vm1240, %v3652, 0
        %v3660 = vsel %vm1328, %v2986, 0
        %3662 = vmatpush.bf16.msra.mxu0 0
        %3663 = vmatpush.bf16.msra.mxu0 0
        %3664 = vmatpush.bf16.msra.mxu0 0
        %3665 = vmatpush.bf16.msra.mxu0 0
        %3666 = vmatpush.bf16.msra.mxu0 0
        %3667 = vmatpush.bf16.msra.mxu0 0
        %3668 = vmatpush.bf16.msra.mxu0 0
        %3669 = vmatpush.bf16.msra.mxu0 %v3660
        %3670 = vmatmul.bf16.gmra.mxu0 %v3654
        %v3671 = vpop.f32.mrf.mxu0
        %v3672 = vadd.f32 0.0, %v3671
        %v3673 = vpop.f32.mrf.mxu0
        %v3674 = vadd.f32 0.0, %v3673
        %3675 = vmatmul.bf16.gmra.mxu0 %v3657
        %v3676 = vpop.f32.mrf.mxu0
        %v3677 = vadd.f32 0.0, %v3676
        %v3678 = vpop.f32.mrf.mxu0
        %3679 = vdwg.mxu0
        %v3680 = vadd.f32 %v3539, %v3672
        %v3681 = vadd.f32 %v3540, %v3674
        %v3682 = vadd.f32 %v3541, %v3677
        %v3684 = vperm.slane %v2988, 0
        %v3686 = vadd.f32 %v3680, %v3684
        %v3687 = vadd.f32 %v3681, %v3684
        %v3688 = vadd.f32 %v3682, %v3684
        %v3689 = vadd.f32 %v2144, %v3686
        %v3690 = vadd.f32 %v2145, %v3687
        %v3691 = vadd.f32 %v2146, %v3688
        %s3692 = scalar_lea.vmem [#allocation26], 2
        %v3693 = vld [vmem:[%s3692] sm:$0x1]
        %s3694 = scalar_lea.vmem [#allocation28], 2
        %v3695 = vld [vmem:[%s3694] sm:$0x1]
        %v3696 = vsel %vm1124, %v3689, 0.0
        %3697 = vadd.xlane.f32.xlu0 %v3696
        %v3698 = vpop.xlane.xlu0 %3697
        %v3699 = vsel %vm1124, %v3690, 0.0
        %3700 = vadd.xlane.f32.xlu0 %v3699
        %v3701 = vpop.xlane.xlu0 %3700
        %v3702 = vsel %vm1124, %v3691, 0.0
        %3703 = vadd.xlane.f32.xlu0 %v3702
        %v3704 = vpop.xlane.xlu0 %3703
        %v3705 = vmul.f32 %v3698, %v1831
        %v3706 = vmul.f32 %v3701, %v1831
        %v3707 = vmul.f32 %v3704, %v1831
        %v3708 = vsub.f32 %v3689, %v3705
        %v3709 = vsub.f32 %v3690, %v3706
        %v3710 = vsub.f32 %v3691, %v3707
        %v3711 = vmul.f32 %v3708, %v3708
        %v3712 = vmul.f32 %v3709, %v3709
        %v3713 = vmul.f32 %v3710, %v3710
        %v3714 = vsel %vm1124, %v3711, 0.0
        %3715 = vadd.xlane.f32.xlu0 %v3714
        %v3716 = vpop.xlane.xlu0 %3715
        %v3717 = vsel %vm1124, %v3712, 0.0
        %3718 = vadd.xlane.f32.xlu0 %v3717
        %v3719 = vpop.xlane.xlu0 %3718
        %v3720 = vsel %vm1124, %v3713, 0.0
        %3721 = vadd.xlane.f32.xlu0 %v3720
        %v3722 = vpop.xlane.xlu0 %3721
        %v3723 = vmul.f32 %v3716, %v1831
        %v3724 = vmul.f32 %v3719, %v1831
        %v3725 = vmul.f32 %v3722, %v1831
        %v3726 = vadd.f32 %v3723, 1e-05
        %v3727 = vadd.f32 %v3724, 1e-05
        %v3728 = vadd.f32 %v3725, 1e-05
        %v3729 = vrsqrt.pop %v3726
        %v3730 = vmul.f32 %v3729, %v3726
        %v3731 = vmul.f32 %v3730, %v3729
        %v3732 = vmul.f32 0.5, %v3731
        %v3733 = vsub.f32 1.5, %v3732
        %v3734 = vmul.f32 %v3729, %v3733
        %vm3735 = vweird.f32 %v3726
        %vm3736 = vweird.f32 %v3729
        %vm3737 = vmor %vm3735, %vm3736
        %v3738 = vsel %vm3737, %v3729, %v3734
        %v3739 = vrsqrt.pop %v3727
        %v3740 = vmul.f32 %v3739, %v3727
        %v3741 = vmul.f32 %v3740, %v3739
        %v3742 = vmul.f32 0.5, %v3741
        %v3743 = vsub.f32 1.5, %v3742
        %v3744 = vmul.f32 %v3739, %v3743
        %vm3745 = vweird.f32 %v3727
        %vm3746 = vweird.f32 %v3739
        %vm3747 = vmor %vm3745, %vm3746
        %v3748 = vsel %vm3747, %v3739, %v3744
        %v3749 = vrsqrt.pop %v3728
        %v3750 = vmul.f32 %v3749, %v3728
        %v3751 = vmul.f32 %v3750, %v3749
        %v3752 = vmul.f32 0.5, %v3751
        %v3753 = vsub.f32 1.5, %v3752
        %v3754 = vmul.f32 %v3749, %v3753
        %vm3755 = vweird.f32 %v3728
        %vm3756 = vweird.f32 %v3749
        %vm3757 = vmor %vm3755, %vm3756
        %v3758 = vsel %vm3757, %v3749, %v3754
        %v3759 = vmul.f32 %v3708, %v3738
        %v3760 = vmul.f32 %v3709, %v3748
        %v3761 = vmul.f32 %v3710, %v3758
        %v3763 = vperm.slane %v3693, 0
        %v3765 = vmul.f32 %v3759, %v3763
        %v3766 = vmul.f32 %v3760, %v3763
        %v3767 = vmul.f32 %v3761, %v3763
        %v3769 = vperm.slane %v3695, 0
        %v3771 = vadd.f32 %v3765, %v3769
        %v3772 = vadd.f32 %v3766, %v3769
        %v3773 = vadd.f32 %v3767, %v3769
        %s3774 = scalar_lea.vmem [#allocation23], 16
        %v3775 = vld [vmem:[%s3774] sm:$0xf]
        %v3776 = vld [vmem:[%s3774 + $0x4] sm:$0xf]
        %v3777 = vld [vmem:[%s3774 + $0x8] sm:$0xf]
        %v3778 = vld [vmem:[%s3774 + $0xc] sm:$0xf]
        %s3779 = scalar_lea.vmem %s16, 1
        %v3780 = vld [vmem:[%s3779] sm:$0x1]
        %s3781 = scalar_lea.vmem %s17, 64
        %v3782 = vld [vmem:[%s3781] sm:$0xf]
        %v3783 = vld [vmem:[%s3781 + $0x4] sm:$0xf]
        %v3784 = vld [vmem:[%s3781 + $0x8] sm:$0xf]
        %v3785 = vld [vmem:[%s3781 + $0xc] sm:$0xf]
        %v3786 = vld [vmem:[%s3781 + $0x10] sm:$0xf]
        %v3787 = vld [vmem:[%s3781 + $0x14] sm:$0xf]
        %v3788 = vld [vmem:[%s3781 + $0x18] sm:$0xf]
        %v3789 = vld [vmem:[%s3781 + $0x1c] sm:$0xf]
        %v3790 = vld [vmem:[%s3781 + $0x20] sm:$0xf]
        %v3791 = vld [vmem:[%s3781 + $0x24] sm:$0xf]
        %v3792 = vld [vmem:[%s3781 + $0x28] sm:$0xf]
        %v3793 = vld [vmem:[%s3781 + $0x2c] sm:$0xf]
        %v3794 = vld [vmem:[%s3781 + $0x30] sm:$0xf]
        %v3795 = vld [vmem:[%s3781 + $0x34] sm:$0xf]
        %v3796 = vld [vmem:[%s3781 + $0x38] sm:$0xf]
        %v3797 = vld [vmem:[%s3781 + $0x3c] sm:$0xf]
        %s3798 = scalar_lea.vmem [#allocation25], 1
        %v3799 = vld [vmem:[%s3798] sm:$0x1]
        %v3800 = vpack.c.bf16 %v3772, %v3771
        %v3801 = vpack.c.bf16 %v3773, %v3773
        %v3803 = vperm.slane %v3780, 0
        %v3809 = vunpack.c.l.b16 %v3775
        %v3810 = vunpack.c.l.b16 %v3776
        %v3811 = vunpack.c.l.b16 %v3777
        %v3812 = vunpack.c.l.b16 %v3778
        %v3813 = vpack.c.b16 %v3810, %v3809
        %v3814 = vpack.c.b16 %v3812, %v3811
        %v3818 = vsel %vm1124, %v3800, 0
        %v3821 = vsel %vm1124, %v3801, 0
        %3823 = vmatpush.bf16.msra.mxu0 0
        %3824 = vmatpush.bf16.msra.mxu0 0
        %3825 = vmatpush.bf16.msra.mxu0 0
        %3826 = vmatpush.bf16.msra.mxu0 0
        %3827 = vmatpush.bf16.msra.mxu0 0
        %3828 = vmatpush.bf16.msra.mxu0 0
        %3829 = vmatpush.bf16.msra.mxu0 %v3814
        %3830 = vmatpush.bf16.msra.mxu0 %v3813
        %3831 = vmatmul.bf16.gmra.mxu0 %v3818
        %v3832 = vpop.f32.mrf.mxu0
        %v3833 = vadd.f32 %v3803, %v3832
        %v3834 = vpop.f32.mrf.mxu0
        %v3835 = vadd.f32 %v3803, %v3834
        %3836 = vmatmul.bf16.gmra.mxu0 %v3821
        %v3837 = vpop.f32.mrf.mxu0
        %v3838 = vadd.f32 %v3803, %v3837
        %v3839 = vpop.f32.mrf.mxu0
        %3840 = vdwg.mxu0
        %v3841 = vmul.f32 %v3833, 0.5
        %v3842 = vmul.f32 %v3835, 0.5
        %v3843 = vmul.f32 %v3838, 0.5
        %v3844 = vmul.f32 %v3833, 0.044715
        %v3845 = vmul.f32 %v3835, 0.044715
        %v3846 = vmul.f32 %v3838, 0.044715
        %v3847 = vmul.f32 %v3844, %v3833
        %v3848 = vmul.f32 %v3845, %v3835
        %v3849 = vmul.f32 %v3846, %v3838
        %v3850 = vmul.f32 %v3847, %v3833
        %v3851 = vmul.f32 %v3848, %v3835
        %v3852 = vmul.f32 %v3849, %v3838
        %v3853 = vadd.f32 %v3833, %v3850
        %v3854 = vadd.f32 %v3835, %v3851
        %v3855 = vadd.f32 %v3838, %v3852
        %v3856 = vmul.f32 %v3853, 0.7978846
        %v3857 = vmul.f32 %v3854, 0.7978846
        %v3858 = vmul.f32 %v3855, 0.7978846
        %v3859 = vtanh.pop %v3856
        %v3860 = vtanh.pop %v3857
        %v3861 = vtanh.pop %v3858
        %v3862 = vadd.f32 %v3859, 1.0
        %v3863 = vadd.f32 %v3860, 1.0
        %v3864 = vadd.f32 %v3861, 1.0
        %v3865 = vmul.f32 %v3841, %v3862
        %v3866 = vmul.f32 %v3842, %v3863
        %v3867 = vmul.f32 %v3843, %v3864
        %v3868 = vpack.c.bf16 %v3866, %v3865
        %v3869 = vpack.c.bf16 %v3867, %v3867
        %v3871 = vperm.slane %v3799, 0
        %v3889 = vunpack.c.l.b16 %v3782
        %v3890 = vunpack.c.l.b16 %v3783
        %v3891 = vunpack.c.l.b16 %v3784
        %v3892 = vunpack.c.l.b16 %v3785
        %v3893 = vunpack.c.l.b16 %v3786
        %v3894 = vunpack.c.l.b16 %v3787
        %v3895 = vunpack.c.l.b16 %v3788
        %v3896 = vunpack.c.l.b16 %v3789
        %v3897 = vunpack.c.l.b16 %v3790
        %v3898 = vunpack.c.l.b16 %v3791
        %v3899 = vunpack.c.l.b16 %v3792
        %v3900 = vunpack.c.l.b16 %v3793
        %v3901 = vunpack.c.l.b16 %v3794
        %v3902 = vunpack.c.l.b16 %v3795
        %v3903 = vunpack.c.l.b16 %v3796
        %v3904 = vunpack.c.l.b16 %v3797
        %v3905 = vpack.c.b16 %v3890, %v3889
        %v3906 = vpack.c.b16 %v3892, %v3891
        %v3907 = vpack.c.b16 %v3894, %v3893
        %v3908 = vpack.c.b16 %v3896, %v3895
        %v3909 = vpack.c.b16 %v3898, %v3897
        %v3910 = vpack.c.b16 %v3900, %v3899
        %v3911 = vpack.c.b16 %v3902, %v3901
        %v3912 = vpack.c.b16 %v3904, %v3903
        %3921 = vmatpush.bf16.msra.mxu0 %v3912
        %3922 = vmatpush.bf16.msra.mxu0 %v3911
        %3923 = vmatpush.bf16.msra.mxu0 %v3910
        %3924 = vmatpush.bf16.msra.mxu0 %v3909
        %3925 = vmatpush.bf16.msra.mxu0 %v3908
        %3926 = vmatpush.bf16.msra.mxu0 %v3907
        %3927 = vmatpush.bf16.msra.mxu0 %v3906
        %3928 = vmatpush.bf16.msra.mxu0 %v3905
        %3929 = vmatmul.bf16.gmra.mxu0 %v3868
        %v3930 = vpop.f32.mrf.mxu0
        %v3931 = vadd.f32 %v3871, %v3930
        %v3932 = vpop.f32.mrf.mxu0
        %v3933 = vadd.f32 %v3871, %v3932
        %3934 = vmatmul.bf16.gmra.mxu0 %v3869
        %v3935 = vpop.f32.mrf.mxu0
        %v3936 = vadd.f32 %v3871, %v3935
        %v3937 = vpop.f32.mrf.mxu0
        %3938 = vdwg.mxu0
        %v3939 = vadd.f32 %v3771, %v3931
        %v3940 = vadd.f32 %v3772, %v3933
        %v3941 = vadd.f32 %v3773, %v3936
        %s3942 = scalar_lea.vmem [#allocation26], 3
        %v3943 = vld [vmem:[%s3942] sm:$0x1]
        %s3944 = scalar_lea.vmem [#allocation28], 3
        %v3945 = vld [vmem:[%s3944] sm:$0x1]
        %v3946 = vsel %vm1124, %v3939, 0.0
        %3947 = vadd.xlane.f32.xlu0 %v3946
        %v3948 = vpop.xlane.xlu0 %3947
        %v3949 = vsel %vm1124, %v3940, 0.0
        %3950 = vadd.xlane.f32.xlu0 %v3949
        %v3951 = vpop.xlane.xlu0 %3950
        %v3952 = vsel %vm1124, %v3941, 0.0
        %3953 = vadd.xlane.f32.xlu0 %v3952
        %v3954 = vpop.xlane.xlu0 %3953
        %v3955 = vmul.f32 %v3948, %v1831
        %v3956 = vmul.f32 %v3951, %v1831
        %v3957 = vmul.f32 %v3954, %v1831
        %v3958 = vsub.f32 %v3939, %v3955
        %v3959 = vsub.f32 %v3940, %v3956
        %v3960 = vsub.f32 %v3941, %v3957
        %v3961 = vmul.f32 %v3958, %v3958
        %v3962 = vmul.f32 %v3959, %v3959
        %v3963 = vmul.f32 %v3960, %v3960
        %v3964 = vsel %vm1124, %v3961, 0.0
        %3965 = vadd.xlane.f32.xlu0 %v3964
        %v3966 = vpop.xlane.xlu0 %3965
        %v3967 = vsel %vm1124, %v3962, 0.0
        %3968 = vadd.xlane.f32.xlu0 %v3967
        %v3969 = vpop.xlane.xlu0 %3968
        %v3970 = vsel %vm1124, %v3963, 0.0
        %3971 = vadd.xlane.f32.xlu0 %v3970
        %v3972 = vpop.xlane.xlu0 %3971
        %v3973 = vmul.f32 %v3966, %v1831
        %v3974 = vmul.f32 %v3969, %v1831
        %v3975 = vmul.f32 %v3972, %v1831
        %v3976 = vadd.f32 %v3973, 1e-05
        %v3977 = vadd.f32 %v3974, 1e-05
        %v3978 = vadd.f32 %v3975, 1e-05
        %v3979 = vrsqrt.pop %v3976
        %v3980 = vmul.f32 %v3979, %v3976
        %v3981 = vmul.f32 %v3980, %v3979
        %v3982 = vmul.f32 0.5, %v3981
        %v3983 = vsub.f32 1.5, %v3982
        %v3984 = vmul.f32 %v3979, %v3983
        %vm3985 = vweird.f32 %v3976
        %vm3986 = vweird.f32 %v3979
        %vm3987 = vmor %vm3985, %vm3986
        %v3988 = vsel %vm3987, %v3979, %v3984
        %v3989 = vrsqrt.pop %v3977
        %v3990 = vmul.f32 %v3989, %v3977
        %v3991 = vmul.f32 %v3990, %v3989
        %v3992 = vmul.f32 0.5, %v3991
        %v3993 = vsub.f32 1.5, %v3992
        %v3994 = vmul.f32 %v3989, %v3993
        %vm3995 = vweird.f32 %v3977
        %vm3996 = vweird.f32 %v3989
        %vm3997 = vmor %vm3995, %vm3996
        %v3998 = vsel %vm3997, %v3989, %v3994
        %v3999 = vrsqrt.pop %v3978
        %v4000 = vmul.f32 %v3999, %v3978
        %v4001 = vmul.f32 %v4000, %v3999
        %v4002 = vmul.f32 0.5, %v4001
        %v4003 = vsub.f32 1.5, %v4002
        %v4004 = vmul.f32 %v3999, %v4003
        %vm4005 = vweird.f32 %v3978
        %vm4006 = vweird.f32 %v3999
        %vm4007 = vmor %vm4005, %vm4006
        %v4008 = vsel %vm4007, %v3999, %v4004
        %v4009 = vmul.f32 %v3958, %v3988
        %v4010 = vmul.f32 %v3959, %v3998
        %v4011 = vmul.f32 %v3960, %v4008
        %v4013 = vperm.slane %v3943, 0
        %v4015 = vmul.f32 %v4009, %v4013
        %v4016 = vmul.f32 %v4010, %v4013
        %v4017 = vmul.f32 %v4011, %v4013
        %v4019 = vperm.slane %v3945, 0
        %v4021 = vadd.f32 %v4015, %v4019
        %v4022 = vadd.f32 %v4016, %v4019
        %v4023 = vadd.f32 %v4017, %v4019
        %v4024 = vld [vmem:[#allocation11] sm:$0xff]
        %v4025 = vld [vmem:[#allocation11 + $0x8] sm:$0xff]
        %v4026 = vld [vmem:[#allocation11 + $0x10] sm:$0xff]
        %s4027 = scalar_lea.vmem %s7, 48
        %v4028 = vld [vmem:[%s4027] sm:$0xf]
        %v4029 = vld [vmem:[%s4027 + $0x4] sm:$0xf]
        %v4030 = vld [vmem:[%s4027 + $0x8] sm:$0xf]
        %v4031 = vld [vmem:[%s4027 + $0xc] sm:$0xf]
        %s4032 = scalar_lea.vmem [#allocation13], 3
        %v4033 = vld [vmem:[%s4032] sm:$0x1]
        %s4034 = scalar_lea.vmem [#allocation14], 48
        %v4035 = vld [vmem:[%s4034] sm:$0xf]
        %v4036 = vld [vmem:[%s4034 + $0x4] sm:$0xf]
        %v4037 = vld [vmem:[%s4034 + $0x8] sm:$0xf]
        %v4038 = vld [vmem:[%s4034 + $0xc] sm:$0xf]
        %s4039 = scalar_lea.vmem [#allocation16], 3
        %v4040 = vld [vmem:[%s4039] sm:$0x1]
        %s4041 = scalar_lea.vmem [#allocation17], 48
        %v4042 = vld [vmem:[%s4041] sm:$0xf]
        %v4043 = vld [vmem:[%s4041 + $0x4] sm:$0xf]
        %v4044 = vld [vmem:[%s4041 + $0x8] sm:$0xf]
        %v4045 = vld [vmem:[%s4041 + $0xc] sm:$0xf]
        %s4046 = scalar_lea.vmem [#allocation19], 3
        %v4047 = vld [vmem:[%s4046] sm:$0x1]
        %s4048 = scalar_lea.vmem [#allocation20], 48
        %v4049 = vld [vmem:[%s4048] sm:$0xf]
        %v4050 = vld [vmem:[%s4048 + $0x4] sm:$0xf]
        %v4051 = vld [vmem:[%s4048 + $0x8] sm:$0xf]
        %v4052 = vld [vmem:[%s4048 + $0xc] sm:$0xf]
        %s4053 = scalar_lea.vmem [#allocation22], 3
        %v4054 = vld [vmem:[%s4053] sm:$0x1]
        %v4055 = vpack.c.bf16 %v4022, %v4021
        %v4056 = vpack.c.bf16 %v4023, %v4023
        %v4058 = vperm.slane %v4033, 0
        %v4064 = vunpack.c.l.b16 %v4028
        %v4065 = vunpack.c.l.b16 %v4029
        %v4066 = vunpack.c.l.b16 %v4030
        %v4067 = vunpack.c.l.b16 %v4031
        %v4068 = vpack.c.b16 %v4065, %v4064
        %v4069 = vpack.c.b16 %v4067, %v4066
        %v4073 = vsel %vm1124, %v4055, 0
        %v4076 = vsel %vm1124, %v4056, 0
        %4078 = vmatpush.bf16.msra.mxu0 0
        %4079 = vmatpush.bf16.msra.mxu0 0
        %4080 = vmatpush.bf16.msra.mxu0 0
        %4081 = vmatpush.bf16.msra.mxu0 0
        %4082 = vmatpush.bf16.msra.mxu0 0
        %4083 = vmatpush.bf16.msra.mxu0 0
        %4084 = vmatpush.bf16.msra.mxu0 %v4069
        %4085 = vmatpush.bf16.msra.mxu0 %v4068
        %4086 = vmatmul.bf16.gmra.mxu0 %v4073
        %v4087 = vpop.f32.mrf.mxu0
        %v4088 = vadd.f32 %v4058, %v4087
        %v4089 = vpop.f32.mrf.mxu0
        %v4090 = vadd.f32 %v4058, %v4089
        %4091 = vmatmul.bf16.gmra.mxu0 %v4076
        %v4092 = vpop.f32.mrf.mxu0
        %v4093 = vadd.f32 %v4058, %v4092
        %v4094 = vpop.f32.mrf.mxu0
        %4095 = vdwg.mxu0
        %v4096 = vpack.c.bf16 %v1075, %v1074
        %v4097 = vpack.c.bf16 %v1077, %v1076
        %v4098 = vpack.c.bf16 %v1079, %v1078
        %v4100 = vperm.slane %v4040, 0
        %v4106 = vunpack.c.l.b16 %v4035
        %v4107 = vunpack.c.l.b16 %v4036
        %v4108 = vunpack.c.l.b16 %v4037
        %v4109 = vunpack.c.l.b16 %v4038
        %v4110 = vpack.c.b16 %v4107, %v4106
        %v4111 = vpack.c.b16 %v4109, %v4108
        %v4115 = vsel %vm1124, %v4096, 0
        %v4118 = vsel %vm1124, %v4097, 0
        %v4121 = vsel %vm1124, %v4098, 0
        %4123 = vmatpush.bf16.msra.mxu0 0
        %4124 = vmatpush.bf16.msra.mxu0 0
        %4125 = vmatpush.bf16.msra.mxu0 0
        %4126 = vmatpush.bf16.msra.mxu0 0
        %4127 = vmatpush.bf16.msra.mxu0 0
        %4128 = vmatpush.bf16.msra.mxu0 0
        %4129 = vmatpush.bf16.msra.mxu0 %v4111
        %4130 = vmatpush.bf16.msra.mxu0 %v4110
        %4131 = vmatmul.bf16.gmra.mxu0 %v4115
        %v4132 = vpop.f32.mrf.mxu0
        %v4133 = vadd.f32 %v4100, %v4132
        %v4134 = vpop.f32.mrf.mxu0
        %v4135 = vadd.f32 %v4100, %v4134
        %4136 = vmatmul.bf16.gmra.mxu0 %v4118
        %v4137 = vpop.f32.mrf.mxu0
        %v4138 = vadd.f32 %v4100, %v4137
        %v4139 = vpop.f32.mrf.mxu0
        %v4140 = vadd.f32 %v4100, %v4139
        %4141 = vmatmul.bf16.gmra.mxu0 %v4121
        %v4142 = vpop.f32.mrf.mxu0
        %v4143 = vadd.f32 %v4100, %v4142
        %v4144 = vpop.f32.mrf.mxu0
        %v4145 = vadd.f32 %v4100, %v4144
        %4146 = vdwg.mxu0
        %v4148 = vperm.slane %v4047, 0
        %v4154 = vunpack.c.l.b16 %v4042
        %v4155 = vunpack.c.l.b16 %v4043
        %v4156 = vunpack.c.l.b16 %v4044
        %v4157 = vunpack.c.l.b16 %v4045
        %v4158 = vpack.c.b16 %v4155, %v4154
        %v4159 = vpack.c.b16 %v4157, %v4156
        %4162 = vmatpush.bf16.msra.mxu0 0
        %4163 = vmatpush.bf16.msra.mxu0 0
        %4164 = vmatpush.bf16.msra.mxu0 0
        %4165 = vmatpush.bf16.msra.mxu0 0
        %4166 = vmatpush.bf16.msra.mxu0 0
        %4167 = vmatpush.bf16.msra.mxu0 0
        %4168 = vmatpush.bf16.msra.mxu0 %v4159
        %4169 = vmatpush.bf16.msra.mxu0 %v4158
        %4170 = vmatmul.bf16.gmra.mxu0 %v4115
        %v4171 = vpop.f32.mrf.mxu0
        %v4172 = vadd.f32 %v4148, %v4171
        %v4173 = vpop.f32.mrf.mxu0
        %v4174 = vadd.f32 %v4148, %v4173
        %4175 = vmatmul.bf16.gmra.mxu0 %v4118
        %v4176 = vpop.f32.mrf.mxu0
        %v4177 = vadd.f32 %v4148, %v4176
        %v4178 = vpop.f32.mrf.mxu0
        %v4179 = vadd.f32 %v4148, %v4178
        %4180 = vmatmul.bf16.gmra.mxu0 %v4121
        %v4181 = vpop.f32.mrf.mxu0
        %v4182 = vadd.f32 %v4148, %v4181
        %v4183 = vpop.f32.mrf.mxu0
        %v4184 = vadd.f32 %v4148, %v4183
        %4185 = vdwg.mxu0
        %v4186 = vpack.c.bf16 %v4088, %v4088
        %v4187 = vpack.c.bf16 %v4090, %v4090
        %v4188 = vpack.c.bf16 %v4093, %v4093
        %v4189 = vpack.c.bf16 %v4133, %v4133
        %v4190 = vpack.c.bf16 %v4135, %v4135
        %v4191 = vpack.c.bf16 %v4138, %v4138
        %v4192 = vpack.c.bf16 %v4140, %v4140
        %v4193 = vpack.c.bf16 %v4143, %v4143
        %v4194 = vpack.c.bf16 %v4145, %v4145
        %v4195 = vpack.c.bf16 %v4172, %v4172
        %v4196 = vpack.c.bf16 %v4174, %v4174
        %v4197 = vpack.c.bf16 %v4177, %v4177
        %v4198 = vpack.c.bf16 %v4179, %v4179
        %v4199 = vpack.c.bf16 %v4182, %v4182
        %v4200 = vpack.c.bf16 %v4184, %v4184
        %v4204 = vunpack.c.l.b16 %v4186
        %v4205 = vunpack.c.l.b16 %v4187
        %v4206 = vunpack.c.l.b16 %v4188
        %v4207 = vpack.c.b16 %v4205, %v4204
        %v4208 = vpack.c.b16 %v4206, %v4206
        %v4215 = vunpack.c.l.b16 %v4189
        %v4216 = vunpack.c.l.b16 %v4190
        %v4217 = vunpack.c.l.b16 %v4191
        %v4218 = vunpack.c.l.b16 %v4192
        %v4219 = vunpack.c.l.b16 %v4193
        %v4220 = vunpack.c.l.b16 %v4194
        %v4221 = vpack.c.b16 %v4216, %v4215
        %v4222 = vpack.c.b16 %v4218, %v4217
        %v4223 = vpack.c.b16 %v4220, %v4219
        %v4225 = vsel %vm1240, %v4207, 0
        %v4228 = vsel %vm1240, %v4208, 0
        %v4231 = vsel %vm1240, %v4221, 0
        %v4234 = vsel %vm1240, %v4222, 0
        %v4237 = vsel %vm1240, %v4223, 0
        %4239 = vmatpush.bf16.xpose.msra.mxu0 0
        %4240 = vmatpush.bf16.xpose.msra.mxu0 0
        %4241 = vmatpush.bf16.xpose.msra.mxu0 0
        %4242 = vmatpush.bf16.xpose.msra.mxu0 0
        %4243 = vmatpush.bf16.xpose.msra.mxu0 0
        %4244 = vmatpush.bf16.xpose.msra.mxu0 %v4237
        %4245 = vmatpush.bf16.xpose.msra.mxu0 %v4234
        %4246 = vmatpush.bf16.xpose.msra.mxu0 %v4231
        %4247 = vmatmul.bf16.gmra.mxu0 %v4225
        %v4248 = vpop.f32.mrf.mxu0
        %v4249 = vadd.f32 0.0, %v4248
        %v4250 = vpop.f32.mrf.mxu0
        %v4251 = vadd.f32 0.0, %v4250
        %4252 = vmatmul.bf16.gmra.mxu0 %v4228
        %v4253 = vpop.f32.mrf.mxu0
        %v4254 = vadd.f32 0.0, %v4253
        %v4255 = vpop.f32.mrf.mxu0
        %4256 = vdwg.mxu0
        %v4257 = vmul.f32 %v4249, 0.35355338
        %v4258 = vmul.f32 %v4251, 0.35355338
        %v4259 = vmul.f32 %v4254, 0.35355338
        %v4260 = vadd.f32 %v4257, %v4024
        %v4261 = vadd.f32 %v4258, %v4025
        %v4262 = vadd.f32 %v4259, %v4026
        %vm4263 = vcmask 392192
        %v4264 = vsel %vm4263, %v4260, -inf
        %4265 = vmax.xlane.f32.xlu0 %v4264
        %v4266 = vpop.xlane.xlu0 %4265
        %v4267 = vsel %vm4263, %v4261, -inf
        %4268 = vmax.xlane.f32.xlu0 %v4267
        %v4269 = vpop.xlane.xlu0 %4268
        %v4270 = vsel %vm4263, %v4262, -inf
        %4271 = vmax.xlane.f32.xlu0 %v4270
        %v4272 = vpop.xlane.xlu0 %4271
        %v4273 = vsub.f32 %v4260, %v4266
        %v4274 = vsub.f32 %v4261, %v4269
        %v4275 = vsub.f32 %v4262, %v4272
        %v4276 = vmul.f32 %v4273, 1.442695
        %v4277 = vpow.pop %v4276
        %v4278 = vmul.f32 %v4274, 1.442695
        %v4279 = vpow.pop %v4278
        %v4280 = vmul.f32 %v4275, 1.442695
        %v4281 = vpow.pop %v4280
        %v4282 = vsel %vm4263, %v4277, 0.0
        %4283 = vadd.xlane.f32.xlu0 %v4282
        %v4284 = vpop.xlane.xlu0 %4283
        %v4285 = vsel %vm4263, %v4279, 0.0
        %4286 = vadd.xlane.f32.xlu0 %v4285
        %v4287 = vpop.xlane.xlu0 %4286
        %v4288 = vsel %vm4263, %v4281, 0.0
        %4289 = vadd.xlane.f32.xlu0 %v4288
        %v4290 = vpop.xlane.xlu0 %4289
        %v4291 = vrcp.pop %v4284
        %v4292 = vrcp.pop %v4287
        %v4293 = vrcp.pop %v4290
        %v4294 = vmul.f32 %v4277, %v4291
        %v4295 = vmul.f32 %v4279, %v4292
        %v4296 = vmul.f32 %v4281, %v4293
        %v4297 = vpack.c.bf16 %v4295, %v4294
        %v4298 = vpack.c.bf16 %v4296, %v4296
        %v4305 = vunpack.c.l.b16 %v4195
        %v4306 = vunpack.c.l.b16 %v4196
        %v4307 = vunpack.c.l.b16 %v4197
        %v4308 = vunpack.c.l.b16 %v4198
        %v4309 = vunpack.c.l.b16 %v4199
        %v4310 = vunpack.c.l.b16 %v4200
        %v4311 = vpack.c.b16 %v4306, %v4305
        %v4312 = vpack.c.b16 %v4308, %v4307
        %v4313 = vpack.c.b16 %v4310, %v4309
        %v4318 = vsel %vm4263, %v4297, 0
        %v4321 = vsel %vm4263, %v4298, 0
        %4323 = vmatpush.bf16.msra.mxu0 0
        %4324 = vmatpush.bf16.msra.mxu0 0
        %4325 = vmatpush.bf16.msra.mxu0 0
        %4326 = vmatpush.bf16.msra.mxu0 0
        %4327 = vmatpush.bf16.msra.mxu0 0
        %4328 = vmatpush.bf16.msra.mxu0 %v4313
        %4329 = vmatpush.bf16.msra.mxu0 %v4312
        %4330 = vmatpush.bf16.msra.mxu0 %v4311
        %4331 = vmatmul.bf16.gmra.mxu0 %v4318
        %v4332 = vpop.f32.mrf.mxu0
        %v4333 = vadd.f32 0.0, %v4332
        %v4334 = vpop.f32.mrf.mxu0
        %v4335 = vadd.f32 0.0, %v4334
        %4336 = vmatmul.bf16.gmra.mxu0 %v4321
        %v4337 = vpop.f32.mrf.mxu0
        %v4338 = vadd.f32 0.0, %v4337
        %v4339 = vpop.f32.mrf.mxu0
        %4340 = vdwg.mxu0
        %v4341 = vpack.c.bf16 %v4335, %v4333
        %v4342 = vpack.c.bf16 %v4338, %v4338
        %4343 = vrot.lane.b32.xlu0 %v4207, 120
        %v4344 = vpop.permute.xlu0 %4343
        %4345 = vrot.lane.b32.xlu0 %v4208, 120
        %v4346 = vpop.permute.xlu0 %4345
        %4347 = vrot.lane.b32.xlu0 %v4221, 120
        %v4348 = vpop.permute.xlu0 %4347
        %4349 = vrot.lane.b32.xlu0 %v4222, 120
        %v4350 = vpop.permute.xlu0 %4349
        %4351 = vrot.lane.b32.xlu0 %v4223, 120
        %v4352 = vpop.permute.xlu0 %4351
        %v4354 = vsel %vm1240, %v4344, 0
        %v4357 = vsel %vm1240, %v4346, 0
        %v4360 = vsel %vm1240, %v4348, 0
        %v4363 = vsel %vm1240, %v4350, 0
        %v4366 = vsel %vm1240, %v4352, 0
        %4368 = vmatpush.bf16.xpose.msra.mxu0 0
        %4369 = vmatpush.bf16.xpose.msra.mxu0 0
        %4370 = vmatpush.bf16.xpose.msra.mxu0 0
        %4371 = vmatpush.bf16.xpose.msra.mxu0 0
        %4372 = vmatpush.bf16.xpose.msra.mxu0 0
        %4373 = vmatpush.bf16.xpose.msra.mxu0 %v4366
        %4374 = vmatpush.bf16.xpose.msra.mxu0 %v4363
        %4375 = vmatpush.bf16.xpose.msra.mxu0 %v4360
        %4376 = vmatmul.bf16.gmra.mxu0 %v4354
        %v4377 = vpop.f32.mrf.mxu0
        %v4378 = vadd.f32 0.0, %v4377
        %v4379 = vpop.f32.mrf.mxu0
        %v4380 = vadd.f32 0.0, %v4379
        %4381 = vmatmul.bf16.gmra.mxu0 %v4357
        %v4382 = vpop.f32.mrf.mxu0
        %v4383 = vadd.f32 0.0, %v4382
        %v4384 = vpop.f32.mrf.mxu0
        %4385 = vdwg.mxu0
        %v4386 = vmul.f32 %v4378, 0.35355338
        %v4387 = vmul.f32 %v4380, 0.35355338
        %v4388 = vmul.f32 %v4383, 0.35355338
        %v4389 = vadd.f32 %v4386, %v4024
        %v4390 = vadd.f32 %v4387, %v4025
        %v4391 = vadd.f32 %v4388, %v4026
        %v4392 = vsel %vm4263, %v4389, -inf
        %4393 = vmax.xlane.f32.xlu0 %v4392
        %v4394 = vpop.xlane.xlu0 %4393
        %v4395 = vsel %vm4263, %v4390, -inf
        %4396 = vmax.xlane.f32.xlu0 %v4395
        %v4397 = vpop.xlane.xlu0 %4396
        %v4398 = vsel %vm4263, %v4391, -inf
        %4399 = vmax.xlane.f32.xlu0 %v4398
        %v4400 = vpop.xlane.xlu0 %4399
        %v4401 = vsub.f32 %v4389, %v4394
        %v4402 = vsub.f32 %v4390, %v4397
        %v4403 = vsub.f32 %v4391, %v4400
        %v4404 = vmul.f32 %v4401, 1.442695
        %v4405 = vpow.pop %v4404
        %v4406 = vmul.f32 %v4402, 1.442695
        %v4407 = vpow.pop %v4406
        %v4408 = vmul.f32 %v4403, 1.442695
        %v4409 = vpow.pop %v4408
        %v4410 = vsel %vm4263, %v4405, 0.0
        %4411 = vadd.xlane.f32.xlu0 %v4410
        %v4412 = vpop.xlane.xlu0 %4411
        %v4413 = vsel %vm4263, %v4407, 0.0
        %4414 = vadd.xlane.f32.xlu0 %v4413
        %v4415 = vpop.xlane.xlu0 %4414
        %v4416 = vsel %vm4263, %v4409, 0.0
        %4417 = vadd.xlane.f32.xlu0 %v4416
        %v4418 = vpop.xlane.xlu0 %4417
        %v4419 = vrcp.pop %v4412
        %v4420 = vrcp.pop %v4415
        %v4421 = vrcp.pop %v4418
        %v4422 = vmul.f32 %v4405, %v4419
        %v4423 = vmul.f32 %v4407, %v4420
        %v4424 = vmul.f32 %v4409, %v4421
        %v4425 = vpack.c.bf16 %v4423, %v4422
        %v4426 = vpack.c.bf16 %v4424, %v4424
        %4427 = vrot.lane.b32.xlu0 %v4311, 120
        %v4428 = vpop.permute.xlu0 %4427
        %4429 = vrot.lane.b32.xlu0 %v4312, 120
        %v4430 = vpop.permute.xlu0 %4429
        %4431 = vrot.lane.b32.xlu0 %v4313, 120
        %v4432 = vpop.permute.xlu0 %4431
        %v4437 = vsel %vm4263, %v4425, 0
        %v4440 = vsel %vm4263, %v4426, 0
        %4442 = vmatpush.bf16.msra.mxu0 0
        %4443 = vmatpush.bf16.msra.mxu0 0
        %4444 = vmatpush.bf16.msra.mxu0 0
        %4445 = vmatpush.bf16.msra.mxu0 0
        %4446 = vmatpush.bf16.msra.mxu0 0
        %4447 = vmatpush.bf16.msra.mxu0 %v4432
        %4448 = vmatpush.bf16.msra.mxu0 %v4430
        %4449 = vmatpush.bf16.msra.mxu0 %v4428
        %4450 = vmatmul.bf16.gmra.mxu0 %v4437
        %v4451 = vpop.f32.mrf.mxu0
        %v4452 = vadd.f32 0.0, %v4451
        %v4453 = vpop.f32.mrf.mxu0
        %v4454 = vadd.f32 0.0, %v4453
        %4455 = vmatmul.bf16.gmra.mxu0 %v4440
        %v4456 = vpop.f32.mrf.mxu0
        %v4457 = vadd.f32 0.0, %v4456
        %v4458 = vpop.f32.mrf.mxu0
        %4459 = vdwg.mxu0
        %v4460 = vpack.c.bf16 %v4454, %v4452
        %v4461 = vpack.c.bf16 %v4457, %v4457
        %v4463 = vsel %vm1240, %v4460, 0
        %v4466 = vsel %vm1240, %v4461, 0
        %v4469 = vsel %vm1328, %v4050, 0
        %4471 = vmatpush.bf16.msra.mxu0 0
        %4472 = vmatpush.bf16.msra.mxu0 0
        %4473 = vmatpush.bf16.msra.mxu0 0
        %4474 = vmatpush.bf16.msra.mxu0 0
        %4475 = vmatpush.bf16.msra.mxu0 0
        %4476 = vmatpush.bf16.msra.mxu0 0
        %4477 = vmatpush.bf16.msra.mxu0 0
        %4478 = vmatpush.bf16.msra.mxu0 %v4469
        %4479 = vmatmul.bf16.gmra.mxu0 %v4463
        %v4480 = vpop.f32.mrf.mxu0
        %v4481 = vadd.f32 0.0, %v4480
        %v4482 = vpop.f32.mrf.mxu0
        %v4483 = vadd.f32 0.0, %v4482
        %4484 = vmatmul.bf16.gmra.mxu0 %v4466
        %v4485 = vpop.f32.mrf.mxu0
        %v4486 = vadd.f32 0.0, %v4485
        %v4487 = vpop.f32.mrf.mxu0
        %4488 = vdwg.mxu0
        %v4490 = vsel %vm1240, %v4341, 0
        %v4493 = vsel %vm1240, %v4342, 0
        %v4496 = vsel %vm1328, %v4049, 0
        %4498 = vmatpush.bf16.msra.mxu0 0
        %4499 = vmatpush.bf16.msra.mxu0 0
        %4500 = vmatpush.bf16.msra.mxu0 0
        %4501 = vmatpush.bf16.msra.mxu0 0
        %4502 = vmatpush.bf16.msra.mxu0 0
        %4503 = vmatpush.bf16.msra.mxu0 0
        %4504 = vmatpush.bf16.msra.mxu0 0
        %4505 = vmatpush.bf16.msra.mxu0 %v4496
        %4506 = vmatmul.bf16.gmra.mxu0 %v4490
        %v4507 = vpop.f32.mrf.mxu0
        %v4508 = vadd.f32 %v4481, %v4507
        %v4509 = vpop.f32.mrf.mxu0
        %v4510 = vadd.f32 %v4483, %v4509
        %4511 = vmatmul.bf16.gmra.mxu0 %v4493
        %v4512 = vpop.f32.mrf.mxu0
        %v4513 = vadd.f32 %v4486, %v4512
        %v4514 = vpop.f32.mrf.mxu0
        %4515 = vdwg.mxu0
        %4516 = vrot.lane.b32.xlu0 %v4207, 112
        %v4517 = vpop.permute.xlu0 %4516
        %4518 = vrot.lane.b32.xlu0 %v4208, 112
        %v4519 = vpop.permute.xlu0 %4518
        %4520 = vrot.lane.b32.xlu0 %v4221, 112
        %v4521 = vpop.permute.xlu0 %4520
        %4522 = vrot.lane.b32.xlu0 %v4222, 112
        %v4523 = vpop.permute.xlu0 %4522
        %4524 = vrot.lane.b32.xlu0 %v4223, 112
        %v4525 = vpop.permute.xlu0 %4524
        %v4527 = vsel %vm1240, %v4517, 0
        %v4530 = vsel %vm1240, %v4519, 0
        %v4533 = vsel %vm1240, %v4521, 0
        %v4536 = vsel %vm1240, %v4523, 0
        %v4539 = vsel %vm1240, %v4525, 0
        %4541 = vmatpush.bf16.xpose.msra.mxu0 0
        %4542 = vmatpush.bf16.xpose.msra.mxu0 0
        %4543 = vmatpush.bf16.xpose.msra.mxu0 0
        %4544 = vmatpush.bf16.xpose.msra.mxu0 0
        %4545 = vmatpush.bf16.xpose.msra.mxu0 0
        %4546 = vmatpush.bf16.xpose.msra.mxu0 %v4539
        %4547 = vmatpush.bf16.xpose.msra.mxu0 %v4536
        %4548 = vmatpush.bf16.xpose.msra.mxu0 %v4533
        %4549 = vmatmul.bf16.gmra.mxu0 %v4527
        %v4550 = vpop.f32.mrf.mxu0
        %v4551 = vadd.f32 0.0, %v4550
        %v4552 = vpop.f32.mrf.mxu0
        %v4553 = vadd.f32 0.0, %v4552
        %4554 = vmatmul.bf16.gmra.mxu0 %v4530
        %v4555 = vpop.f32.mrf.mxu0
        %v4556 = vadd.f32 0.0, %v4555
        %v4557 = vpop.f32.mrf.mxu0
        %4558 = vdwg.mxu0
        %v4559 = vmul.f32 %v4551, 0.35355338
        %v4560 = vmul.f32 %v4553, 0.35355338
        %v4561 = vmul.f32 %v4556, 0.35355338
        %v4562 = vadd.f32 %v4559, %v4024
        %v4563 = vadd.f32 %v4560, %v4025
        %v4564 = vadd.f32 %v4561, %v4026
        %v4565 = vsel %vm4263, %v4562, -inf
        %4566 = vmax.xlane.f32.xlu0 %v4565
        %v4567 = vpop.xlane.xlu0 %4566
        %v4568 = vsel %vm4263, %v4563, -inf
        %4569 = vmax.xlane.f32.xlu0 %v4568
        %v4570 = vpop.xlane.xlu0 %4569
        %v4571 = vsel %vm4263, %v4564, -inf
        %4572 = vmax.xlane.f32.xlu0 %v4571
        %v4573 = vpop.xlane.xlu0 %4572
        %v4574 = vsub.f32 %v4562, %v4567
        %v4575 = vsub.f32 %v4563, %v4570
        %v4576 = vsub.f32 %v4564, %v4573
        %v4577 = vmul.f32 %v4574, 1.442695
        %v4578 = vpow.pop %v4577
        %v4579 = vmul.f32 %v4575, 1.442695
        %v4580 = vpow.pop %v4579
        %v4581 = vmul.f32 %v4576, 1.442695
        %v4582 = vpow.pop %v4581
        %v4583 = vsel %vm4263, %v4578, 0.0
        %4584 = vadd.xlane.f32.xlu0 %v4583
        %v4585 = vpop.xlane.xlu0 %4584
        %v4586 = vsel %vm4263, %v4580, 0.0
        %4587 = vadd.xlane.f32.xlu0 %v4586
        %v4588 = vpop.xlane.xlu0 %4587
        %v4589 = vsel %vm4263, %v4582, 0.0
        %4590 = vadd.xlane.f32.xlu0 %v4589
        %v4591 = vpop.xlane.xlu0 %4590
        %v4592 = vrcp.pop %v4585
        %v4593 = vrcp.pop %v4588
        %v4594 = vrcp.pop %v4591
        %v4595 = vmul.f32 %v4578, %v4592
        %v4596 = vmul.f32 %v4580, %v4593
        %v4597 = vmul.f32 %v4582, %v4594
        %v4598 = vpack.c.bf16 %v4596, %v4595
        %v4599 = vpack.c.bf16 %v4597, %v4597
        %4600 = vrot.lane.b32.xlu0 %v4311, 112
        %v4601 = vpop.permute.xlu0 %4600
        %4602 = vrot.lane.b32.xlu0 %v4312, 112
        %v4603 = vpop.permute.xlu0 %4602
        %4604 = vrot.lane.b32.xlu0 %v4313, 112
        %v4605 = vpop.permute.xlu0 %4604
        %v4610 = vsel %vm4263, %v4598, 0
        %v4613 = vsel %vm4263, %v4599, 0
        %4615 = vmatpush.bf16.msra.mxu0 0
        %4616 = vmatpush.bf16.msra.mxu0 0
        %4617 = vmatpush.bf16.msra.mxu0 0
        %4618 = vmatpush.bf16.msra.mxu0 0
        %4619 = vmatpush.bf16.msra.mxu0 0
        %4620 = vmatpush.bf16.msra.mxu0 %v4605
        %4621 = vmatpush.bf16.msra.mxu0 %v4603
        %4622 = vmatpush.bf16.msra.mxu0 %v4601
        %4623 = vmatmul.bf16.gmra.mxu0 %v4610
        %v4624 = vpop.f32.mrf.mxu0
        %v4625 = vadd.f32 0.0, %v4624
        %v4626 = vpop.f32.mrf.mxu0
        %v4627 = vadd.f32 0.0, %v4626
        %4628 = vmatmul.bf16.gmra.mxu0 %v4613
        %v4629 = vpop.f32.mrf.mxu0
        %v4630 = vadd.f32 0.0, %v4629
        %v4631 = vpop.f32.mrf.mxu0
        %4632 = vdwg.mxu0
        %v4633 = vpack.c.bf16 %v4627, %v4625
        %v4634 = vpack.c.bf16 %v4630, %v4630
        %v4636 = vsel %vm1240, %v4633, 0
        %v4639 = vsel %vm1240, %v4634, 0
        %v4642 = vsel %vm1328, %v4051, 0
        %4644 = vmatpush.bf16.msra.mxu0 0
        %4645 = vmatpush.bf16.msra.mxu0 0
        %4646 = vmatpush.bf16.msra.mxu0 0
        %4647 = vmatpush.bf16.msra.mxu0 0
        %4648 = vmatpush.bf16.msra.mxu0 0
        %4649 = vmatpush.bf16.msra.mxu0 0
        %4650 = vmatpush.bf16.msra.mxu0 0
        %4651 = vmatpush.bf16.msra.mxu0 %v4642
        %4652 = vmatmul.bf16.gmra.mxu0 %v4636
        %v4653 = vpop.f32.mrf.mxu0
        %v4654 = vadd.f32 0.0, %v4653
        %v4655 = vpop.f32.mrf.mxu0
        %v4656 = vadd.f32 0.0, %v4655
        %4657 = vmatmul.bf16.gmra.mxu0 %v4639
        %v4658 = vpop.f32.mrf.mxu0
        %v4659 = vadd.f32 0.0, %v4658
        %v4660 = vpop.f32.mrf.mxu0
        %4661 = vdwg.mxu0
        %v4662 = vadd.f32 %v4508, %v4654
        %v4663 = vadd.f32 %v4510, %v4656
        %v4664 = vadd.f32 %v4513, %v4659
        %4665 = vrot.lane.b32.xlu0 %v4207, 104
        %v4666 = vpop.permute.xlu0 %4665
        %4667 = vrot.lane.b32.xlu0 %v4208, 104
        %v4668 = vpop.permute.xlu0 %4667
        %4669 = vrot.lane.b32.xlu0 %v4221, 104
        %v4670 = vpop.permute.xlu0 %4669
        %4671 = vrot.lane.b32.xlu0 %v4222, 104
        %v4672 = vpop.permute.xlu0 %4671
        %4673 = vrot.lane.b32.xlu0 %v4223, 104
        %v4674 = vpop.permute.xlu0 %4673
        %v4676 = vsel %vm1240, %v4666, 0
        %v4679 = vsel %vm1240, %v4668, 0
        %v4682 = vsel %vm1240, %v4670, 0
        %v4685 = vsel %vm1240, %v4672, 0
        %v4688 = vsel %vm1240, %v4674, 0
        %4690 = vmatpush.bf16.xpose.msra.mxu0 0
        %4691 = vmatpush.bf16.xpose.msra.mxu0 0
        %4692 = vmatpush.bf16.xpose.msra.mxu0 0
        %4693 = vmatpush.bf16.xpose.msra.mxu0 0
        %4694 = vmatpush.bf16.xpose.msra.mxu0 0
        %4695 = vmatpush.bf16.xpose.msra.mxu0 %v4688
        %4696 = vmatpush.bf16.xpose.msra.mxu0 %v4685
        %4697 = vmatpush.bf16.xpose.msra.mxu0 %v4682
        %4698 = vmatmul.bf16.gmra.mxu0 %v4676
        %v4699 = vpop.f32.mrf.mxu0
        %v4700 = vadd.f32 0.0, %v4699
        %v4701 = vpop.f32.mrf.mxu0
        %v4702 = vadd.f32 0.0, %v4701
        %4703 = vmatmul.bf16.gmra.mxu0 %v4679
        %v4704 = vpop.f32.mrf.mxu0
        %v4705 = vadd.f32 0.0, %v4704
        %v4706 = vpop.f32.mrf.mxu0
        %4707 = vdwg.mxu0
        %v4708 = vmul.f32 %v4700, 0.35355338
        %v4709 = vmul.f32 %v4702, 0.35355338
        %v4710 = vmul.f32 %v4705, 0.35355338
        %v4711 = vadd.f32 %v4708, %v4024
        %v4712 = vadd.f32 %v4709, %v4025
        %v4713 = vadd.f32 %v4710, %v4026
        %v4714 = vsel %vm4263, %v4711, -inf
        %4715 = vmax.xlane.f32.xlu0 %v4714
        %v4716 = vpop.xlane.xlu0 %4715
        %v4717 = vsel %vm4263, %v4712, -inf
        %4718 = vmax.xlane.f32.xlu0 %v4717
        %v4719 = vpop.xlane.xlu0 %4718
        %v4720 = vsel %vm4263, %v4713, -inf
        %4721 = vmax.xlane.f32.xlu0 %v4720
        %v4722 = vpop.xlane.xlu0 %4721
        %v4723 = vsub.f32 %v4711, %v4716
        %v4724 = vsub.f32 %v4712, %v4719
        %v4725 = vsub.f32 %v4713, %v4722
        %v4726 = vmul.f32 %v4723, 1.442695
        %v4727 = vpow.pop %v4726
        %v4728 = vmul.f32 %v4724, 1.442695
        %v4729 = vpow.pop %v4728
        %v4730 = vmul.f32 %v4725, 1.442695
        %v4731 = vpow.pop %v4730
        %v4732 = vsel %vm4263, %v4727, 0.0
        %4733 = vadd.xlane.f32.xlu0 %v4732
        %v4734 = vpop.xlane.xlu0 %4733
        %v4735 = vsel %vm4263, %v4729, 0.0
        %4736 = vadd.xlane.f32.xlu0 %v4735
        %v4737 = vpop.xlane.xlu0 %4736
        %v4738 = vsel %vm4263, %v4731, 0.0
        %4739 = vadd.xlane.f32.xlu0 %v4738
        %v4740 = vpop.xlane.xlu0 %4739
        %v4741 = vrcp.pop %v4734
        %v4742 = vrcp.pop %v4737
        %v4743 = vrcp.pop %v4740
        %v4744 = vmul.f32 %v4727, %v4741
        %v4745 = vmul.f32 %v4729, %v4742
        %v4746 = vmul.f32 %v4731, %v4743
        %v4747 = vpack.c.bf16 %v4745, %v4744
        %v4748 = vpack.c.bf16 %v4746, %v4746
        %4749 = vrot.lane.b32.xlu0 %v4311, 104
        %v4750 = vpop.permute.xlu0 %4749
        %4751 = vrot.lane.b32.xlu0 %v4312, 104
        %v4752 = vpop.permute.xlu0 %4751
        %4753 = vrot.lane.b32.xlu0 %v4313, 104
        %v4754 = vpop.permute.xlu0 %4753
        %v4759 = vsel %vm4263, %v4747, 0
        %v4762 = vsel %vm4263, %v4748, 0
        %4764 = vmatpush.bf16.msra.mxu0 0
        %4765 = vmatpush.bf16.msra.mxu0 0
        %4766 = vmatpush.bf16.msra.mxu0 0
        %4767 = vmatpush.bf16.msra.mxu0 0
        %4768 = vmatpush.bf16.msra.mxu0 0
        %4769 = vmatpush.bf16.msra.mxu0 %v4754
        %4770 = vmatpush.bf16.msra.mxu0 %v4752
        %4771 = vmatpush.bf16.msra.mxu0 %v4750
        %4772 = vmatmul.bf16.gmra.mxu0 %v4759
        %v4773 = vpop.f32.mrf.mxu0
        %v4774 = vadd.f32 0.0, %v4773
        %v4775 = vpop.f32.mrf.mxu0
        %v4776 = vadd.f32 0.0, %v4775
        %4777 = vmatmul.bf16.gmra.mxu0 %v4762
        %v4778 = vpop.f32.mrf.mxu0
        %v4779 = vadd.f32 0.0, %v4778
        %v4780 = vpop.f32.mrf.mxu0
        %4781 = vdwg.mxu0
        %v4782 = vpack.c.bf16 %v4776, %v4774
        %v4783 = vpack.c.bf16 %v4779, %v4779
        %v4785 = vsel %vm1240, %v4782, 0
        %v4788 = vsel %vm1240, %v4783, 0
        %v4791 = vsel %vm1328, %v4052, 0
        %4793 = vmatpush.bf16.msra.mxu0 0
        %4794 = vmatpush.bf16.msra.mxu0 0
        %4795 = vmatpush.bf16.msra.mxu0 0
        %4796 = vmatpush.bf16.msra.mxu0 0
        %4797 = vmatpush.bf16.msra.mxu0 0
        %4798 = vmatpush.bf16.msra.mxu0 0
        %4799 = vmatpush.bf16.msra.mxu0 0
        %4800 = vmatpush.bf16.msra.mxu0 %v4791
        %4801 = vmatmul.bf16.gmra.mxu0 %v4785
        %v4802 = vpop.f32.mrf.mxu0
        %v4803 = vadd.f32 0.0, %v4802
        %v4804 = vpop.f32.mrf.mxu0
        %v4805 = vadd.f32 0.0, %v4804
        %4806 = vmatmul.bf16.gmra.mxu0 %v4788
        %v4807 = vpop.f32.mrf.mxu0
        %v4808 = vadd.f32 0.0, %v4807
        %v4809 = vpop.f32.mrf.mxu0
        %4810 = vdwg.mxu0
        %v4811 = vadd.f32 %v4662, %v4803
        %v4812 = vadd.f32 %v4663, %v4805
        %v4813 = vadd.f32 %v4664, %v4808
        %v4815 = vperm.slane %v4054, 0
        %v4817 = vadd.f32 %v4811, %v4815
        %v4818 = vadd.f32 %v4812, %v4815
        %v4819 = vadd.f32 %v4813, %v4815
        %v4820 = vadd.f32 %v4021, %v4817
        %v4821 = vadd.f32 %v4022, %v4818
        %v4822 = vadd.f32 %v4023, %v4819
        %s4823 = scalar_lea.vmem [#allocation26], 4
        %v4824 = vld [vmem:[%s4823] sm:$0x1]
        %s4825 = scalar_lea.vmem [#allocation28], 4
        %v4826 = vld [vmem:[%s4825] sm:$0x1]
        %v4827 = vsel %vm1124, %v4820, 0.0
        %4828 = vadd.xlane.f32.xlu0 %v4827
        %v4829 = vpop.xlane.xlu0 %4828
        %v4830 = vsel %vm1124, %v4821, 0.0
        %4831 = vadd.xlane.f32.xlu0 %v4830
        %v4832 = vpop.xlane.xlu0 %4831
        %v4833 = vsel %vm1124, %v4822, 0.0
        %4834 = vadd.xlane.f32.xlu0 %v4833
        %v4835 = vpop.xlane.xlu0 %4834
        %v4836 = vmul.f32 %v4829, %v1831
        %v4837 = vmul.f32 %v4832, %v1831
        %v4838 = vmul.f32 %v4835, %v1831
        %v4839 = vsub.f32 %v4820, %v4836
        %v4840 = vsub.f32 %v4821, %v4837
        %v4841 = vsub.f32 %v4822, %v4838
        %v4842 = vmul.f32 %v4839, %v4839
        %v4843 = vmul.f32 %v4840, %v4840
        %v4844 = vmul.f32 %v4841, %v4841
        %v4845 = vsel %vm1124, %v4842, 0.0
        %4846 = vadd.xlane.f32.xlu0 %v4845
        %v4847 = vpop.xlane.xlu0 %4846
        %v4848 = vsel %vm1124, %v4843, 0.0
        %4849 = vadd.xlane.f32.xlu0 %v4848
        %v4850 = vpop.xlane.xlu0 %4849
        %v4851 = vsel %vm1124, %v4844, 0.0
        %4852 = vadd.xlane.f32.xlu0 %v4851
        %v4853 = vpop.xlane.xlu0 %4852
        %v4854 = vmul.f32 %v4847, %v1831
        %v4855 = vmul.f32 %v4850, %v1831
        %v4856 = vmul.f32 %v4853, %v1831
        %v4857 = vadd.f32 %v4854, 1e-05
        %v4858 = vadd.f32 %v4855, 1e-05
        %v4859 = vadd.f32 %v4856, 1e-05
        %v4860 = vrsqrt.pop %v4857
        %v4861 = vmul.f32 %v4860, %v4857
        %v4862 = vmul.f32 %v4861, %v4860
        %v4863 = vmul.f32 0.5, %v4862
        %v4864 = vsub.f32 1.5, %v4863
        %v4865 = vmul.f32 %v4860, %v4864
        %vm4866 = vweird.f32 %v4857
        %vm4867 = vweird.f32 %v4860
        %vm4868 = vmor %vm4866, %vm4867
        %v4869 = vsel %vm4868, %v4860, %v4865
        %v4870 = vrsqrt.pop %v4858
        %v4871 = vmul.f32 %v4870, %v4858
        %v4872 = vmul.f32 %v4871, %v4870
        %v4873 = vmul.f32 0.5, %v4872
        %v4874 = vsub.f32 1.5, %v4873
        %v4875 = vmul.f32 %v4870, %v4874
        %vm4876 = vweird.f32 %v4858
        %vm4877 = vweird.f32 %v4870
        %vm4878 = vmor %vm4876, %vm4877
        %v4879 = vsel %vm4878, %v4870, %v4875
        %v4880 = vrsqrt.pop %v4859
        %v4881 = vmul.f32 %v4880, %v4859
        %v4882 = vmul.f32 %v4881, %v4880
        %v4883 = vmul.f32 0.5, %v4882
        %v4884 = vsub.f32 1.5, %v4883
        %v4885 = vmul.f32 %v4880, %v4884
        %vm4886 = vweird.f32 %v4859
        %vm4887 = vweird.f32 %v4880
        %vm4888 = vmor %vm4886, %vm4887
        %v4889 = vsel %vm4888, %v4880, %v4885
        %v4890 = vmul.f32 %v4839, %v4869
        %v4891 = vmul.f32 %v4840, %v4879
        %v4892 = vmul.f32 %v4841, %v4889
        %v4894 = vperm.slane %v4824, 0
        %v4896 = vmul.f32 %v4890, %v4894
        %v4897 = vmul.f32 %v4891, %v4894
        %v4898 = vmul.f32 %v4892, %v4894
        %v4900 = vperm.slane %v4826, 0
        %v4902 = vadd.f32 %v4896, %v4900
        %v4903 = vadd.f32 %v4897, %v4900
        %v4904 = vadd.f32 %v4898, %v4900
        %v4905 = vadd.f32 %v4902, %v4902
        %v4906 = vadd.f32 %v4903, %v4903
        %v4907 = vadd.f32 %v4904, %v4904
        %s4908 = scalar_lea.vmem [#allocation26], 5
        %v4909 = vld [vmem:[%s4908] sm:$0x1]
        %s4910 = scalar_lea.vmem [#allocation28], 5
        %v4911 = vld [vmem:[%s4910] sm:$0x1]
        %v4912 = vsel %vm1124, %v4905, 0.0
        %4913 = vadd.xlane.f32.xlu0 %v4912
        %v4914 = vpop.xlane.xlu0 %4913
        %v4915 = vsel %vm1124, %v4906, 0.0
        %4916 = vadd.xlane.f32.xlu0 %v4915
        %v4917 = vpop.xlane.xlu0 %4916
        %v4918 = vsel %vm1124, %v4907, 0.0
        %4919 = vadd.xlane.f32.xlu0 %v4918
        %v4920 = vpop.xlane.xlu0 %4919
        %v4921 = vmul.f32 %v4914, %v1831
        %v4922 = vmul.f32 %v4917, %v1831
        %v4923 = vmul.f32 %v4920, %v1831
        %v4924 = vsub.f32 %v4905, %v4921
        %v4925 = vsub.f32 %v4906, %v4922
        %v4926 = vsub.f32 %v4907, %v4923
        %v4927 = vmul.f32 %v4924, %v4924
        %v4928 = vmul.f32 %v4925, %v4925
        %v4929 = vmul.f32 %v4926, %v4926
        %v4930 = vsel %vm1124, %v4927, 0.0
        %4931 = vadd.xlane.f32.xlu0 %v4930
        %v4932 = vpop.xlane.xlu0 %4931
        %v4933 = vsel %vm1124, %v4928, 0.0
        %4934 = vadd.xlane.f32.xlu0 %v4933
        %v4935 = vpop.xlane.xlu0 %4934
        %v4936 = vsel %vm1124, %v4929, 0.0
        %4937 = vadd.xlane.f32.xlu0 %v4936
        %v4938 = vpop.xlane.xlu0 %4937
        %v4939 = vmul.f32 %v4932, %v1831
        %v4940 = vmul.f32 %v4935, %v1831
        %v4941 = vmul.f32 %v4938, %v1831
        %v4942 = vadd.f32 %v4939, 1e-05
        %v4943 = vadd.f32 %v4940, 1e-05
        %v4944 = vadd.f32 %v4941, 1e-05
        %v4945 = vrsqrt.pop %v4942
        %v4946 = vmul.f32 %v4945, %v4942
        %v4947 = vmul.f32 %v4946, %v4945
        %v4948 = vmul.f32 0.5, %v4947
        %v4949 = vsub.f32 1.5, %v4948
        %v4950 = vmul.f32 %v4945, %v4949
        %vm4951 = vweird.f32 %v4942
        %vm4952 = vweird.f32 %v4945
        %vm4953 = vmor %vm4951, %vm4952
        %v4954 = vsel %vm4953, %v4945, %v4950
        %v4955 = vrsqrt.pop %v4943
        %v4956 = vmul.f32 %v4955, %v4943
        %v4957 = vmul.f32 %v4956, %v4955
        %v4958 = vmul.f32 0.5, %v4957
        %v4959 = vsub.f32 1.5, %v4958
        %v4960 = vmul.f32 %v4955, %v4959
        %vm4961 = vweird.f32 %v4943
        %vm4962 = vweird.f32 %v4955
        %vm4963 = vmor %vm4961, %vm4962
        %v4964 = vsel %vm4963, %v4955, %v4960
        %v4965 = vrsqrt.pop %v4944
        %v4966 = vmul.f32 %v4965, %v4944
        %v4967 = vmul.f32 %v4966, %v4965
        %v4968 = vmul.f32 0.5, %v4967
        %v4969 = vsub.f32 1.5, %v4968
        %v4970 = vmul.f32 %v4965, %v4969
        %vm4971 = vweird.f32 %v4944
        %vm4972 = vweird.f32 %v4965
        %vm4973 = vmor %vm4971, %vm4972
        %v4974 = vsel %vm4973, %v4965, %v4970
        %v4975 = vmul.f32 %v4924, %v4954
        %v4976 = vmul.f32 %v4925, %v4964
        %v4977 = vmul.f32 %v4926, %v4974
        %v4979 = vperm.slane %v4909, 0
        %v4981 = vmul.f32 %v4975, %v4979
        %v4982 = vmul.f32 %v4976, %v4979
        %v4983 = vmul.f32 %v4977, %v4979
        %v4985 = vperm.slane %v4911, 0
        %v4987 = vadd.f32 %v4981, %v4985
        %v4988 = vadd.f32 %v4982, %v4985
        %v4989 = vadd.f32 %v4983, %v4985
        %4990 = vst.msk [vmem:[%s1052] sm:$0xff] %vm1124, %v4987
        %4991 = vst.msk [vmem:[%s1052 + $0x8] sm:$0xff] %vm1124, %v4988
        %4992 = vst.msk [vmem:[%s1052 + $0x10] sm:$0xff] %vm1124, %v4989
        %v4993 = vpack.c.bf16 %v4988, %v4987
        %v4994 = vpack.c.bf16 %v4989, %v4989
        %v4995 = vld [vmem:[%s21] sm:$0xf]
        %v4996 = vld [vmem:[%s21 + $0x4] sm:$0xf]
        %v4997 = vld [vmem:[%s21 + $0x8] sm:$0xf]
        %v4998 = vld [vmem:[%s21 + $0xc] sm:$0xf]
        %v4999 = vld [vmem:[#allocation29] sm:$0x1]
        %v5001 = vperm.slane %v4999, 0
        %v5007 = vunpack.c.l.b16 %v4995
        %v5008 = vunpack.c.l.b16 %v4996
        %v5009 = vunpack.c.l.b16 %v4997
        %v5010 = vunpack.c.l.b16 %v4998
        %v5011 = vpack.c.b16 %v5008, %v5007
        %v5012 = vpack.c.b16 %v5010, %v5009
        %v5016 = vsel %vm1124, %v4993, 0
        %v5019 = vsel %vm1124, %v4994, 0
        %5021 = vmatpush.bf16.msra.mxu0 0
        %5022 = vmatpush.bf16.msra.mxu0 0
        %5023 = vmatpush.bf16.msra.mxu0 0
        %5024 = vmatpush.bf16.msra.mxu0 0
        %5025 = vmatpush.bf16.msra.mxu0 0
        %5026 = vmatpush.bf16.msra.mxu0 0
        %5027 = vmatpush.bf16.msra.mxu0 %v5012
        %5028 = vmatpush.bf16.msra.mxu0 %v5011
        %5029 = vmatmul.bf16.gmra.mxu0 %v5016
        %v5030 = vpop.f32.mrf.mxu0
        %v5031 = vadd.f32 %v5001, %v5030
        %v5032 = vpop.f32.mrf.mxu0
        %v5033 = vadd.f32 %v5001, %v5032
        %5034 = vmatmul.bf16.gmra.mxu0 %v5019
        %v5035 = vpop.f32.mrf.mxu0
        %v5036 = vadd.f32 %v5001, %v5035
        %v5037 = vpop.f32.mrf.mxu0
        %5038 = vdwg.mxu0
        %vm5039 = vcmask 130048
        %5040 = vst.msk [vmem:[%s1069] sm:$0xff] %vm5039, %v5031
        %5041 = vst.msk [vmem:[%s1069 + $0x8] sm:$0xff] %vm5039, %v5033
        %5042 = vst.msk [vmem:[%s1069 + $0x10] sm:$0xff] %vm5039, %v5036
        %s5043 = sand.u32 %s552, 1
        %s5044 = scalar_lea.sflag [#allocation4], %s5043
        %s5045 = sand.u32 %s552, 1
        %s5046 = smul.addr %s5045, 24
        %s5047 = scalar_lea.vmem [#allocation31], %s5046
        %p5048 = scmp.lt.s32.totalorder %s51, 1
        %s5049 = scalar_select %p5048, %s51, 1
        %s5050 = smul.addr %s5049, 3
        %s5051 = smul.addr %s5050, 8
        %s5052 = scalar_lea.vmem %s24, %s5051
        // Predicated region
        $region185: #{decoder_layer_forward.1} parent=111 // pred_check
          %p5053 = pneg %p562
        $region186: #{decoder_layer_forward.1} parent=111 // pred_check_branch
          %5055 = sbr.rel (%p5053) target = $region188
        $region187: #{decoder_layer_forward.1} parent=111 // pred_region
          %5057 = vsyncadd %s5044, 0
          %s5058 = smul.addr %s51, 3
          %s5059 = smul.addr %s5058, 8
          %s5060 = scalar_lea.hbm %s23, %s5059
          %s5061 = sshll.u32 %s5047, 4
          %s5062 = int_to_ptr.vmem [resolvable:$true] %s5061
          %s5063 = sshll.u32 %s5060, 4
          %s5064 = int_to_ptr.hbm [resolvable:$true] %s5063
          %5069 = dma.vmem_to_hbm [thread:$0]  %s5062, 384, %s5064, %s5044, 128, 128, 8
        $region188: #{decoder_layer_forward.1} parent=111 // pred_fallthru
          _
        // Predicated region
        $region189: #{decoder_layer_forward.1} parent=111 // pred_check
          %p5070 = pneg %p588
        $region190: #{decoder_layer_forward.1} parent=111 // pred_check_branch
          %5072 = sbr.rel (%p5070) target = $region192
        $region191: #{decoder_layer_forward.1} parent=111 // pred_region
          _
        $region192: #{decoder_layer_forward.1} parent=111 // pred_fallthru
          _
      $region112: #{decoder_layer_forward.1} parent=5 // pred_fallthru
        _
      %p5073 = scmp.le.s32.totalorder 2, %s46
      // Predicated region
      $region193: #{decoder_layer_forward.1} parent=5 // pred_check
        %p5074 = pneg %p5073
      $region194: #{decoder_layer_forward.1} parent=5 // pred_check_branch
        %5076 = sbr.rel (%p5074) target = $region196
      $region195: #{decoder_layer_forward.1} parent=5 // pred_region
        %s5077 = ssub.s32 %s46, 2
        // Predicated region
        $region197: #{decoder_layer_forward.1} parent=195 // pred_check
          %p5078 = pneg %p568
        $region198: #{decoder_layer_forward.1} parent=195 // pred_check_branch
          %5080 = sbr.rel (%p5078) target = $region200
        $region199: #{decoder_layer_forward.1} parent=195 // pred_region
          %s5081 = sand.u32 %s553, 1
          %s5082 = scalar_lea.sflag [#allocation4], %s5081
          %s5083 = sand.u32 %s553, 1
          %s5084 = smul.addr %s5083, 24
          %s5085 = scalar_lea.vmem [#allocation31], %s5084
          %5087 = dma.done %s5082, 384
        $region200: #{decoder_layer_forward.1} parent=195 // pred_fallthru
          _
        // Predicated region
        $region201: #{decoder_layer_forward.1} parent=195 // pred_check
          %p5088 = pneg %p594
        $region202: #{decoder_layer_forward.1} parent=195 // pred_check_branch
          %5090 = sbr.rel (%p5088) target = $region204
        $region203: #{decoder_layer_forward.1} parent=195 // pred_region
          %p5091 = scmp.lt.s32.totalorder %s52, 1
          %s5092 = scalar_select %p5091, %s52, 1
          %s5093 = smul.addr %s5092, 3
          %s5094 = smul.addr %s5093, 8
          %s5095 = scalar_lea.vmem %s24, %s5094
        $region204: #{decoder_layer_forward.1} parent=195 // pred_fallthru
          _
      $region196: #{decoder_layer_forward.1} parent=5 // pred_fallthru
        _
    $region6: #{decoder_layer_forward.1} parent=1 // loop_footer
      %s50 = sadd.s32 1, %s46
    $region7: #{decoder_layer_forward.1} parent=1 // loop_footer_branch
      %45 = sbr.rel target = $region3
    $region8: #{decoder_layer_forward.1} parent=1 // loop_exit
      _
    %5096 = vsyncpa [#allocation3], 1
    %s5097 = scalar_lea.sflag [#allocation3], 1
    %5098 = vsyncpa %s5097, 1
    %5099 = vsyncpa [#allocation6], 1
    %5100 = vsyncpa [#allocation9], 1
    %5101 = vsyncpa [#allocation12], 1
    %5102 = vsyncpa [#allocation15], 1
    %5103 = vsyncpa [#allocation18], 1
    %5104 = vsyncpa [#allocation21], 1
    %5105 = vsyncpa [#allocation24], 1
    %5106 = vsyncpa [#allocation27], 1
    %5107 = vsyncpa [#allocation30], 1
    %5108 = vsyncpa [#allocation4], 1
    %s5109 = scalar_lea.sflag [#allocation4], 1
    %5110 = vsyncpa %s5109, 1

</llo_original>
